<compile_context>
chip_gen: v5e
topology: v5e:2x2
jax: 0.10.0
libtpu: 0.0.40
codegen_flags: <defaults>
</compile_context>

<pallas_src>
import math
import jax
import jax.numpy as jnp
from jax import lax
from jax.experimental import pallas as pl
from jax.experimental.pallas import tpu as pltpu

# ----------------------------- configuration -----------------------------
B, C, S, H, W = 2, 3, 4, 16, 16     # frame_sequence: [batch, channels, seq, h, w]
PATCH = 8                           # patch size  -> 2x2 = 4 patches, 5 tokens w/ CLS
VDIM, VHEADS, VLAYERS = 32, 4, 2    # visual transformer width / heads / depth
EMBED = 16                          # backbone_dim (shared CLIP embedding dim)
TDIM, THEADS, TLAYERS = 32, 4, 2    # text transformer width / heads / depth
CTX, VOCAB = 8, 64                  # text context length / vocab size
NTEXT = 2                           # number of texts


def _tensorcores_per_chip():
    """2 only on chips where the Pallas grid can be split across TensorCores."""
    try:
        kind = jax.devices()[0].device_kind.lower()
    except Exception:
        return 1
    if 'v7' in kind or '7x' in kind or 'v5p' in kind or 'v4' in kind:
        return 2
    return 1          # v5e / v6e: single TensorCore -> never split the batch


NUM_TC = _tensorcores_per_chip()


# ----------------------------- patch embedding -----------------------------
def _patch_embed_kernel(x_ref, w_ref, o_ref):
    o_ref[...] = jnp.dot(x_ref[...], w_ref[...],
                         preferred_element_type=jnp.float32).astype(o_ref.dtype)


def pallas_patch_embed(patches, w):
    """(M,K) @ (K,N) -> (M,N) bf16; bf16 MXU operands, bf16 HBM handoff."""
    M = patches.shape[0]
    N = w.shape[1]
    return pl.pallas_call(
        _patch_embed_kernel,
        out_shape=jax.ShapeDtypeStruct((M, N), jnp.bfloat16),
    )(patches.astype(jnp.bfloat16), w.astype(jnp.bfloat16))


# ----------------------------- fused transformer tower -----------------------------
_STACK_NAMES = ('ln1_g', 'ln1_b', 'in_w', 'in_b', 'out_w', 'out_b',
                'ln2_g', 'ln2_b', 'fc_w', 'fc_b', 'proj_w', 'proj_b')


def fused_clip_tower(x, stack, *, heads, n_tokens, mask, rows,
                     final_g, final_b, final_w, pre_ln=None):
    """All residual attention blocks + final LN + projection of one CLIP tower
    in a single pallas_call.

    x       : (BS*T, D) bf16 token embeddings (residual stream input).
    stack   : dict of per-layer-stacked params (weights bf16, LN/bias f32).
    mask    : (T, T) additive attention mask (causal for text, key-padding for visual).
    rows    : (BS,) int32 pooled-token index per sequence (0 = CLS, argmax = EOT),
              scalar-prefetched into SMEM.
    final_* : post-tower LayerNorm gamma/beta and projection weight (fused epilogue).
    pre_ln  : optional (gamma, beta) applied once before layer 0 (visual ln_pre).
    Returns (BS, E) f32 pooled + projected features.
    """
    M, D = x.shape
    T = n_tokens
    BS = M // T
    assert BS * T == M
    L = stack['in_w'].shape[0]
    hd = D // heads
    scale = 1.0 / math.sqrt(hd)
    E = final_w.shape[1]
    use_pre = pre_ln is not None

    # Split the batch over the leading "parallel" grid axis only when the chip
    # actually has 2 TensorCores; on v5e/v6e that axis would be a serial loop
    # that shrinks MXU tiles and re-streams every layer's weights.
    P = NUM_TC if (NUM_TC > 1 and BS % NUM_TC == 0) else 1
    BSb = BS // P
    Mb = BSb * T

    def kernel(*refs):
        refs = list(refs)
        rows_ref = refs[0]            # SMEM (BS,) int32 pooled-token indices
        res = refs[-1]                # VMEM scratch (Mb, D) f32 residual stream
        feat_ref = refs[-2]           # output block (1, BSb, E) f32
        it = iter(refs[1:-2])
        x_ref = next(it)
        if use_pre:
            pg_ref = next(it)
            pb_ref = next(it)
        w = {n: next(it) for n in _STACK_NAMES}
        m_ref = next(it)
        fg_ref = next(it)
        fb_ref = next(it)
        fw_ref = next(it)

        p = pl.program_id(0)
        l = pl.program_id(1)

        def ln(v, g, b):              # f32 statistics
            mu = jnp.mean(v, axis=-1, keepdims=True)
            var = jnp.mean(jnp.square(v - mu), axis=-1, keepdims=True)
            return (v - mu) * lax.rsqrt(var + 1e-5) * g + b

        @pl.when(l == 0)
        def _init():                  # load input (and apply ln_pre) once per batch block
            x0 = x_ref[0].astype(jnp.float32)
            if use_pre:
                x0 = ln(x0, pg_ref[...], pb_ref[...])
            res[...] = x0

        xr = res[...]                 # (Mb, D) f32 residual stream

        # ---------------- multi-head self-attention ----------------
        y = ln(xr, w['ln1_g'][0], w['ln1_b'][0])
        qkv = jnp.dot(y.astype(jnp.bfloat16), w['in_w'][0],
                      preferred_element_type=jnp.float32) + w['in_b'][0]    # (Mb, 3D)
        qkv = qkv.astype(jnp.bfloat16).reshape(BSb, T, 3 * D)               # one cast
        m_add = m_ref[...][None, :, :]                                      # (1, T, T)

        ctx_heads = []
        for h in range(heads):        # static unroll over heads only; batched over BSb
            c0 = h * hd
            q = qkv[:, :, c0:c0 + hd]
            k = qkv[:, :, D + c0:D + c0 + hd]
            v = qkv[:, :, 2 * D + c0:2 * D + c0 + hd]
            s = jnp.einsum('bqd,bkd->bqk', q, k,
                           preferred_element_type=jnp.float32) * scale + m_add
            s = s - jnp.max(s, axis=-1, keepdims=True)
            pr = jnp.exp(s)
            pr = pr * pl.reciprocal(jnp.sum(pr, axis=-1, keepdims=True), approx=True)
            ctx_heads.append(jnp.einsum('bqk,bkd->bqd', pr.astype(jnp.bfloat16), v,
                                        preferred_element_type=jnp.float32))
        # concatenate head outputs -> ONE (Mb, D) @ (D, D) output projection
        ctx = jnp.concatenate(ctx_heads, axis=-1).reshape(Mb, D)
        xr = xr + jnp.dot(ctx.astype(jnp.bfloat16), w['out_w'][0],
                          preferred_element_type=jnp.float32) + w['out_b'][0]

        # ---------------- MLP with QuickGELU ----------------
        # TODO(synk): at real CLIP widths chunk the 4*D hidden dim with an inner
        # fori_loop to bound live VMEM on v7x (64 MiB); unnecessary at toy sizes.
        y = ln(xr, w['ln2_g'][0], w['ln2_b'][0])
        hmid = jnp.dot(y.astype(jnp.bfloat16), w['fc_w'][0],
                       preferred_element_type=jnp.float32) + w['fc_b'][0]
        hmid = hmid * jax.nn.sigmoid(1.702 * hmid)                          # QuickGELU (f32)
        hout = jnp.dot(hmid.astype(jnp.bfloat16), w['proj_w'][0],
                       preferred_element_type=jnp.float32) + w['proj_b'][0]
        res[...] = xr + hout

        # -------- fused final LayerNorm + projection epilogue (last layer) --------
        @pl.when(l == L - 1)
        def _final():
            picks = []
            for bi in range(BSb):     # pooled token row per sequence (CLS / EOT)
                tok = rows_ref[p * BSb + bi]
                picks.append(res[pl.ds(bi * T + tok, 1), :])
            sel = jnp.concatenate(picks, axis=0)                            # (BSb, D)
            yf = ln(sel, fg_ref[...], fb_ref[...])
            feat_ref[0] = jnp.dot(yf.astype(jnp.bfloat16), fw_ref[...],
                                  preferred_element_type=jnp.float32)

    # ----- operands & specs -----
    inputs = [x.reshape(P, Mb, D)]                                          # bf16 handoff
    in_specs = [pl.BlockSpec((1, Mb, D), lambda p, l, rows: (p, 0, 0))]
    if use_pre:
        g, bta = pre_ln
        inputs += [g.reshape(1, D).astype(jnp.float32),
                   bta.reshape(1, D).astype(jnp.float32)]
        in_specs += [pl.BlockSpec((1, D), lambda p, l, rows: (0, 0)),
                     pl.BlockSpec((1, D), lambda p, l, rows: (0, 0))]
    for name in _STACK_NAMES:         # per-layer stacked weights, indexed by layer axis
        arr = stack[name]
        inputs.append(arr)
        in_specs.append(pl.BlockSpec((1,) + arr.shape[1:], lambda p, l, rows: (l, 0, 0)))
    inputs.append(mask.astype(jnp.float32))
    in_specs.append(pl.BlockSpec((T, T), lambda p, l, rows: (0, 0)))
    inputs += [final_g.reshape(1, D).astype(jnp.float32),
               final_b.reshape(1, D).astype(jnp.float32),
               final_w.astype(jnp.bfloat16)]
    in_specs += [pl.BlockSpec((1, D), lambda p, l, rows: (0, 0)),
                 pl.BlockSpec((1, D), lambda p, l, rows: (0, 0)),
                 pl.BlockSpec((D, E), lambda p, l, rows: (0, 0))]

    grid_spec = pltpu.PrefetchScalarGridSpec(
        num_scalar_prefetch=1,
        grid=(P, L),
        in_specs=in_specs,
        out_specs=pl.BlockSpec((1, BSb, E), lambda p, l, rows: (p, 0, 0)),
        scratch_shapes=[pltpu.VMEM((Mb, D), jnp.float32)],
    )
    feats = pl.pallas_call(
        kernel,
        grid_spec=grid_spec,
        out_shape=jax.ShapeDtypeStruct((P, BSb, E), jnp.float32),
        compiler_params=pltpu.CompilerParams(
            dimension_semantics=("parallel", "arbitrary"),
            # explicit VMEM budget: safe on every chip incl. v7x's 64 MiB physical
            vmem_limit_bytes=32 * 1024 * 1024),
    )(rows.astype(jnp.int32), *inputs)
    return feats.reshape(BS, E)


# ----------------------------- model (glue + kernels) -----------------------------
def visual_forward(params, x):
    """CLIP VisionTransformer. x: (BS, C, H, W) -> (BS, EMBED)."""
    BS = x.shape[0]
    Hp, Wp = H // PATCH, W // PATCH
    # conv1 (kernel==stride==PATCH, no bias) as im2col + Pallas matmul
    # TODO(synk): with real pretrained weights the (c, ph, pw) flatten order must
    # match PyTorch Conv2d's weight layout; untested with synthetic params.
    patches = x.reshape(BS, C, Hp, PATCH, Wp, PATCH)
    patches = patches.transpose(0, 2, 4, 1, 3, 5).reshape(BS * Hp * Wp, C * PATCH * PATCH)
    emb = pallas_patch_embed(patches, params['conv_w']).astype(jnp.float32)
    emb = emb.reshape(BS, Hp * Wp, VDIM)

    cls = jnp.broadcast_to(params['cls'].reshape(1, 1, VDIM), (BS, 1, VDIM))
    xt = jnp.concatenate([cls, emb], axis=1) + params['pos'][None]   # (BS, T_real, VDIM)
    T_real = xt.shape[1]
    T_pad = ((T_real + 7) // 8) * 8                                  # sublane-align tokens
    xt = jnp.pad(xt, ((0, 0), (0, T_pad - T_real), (0, 0)))

    # key-padding mask: real queries never attend to padded key columns
    col = jnp.arange(T_pad)
    mask = jnp.broadcast_to(
        jnp.where(col[None, :] >= T_real, -1e9, 0.0).astype(jnp.float32),
        (T_pad, T_pad))

    rows = jnp.zeros((BS,), jnp.int32)                               # CLS token = row 0
    return fused_clip_tower(
        xt.reshape(BS * T_pad, VDIM).astype(jnp.bfloat16),
        params['v_stack'], heads=VHEADS, n_tokens=T_pad, mask=mask, rows=rows,
        final_g=params['ln_post_g'], final_b=params['ln_post_b'],
        final_w=params['proj'],
        pre_ln=(params['ln_pre_g'], params['ln_pre_b']))             # (BS, EMBED)


def text_forward(params, tokens):
    """CLIP encode_text. tokens: (Nt, CTX) int32 -> (Nt, EMBED)."""
    Nt = tokens.shape[0]
    x = jnp.take(params['tok_emb'], tokens, axis=0) + params['tpos'][None]  # (Nt, CTX, TDIM)
    causal = jnp.triu(jnp.full((CTX, CTX), -1e9, jnp.float32), k=1)
    rows = jnp.argmax(tokens, axis=-1).astype(jnp.int32)             # EOT = highest token id
    return fused_clip_tower(
        x.reshape(Nt * CTX, TDIM).astype(jnp.bfloat16),
        params['t_stack'], heads=THEADS, n_tokens=CTX, mask=causal, rows=rows,
        final_g=params['ln_final_g'], final_b=params['ln_final_b'],
        final_w=params['text_proj'])                                 # (Nt, EMBED)


def clip_backbone_forward(params, frame_sequence, text_tokens):
    """frame_sequence: [b,c,s,h,w] -> ([b,s,backbone_dim], [n_text,backbone_dim])."""
    b, c, s, h, w = frame_sequence.shape
    x = frame_sequence.transpose(0, 2, 1, 3, 4).reshape(b * s, c, h, w)  # 'b c s h w -> (b s) c h w'
    img = visual_forward(params, x).astype(jnp.float32)
    img = img.reshape(b, s, -1)                                          # '(b s) d -> b s d'
    txt = text_forward(params, text_tokens)
    return img, txt


# ----------------------------- deterministic init -----------------------------
def init_params(key):
    keys = iter(jax.random.split(key, 64))

    def nrm(shape, scale=0.02):
        return scale * jax.random.normal(next(keys), shape, jnp.float32)

    def stacked_blocks(D, L):
        blocks = []
        for _ in range(L):
            blocks.append(dict(
                ln1_g=jnp.ones((1, D), jnp.float32), ln1_b=jnp.zeros((1, D), jnp.float32),
                in_w=nrm((D, 3 * D)).astype(jnp.bfloat16),
                in_b=jnp.zeros((1, 3 * D), jnp.float32),
                out_w=nrm((D, D)).astype(jnp.bfloat16),
                out_b=jnp.zeros((1, D), jnp.float32),
                ln2_g=jnp.ones((1, D), jnp.float32), ln2_b=jnp.zeros((1, D), jnp.float32),
                fc_w=nrm((D, 4 * D)).astype(jnp.bfloat16),
                fc_b=jnp.zeros((1, 4 * D), jnp.float32),
                proj_w=nrm((4 * D, D)).astype(jnp.bfloat16),
                proj_b=jnp.zeros((1, D), jnp.float32),
            ))
        return {k: jnp.stack([blk[k] for blk in blocks], axis=0) for k in blocks[0]}

    n_tokens = 1 + (H // PATCH) * (W // PATCH)
    return dict(
        # visual
        conv_w=nrm((C * PATCH * PATCH, VDIM)).astype(jnp.bfloat16),
        cls=nrm((VDIM,)),
        pos=nrm((n_tokens, VDIM)),
        ln_pre_g=jnp.ones((VDIM,), jnp.float32), ln_pre_b=jnp.zeros((VDIM,), jnp.float32),
        v_stack=stacked_blocks(VDIM, VLAYERS),
        ln_post_g=jnp.ones((VDIM,), jnp.float32), ln_post_b=jnp.zeros((VDIM,), jnp.float32),
        proj=nrm((VDIM, EMBED)).astype(jnp.bfloat16),
        # text
        tok_emb=nrm((VOCAB, TDIM)),
        tpos=nrm((CTX, TDIM)),
        t_stack=stacked_blocks(TDIM, TLAYERS),
        ln_final_g=jnp.ones((TDIM,), jnp.float32), ln_final_b=jnp.zeros((TDIM,), jnp.float32),
        text_proj=nrm((TDIM, EMBED)).astype(jnp.bfloat16),
    )


# ----------------------------- main -----------------------------
if __name__ == "__main__":
    key = jax.random.PRNGKey(0)
    pkey, fkey, tkey = jax.random.split(key, 3)

    params = init_params(pkey)
    frames = jax.random.normal(fkey, (B, C, S, H, W), jnp.float32)
    tokens = jax.random.randint(tkey, (NTEXT, CTX), 1, VOCAB - 1, dtype=jnp.int32)
    tokens = tokens.at[:, 0].set(1).at[:, -1].set(VOCAB - 1)   # SOT ... EOT (max id)

    img_feats, txt_feats = jax.jit(clip_backbone_forward)(params, frames, tokens)
    jax.block_until_ready((img_feats, txt_feats))

    assert img_feats.shape == (B, S, EMBED), img_feats.shape
    assert txt_feats.shape == (NTEXT, EMBED), txt_feats.shape
    assert img_feats.dtype == jnp.float32 and txt_feats.dtype == jnp.float32
    print("KERNEL_OK")
</pallas_src>

<mosaic_0001>
module attributes {stable_mosaic.version = 11 : i64} {
  func.func @_patch_embed_kernel(%arg0: memref<32x192xbf16, #tpu.memory_space<vmem>>, %arg1: memref<192x32xbf16, #tpu.memory_space<vmem>>, %arg2: memref<32x32xbf16, #tpu.memory_space<vmem>>) attributes {dimension_semantics = [], scalar_prefetch = 0 : i64, scratch_operands = 0 : i64, tpu.core_type = #tpu.core_type<tc>} {
    %c0 = arith.constant 0 : index
    %c0_0 = arith.constant 0 : index
    %0 = vector.load %arg0[%c0, %c0_0] : memref<32x192xbf16, #tpu.memory_space<vmem>>, vector<32x192xbf16>
    %c0_1 = arith.constant 0 : index
    %c0_2 = arith.constant 0 : index
    %1 = vector.load %arg1[%c0_1, %c0_2] : memref<192x32xbf16, #tpu.memory_space<vmem>>, vector<192x32xbf16>
    %cst = arith.constant dense<0.000000e+00> : vector<32x32xf32>
    %2 = tpu.matmul %0, %1, %cst {dimension_numbers = #tpu.dot_dimension_numbers<[1], [0], [0], [1], [0, 0, 1, 1], [], []>} : vector<32x192xbf16>, vector<192x32xbf16>, vector<32x32xf32> -> vector<32x32xf32>
    %3 = arith.truncf %2 : vector<32x32xf32> to vector<32x32xbf16>
    %c0_3 = arith.constant 0 : index
    %c0_4 = arith.constant 0 : index
    %4 = vector.load %arg2[%c0_3, %c0_4] : memref<32x32xbf16, #tpu.memory_space<vmem>>, vector<32x32xbf16>
    tpu.vector_store %arg2[%c0_3, %c0_4], %3 {strides = array<i32>} : memref<32x32xbf16, #tpu.memory_space<vmem>>, vector<32x32xbf16>,
    return
  }
}

module attributes {stable_mosaic.version = 11 : i64} {
  func.func @kernel(%arg0: i32, %arg1: i32, %arg2: memref<8xi32, #tpu.memory_space<smem>>, %arg3: memref<1x64x32xbf16, #tpu.memory_space<vmem>>, %arg4: memref<1x32xf32, #tpu.memory_space<vmem>>, %arg5: memref<1x32xf32, #tpu.memory_space<vmem>>, %arg6: memref<1x1x32xf32, #tpu.memory_space<vmem>>, %arg7: memref<1x1x32xf32, #tpu.memory_space<vmem>>, %arg8: memref<1x32x96xbf16, #tpu.memory_space<vmem>>, %arg9: memref<1x1x96xf32, #tpu.memory_space<vmem>>, %arg10: memref<1x32x32xbf16, #tpu.memory_space<vmem>>, %arg11: memref<1x1x32xf32, #tpu.memory_space<vmem>>, %arg12: memref<1x1x32xf32, #tpu.memory_space<vmem>>, %arg13: memref<1x1x32xf32, #tpu.memory_space<vmem>>, %arg14: memref<1x32x128xbf16, #tpu.memory_space<vmem>>, %arg15: memref<1x1x128xf32, #tpu.memory_space<vmem>>, %arg16: memref<1x128x32xbf16, #tpu.memory_space<vmem>>, %arg17: memref<1x1x32xf32, #tpu.memory_space<vmem>>, %arg18: memref<8x8xf32, #tpu.memory_space<vmem>>, %arg19: memref<1x32xf32, #tpu.memory_space<vmem>>, %arg20: memref<1x32xf32, #tpu.memory_space<vmem>>, %arg21: memref<32x16xbf16, #tpu.memory_space<vmem>>, %arg22: memref<1x8x16xf32, #tpu.memory_space<vmem>>, %arg23: memref<64x32xf32, #tpu.memory_space<vmem>>) attributes {dimension_semantics = [#tpu.dimension_semantics<parallel>, #tpu.dimension_semantics<arbitrary>], iteration_bounds = array<i64: 1, 2>, scalar_prefetch = 1 : i64, scratch_operands = 1 : i64, tpu.core_type = #tpu.core_type<tc>, window_params = [{transform_indices = @transform_0, window_bounds = array<i64: 1, 64, 32>}, {pipeline_mode = #tpu.pipeline_mode<synchronous>, transform_indices = @transform_1, window_bounds = array<i64: 1, 32>}, {pipeline_mode = #tpu.pipeline_mode<synchronous>, transform_indices = @transform_2, window_bounds = array<i64: 1, 32>}, {transform_indices = @transform_3, window_bounds = array<i64: 1, 1, 32>}, {transform_indices = @transform_4, window_bounds = array<i64: 1, 1, 32>}, {transform_indices = @transform_5, window_bounds = array<i64: 1, 32, 96>}, {transform_indices = @transform_6, window_bounds = array<i64: 1, 1, 96>}, {transform_indices = @transform_7, window_bounds = array<i64: 1, 32, 32>}, {transform_indices = @transform_8, window_bounds = array<i64: 1, 1, 32>}, {transform_indices = @transform_9, window_bounds = array<i64: 1, 1, 32>}, {transform_indices = @transform_10, window_bounds = array<i64: 1, 1, 32>}, {transform_indices = @transform_11, window_bounds = array<i64: 1, 32, 128>}, {transform_indices = @transform_12, window_bounds = array<i64: 1, 1, 128>}, {transform_indices = @transform_13, window_bounds = array<i64: 1, 128, 32>}, {transform_indices = @transform_14, window_bounds = array<i64: 1, 1, 32>}, {pipeline_mode = #tpu.pipeline_mode<synchronous>, transform_indices = @transform_15, window_bounds = array<i64: 8, 8>}, {pipeline_mode = #tpu.pipeline_mode<synchronous>, transform_indices = @transform_16, window_bounds = array<i64: 1, 32>}, {pipeline_mode = #tpu.pipeline_mode<synchronous>, transform_indices = @transform_17, window_bounds = array<i64: 1, 32>}, {pipeline_mode = #tpu.pipeline_mode<synchronous>, transform_indices = @transform_18, window_bounds = array<i64: 32, 16>}, {transform_indices = @transform_19, window_bounds = array<i64: 1, 8, 16>}]} {
    %c0_i32 = arith.constant 0 : i32
    %0 = arith.cmpi eq, %arg1, %c0_i32 : i32
    %1 = arith.extui %0 : i1 to i32
    %c0_i32_0 = arith.constant 0 : i32
    %2 = arith.cmpi ne, %1, %c0_i32_0 : i32
    scf.if %2 {
      %c0_78 = arith.constant 0 : index
      %c0_79 = arith.constant 0 : index
      %c0_80 = arith.constant 0 : index
      %188 = vector.load %arg3[%c0_78, %c0_79, %c0_80] : memref<1x64x32xbf16, #tpu.memory_space<vmem>>, vector<1x64x32xbf16>
      %189 = vector.shape_cast %188 : vector<1x64x32xbf16> to vector<64x32xbf16>
      %190 = arith.extf %189 : vector<64x32xbf16> to vector<64x32xf32>
      %c0_81 = arith.constant 0 : index
      %c0_82 = arith.constant 0 : index
      %191 = vector.load %arg4[%c0_81, %c0_82] : memref<1x32xf32, #tpu.memory_space<vmem>>, vector<1x32xf32>
      %c0_83 = arith.constant 0 : index
      %c0_84 = arith.constant 0 : index
      %192 = vector.load %arg5[%c0_83, %c0_84] : memref<1x32xf32, #tpu.memory_space<vmem>>, vector<1x32xf32>
      %cst_85 = arith.constant dense<0.000000e+00> : vector<64xf32>
      %193 = vector.multi_reduction <add>, %190, %cst_85 [1] : vector<64x32xf32> to vector<64xf32>
      %194 = vector.shape_cast %193 : vector<64xf32> to vector<64x1xf32>
      %cst_86 = arith.constant 3.200000e+01 : f32
      %195 = vector.broadcast %cst_86 : f32 to vector<64x1xf32>
      %196 = arith.divf %194, %195 : vector<64x1xf32>
      %197 = vector.broadcast %196 : vector<64x1xf32> to vector<64x32xf32>
      %198 = arith.subf %190, %197 : vector<64x32xf32>
      %199 = arith.mulf %198, %198 : vector<64x32xf32>
      %cst_87 = arith.constant dense<0.000000e+00> : vector<64xf32>
      %200 = vector.multi_reduction <add>, %199, %cst_87 [1] : vector<64x32xf32> to vector<64xf32>
      %201 = vector.shape_cast %200 : vector<64xf32> to vector<64x1xf32>
      %cst_88 = arith.constant 3.200000e+01 : f32
      %202 = vector.broadcast %cst_88 : f32 to vector<64x1xf32>
      %203 = arith.divf %201, %202 : vector<64x1xf32>
      %204 = vector.broadcast %196 : vector<64x1xf32> to vector<64x32xf32>
      %205 = arith.subf %190, %204 : vector<64x32xf32>
      %cst_89 = arith.constant 9.99999974E-6 : f32
      %206 = vector.broadcast %cst_89 : f32 to vector<64x1xf32>
      %207 = arith.addf %203, %206 : vector<64x1xf32>
      %208 = math.rsqrt %207 : vector<64x1xf32>
      %209 = vector.broadcast %208 : vector<64x1xf32> to vector<64x32xf32>
      %210 = arith.mulf %205, %209 : vector<64x32xf32>
      %211 = vector.broadcast %191 : vector<1x32xf32> to vector<64x32xf32>
      %212 = arith.mulf %210, %211 : vector<64x32xf32>
      %213 = vector.broadcast %192 : vector<1x32xf32> to vector<64x32xf32>
      %214 = arith.addf %212, %213 : vector<64x32xf32>
      %c0_90 = arith.constant 0 : index
      %c0_91 = arith.constant 0 : index
      %215 = vector.load %arg23[%c0_90, %c0_91] : memref<64x32xf32, #tpu.memory_space<vmem>>, vector<64x32xf32>
      tpu.vector_store %arg23[%c0_90, %c0_91], %214 {strides = array<i32>} : memref<64x32xf32, #tpu.memory_space<vmem>>, vector<64x32xf32>,
    } else {
    }
    %c0 = arith.constant 0 : index
    %c0_1 = arith.constant 0 : index
    %3 = vector.load %arg23[%c0, %c0_1] : memref<64x32xf32, #tpu.memory_space<vmem>>, vector<64x32xf32>
    %c0_2 = arith.constant 0 : index
    %c0_3 = arith.constant 0 : index
    %c0_4 = arith.constant 0 : index
    %4 = vector.load %arg6[%c0_2, %c0_3, %c0_4] : memref<1x1x32xf32, #tpu.memory_space<vmem>>, vector<1x1x32xf32>
    %5 = vector.shape_cast %4 : vector<1x1x32xf32> to vector<1x32xf32>
    %c0_5 = arith.constant 0 : index
    %c0_6 = arith.constant 0 : index
    %c0_7 = arith.constant 0 : index
    %6 = vector.load %arg7[%c0_5, %c0_6, %c0_7] : memref<1x1x32xf32, #tpu.memory_space<vmem>>, vector<1x1x32xf32>
    %7 = vector.shape_cast %6 : vector<1x1x32xf32> to vector<1x32xf32>
    %cst = arith.constant dense<0.000000e+00> : vector<64xf32>
    %8 = vector.multi_reduction <add>, %3, %cst [1] : vector<64x32xf32> to vector<64xf32>
    %9 = vector.shape_cast %8 : vector<64xf32> to vector<64x1xf32>
    %cst_8 = arith.constant 3.200000e+01 : f32
    %10 = vector.broadcast %cst_8 : f32 to vector<64x1xf32>
    %11 = arith.divf %9, %10 : vector<64x1xf32>
    %12 = vector.broadcast %11 : vector<64x1xf32> to vector<64x32xf32>
    %13 = arith.subf %3, %12 : vector<64x32xf32>
    %14 = arith.mulf %13, %13 : vector<64x32xf32>
    %cst_9 = arith.constant dense<0.000000e+00> : vector<64xf32>
    %15 = vector.multi_reduction <add>, %14, %cst_9 [1] : vector<64x32xf32> to vector<64xf32>
    %16 = vector.shape_cast %15 : vector<64xf32> to vector<64x1xf32>
    %cst_10 = arith.constant 3.200000e+01 : f32
    %17 = vector.broadcast %cst_10 : f32 to vector<64x1xf32>
    %18 = arith.divf %16, %17 : vector<64x1xf32>
    %19 = vector.broadcast %11 : vector<64x1xf32> to vector<64x32xf32>
    %20 = arith.subf %3, %19 : vector<64x32xf32>
    %cst_11 = arith.constant 9.99999974E-6 : f32
    %21 = vector.broadcast %cst_11 : f32 to vector<64x1xf32>
    %22 = arith.addf %18, %21 : vector<64x1xf32>
    %23 = math.rsqrt %22 : vector<64x1xf32>
    %24 = vector.broadcast %23 : vector<64x1xf32> to vector<64x32xf32>
    %25 = arith.mulf %20, %24 : vector<64x32xf32>
    %26 = vector.broadcast %5 : vector<1x32xf32> to vector<64x32xf32>
    %27 = arith.mulf %25, %26 : vector<64x32xf32>
    %28 = vector.broadcast %7 : vector<1x32xf32> to vector<64x32xf32>
    %29 = arith.addf %27, %28 : vector<64x32xf32>
    %30 = arith.truncf %29 : vector<64x32xf32> to vector<64x32xbf16>
    %c0_12 = arith.constant 0 : index
    %c0_13 = arith.constant 0 : index
    %c0_14 = arith.constant 0 : index
    %31 = vector.load %arg8[%c0_12, %c0_13, %c0_14] : memref<1x32x96xbf16, #tpu.memory_space<vmem>>, vector<1x32x96xbf16>
    %32 = vector.shape_cast %31 : vector<1x32x96xbf16> to vector<32x96xbf16>
    %cst_15 = arith.constant dense<0.000000e+00> : vector<64x96xf32>
    %33 = tpu.matmul %30, %32, %cst_15 {dimension_numbers = #tpu.dot_dimension_numbers<[1], [0], [0], [1], [0, 0, 1, 1], [], []>} : vector<64x32xbf16>, vector<32x96xbf16>, vector<64x96xf32> -> vector<64x96xf32>
    %c0_16 = arith.constant 0 : index
    %c0_17 = arith.constant 0 : index
    %c0_18 = arith.constant 0 : index
    %34 = vector.load %arg9[%c0_16, %c0_17, %c0_18] : memref<1x1x96xf32, #tpu.memory_space<vmem>>, vector<1x1x96xf32>
    %35 = vector.shape_cast %34 : vector<1x1x96xf32> to vector<1x96xf32>
    %36 = vector.broadcast %35 : vector<1x96xf32> to vector<64x96xf32>
    %37 = arith.addf %33, %36 : vector<64x96xf32>
    %38 = arith.truncf %37 : vector<64x96xf32> to vector<64x96xbf16>
    %39 = vector.shape_cast %38 : vector<64x96xbf16> to vector<8x8x96xbf16>
    %c0_19 = arith.constant 0 : index
    %c0_20 = arith.constant 0 : index
    %40 = vector.load %arg18[%c0_19, %c0_20] : memref<8x8xf32, #tpu.memory_space<vmem>>, vector<8x8xf32>
    %41 = vector.shape_cast %40 : vector<8x8xf32> to vector<1x8x8xf32>
    %42 = vector.extract_strided_slice %39 {offsets = [0, 0, 0], sizes = [8, 8, 8], strides = [1, 1, 1]} : vector<8x8x96xbf16> to vector<8x8x8xbf16>
    %43 = vector.extract_strided_slice %39 {offsets = [0, 0, 32], sizes = [8, 8, 8], strides = [1, 1, 1]} : vector<8x8x96xbf16> to vector<8x8x8xbf16>
    %44 = vector.extract_strided_slice %39 {offsets = [0, 0, 64], sizes = [8, 8, 8], strides = [1, 1, 1]} : vector<8x8x96xbf16> to vector<8x8x8xbf16>
    "tpu.trace_start"() <{level = 10 : i32, message = "bqd,bkd->bqk"}> : () -> ()
    %cst_21 = arith.constant dense<0.000000e+00> : vector<8x8x8xf32>
    %45 = tpu.matmul %42, %43, %cst_21 {dimension_numbers = #tpu.dot_dimension_numbers<[2], [2], [1], [1], [0, 0, 0, 1, 1, 1], [0], [0]>} : vector<8x8x8xbf16>, vector<8x8x8xbf16>, vector<8x8x8xf32> -> vector<8x8x8xf32>
    "tpu.trace_stop"() : () -> ()
    %cst_22 = arith.constant 0.353553385 : f32
    %46 = vector.broadcast %cst_22 : f32 to vector<8x8x8xf32>
    %47 = arith.mulf %45, %46 : vector<8x8x8xf32>
    %48 = vector.broadcast %41 : vector<1x8x8xf32> to vector<8x8x8xf32>
    %49 = arith.addf %47, %48 : vector<8x8x8xf32>
    %cst_23 = arith.constant dense<0xFF800000> : vector<8x8xf32>
    %50 = vector.multi_reduction <maximumf>, %49, %cst_23 [2] : vector<8x8x8xf32> to vector<8x8xf32>
    %51 = vector.shape_cast %50 : vector<8x8xf32> to vector<8x8x1xf32>
    %52 = vector.broadcast %51 : vector<8x8x1xf32> to vector<8x8x8xf32>
    %53 = arith.subf %49, %52 : vector<8x8x8xf32>
    %54 = math.exp %53 : vector<8x8x8xf32>
    %cst_24 = arith.constant dense<0.000000e+00> : vector<8x8xf32>
    %55 = vector.multi_reduction <add>, %54, %cst_24 [2] : vector<8x8x8xf32> to vector<8x8xf32>
    %56 = vector.shape_cast %55 : vector<8x8xf32> to vector<8x8x1xf32>
    %57 = tpu.reciprocal %56 {approx = true} : vector<8x8x1xf32> -> vector<8x8x1xf32>
    %58 = vector.broadcast %57 : vector<8x8x1xf32> to vector<8x8x8xf32>
    %59 = arith.mulf %54, %58 : vector<8x8x8xf32>
    %60 = arith.truncf %59 : vector<8x8x8xf32> to vector<8x8x8xbf16>
    "tpu.trace_start"() <{level = 10 : i32, message = "bqk,bkd->bqd"}> : () -> ()
    %cst_25 = arith.constant dense<0.000000e+00> : vector<8x8x8xf32>
    %61 = tpu.matmul %60, %44, %cst_25 {dimension_numbers = #tpu.dot_dimension_numbers<[2], [1], [1], [2], [0, 0, 0, 1, 1, 2], [0], [0]>} : vector<8x8x8xbf16>, vector<8x8x8xbf16>, vector<8x8x8xf32> -> vector<8x8x8xf32>
    "tpu.trace_stop"() : () -> ()
    %62 = vector.extract_strided_slice %39 {offsets = [0, 0, 8], sizes = [8, 8, 8], strides = [1, 1, 1]} : vector<8x8x96xbf16> to vector<8x8x8xbf16>
    %63 = vector.extract_strided_slice %39 {offsets = [0, 0, 40], sizes = [8, 8, 8], strides = [1, 1, 1]} : vector<8x8x96xbf16> to vector<8x8x8xbf16>
    %64 = vector.extract_strided_slice %39 {offsets = [0, 0, 72], sizes = [8, 8, 8], strides = [1, 1, 1]} : vector<8x8x96xbf16> to vector<8x8x8xbf16>
    "tpu.trace_start"() <{level = 10 : i32, message = "bqd,bkd->bqk"}> : () -> ()
    %cst_26 = arith.constant dense<0.000000e+00> : vector<8x8x8xf32>
    %65 = tpu.matmul %62, %63, %cst_26 {dimension_numbers = #tpu.dot_dimension_numbers<[2], [2], [1], [1], [0, 0, 0, 1, 1, 1], [0], [0]>} : vector<8x8x8xbf16>, vector<8x8x8xbf16>, vector<8x8x8xf32> -> vector<8x8x8xf32>
    "tpu.trace_stop"() : () -> ()
    %cst_27 = arith.constant 0.353553385 : f32
    %66 = vector.broadcast %cst_27 : f32 to vector<8x8x8xf32>
    %67 = arith.mulf %65, %66 : vector<8x8x8xf32>
    %68 = vector.broadcast %41 : vector<1x8x8xf32> to vector<8x8x8xf32>
    %69 = arith.addf %67, %68 : vector<8x8x8xf32>
    %cst_28 = arith.constant dense<0xFF800000> : vector<8x8xf32>
    %70 = vector.multi_reduction <maximumf>, %69, %cst_28 [2] : vector<8x8x8xf32> to vector<8x8xf32>
    %71 = vector.shape_cast %70 : vector<8x8xf32> to vector<8x8x1xf32>
    %72 = vector.broadcast %71 : vector<8x8x1xf32> to vector<8x8x8xf32>
    %73 = arith.subf %69, %72 : vector<8x8x8xf32>
    %74 = math.exp %73 : vector<8x8x8xf32>
    %cst_29 = arith.constant dense<0.000000e+00> : vector<8x8xf32>
    %75 = vector.multi_reduction <add>, %74, %cst_29 [2] : vector<8x8x8xf32> to vector<8x8xf32>
    %76 = vector.shape_cast %75 : vector<8x8xf32> to vector<8x8x1xf32>
    %77 = tpu.reciprocal %76 {approx = true} : vector<8x8x1xf32> -> vector<8x8x1xf32>
    %78 = vector.broadcast %77 : vector<8x8x1xf32> to vector<8x8x8xf32>
    %79 = arith.mulf %74, %78 : vector<8x8x8xf32>
    %80 = arith.truncf %79 : vector<8x8x8xf32> to vector<8x8x8xbf16>
    "tpu.trace_start"() <{level = 10 : i32, message = "bqk,bkd->bqd"}> : () -> ()
    %cst_30 = arith.constant dense<0.000000e+00> : vector<8x8x8xf32>
    %81 = tpu.matmul %80, %64, %cst_30 {dimension_numbers = #tpu.dot_dimension_numbers<[2], [1], [1], [2], [0, 0, 0, 1, 1, 2], [0], [0]>} : vector<8x8x8xbf16>, vector<8x8x8xbf16>, vector<8x8x8xf32> -> vector<8x8x8xf32>
    "tpu.trace_stop"() : () -> ()
    %82 = vector.extract_strided_slice %39 {offsets = [0, 0, 16], sizes = [8, 8, 8], strides = [1, 1, 1]} : vector<8x8x96xbf16> to vector<8x8x8xbf16>
    %83 = vector.extract_strided_slice %39 {offsets = [0, 0, 48], sizes = [8, 8, 8], strides = [1, 1, 1]} : vector<8x8x96xbf16> to vector<8x8x8xbf16>
    %84 = vector.extract_strided_slice %39 {offsets = [0, 0, 80], sizes = [8, 8, 8], strides = [1, 1, 1]} : vector<8x8x96xbf16> to vector<8x8x8xbf16>
    "tpu.trace_start"() <{level = 10 : i32, message = "bqd,bkd->bqk"}> : () -> ()
    %cst_31 = arith.constant dense<0.000000e+00> : vector<8x8x8xf32>
    %85 = tpu.matmul %82, %83, %cst_31 {dimension_numbers = #tpu.dot_dimension_numbers<[2], [2], [1], [1], [0, 0, 0, 1, 1, 1], [0], [0]>} : vector<8x8x8xbf16>, vector<8x8x8xbf16>, vector<8x8x8xf32> -> vector<8x8x8xf32>
    "tpu.trace_stop"() : () -> ()
    %cst_32 = arith.constant 0.353553385 : f32
    %86 = vector.broadcast %cst_32 : f32 to vector<8x8x8xf32>
    %87 = arith.mulf %85, %86 : vector<8x8x8xf32>
    %88 = vector.broadcast %41 : vector<1x8x8xf32> to vector<8x8x8xf32>
    %89 = arith.addf %87, %88 : vector<8x8x8xf32>
    %cst_33 = arith.constant dense<0xFF800000> : vector<8x8xf32>
    %90 = vector.multi_reduction <maximumf>, %89, %cst_33 [2] : vector<8x8x8xf32> to vector<8x8xf32>
    %91 = vector.shape_cast %90 : vector<8x8xf32> to vector<8x8x1xf32>
    %92 = vector.broadcast %91 : vector<8x8x1xf32> to vector<8x8x8xf32>
    %93 = arith.subf %89, %92 : vector<8x8x8xf32>
    %94 = math.exp %93 : vector<8x8x8xf32>
    %cst_34 = arith.constant dense<0.000000e+00> : vector<8x8xf32>
    %95 = vector.multi_reduction <add>, %94, %cst_34 [2] : vector<8x8x8xf32> to vector<8x8xf32>
    %96 = vector.shape_cast %95 : vector<8x8xf32> to vector<8x8x1xf32>
    %97 = tpu.reciprocal %96 {approx = true} : vector<8x8x1xf32> -> vector<8x8x1xf32>
    %98 = vector.broadcast %97 : vector<8x8x1xf32> to vector<8x8x8xf32>
    %99 = arith.mulf %94, %98 : vector<8x8x8xf32>
    %100 = arith.truncf %99 : vector<8x8x8xf32> to vector<8x8x8xbf16>
    "tpu.trace_start"() <{level = 10 : i32, message = "bqk,bkd->bqd"}> : () -> ()
    %cst_35 = arith.constant dense<0.000000e+00> : vector<8x8x8xf32>
    %101 = tpu.matmul %100, %84, %cst_35 {dimension_numbers = #tpu.dot_dimension_numbers<[2], [1], [1], [2], [0, 0, 0, 1, 1, 2], [0], [0]>} : vector<8x8x8xbf16>, vector<8x8x8xbf16>, vector<8x8x8xf32> -> vector<8x8x8xf32>
    "tpu.trace_stop"() : () -> ()
    %102 = vector.extract_strided_slice %39 {offsets = [0, 0, 24], sizes = [8, 8, 8], strides = [1, 1, 1]} : vector<8x8x96xbf16> to vector<8x8x8xbf16>
    %103 = vector.extract_strided_slice %39 {offsets = [0, 0, 56], sizes = [8, 8, 8], strides = [1, 1, 1]} : vector<8x8x96xbf16> to vector<8x8x8xbf16>
    %104 = vector.extract_strided_slice %39 {offsets = [0, 0, 88], sizes = [8, 8, 8], strides = [1, 1, 1]} : vector<8x8x96xbf16> to vector<8x8x8xbf16>
    "tpu.trace_start"() <{level = 10 : i32, message = "bqd,bkd->bqk"}> : () -> ()
    %cst_36 = arith.constant dense<0.000000e+00> : vector<8x8x8xf32>
    %105 = tpu.matmul %102, %103, %cst_36 {dimension_numbers = #tpu.dot_dimension_numbers<[2], [2], [1], [1], [0, 0, 0, 1, 1, 1], [0], [0]>} : vector<8x8x8xbf16>, vector<8x8x8xbf16>, vector<8x8x8xf32> -> vector<8x8x8xf32>
    "tpu.trace_stop"() : () -> ()
    %cst_37 = arith.constant 0.353553385 : f32
    %106 = vector.broadcast %cst_37 : f32 to vector<8x8x8xf32>
    %107 = arith.mulf %105, %106 : vector<8x8x8xf32>
    %108 = vector.broadcast %41 : vector<1x8x8xf32> to vector<8x8x8xf32>
    %109 = arith.addf %107, %108 : vector<8x8x8xf32>
    %cst_38 = arith.constant dense<0xFF800000> : vector<8x8xf32>
    %110 = vector.multi_reduction <maximumf>, %109, %cst_38 [2] : vector<8x8x8xf32> to vector<8x8xf32>
    %111 = vector.shape_cast %110 : vector<8x8xf32> to vector<8x8x1xf32>
    %112 = vector.broadcast %111 : vector<8x8x1xf32> to vector<8x8x8xf32>
    %113 = arith.subf %109, %112 : vector<8x8x8xf32>
    %114 = math.exp %113 : vector<8x8x8xf32>
    %cst_39 = arith.constant dense<0.000000e+00> : vector<8x8xf32>
    %115 = vector.multi_reduction <add>, %114, %cst_39 [2] : vector<8x8x8xf32> to vector<8x8xf32>
    %116 = vector.shape_cast %115 : vector<8x8xf32> to vector<8x8x1xf32>
    %117 = tpu.reciprocal %116 {approx = true} : vector<8x8x1xf32> -> vector<8x8x1xf32>
    %118 = vector.broadcast %117 : vector<8x8x1xf32> to vector<8x8x8xf32>
    %119 = arith.mulf %114, %118 : vector<8x8x8xf32>
    %120 = arith.truncf %119 : vector<8x8x8xf32> to vector<8x8x8xbf16>
    "tpu.trace_start"() <{level = 10 : i32, message = "bqk,bkd->bqd"}> : () -> ()
    %cst_40 = arith.constant dense<0.000000e+00> : vector<8x8x8xf32>
    %121 = tpu.matmul %120, %104, %cst_40 {dimension_numbers = #tpu.dot_dimension_numbers<[2], [1], [1], [2], [0, 0, 0, 1, 1, 2], [0], [0]>} : vector<8x8x8xbf16>, vector<8x8x8xbf16>, vector<8x8x8xf32> -> vector<8x8x8xf32>
    "tpu.trace_stop"() : () -> ()
    %122 = tpu.concatenate %61, %81, %101, %121 in 2 : vector<8x8x8xf32>, vector<8x8x8xf32>, vector<8x8x8xf32>, vector<8x8x8xf32> -> vector<8x8x32xf32>
    %123 = vector.shape_cast %122 : vector<8x8x32xf32> to vector<64x32xf32>
    %124 = arith.truncf %123 : vector<64x32xf32> to vector<64x32xbf16>
    %c0_41 = arith.constant 0 : index
    %c0_42 = arith.constant 0 : index
    %c0_43 = arith.constant 0 : index
    %125 = vector.load %arg10[%c0_41, %c0_42, %c0_43] : memref<1x32x32xbf16, #tpu.memory_space<vmem>>, vector<1x32x32xbf16>
    %126 = vector.shape_cast %125 : vector<1x32x32xbf16> to vector<32x32xbf16>
    %cst_44 = arith.constant dense<0.000000e+00> : vector<64x32xf32>
    %127 = tpu.matmul %124, %126, %cst_44 {dimension_numbers = #tpu.dot_dimension_numbers<[1], [0], [0], [1], [0, 0, 1, 1], [], []>} : vector<64x32xbf16>, vector<32x32xbf16>, vector<64x32xf32> -> vector<64x32xf32>
    %128 = arith.addf %3, %127 : vector<64x32xf32>
    %c0_45 = arith.constant 0 : index
    %c0_46 = arith.constant 0 : index
    %c0_47 = arith.constant 0 : index
    %129 = vector.load %arg11[%c0_45, %c0_46, %c0_47] : memref<1x1x32xf32, #tpu.memory_space<vmem>>, vector<1x1x32xf32>
    %130 = vector.shape_cast %129 : vector<1x1x32xf32> to vector<1x32xf32>
    %131 = vector.broadcast %130 : vector<1x32xf32> to vector<64x32xf32>
    %132 = arith.addf %128, %131 : vector<64x32xf32>
    %c0_48 = arith.constant 0 : index
    %c0_49 = arith.constant 0 : index
    %c0_50 = arith.constant 0 : index
    %133 = vector.load %arg12[%c0_48, %c0_49, %c0_50] : memref<1x1x32xf32, #tpu.memory_space<vmem>>, vector<1x1x32xf32>
    %134 = vector.shape_cast %133 : vector<1x1x32xf32> to vector<1x32xf32>
    %c0_51 = arith.constant 0 : index
    %c0_52 = arith.constant 0 : index
    %c0_53 = arith.constant 0 : index
    %135 = vector.load %arg13[%c0_51, %c0_52, %c0_53] : memref<1x1x32xf32, #tpu.memory_space<vmem>>, vector<1x1x32xf32>
    %136 = vector.shape_cast %135 : vector<1x1x32xf32> to vector<1x32xf32>
    %cst_54 = arith.constant dense<0.000000e+00> : vector<64xf32>
    %137 = vector.multi_reduction <add>, %132, %cst_54 [1] : vector<64x32xf32> to vector<64xf32>
    %138 = vector.shape_cast %137 : vector<64xf32> to vector<64x1xf32>
    %cst_55 = arith.constant 3.200000e+01 : f32
    %139 = vector.broadcast %cst_55 : f32 to vector<64x1xf32>
    %140 = arith.divf %138, %139 : vector<64x1xf32>
    %141 = vector.broadcast %140 : vector<64x1xf32> to vector<64x32xf32>
    %142 = arith.subf %132, %141 : vector<64x32xf32>
    %143 = arith.mulf %142, %142 : vector<64x32xf32>
    %cst_56 = arith.constant dense<0.000000e+00> : vector<64xf32>
    %144 = vector.multi_reduction <add>, %143, %cst_56 [1] : vector<64x32xf32> to vector<64xf32>
    %145 = vector.shape_cast %144 : vector<64xf32> to vector<64x1xf32>
    %cst_57 = arith.constant 3.200000e+01 : f32
    %146 = vector.broadcast %cst_57 : f32 to vector<64x1xf32>
    %147 = arith.divf %145, %146 : vector<64x1xf32>
    %148 = vector.broadcast %140 : vector<64x1xf32> to vector<64x32xf32>
    %149 = arith.subf %132, %148 : vector<64x32xf32>
    %cst_58 = arith.constant 9.99999974E-6 : f32
    %150 = vector.broadcast %cst_58 : f32 to vector<64x1xf32>
    %151 = arith.addf %147, %150 : vector<64x1xf32>
    %152 = math.rsqrt %151 : vector<64x1xf32>
    %153 = vector.broadcast %152 : vector<64x1xf32> to vector<64x32xf32>
    %154 = arith.mulf %149, %153 : vector<64x32xf32>
    %155 = vector.broadcast %134 : vector<1x32xf32> to vector<64x32xf32>
    %156 = arith.mulf %154, %155 : vector<64x32xf32>
    %157 = vector.broadcast %136 : vector<1x32xf32> to vector<64x32xf32>
    %158 = arith.addf %156, %157 : vector<64x32xf32>
    %159 = arith.truncf %158 : vector<64x32xf32> to vector<64x32xbf16>
    %c0_59 = arith.constant 0 : index
    %c0_60 = arith.constant 0 : index
    %c0_61 = arith.constant 0 : index
    %160 = vector.load %arg14[%c0_59, %c0_60, %c0_61] : memref<1x32x128xbf16, #tpu.memory_space<vmem>>, vector<1x32x128xbf16>
    %161 = vector.shape_cast %160 : vector<1x32x128xbf16> to vector<32x128xbf16>
    %cst_62 = arith.constant dense<0.000000e+00> : vector<64x128xf32>
    %162 = tpu.matmul %159, %161, %cst_62 {dimension_numbers = #tpu.dot_dimension_numbers<[1], [0], [0], [1], [0, 0, 1, 1], [], []>} : vector<64x32xbf16>, vector<32x128xbf16>, vector<64x128xf32> -> vector<64x128xf32>
    %c0_63 = arith.constant 0 : index
    %c0_64 = arith.constant 0 : index
    %c0_65 = arith.constant 0 : index
    %163 = vector.load %arg15[%c0_63, %c0_64, %c0_65] : memref<1x1x128xf32, #tpu.memory_space<vmem>>, vector<1x1x128xf32>
    %164 = vector.shape_cast %163 : vector<1x1x128xf32> to vector<1x128xf32>
    %165 = vector.broadcast %164 : vector<1x128xf32> to vector<64x128xf32>
    %166 = arith.addf %162, %165 : vector<64x128xf32>
    %cst_66 = arith.constant 1.702000e+00 : f32
    %167 = vector.broadcast %cst_66 : f32 to vector<64x128xf32>
    %168 = arith.mulf %167, %166 : vector<64x128xf32>
    %169 = arith.negf %168 : vector<64x128xf32>
    %170 = math.exp %169 : vector<64x128xf32>
    %cst_67 = arith.constant 1.000000e+00 : f32
    %171 = vector.broadcast %cst_67 : f32 to vector<64x128xf32>
    %172 = arith.addf %171, %170 : vector<64x128xf32>
    %173 = arith.divf %171, %172 : vector<64x128xf32>
    %174 = arith.mulf %166, %173 : vector<64x128xf32>
    %175 = arith.truncf %174 : vector<64x128xf32> to vector<64x128xbf16>
    %c0_68 = arith.constant 0 : index
    %c0_69 = arith.constant 0 : index
    %c0_70 = arith.constant 0 : index
    %176 = vector.load %arg16[%c0_68, %c0_69, %c0_70] : memref<1x128x32xbf16, #tpu.memory_space<vmem>>, vector<1x128x32xbf16>
    %177 = vector.shape_cast %176 : vector<1x128x32xbf16> to vector<128x32xbf16>
    %cst_71 = arith.constant dense<0.000000e+00> : vector<64x32xf32>
    %178 = tpu.matmul %175, %177, %cst_71 {dimension_numbers = #tpu.dot_dimension_numbers<[1], [0], [0], [1], [0, 0, 1, 1], [], []>} : vector<64x128xbf16>, vector<128x32xbf16>, vector<64x32xf32> -> vector<64x32xf32>
    %c0_72 = arith.constant 0 : index
    %c0_73 = arith.constant 0 : index
    %c0_74 = arith.constant 0 : index
    %179 = vector.load %arg17[%c0_72, %c0_73, %c0_74] : memref<1x1x32xf32, #tpu.memory_space<vmem>>, vector<1x1x32xf32>
    %180 = vector.shape_cast %179 : vector<1x1x32xf32> to vector<1x32xf32>
    %181 = vector.broadcast %180 : vector<1x32xf32> to vector<64x32xf32>
    %182 = arith.addf %178, %181 : vector<64x32xf32>
    %183 = arith.addf %132, %182 : vector<64x32xf32>
    %c0_75 = arith.constant 0 : index
    %c0_76 = arith.constant 0 : index
    %184 = vector.load %arg23[%c0_75, %c0_76] : memref<64x32xf32, #tpu.memory_space<vmem>>, vector<64x32xf32>
    tpu.vector_store %arg23[%c0_75, %c0_76], %183 {strides = array<i32>} : memref<64x32xf32, #tpu.memory_space<vmem>>, vector<64x32xf32>,
    %c1_i32 = arith.constant 1 : i32
    %185 = arith.cmpi eq, %arg1, %c1_i32 : i32
    %186 = arith.extui %185 : i1 to i32
    %c0_i32_77 = arith.constant 0 : i32
    %187 = arith.cmpi ne, %186, %c0_i32_77 : i32
    scf.if %187 {
      %c8_i32 = arith.constant 8 : i32
      %188 = arith.muli %arg0, %c8_i32 : i32
      %c0_i32_78 = arith.constant 0 : i32
      %189 = arith.addi %188, %c0_i32_78 : i32
      %190 = arith.index_cast %189 : i32 to index
      %191 = memref.load %arg2[%190] : memref<8xi32, #tpu.memory_space<smem>>
      %c0_i32_79 = arith.constant 0 : i32
      %192 = arith.addi %c0_i32_79, %191 : i32
      %193 = arith.index_cast %192 : i32 to index
      %c0_80 = arith.constant 0 : index
      %194 = vector.load %arg23[%193, %c0_80] : memref<64x32xf32, #tpu.memory_space<vmem>>, vector<1x32xf32>
      %c8_i32_81 = arith.constant 8 : i32
      %195 = arith.muli %arg0, %c8_i32_81 : i32
      %c1_i32_82 = arith.constant 1 : i32
      %196 = arith.addi %195, %c1_i32_82 : i32
      %197 = arith.index_cast %196 : i32 to index
      %198 = memref.load %arg2[%197] : memref<8xi32, #tpu.memory_space<smem>>
      %c8_i32_83 = arith.constant 8 : i32
      %199 = arith.addi %c8_i32_83, %198 : i32
      %200 = arith.index_cast %199 : i32 to index
      %c0_84 = arith.constant 0 : index
      %201 = vector.load %arg23[%200, %c0_84] : memref<64x32xf32, #tpu.memory_space<vmem>>, vector<1x32xf32>
      %c8_i32_85 = arith.constant 8 : i32
      %202 = arith.muli %arg0, %c8_i32_85 : i32
      %c2_i32 = arith.constant 2 : i32
      %203 = arith.addi %202, %c2_i32 : i32
      %204 = arith.index_cast %203 : i32 to index
      %205 = memref.load %arg2[%204] : memref<8xi32, #tpu.memory_space<smem>>
      %c16_i32 = arith.constant 16 : i32
      %206 = arith.addi %c16_i32, %205 : i32
      %207 = arith.index_cast %206 : i32 to index
      %c0_86 = arith.constant 0 : index
      %208 = vector.load %arg23[%207, %c0_86] : memref<64x32xf32, #tpu.memory_space<vmem>>, vector<1x32xf32>
      %c8_i32_87 = arith.constant 8 : i32
      %209 = arith.muli %arg0, %c8_i32_87 : i32
      %c3_i32 = arith.constant 3 : i32
      %210 = arith.addi %209, %c3_i32 : i32
      %211 = arith.index_cast %210 : i32 to index
      %212 = memref.load %arg2[%211] : memref<8xi32, #tpu.memory_space<smem>>
      %c24_i32 = arith.constant 24 : i32
      %213 = arith.addi %c24_i32, %212 : i32
      %214 = arith.index_cast %213 : i32 to index
      %c0_88 = arith.constant 0 : index
      %215 = vector.load %arg23[%214, %c0_88] : memref<64x32xf32, #tpu.memory_space<vmem>>, vector<1x32xf32>
      %c8_i32_89 = arith.constant 8 : i32
      %216 = arith.muli %arg0, %c8_i32_89 : i32
      %c4_i32 = arith.constant 4 : i32
      %217 = arith.addi %216, %c4_i32 : i32
      %218 = arith.index_cast %217 : i32 to index
      %219 = memref.load %arg2[%218] : memref<8xi32, #tpu.memory_space<smem>>
      %c32_i32 = arith.constant 32 : i32
      %220 = arith.addi %c32_i32, %219 : i32
      %221 = arith.index_cast %220 : i32 to index
      %c0_90 = arith.constant 0 : index
      %222 = vector.load %arg23[%221, %c0_90] : memref<64x32xf32, #tpu.memory_space<vmem>>, vector<1x32xf32>
      %c8_i32_91 = arith.constant 8 : i32
      %223 = arith.muli %arg0, %c8_i32_91 : i32
      %c5_i32 = arith.constant 5 : i32
      %224 = arith.addi %223, %c5_i32 : i32
      %225 = arith.index_cast %224 : i32 to index
      %226 = memref.load %arg2[%225] : memref<8xi32, #tpu.memory_space<smem>>
      %c40_i32 = arith.constant 40 : i32
      %227 = arith.addi %c40_i32, %226 : i32
      %228 = arith.index_cast %227 : i32 to index
      %c0_92 = arith.constant 0 : index
      %229 = vector.load %arg23[%228, %c0_92] : memref<64x32xf32, #tpu.memory_space<vmem>>, vector<1x32xf32>
      %c8_i32_93 = arith.constant 8 : i32
      %230 = arith.muli %arg0, %c8_i32_93 : i32
      %c6_i32 = arith.constant 6 : i32
      %231 = arith.addi %230, %c6_i32 : i32
      %232 = arith.index_cast %231 : i32 to index
      %233 = memref.load %arg2[%232] : memref<8xi32, #tpu.memory_space<smem>>
      %c48_i32 = arith.constant 48 : i32
      %234 = arith.addi %c48_i32, %233 : i32
      %235 = arith.index_cast %234 : i32 to index
      %c0_94 = arith.constant 0 : index
      %236 = vector.load %arg23[%235, %c0_94] : memref<64x32xf32, #tpu.memory_space<vmem>>, vector<1x32xf32>
      %c8_i32_95 = arith.constant 8 : i32
      %237 = arith.muli %arg0, %c8_i32_95 : i32
      %c7_i32 = arith.constant 7 : i32
      %238 = arith.addi %237, %c7_i32 : i32
      %239 = arith.index_cast %238 : i32 to index
      %240 = memref.load %arg2[%239] : memref<8xi32, #tpu.memory_space<smem>>
      %c56_i32 = arith.constant 56 : i32
      %241 = arith.addi %c56_i32, %240 : i32
      %242 = arith.index_cast %241 : i32 to index
      %c0_96 = arith.constant 0 : index
      %243 = vector.load %arg23[%242, %c0_96] : memref<64x32xf32, #tpu.memory_space<vmem>>, vector<1x32xf32>
      %244 = tpu.concatenate %194, %201, %208, %215, %222, %229, %236, %243 in 0 : vector<1x32xf32>, vector<1x32xf32>, vector<1x32xf32>, vector<1x32xf32>, vector<1x32xf32>, vector<1x32xf32>, vector<1x32xf32>, vector<1x32xf32> -> vector<8x32xf32>
      %c0_97 = arith.constant 0 : index
      %c0_98 = arith.constant 0 : index
      %245 = vector.load %arg19[%c0_97, %c0_98] : memref<1x32xf32, #tpu.memory_space<vmem>>, vector<1x32xf32>
      %c0_99 = arith.constant 0 : index
      %c0_100 = arith.constant 0 : index
      %246 = vector.load %arg20[%c0_99, %c0_100] : memref<1x32xf32, #tpu.memory_space<vmem>>, vector<1x32xf32>
      %cst_101 = arith.constant dense<0.000000e+00> : vector<8xf32>
      %247 = vector.multi_reduction <add>, %244, %cst_101 [1] : vector<8x32xf32> to vector<8xf32>
      %248 = vector.shape_cast %247 : vector<8xf32> to vector<8x1xf32>
      %cst_102 = arith.constant 3.200000e+01 : f32
      %249 = vector.broadcast %cst_102 : f32 to vector<8x1xf32>
      %250 = arith.divf %248, %249 : vector<8x1xf32>
      %251 = vector.broadcast %250 : vector<8x1xf32> to vector<8x32xf32>
      %252 = arith.subf %244, %251 : vector<8x32xf32>
      %253 = arith.mulf %252, %252 : vector<8x32xf32>
      %cst_103 = arith.constant dense<0.000000e+00> : vector<8xf32>
      %254 = vector.multi_reduction <add>, %253, %cst_103 [1] : vector<8x32xf32> to vector<8xf32>
      %255 = vector.shape_cast %254 : vector<8xf32> to vector<8x1xf32>
      %cst_104 = arith.constant 3.200000e+01 : f32
      %256 = vector.broadcast %cst_104 : f32 to vector<8x1xf32>
      %257 = arith.divf %255, %256 : vector<8x1xf32>
      %258 = vector.broadcast %250 : vector<8x1xf32> to vector<8x32xf32>
      %259 = arith.subf %244, %258 : vector<8x32xf32>
      %cst_105 = arith.constant 9.99999974E-6 : f32
      %260 = vector.broadcast %cst_105 : f32 to vector<8x1xf32>
      %261 = arith.addf %257, %260 : vector<8x1xf32>
      %262 = math.rsqrt %261 : vector<8x1xf32>
      %263 = vector.broadcast %262 : vector<8x1xf32> to vector<8x32xf32>
      %264 = arith.mulf %259, %263 : vector<8x32xf32>
      %265 = vector.broadcast %245 : vector<1x32xf32> to vector<8x32xf32>
      %266 = arith.mulf %264, %265 : vector<8x32xf32>
      %267 = vector.broadcast %246 : vector<1x32xf32> to vector<8x32xf32>
      %268 = arith.addf %266, %267 : vector<8x32xf32>
      %269 = arith.truncf %268 : vector<8x32xf32> to vector<8x32xbf16>
      %c0_106 = arith.constant 0 : index
      %c0_107 = arith.constant 0 : index
      %270 = vector.load %arg21[%c0_106, %c0_107] : memref<32x16xbf16, #tpu.memory_space<vmem>>, vector<32x16xbf16>
      %cst_108 = arith.constant dense<0.000000e+00> : vector<8x16xf32>
      %271 = tpu.matmul %269, %270, %cst_108 {dimension_numbers = #tpu.dot_dimension_numbers<[1], [0], [0], [1], [0, 0, 1, 1], [], []>} : vector<8x32xbf16>, vector<32x16xbf16>, vector<8x16xf32> -> vector<8x16xf32>
      %c0_109 = arith.constant 0 : index
      %c0_110 = arith.constant 0 : index
      %c0_111 = arith.constant 0 : index
      %272 = vector.load %arg22[%c0_109, %c0_110, %c0_111] : memref<1x8x16xf32, #tpu.memory_space<vmem>>, vector<1x8x16xf32>
      %273 = vector.shape_cast %272 : vector<1x8x16xf32> to vector<8x16xf32>
      %274 = vector.shape_cast %271 : vector<8x16xf32> to vector<1x8x16xf32>
      tpu.vector_store %arg22[%c0_109, %c0_110, %c0_111], %274 {strides = array<i32>} : memref<1x8x16xf32, #tpu.memory_space<vmem>>, vector<1x8x16xf32>,
    } else {
    }
    return
  }
  func.func @transform_0(%arg0: i32, %arg1: i32, %arg2: memref<8xi32, #tpu.memory_space<smem>>) -> (i32, i32, i32) {
    %c0_i32 = arith.constant 0 : i32
    %c0_i32_0 = arith.constant 0 : i32
    %c0_i32_1 = arith.constant 0 : i32
    return %arg0, %c0_i32, %c0_i32_0 : i32, i32, i32
  }
  func.func @transform_1(%arg0: i32, %arg1: i32, %arg2: memref<8xi32, #tpu.memory_space<smem>>) -> (i32, i32) {
    %c0_i32 = arith.constant 0 : i32
    %c0_i32_0 = arith.constant 0 : i32
    %c0_i32_1 = arith.constant 0 : i32
    return %c0_i32, %c0_i32_0 : i32, i32
  }
  func.func @transform_2(%arg0: i32, %arg1: i32, %arg2: memref<8xi32, #tpu.memory_space<smem>>) -> (i32, i32) {
    %c0_i32 = arith.constant 0 : i32
    %c0_i32_0 = arith.constant 0 : i32
    %c0_i32_1 = arith.constant 0 : i32
    return %c0_i32, %c0_i32_0 : i32, i32
  }
  func.func @transform_3(%arg0: i32, %arg1: i32, %arg2: memref<8xi32, #tpu.memory_space<smem>>) -> (i32, i32, i32) {
    %c0_i32 = arith.constant 0 : i32
    %c0_i32_0 = arith.constant 0 : i32
    %c0_i32_1 = arith.constant 0 : i32
    return %arg1, %c0_i32, %c0_i32_0 : i32, i32, i32
  }
  func.func @transform_4(%arg0: i32, %arg1: i32, %arg2: memref<8xi32, #tpu.memory_space<smem>>) -> (i32, i32, i32) {
    %c0_i32 = arith.constant 0 : i32
    %c0_i32_0 = arith.constant 0 : i32
    %c0_i32_1 = arith.constant 0 : i32
    return %arg1, %c0_i32, %c0_i32_0 : i32, i32, i32
  }
  func.func @transform_5(%arg0: i32, %arg1: i32, %arg2: memref<8xi32, #tpu.memory_space<smem>>) -> (i32, i32, i32) {
    %c0_i32 = arith.constant 0 : i32
    %c0_i32_0 = arith.constant 0 : i32
    %c0_i32_1 = arith.constant 0 : i32
    return %arg1, %c0_i32, %c0_i32_0 : i32, i32, i32
  }
  func.func @transform_6(%arg0: i32, %arg1: i32, %arg2: memref<8xi32, #tpu.memory_space<smem>>) -> (i32, i32, i32) {
    %c0_i32 = arith.constant 0 : i32
    %c0_i32_0 = arith.constant 0 : i32
    %c0_i32_1 = arith.constant 0 : i32
    return %arg1, %c0_i32, %c0_i32_0 : i32, i32, i32
  }
  func.func @transform_7(%arg0: i32, %arg1: i32, %arg2: memref<8xi32, #tpu.memory_space<smem>>) -> (i32, i32, i32) {
    %c0_i32 = arith.constant 0 : i32
    %c0_i32_0 = arith.constant 0 : i32
    %c0_i32_1 = arith.constant 0 : i32
    return %arg1, %c0_i32, %c0_i32_0 : i32, i32, i32
  }
  func.func @transform_8(%arg0: i32, %arg1: i32, %arg2: memref<8xi32, #tpu.memory_space<smem>>) -> (i32, i32, i32) {
    %c0_i32 = arith.constant 0 : i32
    %c0_i32_0 = arith.constant 0 : i32
    %c0_i32_1 = arith.constant 0 : i32
    return %arg1, %c0_i32, %c0_i32_0 : i32, i32, i32
  }
  func.func @transform_9(%arg0: i32, %arg1: i32, %arg2: memref<8xi32, #tpu.memory_space<smem>>) -> (i32, i32, i32) {
    %c0_i32 = arith.constant 0 : i32
    %c0_i32_0 = arith.constant 0 : i32
    %c0_i32_1 = arith.constant 0 : i32
    return %arg1, %c0_i32, %c0_i32_0 : i32, i32, i32
  }
  func.func @transform_10(%arg0: i32, %arg1: i32, %arg2: memref<8xi32, #tpu.memory_space<smem>>) -> (i32, i32, i32) {
    %c0_i32 = arith.constant 0 : i32
    %c0_i32_0 = arith.constant 0 : i32
    %c0_i32_1 = arith.constant 0 : i32
    return %arg1, %c0_i32, %c0_i32_0 : i32, i32, i32
  }
  func.func @transform_11(%arg0: i32, %arg1: i32, %arg2: memref<8xi32, #tpu.memory_space<smem>>) -> (i32, i32, i32) {
    %c0_i32 = arith.constant 0 : i32
    %c0_i32_0 = arith.constant 0 : i32
    %c0_i32_1 = arith.constant 0 : i32
    return %arg1, %c0_i32, %c0_i32_0 : i32, i32, i32
  }
  func.func @transform_12(%arg0: i32, %arg1: i32, %arg2: memref<8xi32, #tpu.memory_space<smem>>) -> (i32, i32, i32) {
    %c0_i32 = arith.constant 0 : i32
    %c0_i32_0 = arith.constant 0 : i32
    %c0_i32_1 = arith.constant 0 : i32
    return %arg1, %c0_i32, %c0_i32_0 : i32, i32, i32
  }
  func.func @transform_13(%arg0: i32, %arg1: i32, %arg2: memref<8xi32, #tpu.memory_space<smem>>) -> (i32, i32, i32) {
    %c0_i32 = arith.constant 0 : i32
    %c0_i32_0 = arith.constant 0 : i32
    %c0_i32_1 = arith.constant 0 : i32
    return %arg1, %c0_i32, %c0_i32_0 : i32, i32, i32
  }
  func.func @transform_14(%arg0: i32, %arg1: i32, %arg2: memref<8xi32, #tpu.memory_space<smem>>) -> (i32, i32, i32) {
    %c0_i32 = arith.constant 0 : i32
    %c0_i32_0 = arith.constant 0 : i32
    %c0_i32_1 = arith.constant 0 : i32
    return %arg1, %c0_i32, %c0_i32_0 : i32, i32, i32
  }
  func.func @transform_15(%arg0: i32, %arg1: i32, %arg2: memref<8xi32, #tpu.memory_space<smem>>) -> (i32, i32) {
    %c0_i32 = arith.constant 0 : i32
    %c0_i32_0 = arith.constant 0 : i32
    %c0_i32_1 = arith.constant 0 : i32
    return %c0_i32, %c0_i32_0 : i32, i32
  }
  func.func @transform_16(%arg0: i32, %arg1: i32, %arg2: memref<8xi32, #tpu.memory_space<smem>>) -> (i32, i32) {
    %c0_i32 = arith.constant 0 : i32
    %c0_i32_0 = arith.constant 0 : i32
    %c0_i32_1 = arith.constant 0 : i32
    return %c0_i32, %c0_i32_0 : i32, i32
  }
  func.func @transform_17(%arg0: i32, %arg1: i32, %arg2: memref<8xi32, #tpu.memory_space<smem>>) -> (i32, i32) {
    %c0_i32 = arith.constant 0 : i32
    %c0_i32_0 = arith.constant 0 : i32
    %c0_i32_1 = arith.constant 0 : i32
    return %c0_i32, %c0_i32_0 : i32, i32
  }
  func.func @transform_18(%arg0: i32, %arg1: i32, %arg2: memref<8xi32, #tpu.memory_space<smem>>) -> (i32, i32) {
    %c0_i32 = arith.constant 0 : i32
    %c0_i32_0 = arith.constant 0 : i32
    %c0_i32_1 = arith.constant 0 : i32
    return %c0_i32, %c0_i32_0 : i32, i32
  }
  func.func @transform_19(%arg0: i32, %arg1: i32, %arg2: memref<8xi32, #tpu.memory_space<smem>>) -> (i32, i32, i32) {
    %c0_i32 = arith.constant 0 : i32
    %c0_i32_0 = arith.constant 0 : i32
    %c0_i32_1 = arith.constant 0 : i32
    return %arg0, %c0_i32, %c0_i32_0 : i32, i32, i32
  }
}

module attributes {stable_mosaic.version = 11 : i64} {
  func.func @kernel(%arg0: i32, %arg1: i32, %arg2: memref<2xi32, #tpu.memory_space<smem>>, %arg3: memref<1x16x32xbf16, #tpu.memory_space<vmem>>, %arg4: memref<1x1x32xf32, #tpu.memory_space<vmem>>, %arg5: memref<1x1x32xf32, #tpu.memory_space<vmem>>, %arg6: memref<1x32x96xbf16, #tpu.memory_space<vmem>>, %arg7: memref<1x1x96xf32, #tpu.memory_space<vmem>>, %arg8: memref<1x32x32xbf16, #tpu.memory_space<vmem>>, %arg9: memref<1x1x32xf32, #tpu.memory_space<vmem>>, %arg10: memref<1x1x32xf32, #tpu.memory_space<vmem>>, %arg11: memref<1x1x32xf32, #tpu.memory_space<vmem>>, %arg12: memref<1x32x128xbf16, #tpu.memory_space<vmem>>, %arg13: memref<1x1x128xf32, #tpu.memory_space<vmem>>, %arg14: memref<1x128x32xbf16, #tpu.memory_space<vmem>>, %arg15: memref<1x1x32xf32, #tpu.memory_space<vmem>>, %arg16: memref<8x8xf32, #tpu.memory_space<vmem>>, %arg17: memref<1x32xf32, #tpu.memory_space<vmem>>, %arg18: memref<1x32xf32, #tpu.memory_space<vmem>>, %arg19: memref<32x16xbf16, #tpu.memory_space<vmem>>, %arg20: memref<1x2x16xf32, #tpu.memory_space<vmem>>, %arg21: memref<16x32xf32, #tpu.memory_space<vmem>>) attributes {dimension_semantics = [#tpu.dimension_semantics<parallel>, #tpu.dimension_semantics<arbitrary>], iteration_bounds = array<i64: 1, 2>, scalar_prefetch = 1 : i64, scratch_operands = 1 : i64, tpu.core_type = #tpu.core_type<tc>, window_params = [{transform_indices = @transform_0, window_bounds = array<i64: 1, 16, 32>}, {transform_indices = @transform_1, window_bounds = array<i64: 1, 1, 32>}, {transform_indices = @transform_2, window_bounds = array<i64: 1, 1, 32>}, {transform_indices = @transform_3, window_bounds = array<i64: 1, 32, 96>}, {transform_indices = @transform_4, window_bounds = array<i64: 1, 1, 96>}, {transform_indices = @transform_5, window_bounds = array<i64: 1, 32, 32>}, {transform_indices = @transform_6, window_bounds = array<i64: 1, 1, 32>}, {transform_indices = @transform_7, window_bounds = array<i64: 1, 1, 32>}, {transform_indices = @transform_8, window_bounds = array<i64: 1, 1, 32>}, {transform_indices = @transform_9, window_bounds = array<i64: 1, 32, 128>}, {transform_indices = @transform_10, window_bounds = array<i64: 1, 1, 128>}, {transform_indices = @transform_11, window_bounds = array<i64: 1, 128, 32>}, {transform_indices = @transform_12, window_bounds = array<i64: 1, 1, 32>}, {pipeline_mode = #tpu.pipeline_mode<synchronous>, transform_indices = @transform_13, window_bounds = array<i64: 8, 8>}, {pipeline_mode = #tpu.pipeline_mode<synchronous>, transform_indices = @transform_14, window_bounds = array<i64: 1, 32>}, {pipeline_mode = #tpu.pipeline_mode<synchronous>, transform_indices = @transform_15, window_bounds = array<i64: 1, 32>}, {pipeline_mode = #tpu.pipeline_mode<synchronous>, transform_indices = @transform_16, window_bounds = array<i64: 32, 16>}, {transform_indices = @transform_17, window_bounds = array<i64: 1, 2, 16>}]} {
    %c0_i32 = arith.constant 0 : i32
    %0 = arith.cmpi eq, %arg1, %c0_i32 : i32
    %1 = arith.extui %0 : i1 to i32
    %c0_i32_0 = arith.constant 0 : i32
    %2 = arith.cmpi ne, %1, %c0_i32_0 : i32
    scf.if %2 {
      %c0_78 = arith.constant 0 : index
      %c0_79 = arith.constant 0 : index
      %c0_80 = arith.constant 0 : index
      %188 = vector.load %arg3[%c0_78, %c0_79, %c0_80] : memref<1x16x32xbf16, #tpu.memory_space<vmem>>, vector<1x16x32xbf16>
      %189 = vector.shape_cast %188 : vector<1x16x32xbf16> to vector<16x32xbf16>
      %190 = arith.extf %189 : vector<16x32xbf16> to vector<16x32xf32>
      %c0_81 = arith.constant 0 : index
      %c0_82 = arith.constant 0 : index
      %191 = vector.load %arg21[%c0_81, %c0_82] : memref<16x32xf32, #tpu.memory_space<vmem>>, vector<16x32xf32>
      tpu.vector_store %arg21[%c0_81, %c0_82], %190 {strides = array<i32>} : memref<16x32xf32, #tpu.memory_space<vmem>>, vector<16x32xf32>,
    } else {
    }
    %c0 = arith.constant 0 : index
    %c0_1 = arith.constant 0 : index
    %3 = vector.load %arg21[%c0, %c0_1] : memref<16x32xf32, #tpu.memory_space<vmem>>, vector<16x32xf32>
    %c0_2 = arith.constant 0 : index
    %c0_3 = arith.constant 0 : index
    %c0_4 = arith.constant 0 : index
    %4 = vector.load %arg4[%c0_2, %c0_3, %c0_4] : memref<1x1x32xf32, #tpu.memory_space<vmem>>, vector<1x1x32xf32>
    %5 = vector.shape_cast %4 : vector<1x1x32xf32> to vector<1x32xf32>
    %c0_5 = arith.constant 0 : index
    %c0_6 = arith.constant 0 : index
    %c0_7 = arith.constant 0 : index
    %6 = vector.load %arg5[%c0_5, %c0_6, %c0_7] : memref<1x1x32xf32, #tpu.memory_space<vmem>>, vector<1x1x32xf32>
    %7 = vector.shape_cast %6 : vector<1x1x32xf32> to vector<1x32xf32>
    %cst = arith.constant dense<0.000000e+00> : vector<16xf32>
    %8 = vector.multi_reduction <add>, %3, %cst [1] : vector<16x32xf32> to vector<16xf32>
    %9 = vector.shape_cast %8 : vector<16xf32> to vector<16x1xf32>
    %cst_8 = arith.constant 3.200000e+01 : f32
    %10 = vector.broadcast %cst_8 : f32 to vector<16x1xf32>
    %11 = arith.divf %9, %10 : vector<16x1xf32>
    %12 = vector.broadcast %11 : vector<16x1xf32> to vector<16x32xf32>
    %13 = arith.subf %3, %12 : vector<16x32xf32>
    %14 = arith.mulf %13, %13 : vector<16x32xf32>
    %cst_9 = arith.constant dense<0.000000e+00> : vector<16xf32>
    %15 = vector.multi_reduction <add>, %14, %cst_9 [1] : vector<16x32xf32> to vector<16xf32>
    %16 = vector.shape_cast %15 : vector<16xf32> to vector<16x1xf32>
    %cst_10 = arith.constant 3.200000e+01 : f32
    %17 = vector.broadcast %cst_10 : f32 to vector<16x1xf32>
    %18 = arith.divf %16, %17 : vector<16x1xf32>
    %19 = vector.broadcast %11 : vector<16x1xf32> to vector<16x32xf32>
    %20 = arith.subf %3, %19 : vector<16x32xf32>
    %cst_11 = arith.constant 9.99999974E-6 : f32
    %21 = vector.broadcast %cst_11 : f32 to vector<16x1xf32>
    %22 = arith.addf %18, %21 : vector<16x1xf32>
    %23 = math.rsqrt %22 : vector<16x1xf32>
    %24 = vector.broadcast %23 : vector<16x1xf32> to vector<16x32xf32>
    %25 = arith.mulf %20, %24 : vector<16x32xf32>
    %26 = vector.broadcast %5 : vector<1x32xf32> to vector<16x32xf32>
    %27 = arith.mulf %25, %26 : vector<16x32xf32>
    %28 = vector.broadcast %7 : vector<1x32xf32> to vector<16x32xf32>
    %29 = arith.addf %27, %28 : vector<16x32xf32>
    %30 = arith.truncf %29 : vector<16x32xf32> to vector<16x32xbf16>
    %c0_12 = arith.constant 0 : index
    %c0_13 = arith.constant 0 : index
    %c0_14 = arith.constant 0 : index
    %31 = vector.load %arg6[%c0_12, %c0_13, %c0_14] : memref<1x32x96xbf16, #tpu.memory_space<vmem>>, vector<1x32x96xbf16>
    %32 = vector.shape_cast %31 : vector<1x32x96xbf16> to vector<32x96xbf16>
    %cst_15 = arith.constant dense<0.000000e+00> : vector<16x96xf32>
    %33 = tpu.matmul %30, %32, %cst_15 {dimension_numbers = #tpu.dot_dimension_numbers<[1], [0], [0], [1], [0, 0, 1, 1], [], []>} : vector<16x32xbf16>, vector<32x96xbf16>, vector<16x96xf32> -> vector<16x96xf32>
    %c0_16 = arith.constant 0 : index
    %c0_17 = arith.constant 0 : index
    %c0_18 = arith.constant 0 : index
    %34 = vector.load %arg7[%c0_16, %c0_17, %c0_18] : memref<1x1x96xf32, #tpu.memory_space<vmem>>, vector<1x1x96xf32>
    %35 = vector.shape_cast %34 : vector<1x1x96xf32> to vector<1x96xf32>
    %36 = vector.broadcast %35 : vector<1x96xf32> to vector<16x96xf32>
    %37 = arith.addf %33, %36 : vector<16x96xf32>
    %38 = arith.truncf %37 : vector<16x96xf32> to vector<16x96xbf16>
    %39 = vector.shape_cast %38 : vector<16x96xbf16> to vector<2x8x96xbf16>
    %c0_19 = arith.constant 0 : index
    %c0_20 = arith.constant 0 : index
    %40 = vector.load %arg16[%c0_19, %c0_20] : memref<8x8xf32, #tpu.memory_space<vmem>>, vector<8x8xf32>
    %41 = vector.shape_cast %40 : vector<8x8xf32> to vector<1x8x8xf32>
    %42 = vector.extract_strided_slice %39 {offsets = [0, 0, 0], sizes = [2, 8, 8], strides = [1, 1, 1]} : vector<2x8x96xbf16> to vector<2x8x8xbf16>
    %43 = vector.extract_strided_slice %39 {offsets = [0, 0, 32], sizes = [2, 8, 8], strides = [1, 1, 1]} : vector<2x8x96xbf16> to vector<2x8x8xbf16>
    %44 = vector.extract_strided_slice %39 {offsets = [0, 0, 64], sizes = [2, 8, 8], strides = [1, 1, 1]} : vector<2x8x96xbf16> to vector<2x8x8xbf16>
    "tpu.trace_start"() <{level = 10 : i32, message = "bqd,bkd->bqk"}> : () -> ()
    %cst_21 = arith.constant dense<0.000000e+00> : vector<2x8x8xf32>
    %45 = tpu.matmul %42, %43, %cst_21 {dimension_numbers = #tpu.dot_dimension_numbers<[2], [2], [1], [1], [0, 0, 0, 1, 1, 1], [0], [0]>} : vector<2x8x8xbf16>, vector<2x8x8xbf16>, vector<2x8x8xf32> -> vector<2x8x8xf32>
    "tpu.trace_stop"() : () -> ()
    %cst_22 = arith.constant 0.353553385 : f32
    %46 = vector.broadcast %cst_22 : f32 to vector<2x8x8xf32>
    %47 = arith.mulf %45, %46 : vector<2x8x8xf32>
    %48 = vector.broadcast %41 : vector<1x8x8xf32> to vector<2x8x8xf32>
    %49 = arith.addf %47, %48 : vector<2x8x8xf32>
    %cst_23 = arith.constant dense<0xFF800000> : vector<2x8xf32>
    %50 = vector.multi_reduction <maximumf>, %49, %cst_23 [2] : vector<2x8x8xf32> to vector<2x8xf32>
    %51 = vector.shape_cast %50 : vector<2x8xf32> to vector<2x8x1xf32>
    %52 = vector.broadcast %51 : vector<2x8x1xf32> to vector<2x8x8xf32>
    %53 = arith.subf %49, %52 : vector<2x8x8xf32>
    %54 = math.exp %53 : vector<2x8x8xf32>
    %cst_24 = arith.constant dense<0.000000e+00> : vector<2x8xf32>
    %55 = vector.multi_reduction <add>, %54, %cst_24 [2] : vector<2x8x8xf32> to vector<2x8xf32>
    %56 = vector.shape_cast %55 : vector<2x8xf32> to vector<2x8x1xf32>
    %57 = tpu.reciprocal %56 {approx = true} : vector<2x8x1xf32> -> vector<2x8x1xf32>
    %58 = vector.broadcast %57 : vector<2x8x1xf32> to vector<2x8x8xf32>
    %59 = arith.mulf %54, %58 : vector<2x8x8xf32>
    %60 = arith.truncf %59 : vector<2x8x8xf32> to vector<2x8x8xbf16>
    "tpu.trace_start"() <{level = 10 : i32, message = "bqk,bkd->bqd"}> : () -> ()
    %cst_25 = arith.constant dense<0.000000e+00> : vector<2x8x8xf32>
    %61 = tpu.matmul %60, %44, %cst_25 {dimension_numbers = #tpu.dot_dimension_numbers<[2], [1], [1], [2], [0, 0, 0, 1, 1, 2], [0], [0]>} : vector<2x8x8xbf16>, vector<2x8x8xbf16>, vector<2x8x8xf32> -> vector<2x8x8xf32>
    "tpu.trace_stop"() : () -> ()
    %62 = vector.extract_strided_slice %39 {offsets = [0, 0, 8], sizes = [2, 8, 8], strides = [1, 1, 1]} : vector<2x8x96xbf16> to vector<2x8x8xbf16>
    %63 = vector.extract_strided_slice %39 {offsets = [0, 0, 40], sizes = [2, 8, 8], strides = [1, 1, 1]} : vector<2x8x96xbf16> to vector<2x8x8xbf16>
    %64 = vector.extract_strided_slice %39 {offsets = [0, 0, 72], sizes = [2, 8, 8], strides = [1, 1, 1]} : vector<2x8x96xbf16> to vector<2x8x8xbf16>
    "tpu.trace_start"() <{level = 10 : i32, message = "bqd,bkd->bqk"}> : () -> ()
    %cst_26 = arith.constant dense<0.000000e+00> : vector<2x8x8xf32>
    %65 = tpu.matmul %62, %63, %cst_26 {dimension_numbers = #tpu.dot_dimension_numbers<[2], [2], [1], [1], [0, 0, 0, 1, 1, 1], [0], [0]>} : vector<2x8x8xbf16>, vector<2x8x8xbf16>, vector<2x8x8xf32> -> vector<2x8x8xf32>
    "tpu.trace_stop"() : () -> ()
    %cst_27 = arith.constant 0.353553385 : f32
    %66 = vector.broadcast %cst_27 : f32 to vector<2x8x8xf32>
    %67 = arith.mulf %65, %66 : vector<2x8x8xf32>
    %68 = vector.broadcast %41 : vector<1x8x8xf32> to vector<2x8x8xf32>
    %69 = arith.addf %67, %68 : vector<2x8x8xf32>
    %cst_28 = arith.constant dense<0xFF800000> : vector<2x8xf32>
    %70 = vector.multi_reduction <maximumf>, %69, %cst_28 [2] : vector<2x8x8xf32> to vector<2x8xf32>
    %71 = vector.shape_cast %70 : vector<2x8xf32> to vector<2x8x1xf32>
    %72 = vector.broadcast %71 : vector<2x8x1xf32> to vector<2x8x8xf32>
    %73 = arith.subf %69, %72 : vector<2x8x8xf32>
    %74 = math.exp %73 : vector<2x8x8xf32>
    %cst_29 = arith.constant dense<0.000000e+00> : vector<2x8xf32>
    %75 = vector.multi_reduction <add>, %74, %cst_29 [2] : vector<2x8x8xf32> to vector<2x8xf32>
    %76 = vector.shape_cast %75 : vector<2x8xf32> to vector<2x8x1xf32>
    %77 = tpu.reciprocal %76 {approx = true} : vector<2x8x1xf32> -> vector<2x8x1xf32>
    %78 = vector.broadcast %77 : vector<2x8x1xf32> to vector<2x8x8xf32>
    %79 = arith.mulf %74, %78 : vector<2x8x8xf32>
    %80 = arith.truncf %79 : vector<2x8x8xf32> to vector<2x8x8xbf16>
    "tpu.trace_start"() <{level = 10 : i32, message = "bqk,bkd->bqd"}> : () -> ()
    %cst_30 = arith.constant dense<0.000000e+00> : vector<2x8x8xf32>
    %81 = tpu.matmul %80, %64, %cst_30 {dimension_numbers = #tpu.dot_dimension_numbers<[2], [1], [1], [2], [0, 0, 0, 1, 1, 2], [0], [0]>} : vector<2x8x8xbf16>, vector<2x8x8xbf16>, vector<2x8x8xf32> -> vector<2x8x8xf32>
    "tpu.trace_stop"() : () -> ()
    %82 = vector.extract_strided_slice %39 {offsets = [0, 0, 16], sizes = [2, 8, 8], strides = [1, 1, 1]} : vector<2x8x96xbf16> to vector<2x8x8xbf16>
    %83 = vector.extract_strided_slice %39 {offsets = [0, 0, 48], sizes = [2, 8, 8], strides = [1, 1, 1]} : vector<2x8x96xbf16> to vector<2x8x8xbf16>
    %84 = vector.extract_strided_slice %39 {offsets = [0, 0, 80], sizes = [2, 8, 8], strides = [1, 1, 1]} : vector<2x8x96xbf16> to vector<2x8x8xbf16>
    "tpu.trace_start"() <{level = 10 : i32, message = "bqd,bkd->bqk"}> : () -> ()
    %cst_31 = arith.constant dense<0.000000e+00> : vector<2x8x8xf32>
    %85 = tpu.matmul %82, %83, %cst_31 {dimension_numbers = #tpu.dot_dimension_numbers<[2], [2], [1], [1], [0, 0, 0, 1, 1, 1], [0], [0]>} : vector<2x8x8xbf16>, vector<2x8x8xbf16>, vector<2x8x8xf32> -> vector<2x8x8xf32>
    "tpu.trace_stop"() : () -> ()
    %cst_32 = arith.constant 0.353553385 : f32
    %86 = vector.broadcast %cst_32 : f32 to vector<2x8x8xf32>
    %87 = arith.mulf %85, %86 : vector<2x8x8xf32>
    %88 = vector.broadcast %41 : vector<1x8x8xf32> to vector<2x8x8xf32>
    %89 = arith.addf %87, %88 : vector<2x8x8xf32>
    %cst_33 = arith.constant dense<0xFF800000> : vector<2x8xf32>
    %90 = vector.multi_reduction <maximumf>, %89, %cst_33 [2] : vector<2x8x8xf32> to vector<2x8xf32>
    %91 = vector.shape_cast %90 : vector<2x8xf32> to vector<2x8x1xf32>
    %92 = vector.broadcast %91 : vector<2x8x1xf32> to vector<2x8x8xf32>
    %93 = arith.subf %89, %92 : vector<2x8x8xf32>
    %94 = math.exp %93 : vector<2x8x8xf32>
    %cst_34 = arith.constant dense<0.000000e+00> : vector<2x8xf32>
    %95 = vector.multi_reduction <add>, %94, %cst_34 [2] : vector<2x8x8xf32> to vector<2x8xf32>
    %96 = vector.shape_cast %95 : vector<2x8xf32> to vector<2x8x1xf32>
    %97 = tpu.reciprocal %96 {approx = true} : vector<2x8x1xf32> -> vector<2x8x1xf32>
    %98 = vector.broadcast %97 : vector<2x8x1xf32> to vector<2x8x8xf32>
    %99 = arith.mulf %94, %98 : vector<2x8x8xf32>
    %100 = arith.truncf %99 : vector<2x8x8xf32> to vector<2x8x8xbf16>
    "tpu.trace_start"() <{level = 10 : i32, message = "bqk,bkd->bqd"}> : () -> ()
    %cst_35 = arith.constant dense<0.000000e+00> : vector<2x8x8xf32>
    %101 = tpu.matmul %100, %84, %cst_35 {dimension_numbers = #tpu.dot_dimension_numbers<[2], [1], [1], [2], [0, 0, 0, 1, 1, 2], [0], [0]>} : vector<2x8x8xbf16>, vector<2x8x8xbf16>, vector<2x8x8xf32> -> vector<2x8x8xf32>
    "tpu.trace_stop"() : () -> ()
    %102 = vector.extract_strided_slice %39 {offsets = [0, 0, 24], sizes = [2, 8, 8], strides = [1, 1, 1]} : vector<2x8x96xbf16> to vector<2x8x8xbf16>
    %103 = vector.extract_strided_slice %39 {offsets = [0, 0, 56], sizes = [2, 8, 8], strides = [1, 1, 1]} : vector<2x8x96xbf16> to vector<2x8x8xbf16>
    %104 = vector.extract_strided_slice %39 {offsets = [0, 0, 88], sizes = [2, 8, 8], strides = [1, 1, 1]} : vector<2x8x96xbf16> to vector<2x8x8xbf16>
    "tpu.trace_start"() <{level = 10 : i32, message = "bqd,bkd->bqk"}> : () -> ()
    %cst_36 = arith.constant dense<0.000000e+00> : vector<2x8x8xf32>
    %105 = tpu.matmul %102, %103, %cst_36 {dimension_numbers = #tpu.dot_dimension_numbers<[2], [2], [1], [1], [0, 0, 0, 1, 1, 1], [0], [0]>} : vector<2x8x8xbf16>, vector<2x8x8xbf16>, vector<2x8x8xf32> -> vector<2x8x8xf32>
    "tpu.trace_stop"() : () -> ()
    %cst_37 = arith.constant 0.353553385 : f32
    %106 = vector.broadcast %cst_37 : f32 to vector<2x8x8xf32>
    %107 = arith.mulf %105, %106 : vector<2x8x8xf32>
    %108 = vector.broadcast %41 : vector<1x8x8xf32> to vector<2x8x8xf32>
    %109 = arith.addf %107, %108 : vector<2x8x8xf32>
    %cst_38 = arith.constant dense<0xFF800000> : vector<2x8xf32>
    %110 = vector.multi_reduction <maximumf>, %109, %cst_38 [2] : vector<2x8x8xf32> to vector<2x8xf32>
    %111 = vector.shape_cast %110 : vector<2x8xf32> to vector<2x8x1xf32>
    %112 = vector.broadcast %111 : vector<2x8x1xf32> to vector<2x8x8xf32>
    %113 = arith.subf %109, %112 : vector<2x8x8xf32>
    %114 = math.exp %113 : vector<2x8x8xf32>
    %cst_39 = arith.constant dense<0.000000e+00> : vector<2x8xf32>
    %115 = vector.multi_reduction <add>, %114, %cst_39 [2] : vector<2x8x8xf32> to vector<2x8xf32>
    %116 = vector.shape_cast %115 : vector<2x8xf32> to vector<2x8x1xf32>
    %117 = tpu.reciprocal %116 {approx = true} : vector<2x8x1xf32> -> vector<2x8x1xf32>
    %118 = vector.broadcast %117 : vector<2x8x1xf32> to vector<2x8x8xf32>
    %119 = arith.mulf %114, %118 : vector<2x8x8xf32>
    %120 = arith.truncf %119 : vector<2x8x8xf32> to vector<2x8x8xbf16>
    "tpu.trace_start"() <{level = 10 : i32, message = "bqk,bkd->bqd"}> : () -> ()
    %cst_40 = arith.constant dense<0.000000e+00> : vector<2x8x8xf32>
    %121 = tpu.matmul %120, %104, %cst_40 {dimension_numbers = #tpu.dot_dimension_numbers<[2], [1], [1], [2], [0, 0, 0, 1, 1, 2], [0], [0]>} : vector<2x8x8xbf16>, vector<2x8x8xbf16>, vector<2x8x8xf32> -> vector<2x8x8xf32>
    "tpu.trace_stop"() : () -> ()
    %122 = tpu.concatenate %61, %81, %101, %121 in 2 : vector<2x8x8xf32>, vector<2x8x8xf32>, vector<2x8x8xf32>, vector<2x8x8xf32> -> vector<2x8x32xf32>
    %123 = vector.shape_cast %122 : vector<2x8x32xf32> to vector<16x32xf32>
    %124 = arith.truncf %123 : vector<16x32xf32> to vector<16x32xbf16>
    %c0_41 = arith.constant 0 : index
    %c0_42 = arith.constant 0 : index
    %c0_43 = arith.constant 0 : index
    %125 = vector.load %arg8[%c0_41, %c0_42, %c0_43] : memref<1x32x32xbf16, #tpu.memory_space<vmem>>, vector<1x32x32xbf16>
    %126 = vector.shape_cast %125 : vector<1x32x32xbf16> to vector<32x32xbf16>
    %cst_44 = arith.constant dense<0.000000e+00> : vector<16x32xf32>
    %127 = tpu.matmul %124, %126, %cst_44 {dimension_numbers = #tpu.dot_dimension_numbers<[1], [0], [0], [1], [0, 0, 1, 1], [], []>} : vector<16x32xbf16>, vector<32x32xbf16>, vector<16x32xf32> -> vector<16x32xf32>
    %128 = arith.addf %3, %127 : vector<16x32xf32>
    %c0_45 = arith.constant 0 : index
    %c0_46 = arith.constant 0 : index
    %c0_47 = arith.constant 0 : index
    %129 = vector.load %arg9[%c0_45, %c0_46, %c0_47] : memref<1x1x32xf32, #tpu.memory_space<vmem>>, vector<1x1x32xf32>
    %130 = vector.shape_cast %129 : vector<1x1x32xf32> to vector<1x32xf32>
    %131 = vector.broadcast %130 : vector<1x32xf32> to vector<16x32xf32>
    %132 = arith.addf %128, %131 : vector<16x32xf32>
    %c0_48 = arith.constant 0 : index
    %c0_49 = arith.constant 0 : index
    %c0_50 = arith.constant 0 : index
    %133 = vector.load %arg10[%c0_48, %c0_49, %c0_50] : memref<1x1x32xf32, #tpu.memory_space<vmem>>, vector<1x1x32xf32>
    %134 = vector.shape_cast %133 : vector<1x1x32xf32> to vector<1x32xf32>
    %c0_51 = arith.constant 0 : index
    %c0_52 = arith.constant 0 : index
    %c0_53 = arith.constant 0 : index
    %135 = vector.load %arg11[%c0_51, %c0_52, %c0_53] : memref<1x1x32xf32, #tpu.memory_space<vmem>>, vector<1x1x32xf32>
    %136 = vector.shape_cast %135 : vector<1x1x32xf32> to vector<1x32xf32>
    %cst_54 = arith.constant dense<0.000000e+00> : vector<16xf32>
    %137 = vector.multi_reduction <add>, %132, %cst_54 [1] : vector<16x32xf32> to vector<16xf32>
    %138 = vector.shape_cast %137 : vector<16xf32> to vector<16x1xf32>
    %cst_55 = arith.constant 3.200000e+01 : f32
    %139 = vector.broadcast %cst_55 : f32 to vector<16x1xf32>
    %140 = arith.divf %138, %139 : vector<16x1xf32>
    %141 = vector.broadcast %140 : vector<16x1xf32> to vector<16x32xf32>
    %142 = arith.subf %132, %141 : vector<16x32xf32>
    %143 = arith.mulf %142, %142 : vector<16x32xf32>
    %cst_56 = arith.constant dense<0.000000e+00> : vector<16xf32>
    %144 = vector.multi_reduction <add>, %143, %cst_56 [1] : vector<16x32xf32> to vector<16xf32>
    %145 = vector.shape_cast %144 : vector<16xf32> to vector<16x1xf32>
    %cst_57 = arith.constant 3.200000e+01 : f32
    %146 = vector.broadcast %cst_57 : f32 to vector<16x1xf32>
    %147 = arith.divf %145, %146 : vector<16x1xf32>
    %148 = vector.broadcast %140 : vector<16x1xf32> to vector<16x32xf32>
    %149 = arith.subf %132, %148 : vector<16x32xf32>
    %cst_58 = arith.constant 9.99999974E-6 : f32
    %150 = vector.broadcast %cst_58 : f32 to vector<16x1xf32>
    %151 = arith.addf %147, %150 : vector<16x1xf32>
    %152 = math.rsqrt %151 : vector<16x1xf32>
    %153 = vector.broadcast %152 : vector<16x1xf32> to vector<16x32xf32>
    %154 = arith.mulf %149, %153 : vector<16x32xf32>
    %155 = vector.broadcast %134 : vector<1x32xf32> to vector<16x32xf32>
    %156 = arith.mulf %154, %155 : vector<16x32xf32>
    %157 = vector.broadcast %136 : vector<1x32xf32> to vector<16x32xf32>
    %158 = arith.addf %156, %157 : vector<16x32xf32>
    %159 = arith.truncf %158 : vector<16x32xf32> to vector<16x32xbf16>
    %c0_59 = arith.constant 0 : index
    %c0_60 = arith.constant 0 : index
    %c0_61 = arith.constant 0 : index
    %160 = vector.load %arg12[%c0_59, %c0_60, %c0_61] : memref<1x32x128xbf16, #tpu.memory_space<vmem>>, vector<1x32x128xbf16>
    %161 = vector.shape_cast %160 : vector<1x32x128xbf16> to vector<32x128xbf16>
    %cst_62 = arith.constant dense<0.000000e+00> : vector<16x128xf32>
    %162 = tpu.matmul %159, %161, %cst_62 {dimension_numbers = #tpu.dot_dimension_numbers<[1], [0], [0], [1], [0, 0, 1, 1], [], []>} : vector<16x32xbf16>, vector<32x128xbf16>, vector<16x128xf32> -> vector<16x128xf32>
    %c0_63 = arith.constant 0 : index
    %c0_64 = arith.constant 0 : index
    %c0_65 = arith.constant 0 : index
    %163 = vector.load %arg13[%c0_63, %c0_64, %c0_65] : memref<1x1x128xf32, #tpu.memory_space<vmem>>, vector<1x1x128xf32>
    %164 = vector.shape_cast %163 : vector<1x1x128xf32> to vector<1x128xf32>
    %165 = vector.broadcast %164 : vector<1x128xf32> to vector<16x128xf32>
    %166 = arith.addf %162, %165 : vector<16x128xf32>
    %cst_66 = arith.constant 1.702000e+00 : f32
    %167 = vector.broadcast %cst_66 : f32 to vector<16x128xf32>
    %168 = arith.mulf %167, %166 : vector<16x128xf32>
    %169 = arith.negf %168 : vector<16x128xf32>
    %170 = math.exp %169 : vector<16x128xf32>
    %cst_67 = arith.constant 1.000000e+00 : f32
    %171 = vector.broadcast %cst_67 : f32 to vector<16x128xf32>
    %172 = arith.addf %171, %170 : vector<16x128xf32>
    %173 = arith.divf %171, %172 : vector<16x128xf32>
    %174 = arith.mulf %166, %173 : vector<16x128xf32>
    %175 = arith.truncf %174 : vector<16x128xf32> to vector<16x128xbf16>
    %c0_68 = arith.constant 0 : index
    %c0_69 = arith.constant 0 : index
    %c0_70 = arith.constant 0 : index
    %176 = vector.load %arg14[%c0_68, %c0_69, %c0_70] : memref<1x128x32xbf16, #tpu.memory_space<vmem>>, vector<1x128x32xbf16>
    %177 = vector.shape_cast %176 : vector<1x128x32xbf16> to vector<128x32xbf16>
    %cst_71 = arith.constant dense<0.000000e+00> : vector<16x32xf32>
    %178 = tpu.matmul %175, %177, %cst_71 {dimension_numbers = #tpu.dot_dimension_numbers<[1], [0], [0], [1], [0, 0, 1, 1], [], []>} : vector<16x128xbf16>, vector<128x32xbf16>, vector<16x32xf32> -> vector<16x32xf32>
    %c0_72 = arith.constant 0 : index
    %c0_73 = arith.constant 0 : index
    %c0_74 = arith.constant 0 : index
    %179 = vector.load %arg15[%c0_72, %c0_73, %c0_74] : memref<1x1x32xf32, #tpu.memory_space<vmem>>, vector<1x1x32xf32>
    %180 = vector.shape_cast %179 : vector<1x1x32xf32> to vector<1x32xf32>
    %181 = vector.broadcast %180 : vector<1x32xf32> to vector<16x32xf32>
    %182 = arith.addf %178, %181 : vector<16x32xf32>
    %183 = arith.addf %132, %182 : vector<16x32xf32>
    %c0_75 = arith.constant 0 : index
    %c0_76 = arith.constant 0 : index
    %184 = vector.load %arg21[%c0_75, %c0_76] : memref<16x32xf32, #tpu.memory_space<vmem>>, vector<16x32xf32>
    tpu.vector_store %arg21[%c0_75, %c0_76], %183 {strides = array<i32>} : memref<16x32xf32, #tpu.memory_space<vmem>>, vector<16x32xf32>,
    %c1_i32 = arith.constant 1 : i32
    %185 = arith.cmpi eq, %arg1, %c1_i32 : i32
    %186 = arith.extui %185 : i1 to i32
    %c0_i32_77 = arith.constant 0 : i32
    %187 = arith.cmpi ne, %186, %c0_i32_77 : i32
    scf.if %187 {
      %c2_i32 = arith.constant 2 : i32
      %188 = arith.muli %arg0, %c2_i32 : i32
      %c0_i32_78 = arith.constant 0 : i32
      %189 = arith.addi %188, %c0_i32_78 : i32
      %190 = arith.index_cast %189 : i32 to index
      %191 = memref.load %arg2[%190] : memref<2xi32, #tpu.memory_space<smem>>
      %c0_i32_79 = arith.constant 0 : i32
      %192 = arith.addi %c0_i32_79, %191 : i32
      %193 = arith.index_cast %192 : i32 to index
      %c0_80 = arith.constant 0 : index
      %194 = vector.load %arg21[%193, %c0_80] : memref<16x32xf32, #tpu.memory_space<vmem>>, vector<1x32xf32>
      %c2_i32_81 = arith.constant 2 : i32
      %195 = arith.muli %arg0, %c2_i32_81 : i32
      %c1_i32_82 = arith.constant 1 : i32
      %196 = arith.addi %195, %c1_i32_82 : i32
      %197 = arith.index_cast %196 : i32 to index
      %198 = memref.load %arg2[%197] : memref<2xi32, #tpu.memory_space<smem>>
      %c8_i32 = arith.constant 8 : i32
      %199 = arith.addi %c8_i32, %198 : i32
      %200 = arith.index_cast %199 : i32 to index
      %c0_83 = arith.constant 0 : index
      %201 = vector.load %arg21[%200, %c0_83] : memref<16x32xf32, #tpu.memory_space<vmem>>, vector<1x32xf32>
      %202 = tpu.concatenate %194, %201 in 0 : vector<1x32xf32>, vector<1x32xf32> -> vector<2x32xf32>
      %c0_84 = arith.constant 0 : index
      %c0_85 = arith.constant 0 : index
      %203 = vector.load %arg17[%c0_84, %c0_85] : memref<1x32xf32, #tpu.memory_space<vmem>>, vector<1x32xf32>
      %c0_86 = arith.constant 0 : index
      %c0_87 = arith.constant 0 : index
      %204 = vector.load %arg18[%c0_86, %c0_87] : memref<1x32xf32, #tpu.memory_space<vmem>>, vector<1x32xf32>
      %cst_88 = arith.constant dense<0.000000e+00> : vector<2xf32>
      %205 = vector.multi_reduction <add>, %202, %cst_88 [1] : vector<2x32xf32> to vector<2xf32>
      %206 = vector.shape_cast %205 : vector<2xf32> to vector<2x1xf32>
      %cst_89 = arith.constant 3.200000e+01 : f32
      %207 = vector.broadcast %cst_89 : f32 to vector<2x1xf32>
      %208 = arith.divf %206, %207 : vector<2x1xf32>
      %209 = vector.broadcast %208 : vector<2x1xf32> to vector<2x32xf32>
      %210 = arith.subf %202, %209 : vector<2x32xf32>
      %211 = arith.mulf %210, %210 : vector<2x32xf32>
      %cst_90 = arith.constant dense<0.000000e+00> : vector<2xf32>
      %212 = vector.multi_reduction <add>, %211, %cst_90 [1] : vector<2x32xf32> to vector<2xf32>
      %213 = vector.shape_cast %212 : vector<2xf32> to vector<2x1xf32>
      %cst_91 = arith.constant 3.200000e+01 : f32
      %214 = vector.broadcast %cst_91 : f32 to vector<2x1xf32>
      %215 = arith.divf %213, %214 : vector<2x1xf32>
      %216 = vector.broadcast %208 : vector<2x1xf32> to vector<2x32xf32>
      %217 = arith.subf %202, %216 : vector<2x32xf32>
      %cst_92 = arith.constant 9.99999974E-6 : f32
      %218 = vector.broadcast %cst_92 : f32 to vector<2x1xf32>
      %219 = arith.addf %215, %218 : vector<2x1xf32>
      %220 = math.rsqrt %219 : vector<2x1xf32>
      %221 = vector.broadcast %220 : vector<2x1xf32> to vector<2x32xf32>
      %222 = arith.mulf %217, %221 : vector<2x32xf32>
      %223 = vector.broadcast %203 : vector<1x32xf32> to vector<2x32xf32>
      %224 = arith.mulf %222, %223 : vector<2x32xf32>
      %225 = vector.broadcast %204 : vector<1x32xf32> to vector<2x32xf32>
      %226 = arith.addf %224, %225 : vector<2x32xf32>
      %227 = arith.truncf %226 : vector<2x32xf32> to vector<2x32xbf16>
      %c0_93 = arith.constant 0 : index
      %c0_94 = arith.constant 0 : index
      %228 = vector.load %arg19[%c0_93, %c0_94] : memref<32x16xbf16, #tpu.memory_space<vmem>>, vector<32x16xbf16>
      %cst_95 = arith.constant dense<0.000000e+00> : vector<2x16xf32>
      %229 = tpu.matmul %227, %228, %cst_95 {dimension_numbers = #tpu.dot_dimension_numbers<[1], [0], [0], [1], [0, 0, 1, 1], [], []>} : vector<2x32xbf16>, vector<32x16xbf16>, vector<2x16xf32> -> vector<2x16xf32>
      %c0_96 = arith.constant 0 : index
      %c0_97 = arith.constant 0 : index
      %c0_98 = arith.constant 0 : index
      %230 = vector.load %arg20[%c0_96, %c0_97, %c0_98] : memref<1x2x16xf32, #tpu.memory_space<vmem>>, vector<1x2x16xf32>
      %231 = vector.shape_cast %230 : vector<1x2x16xf32> to vector<2x16xf32>
      %232 = vector.shape_cast %229 : vector<2x16xf32> to vector<1x2x16xf32>
      tpu.vector_store %arg20[%c0_96, %c0_97, %c0_98], %232 {strides = array<i32>} : memref<1x2x16xf32, #tpu.memory_space<vmem>>, vector<1x2x16xf32>,
    } else {
    }
    return
  }
  func.func @transform_0(%arg0: i32, %arg1: i32, %arg2: memref<2xi32, #tpu.memory_space<smem>>) -> (i32, i32, i32) {
    %c0_i32 = arith.constant 0 : i32
    %c0_i32_0 = arith.constant 0 : i32
    %c0_i32_1 = arith.constant 0 : i32
    return %arg0, %c0_i32, %c0_i32_0 : i32, i32, i32
  }
  func.func @transform_1(%arg0: i32, %arg1: i32, %arg2: memref<2xi32, #tpu.memory_space<smem>>) -> (i32, i32, i32) {
    %c0_i32 = arith.constant 0 : i32
    %c0_i32_0 = arith.constant 0 : i32
    %c0_i32_1 = arith.constant 0 : i32
    return %arg1, %c0_i32, %c0_i32_0 : i32, i32, i32
  }
  func.func @transform_2(%arg0: i32, %arg1: i32, %arg2: memref<2xi32, #tpu.memory_space<smem>>) -> (i32, i32, i32) {
    %c0_i32 = arith.constant 0 : i32
    %c0_i32_0 = arith.constant 0 : i32
    %c0_i32_1 = arith.constant 0 : i32
    return %arg1, %c0_i32, %c0_i32_0 : i32, i32, i32
  }
  func.func @transform_3(%arg0: i32, %arg1: i32, %arg2: memref<2xi32, #tpu.memory_space<smem>>) -> (i32, i32, i32) {
    %c0_i32 = arith.constant 0 : i32
    %c0_i32_0 = arith.constant 0 : i32
    %c0_i32_1 = arith.constant 0 : i32
    return %arg1, %c0_i32, %c0_i32_0 : i32, i32, i32
  }
  func.func @transform_4(%arg0: i32, %arg1: i32, %arg2: memref<2xi32, #tpu.memory_space<smem>>) -> (i32, i32, i32) {
    %c0_i32 = arith.constant 0 : i32
    %c0_i32_0 = arith.constant 0 : i32
    %c0_i32_1 = arith.constant 0 : i32
    return %arg1, %c0_i32, %c0_i32_0 : i32, i32, i32
  }
  func.func @transform_5(%arg0: i32, %arg1: i32, %arg2: memref<2xi32, #tpu.memory_space<smem>>) -> (i32, i32, i32) {
    %c0_i32 = arith.constant 0 : i32
    %c0_i32_0 = arith.constant 0 : i32
    %c0_i32_1 = arith.constant 0 : i32
    return %arg1, %c0_i32, %c0_i32_0 : i32, i32, i32
  }
  func.func @transform_6(%arg0: i32, %arg1: i32, %arg2: memref<2xi32, #tpu.memory_space<smem>>) -> (i32, i32, i32) {
    %c0_i32 = arith.constant 0 : i32
    %c0_i32_0 = arith.constant 0 : i32
    %c0_i32_1 = arith.constant 0 : i32
    return %arg1, %c0_i32, %c0_i32_0 : i32, i32, i32
  }
  func.func @transform_7(%arg0: i32, %arg1: i32, %arg2: memref<2xi32, #tpu.memory_space<smem>>) -> (i32, i32, i32) {
    %c0_i32 = arith.constant 0 : i32
    %c0_i32_0 = arith.constant 0 : i32
    %c0_i32_1 = arith.constant 0 : i32
    return %arg1, %c0_i32, %c0_i32_0 : i32, i32, i32
  }
  func.func @transform_8(%arg0: i32, %arg1: i32, %arg2: memref<2xi32, #tpu.memory_space<smem>>) -> (i32, i32, i32) {
    %c0_i32 = arith.constant 0 : i32
    %c0_i32_0 = arith.constant 0 : i32
    %c0_i32_1 = arith.constant 0 : i32
    return %arg1, %c0_i32, %c0_i32_0 : i32, i32, i32
  }
  func.func @transform_9(%arg0: i32, %arg1: i32, %arg2: memref<2xi32, #tpu.memory_space<smem>>) -> (i32, i32, i32) {
    %c0_i32 = arith.constant 0 : i32
    %c0_i32_0 = arith.constant 0 : i32
    %c0_i32_1 = arith.constant 0 : i32
    return %arg1, %c0_i32, %c0_i32_0 : i32, i32, i32
  }
  func.func @transform_10(%arg0: i32, %arg1: i32, %arg2: memref<2xi32, #tpu.memory_space<smem>>) -> (i32, i32, i32) {
    %c0_i32 = arith.constant 0 : i32
    %c0_i32_0 = arith.constant 0 : i32
    %c0_i32_1 = arith.constant 0 : i32
    return %arg1, %c0_i32, %c0_i32_0 : i32, i32, i32
  }
  func.func @transform_11(%arg0: i32, %arg1: i32, %arg2: memref<2xi32, #tpu.memory_space<smem>>) -> (i32, i32, i32) {
    %c0_i32 = arith.constant 0 : i32
    %c0_i32_0 = arith.constant 0 : i32
    %c0_i32_1 = arith.constant 0 : i32
    return %arg1, %c0_i32, %c0_i32_0 : i32, i32, i32
  }
  func.func @transform_12(%arg0: i32, %arg1: i32, %arg2: memref<2xi32, #tpu.memory_space<smem>>) -> (i32, i32, i32) {
    %c0_i32 = arith.constant 0 : i32
    %c0_i32_0 = arith.constant 0 : i32
    %c0_i32_1 = arith.constant 0 : i32
    return %arg1, %c0_i32, %c0_i32_0 : i32, i32, i32
  }
  func.func @transform_13(%arg0: i32, %arg1: i32, %arg2: memref<2xi32, #tpu.memory_space<smem>>) -> (i32, i32) {
    %c0_i32 = arith.constant 0 : i32
    %c0_i32_0 = arith.constant 0 : i32
    %c0_i32_1 = arith.constant 0 : i32
    return %c0_i32, %c0_i32_0 : i32, i32
  }
  func.func @transform_14(%arg0: i32, %arg1: i32, %arg2: memref<2xi32, #tpu.memory_space<smem>>) -> (i32, i32) {
    %c0_i32 = arith.constant 0 : i32
    %c0_i32_0 = arith.constant 0 : i32
    %c0_i32_1 = arith.constant 0 : i32
    return %c0_i32, %c0_i32_0 : i32, i32
  }
  func.func @transform_15(%arg0: i32, %arg1: i32, %arg2: memref<2xi32, #tpu.memory_space<smem>>) -> (i32, i32) {
    %c0_i32 = arith.constant 0 : i32
    %c0_i32_0 = arith.constant 0 : i32
    %c0_i32_1 = arith.constant 0 : i32
    return %c0_i32, %c0_i32_0 : i32, i32
  }
  func.func @transform_16(%arg0: i32, %arg1: i32, %arg2: memref<2xi32, #tpu.memory_space<smem>>) -> (i32, i32) {
    %c0_i32 = arith.constant 0 : i32
    %c0_i32_0 = arith.constant 0 : i32
    %c0_i32_1 = arith.constant 0 : i32
    return %c0_i32, %c0_i32_0 : i32, i32
  }
  func.func @transform_17(%arg0: i32, %arg1: i32, %arg2: memref<2xi32, #tpu.memory_space<smem>>) -> (i32, i32, i32) {
    %c0_i32 = arith.constant 0 : i32
    %c0_i32_0 = arith.constant 0 : i32
    %c0_i32_1 = arith.constant 0 : i32
    return %arg0, %c0_i32, %c0_i32_0 : i32, i32, i32
  }
}

</mosaic_0001>

<llo_original>
// kernel: clip_backbone_forward.3
$region0: #{clip_backbone_forward.3}
  #allocation0 [shape = 'u32[]', space=smem, size = 0x4, offset = 0x4, fixed_abs, tag = 'smem constant byte address 0x4 - core index']
  #allocation1 [shape = 'u32[72,128]{1,0:T(1,128)}', space=vmem, size = 0x9000, scoped, tag = 'internal scratch']
  %s0 = inlined_call_operand.vmem [shape: bf16[32,192], index: 0, kind: input, shape index: {}]
  %s1 = inlined_call_operand.vmem [shape: bf16[192,32], index: 1, kind: input, shape index: {}]
  %s2 = inlined_call_operand.vmem [shape: bf16[32,32], index: 2, kind: output, shape index: {}]
  %s3 = sld [smem:[#allocation0]]
  $region18: #{clip_backbone_forward.3} parent=0
    _
  %s5 = ssub.s32 1, %s3
  %s6 = scalar_select 0, %s5, %s3
  // Predicated region
  $region2: #{clip_backbone_forward.3} parent=0 // pred_check
    _
  $region3: #{clip_backbone_forward.3} parent=0 // pred_check_branch
    %8 = sbr.rel (0) target = $region5
  $region4: #{clip_backbone_forward.3} parent=0 // pred_region
    _
  $region5: #{clip_backbone_forward.3} parent=0 // pred_fallthru
    _
  // Predicated region
  $region6: #{clip_backbone_forward.3} parent=0 // pred_check
    _
  $region7: #{clip_backbone_forward.3} parent=0 // pred_check_branch
    %10 = sbr.rel (0) target = $region9
  $region8: #{clip_backbone_forward.3} parent=0 // pred_region
    _
  $region9: #{clip_backbone_forward.3} parent=0 // pred_fallthru
    _
  %v12 = vld [vmem:[%s0] sm:$0xff]
  %v13 = vld [vmem:[%s0 + $0x8] sm:$0xff]
  %v14 = vld [vmem:[%s0 + $0x10] sm:$0xff]
  %v15 = vld [vmem:[%s0 + $0x18] sm:$0xff]
  %v16 = vld [vmem:[%s1] sm:$0xf]
  %v17 = vld [vmem:[%s1 + $0x4] sm:$0xf]
  %v18 = vld [vmem:[%s1 + $0x8] sm:$0xf]
  %v19 = vld [vmem:[%s1 + $0xc] sm:$0xf]
  %v20 = vld [vmem:[%s1 + $0x10] sm:$0xf]
  %v21 = vld [vmem:[%s1 + $0x14] sm:$0xf]
  %v22 = vld [vmem:[%s1 + $0x18] sm:$0xf]
  %v23 = vld [vmem:[%s1 + $0x1c] sm:$0xf]
  %v24 = vld [vmem:[%s1 + $0x20] sm:$0xf]
  %v25 = vld [vmem:[%s1 + $0x24] sm:$0xf]
  %v26 = vld [vmem:[%s1 + $0x28] sm:$0xf]
  %v27 = vld [vmem:[%s1 + $0x2c] sm:$0xf]
  %v28 = vld [vmem:[%s1 + $0x30] sm:$0xf]
  %v29 = vld [vmem:[%s1 + $0x34] sm:$0xf]
  %v30 = vld [vmem:[%s1 + $0x38] sm:$0xf]
  %v31 = vld [vmem:[%s1 + $0x3c] sm:$0xf]
  %v32 = vld [vmem:[%s1 + $0x40] sm:$0xf]
  %v33 = vld [vmem:[%s1 + $0x44] sm:$0xf]
  %v34 = vld [vmem:[%s1 + $0x48] sm:$0xf]
  %v35 = vld [vmem:[%s1 + $0x4c] sm:$0xf]
  %v36 = vld [vmem:[%s1 + $0x50] sm:$0xf]
  %v37 = vld [vmem:[%s1 + $0x54] sm:$0xf]
  %v38 = vld [vmem:[%s1 + $0x58] sm:$0xf]
  %v39 = vld [vmem:[%s1 + $0x5c] sm:$0xf]
  %v44 = vunpack.c.l.b16 %v12
  %v45 = vunpack.c.h.b16 %v12
  %v46 = vunpack.c.l.b16 %v13
  %v47 = vunpack.c.h.b16 %v13
  %v48 = vunpack.c.l.b16 %v14
  %v49 = vunpack.c.h.b16 %v14
  %v50 = vunpack.c.l.b16 %v15
  %v51 = vunpack.c.h.b16 %v15
  %v52 = vpack.c.b16 %v46, %v44
  %v53 = vpack.c.b16 %v47, %v45
  %v54 = vpack.c.b16 %v50, %v48
  %v55 = vpack.c.b16 %v51, %v49
  %v82 = vunpack.c.l.b16 %v16
  %v83 = vunpack.c.l.b16 %v17
  %v84 = vunpack.c.l.b16 %v18
  %v85 = vunpack.c.l.b16 %v19
  %v86 = vunpack.c.l.b16 %v20
  %v87 = vunpack.c.l.b16 %v21
  %v88 = vunpack.c.l.b16 %v22
  %v89 = vunpack.c.l.b16 %v23
  %v90 = vunpack.c.l.b16 %v24
  %v91 = vunpack.c.l.b16 %v25
  %v92 = vunpack.c.l.b16 %v26
  %v93 = vunpack.c.l.b16 %v27
  %v94 = vunpack.c.l.b16 %v28
  %v95 = vunpack.c.l.b16 %v29
  %v96 = vunpack.c.l.b16 %v30
  %v97 = vunpack.c.l.b16 %v31
  %v98 = vunpack.c.l.b16 %v32
  %v99 = vunpack.c.l.b16 %v33
  %v100 = vunpack.c.l.b16 %v34
  %v101 = vunpack.c.l.b16 %v35
  %v102 = vunpack.c.l.b16 %v36
  %v103 = vunpack.c.l.b16 %v37
  %v104 = vunpack.c.l.b16 %v38
  %v105 = vunpack.c.l.b16 %v39
  %v106 = vpack.c.b16 %v83, %v82
  %v107 = vpack.c.b16 %v85, %v84
  %v108 = vpack.c.b16 %v87, %v86
  %v109 = vpack.c.b16 %v89, %v88
  %v110 = vpack.c.b16 %v91, %v90
  %v111 = vpack.c.b16 %v93, %v92
  %v112 = vpack.c.b16 %v95, %v94
  %v113 = vpack.c.b16 %v97, %v96
  %v114 = vpack.c.b16 %v99, %v98
  %v115 = vpack.c.b16 %v101, %v100
  %v116 = vpack.c.b16 %v103, %v102
  %v117 = vpack.c.b16 %v105, %v104
  %vm130 = vcmask 523264
  %v132 = vsel %vm130, %v53, 0
  %v135 = vsel %vm130, %v55, 0
  %137 = vmatpush.bf16.msra.mxu0 %v113
  %138 = vmatpush.bf16.msra.mxu0 %v112
  %139 = vmatpush.bf16.msra.mxu0 %v111
  %140 = vmatpush.bf16.msra.mxu0 %v110
  %141 = vmatpush.bf16.msra.mxu0 %v109
  %142 = vmatpush.bf16.msra.mxu0 %v108
  %143 = vmatpush.bf16.msra.mxu0 %v107
  %144 = vmatpush.bf16.msra.mxu0 %v106
  %145 = vmatmul.bf16.gmra.mxu0 %v52
  %v146 = vpop.f32.mrf.mxu0
  %v147 = vadd.f32 0.0, %v146
  %v148 = vpop.f32.mrf.mxu0
  %v149 = vadd.f32 0.0, %v148
  %150 = vmatmul.bf16.gmra.mxu0 %v54
  %v151 = vpop.f32.mrf.mxu0
  %v152 = vadd.f32 0.0, %v151
  %v153 = vpop.f32.mrf.mxu0
  %v154 = vadd.f32 0.0, %v153
  %155 = vdwg.mxu0
  %156 = vmatpush.bf16.msra.mxu0 0
  %157 = vmatpush.bf16.msra.mxu0 0
  %158 = vmatpush.bf16.msra.mxu0 0
  %159 = vmatpush.bf16.msra.mxu0 0
  %160 = vmatpush.bf16.msra.mxu0 %v117
  %161 = vmatpush.bf16.msra.mxu0 %v116
  %162 = vmatpush.bf16.msra.mxu0 %v115
  %163 = vmatpush.bf16.msra.mxu0 %v114
  %164 = vmatmul.bf16.gmra.mxu0 %v132
  %v165 = vpop.f32.mrf.mxu0
  %v166 = vadd.f32 %v147, %v165
  %v167 = vpop.f32.mrf.mxu0
  %v168 = vadd.f32 %v149, %v167
  %169 = vmatmul.bf16.gmra.mxu0 %v135
  %v170 = vpop.f32.mrf.mxu0
  %v171 = vadd.f32 %v152, %v170
  %v172 = vpop.f32.mrf.mxu0
  %v173 = vadd.f32 %v154, %v172
  %174 = vdwg.mxu0
  %v175 = vpack.c.bf16 %v166, %v166
  %v176 = vpack.c.bf16 %v168, %v168
  %v177 = vpack.c.bf16 %v171, %v171
  %v178 = vpack.c.bf16 %v173, %v173
  %vm179 = vcmask 257024
  %180 = vst.msk [vmem:[%s2] sm:$0xf] %vm179, %v175
  %181 = vst.msk [vmem:[%s2 + $0x4] sm:$0xf] %vm179, %v176
  %182 = vst.msk [vmem:[%s2 + $0x8] sm:$0xf] %vm179, %v177
  %183 = vst.msk [vmem:[%s2 + $0xc] sm:$0xf] %vm179, %v178
  // Predicated region
  $region10: #{clip_backbone_forward.3} parent=0 // pred_check
    _
  $region11: #{clip_backbone_forward.3} parent=0 // pred_check_branch
    %185 = sbr.rel (0) target = $region13
  $region12: #{clip_backbone_forward.3} parent=0 // pred_region
    _
  $region13: #{clip_backbone_forward.3} parent=0 // pred_fallthru
    _
  // Predicated region
  $region14: #{clip_backbone_forward.3} parent=0 // pred_check
    _
  $region15: #{clip_backbone_forward.3} parent=0 // pred_check_branch
    %187 = sbr.rel (0) target = $region17
  $region16: #{clip_backbone_forward.3} parent=0 // pred_region
    _
  $region17: #{clip_backbone_forward.3} parent=0 // pred_fallthru
    _

// kernel: clip_backbone_forward.5
$region0: #{clip_backbone_forward.5}
  #allocation0 [shape = 'u32[]', space=smem, size = 0x4, offset = 0x4, fixed_abs, tag = 'smem constant byte address 0x4 - core index']
  #allocation1 [shape = 'u32[72,128]{1,0:T(1,128)}', space=vmem, size = 0x9000, scoped, tag = 'internal scratch']
  #allocation2 [shape = 'f32[16,32]{1,0:T(8,128)}', space=vmem, size = 0x2000, scoped, tag = 'scratch operand']
  #allocation3 [shape = 's32[1]{0}', space=sflag, size = 0x4, scoped, tag = 'scoped memory for clip_backbone_forward.5']
  #allocation4 [shape = 'u8[512]{0}', space=smem, size = 0x200, scoped, tag = 'prefetched SMEM operand 0']
  %s0 = inlined_call_operand.vmem [shape: s32[2], index: 0, kind: input, shape index: {}]
  %s1 = inlined_call_operand.vmem [shape: bf16[1,16,32], index: 1, kind: input, shape index: {}]
  %s2 = inlined_call_operand.vmem [shape: f32[2,1,32], index: 2, kind: input, shape index: {}]
  %s3 = inlined_call_operand.vmem [shape: f32[2,1,32], index: 3, kind: input, shape index: {}]
  %s4 = inlined_call_operand.vmem [shape: bf16[2,32,96], index: 4, kind: input, shape index: {}]
  %s5 = inlined_call_operand.vmem [shape: f32[2,1,96], index: 5, kind: input, shape index: {}]
  %s6 = inlined_call_operand.vmem [shape: bf16[2,32,32], index: 6, kind: input, shape index: {}]
  %s7 = inlined_call_operand.vmem [shape: f32[2,1,32], index: 7, kind: input, shape index: {}]
  %s8 = inlined_call_operand.vmem [shape: f32[2,1,32], index: 8, kind: input, shape index: {}]
  %s9 = inlined_call_operand.vmem [shape: f32[2,1,32], index: 9, kind: input, shape index: {}]
  %s10 = inlined_call_operand.vmem [shape: bf16[2,32,128], index: 10, kind: input, shape index: {}]
  %s11 = inlined_call_operand.vmem [shape: f32[2,1,128], index: 11, kind: input, shape index: {}]
  %s12 = inlined_call_operand.vmem [shape: bf16[2,128,32], index: 12, kind: input, shape index: {}]
  %s13 = inlined_call_operand.vmem [shape: f32[2,1,32], index: 13, kind: input, shape index: {}]
  %s14 = inlined_call_operand.vmem [shape: f32[8,8], index: 14, kind: input, shape index: {}]
  %s15 = inlined_call_operand.vmem [shape: f32[1,32], index: 15, kind: input, shape index: {}]
  %s16 = inlined_call_operand.vmem [shape: f32[1,32], index: 16, kind: input, shape index: {}]
  %s17 = inlined_call_operand.vmem [shape: bf16[32,16], index: 17, kind: input, shape index: {}]
  %s18 = inlined_call_operand.hbm [shape: f32[1,2,16], index: 18, kind: output, shape index: {}]
  %s19 = sld [smem:[#allocation0]]
  $region109: #{clip_backbone_forward.5} parent=0
    _
  %s21 = ssub.s32 1, %s19
  %s22 = scalar_select 0, %s21, %s19
  %s24 = sshll.u32 %s0, 4
  %s25 = int_to_ptr.vmem [resolvable:$true] %s24
  %27 = dma.vmem_to_smem %s25, 16, [#allocation4], [#allocation3]
  %29 = dma.done [#allocation3], 16
  %30 = sfence
  $region1: #{clip_backbone_forward.5} parent=0
    #allocation5 [shape = 'u8[1024]{0}', space=vmem, size = 0x400, scoped, tag = 'output window, operand 0, single buffered']
    #allocation6 [shape = 's32[2]{0}', space=sflag, size = 0x8, scoped, tag = 'scoped memory for clip_backbone_forward.5']
    %31 = vsyncpa [#allocation6], 0
    loop: start=0, step=1, limit=4
    $region2: #{clip_backbone_forward.5} parent=1 // loop_pre_header
      _
    $region3: #{clip_backbone_forward.5} parent=1 // loop_header
      %s33 = sphi 0, %s37
      %p34 = scmp.ge.s32.totalorder %s33, 4
      %s40 = sphi 0, %s52
      %s41 = sphi 0, %s48
      %s42 = sphi 0, %s40
      %s43 = sphi 0, %s41
      %s44 = sphi 0, %s42
      %s45 = sphi 0, %s43
      %s55 = sphi 0, %s57
      %s58 = sphi 0, %s55
      %s59 = sphi 0, %s58
      %s75 = sphi 0, %s59
      %s81 = sphi 0, %s83
      %s84 = sphi 0, %s81
      %s85 = sphi 0, %s84
      %s101 = sphi 0, %s85
      %s107 = sphi 0, %s109
      %s110 = sphi 0, %s107
      %s111 = sphi 0, %s110
      %s127 = sphi 0, %s111
      %s133 = sphi 0, %s135
      %s136 = sphi 0, %s133
      %s137 = sphi 0, %s136
      %s153 = sphi 0, %s137
      %s159 = sphi 0, %s161
      %s162 = sphi 0, %s159
      %s163 = sphi 0, %s162
      %s179 = sphi 0, %s163
      %s185 = sphi 0, %s187
      %s188 = sphi 0, %s185
      %s189 = sphi 0, %s188
      %s205 = sphi 0, %s189
      %s211 = sphi 0, %s213
      %s214 = sphi 0, %s211
      %s215 = sphi 0, %s214
      %s231 = sphi 0, %s215
      %s237 = sphi 0, %s239
      %s240 = sphi 0, %s237
      %s241 = sphi 0, %s240
      %s257 = sphi 0, %s241
      %s263 = sphi 0, %s265
      %s266 = sphi 0, %s263
      %s267 = sphi 0, %s266
      %s283 = sphi 0, %s267
      %s289 = sphi 0, %s291
      %s292 = sphi 0, %s289
      %s293 = sphi 0, %s292
      %s309 = sphi 0, %s293
      %s315 = sphi 0, %s317
      %s318 = sphi 0, %s315
      %s319 = sphi 0, %s318
      %s335 = sphi 0, %s319
      %s341 = sphi 0, %s343
      %s344 = sphi 0, %s341
      %s345 = sphi 0, %s344
      %s361 = sphi 0, %s345
      %s367 = sphi 0, %s369
      %s370 = sphi 0, %s367
      %s371 = sphi 0, %s370
      %s387 = sphi 0, %s371
      %s391 = sphi 0, %s391
      %s393 = sphi 0, %s391
      %s394 = sphi 0, %s393
      %s408 = sphi 0, %s394
      %s412 = sphi 0, %s412
      %s414 = sphi 0, %s412
      %s415 = sphi 0, %s414
      %s429 = sphi 0, %s415
      %s433 = sphi 0, %s433
      %s435 = sphi 0, %s433
      %s436 = sphi 0, %s435
      %s450 = sphi 0, %s436
      %s454 = sphi 0, %s454
      %s456 = sphi 0, %s454
      %s457 = sphi 0, %s456
      %s471 = sphi 0, %s457
      %s477 = sphi 0, %s479
      %s480 = sphi 0, %s477
      %s481 = sphi 0, %s480
      %s497 = sphi 0, %s481
    $region4: #{clip_backbone_forward.5} parent=1 // loop_header_branch
      %36 = sbr.rel (%p34) target = $region8
    $region5: #{clip_backbone_forward.5} parent=1 // loop_body
      %s38 = ssub.s32 %s33, 1
      %s39 = ssub.s32 %s33, 2
      %s46 = sadd.s32 1, %s41
      %p47 = scmp.ge.s32.totalorder %s46, 2
      %s48 = scalar_select %p47, 0, %s46
      %s49 = sadd.s32 1, %s40
      %s50 = scalar_select %p47, %s49, %s40
      %p51 = scmp.ge.s32.totalorder %s50, 1
      %s52 = scalar_select %p51, 0, %s50
      %s53 = ssub.s32 %s40, %s52
      %p54 = scmp.eq.s32.totalorder %s53, 0
      %s56 = sadd.s32 %s55, 1
      %s57 = scalar_select %p54, %s55, %s56
      %p60 = pneg %p54
      %p61 = scmp.eq.s32.totalorder %s33, 1
      %p62 = por %p60, %p61
      %p63 = scmp.ne.s32.totalorder %s55, %s58
      %p64 = scmp.eq.s32.totalorder %s33, 0
      %p65 = por %p63, %p64
      %p66 = scmp.ne.s32.totalorder %s55, %s58
      %p67 = scmp.eq.s32.totalorder %s38, 1
      %p68 = por %p66, %p67
      %p69 = scmp.ne.s32.totalorder %s58, %s59
      %p70 = scmp.eq.s32.totalorder %s38, 0
      %p71 = por %p69, %p70
      %p72 = scmp.ne.s32.totalorder %s58, %s59
      %p73 = scmp.eq.s32.totalorder %s39, 1
      %p74 = por %p72, %p73
      %p76 = scmp.ne.s32.totalorder %s59, %s75
      %p77 = scmp.eq.s32.totalorder %s39, 0
      %p78 = por %p76, %p77
      %s79 = ssub.s32 %s41, %s48
      %p80 = scmp.eq.s32.totalorder %s79, 0
      %s82 = sadd.s32 %s81, 1
      %s83 = scalar_select %p80, %s81, %s82
      %p86 = pneg %p80
      %p87 = scmp.eq.s32.totalorder %s33, 1
      %p88 = por %p86, %p87
      %p89 = scmp.ne.s32.totalorder %s81, %s84
      %p90 = scmp.eq.s32.totalorder %s33, 0
      %p91 = por %p89, %p90
      %p92 = scmp.ne.s32.totalorder %s81, %s84
      %p93 = scmp.eq.s32.totalorder %s38, 1
      %p94 = por %p92, %p93
      %p95 = scmp.ne.s32.totalorder %s84, %s85
      %p96 = scmp.eq.s32.totalorder %s38, 0
      %p97 = por %p95, %p96
      %p98 = scmp.ne.s32.totalorder %s84, %s85
      %p99 = scmp.eq.s32.totalorder %s39, 1
      %p100 = por %p98, %p99
      %p102 = scmp.ne.s32.totalorder %s85, %s101
      %p103 = scmp.eq.s32.totalorder %s39, 0
      %p104 = por %p102, %p103
      %s105 = ssub.s32 %s41, %s48
      %p106 = scmp.eq.s32.totalorder %s105, 0
      %s108 = sadd.s32 %s107, 1
      %s109 = scalar_select %p106, %s107, %s108
      %p112 = pneg %p106
      %p113 = scmp.eq.s32.totalorder %s33, 1
      %p114 = por %p112, %p113
      %p115 = scmp.ne.s32.totalorder %s107, %s110
      %p116 = scmp.eq.s32.totalorder %s33, 0
      %p117 = por %p115, %p116
      %p118 = scmp.ne.s32.totalorder %s107, %s110
      %p119 = scmp.eq.s32.totalorder %s38, 1
      %p120 = por %p118, %p119
      %p121 = scmp.ne.s32.totalorder %s110, %s111
      %p122 = scmp.eq.s32.totalorder %s38, 0
      %p123 = por %p121, %p122
      %p124 = scmp.ne.s32.totalorder %s110, %s111
      %p125 = scmp.eq.s32.totalorder %s39, 1
      %p126 = por %p124, %p125
      %p128 = scmp.ne.s32.totalorder %s111, %s127
      %p129 = scmp.eq.s32.totalorder %s39, 0
      %p130 = por %p128, %p129
      %s131 = ssub.s32 %s41, %s48
      %p132 = scmp.eq.s32.totalorder %s131, 0
      %s134 = sadd.s32 %s133, 1
      %s135 = scalar_select %p132, %s133, %s134
      %p138 = pneg %p132
      %p139 = scmp.eq.s32.totalorder %s33, 1
      %p140 = por %p138, %p139
      %p141 = scmp.ne.s32.totalorder %s133, %s136
      %p142 = scmp.eq.s32.totalorder %s33, 0
      %p143 = por %p141, %p142
      %p144 = scmp.ne.s32.totalorder %s133, %s136
      %p145 = scmp.eq.s32.totalorder %s38, 1
      %p146 = por %p144, %p145
      %p147 = scmp.ne.s32.totalorder %s136, %s137
      %p148 = scmp.eq.s32.totalorder %s38, 0
      %p149 = por %p147, %p148
      %p150 = scmp.ne.s32.totalorder %s136, %s137
      %p151 = scmp.eq.s32.totalorder %s39, 1
      %p152 = por %p150, %p151
      %p154 = scmp.ne.s32.totalorder %s137, %s153
      %p155 = scmp.eq.s32.totalorder %s39, 0
      %p156 = por %p154, %p155
      %s157 = ssub.s32 %s41, %s48
      %p158 = scmp.eq.s32.totalorder %s157, 0
      %s160 = sadd.s32 %s159, 1
      %s161 = scalar_select %p158, %s159, %s160
      %p164 = pneg %p158
      %p165 = scmp.eq.s32.totalorder %s33, 1
      %p166 = por %p164, %p165
      %p167 = scmp.ne.s32.totalorder %s159, %s162
      %p168 = scmp.eq.s32.totalorder %s33, 0
      %p169 = por %p167, %p168
      %p170 = scmp.ne.s32.totalorder %s159, %s162
      %p171 = scmp.eq.s32.totalorder %s38, 1
      %p172 = por %p170, %p171
      %p173 = scmp.ne.s32.totalorder %s162, %s163
      %p174 = scmp.eq.s32.totalorder %s38, 0
      %p175 = por %p173, %p174
      %p176 = scmp.ne.s32.totalorder %s162, %s163
      %p177 = scmp.eq.s32.totalorder %s39, 1
      %p178 = por %p176, %p177
      %p180 = scmp.ne.s32.totalorder %s163, %s179
      %p181 = scmp.eq.s32.totalorder %s39, 0
      %p182 = por %p180, %p181
      %s183 = ssub.s32 %s41, %s48
      %p184 = scmp.eq.s32.totalorder %s183, 0
      %s186 = sadd.s32 %s185, 1
      %s187 = scalar_select %p184, %s185, %s186
      %p190 = pneg %p184
      %p191 = scmp.eq.s32.totalorder %s33, 1
      %p192 = por %p190, %p191
      %p193 = scmp.ne.s32.totalorder %s185, %s188
      %p194 = scmp.eq.s32.totalorder %s33, 0
      %p195 = por %p193, %p194
      %p196 = scmp.ne.s32.totalorder %s185, %s188
      %p197 = scmp.eq.s32.totalorder %s38, 1
      %p198 = por %p196, %p197
      %p199 = scmp.ne.s32.totalorder %s188, %s189
      %p200 = scmp.eq.s32.totalorder %s38, 0
      %p201 = por %p199, %p200
      %p202 = scmp.ne.s32.totalorder %s188, %s189
      %p203 = scmp.eq.s32.totalorder %s39, 1
      %p204 = por %p202, %p203
      %p206 = scmp.ne.s32.totalorder %s189, %s205
      %p207 = scmp.eq.s32.totalorder %s39, 0
      %p208 = por %p206, %p207
      %s209 = ssub.s32 %s41, %s48
      %p210 = scmp.eq.s32.totalorder %s209, 0
      %s212 = sadd.s32 %s211, 1
      %s213 = scalar_select %p210, %s211, %s212
      %p216 = pneg %p210
      %p217 = scmp.eq.s32.totalorder %s33, 1
      %p218 = por %p216, %p217
      %p219 = scmp.ne.s32.totalorder %s211, %s214
      %p220 = scmp.eq.s32.totalorder %s33, 0
      %p221 = por %p219, %p220
      %p222 = scmp.ne.s32.totalorder %s211, %s214
      %p223 = scmp.eq.s32.totalorder %s38, 1
      %p224 = por %p222, %p223
      %p225 = scmp.ne.s32.totalorder %s214, %s215
      %p226 = scmp.eq.s32.totalorder %s38, 0
      %p227 = por %p225, %p226
      %p228 = scmp.ne.s32.totalorder %s214, %s215
      %p229 = scmp.eq.s32.totalorder %s39, 1
      %p230 = por %p228, %p229
      %p232 = scmp.ne.s32.totalorder %s215, %s231
      %p233 = scmp.eq.s32.totalorder %s39, 0
      %p234 = por %p232, %p233
      %s235 = ssub.s32 %s41, %s48
      %p236 = scmp.eq.s32.totalorder %s235, 0
      %s238 = sadd.s32 %s237, 1
      %s239 = scalar_select %p236, %s237, %s238
      %p242 = pneg %p236
      %p243 = scmp.eq.s32.totalorder %s33, 1
      %p244 = por %p242, %p243
      %p245 = scmp.ne.s32.totalorder %s237, %s240
      %p246 = scmp.eq.s32.totalorder %s33, 0
      %p247 = por %p245, %p246
      %p248 = scmp.ne.s32.totalorder %s237, %s240
      %p249 = scmp.eq.s32.totalorder %s38, 1
      %p250 = por %p248, %p249
      %p251 = scmp.ne.s32.totalorder %s240, %s241
      %p252 = scmp.eq.s32.totalorder %s38, 0
      %p253 = por %p251, %p252
      %p254 = scmp.ne.s32.totalorder %s240, %s241
      %p255 = scmp.eq.s32.totalorder %s39, 1
      %p256 = por %p254, %p255
      %p258 = scmp.ne.s32.totalorder %s241, %s257
      %p259 = scmp.eq.s32.totalorder %s39, 0
      %p260 = por %p258, %p259
      %s261 = ssub.s32 %s41, %s48
      %p262 = scmp.eq.s32.totalorder %s261, 0
      %s264 = sadd.s32 %s263, 1
      %s265 = scalar_select %p262, %s263, %s264
      %p268 = pneg %p262
      %p269 = scmp.eq.s32.totalorder %s33, 1
      %p270 = por %p268, %p269
      %p271 = scmp.ne.s32.totalorder %s263, %s266
      %p272 = scmp.eq.s32.totalorder %s33, 0
      %p273 = por %p271, %p272
      %p274 = scmp.ne.s32.totalorder %s263, %s266
      %p275 = scmp.eq.s32.totalorder %s38, 1
      %p276 = por %p274, %p275
      %p277 = scmp.ne.s32.totalorder %s266, %s267
      %p278 = scmp.eq.s32.totalorder %s38, 0
      %p279 = por %p277, %p278
      %p280 = scmp.ne.s32.totalorder %s266, %s267
      %p281 = scmp.eq.s32.totalorder %s39, 1
      %p282 = por %p280, %p281
      %p284 = scmp.ne.s32.totalorder %s267, %s283
      %p285 = scmp.eq.s32.totalorder %s39, 0
      %p286 = por %p284, %p285
      %s287 = ssub.s32 %s41, %s48
      %p288 = scmp.eq.s32.totalorder %s287, 0
      %s290 = sadd.s32 %s289, 1
      %s291 = scalar_select %p288, %s289, %s290
      %p294 = pneg %p288
      %p295 = scmp.eq.s32.totalorder %s33, 1
      %p296 = por %p294, %p295
      %p297 = scmp.ne.s32.totalorder %s289, %s292
      %p298 = scmp.eq.s32.totalorder %s33, 0
      %p299 = por %p297, %p298
      %p300 = scmp.ne.s32.totalorder %s289, %s292
      %p301 = scmp.eq.s32.totalorder %s38, 1
      %p302 = por %p300, %p301
      %p303 = scmp.ne.s32.totalorder %s292, %s293
      %p304 = scmp.eq.s32.totalorder %s38, 0
      %p305 = por %p303, %p304
      %p306 = scmp.ne.s32.totalorder %s292, %s293
      %p307 = scmp.eq.s32.totalorder %s39, 1
      %p308 = por %p306, %p307
      %p310 = scmp.ne.s32.totalorder %s293, %s309
      %p311 = scmp.eq.s32.totalorder %s39, 0
      %p312 = por %p310, %p311
      %s313 = ssub.s32 %s41, %s48
      %p314 = scmp.eq.s32.totalorder %s313, 0
      %s316 = sadd.s32 %s315, 1
      %s317 = scalar_select %p314, %s315, %s316
      %p320 = pneg %p314
      %p321 = scmp.eq.s32.totalorder %s33, 1
      %p322 = por %p320, %p321
      %p323 = scmp.ne.s32.totalorder %s315, %s318
      %p324 = scmp.eq.s32.totalorder %s33, 0
      %p325 = por %p323, %p324
      %p326 = scmp.ne.s32.totalorder %s315, %s318
      %p327 = scmp.eq.s32.totalorder %s38, 1
      %p328 = por %p326, %p327
      %p329 = scmp.ne.s32.totalorder %s318, %s319
      %p330 = scmp.eq.s32.totalorder %s38, 0
      %p331 = por %p329, %p330
      %p332 = scmp.ne.s32.totalorder %s318, %s319
      %p333 = scmp.eq.s32.totalorder %s39, 1
      %p334 = por %p332, %p333
      %p336 = scmp.ne.s32.totalorder %s319, %s335
      %p337 = scmp.eq.s32.totalorder %s39, 0
      %p338 = por %p336, %p337
      %s339 = ssub.s32 %s41, %s48
      %p340 = scmp.eq.s32.totalorder %s339, 0
      %s342 = sadd.s32 %s341, 1
      %s343 = scalar_select %p340, %s341, %s342
      %p346 = pneg %p340
      %p347 = scmp.eq.s32.totalorder %s33, 1
      %p348 = por %p346, %p347
      %p349 = scmp.ne.s32.totalorder %s341, %s344
      %p350 = scmp.eq.s32.totalorder %s33, 0
      %p351 = por %p349, %p350
      %p352 = scmp.ne.s32.totalorder %s341, %s344
      %p353 = scmp.eq.s32.totalorder %s38, 1
      %p354 = por %p352, %p353
      %p355 = scmp.ne.s32.totalorder %s344, %s345
      %p356 = scmp.eq.s32.totalorder %s38, 0
      %p357 = por %p355, %p356
      %p358 = scmp.ne.s32.totalorder %s344, %s345
      %p359 = scmp.eq.s32.totalorder %s39, 1
      %p360 = por %p358, %p359
      %p362 = scmp.ne.s32.totalorder %s345, %s361
      %p363 = scmp.eq.s32.totalorder %s39, 0
      %p364 = por %p362, %p363
      %s365 = ssub.s32 %s41, %s48
      %p366 = scmp.eq.s32.totalorder %s365, 0
      %s368 = sadd.s32 %s367, 1
      %s369 = scalar_select %p366, %s367, %s368
      %p372 = pneg %p366
      %p373 = scmp.eq.s32.totalorder %s33, 1
      %p374 = por %p372, %p373
      %p375 = scmp.ne.s32.totalorder %s367, %s370
      %p376 = scmp.eq.s32.totalorder %s33, 0
      %p377 = por %p375, %p376
      %p378 = scmp.ne.s32.totalorder %s367, %s370
      %p379 = scmp.eq.s32.totalorder %s38, 1
      %p380 = por %p378, %p379
      %p381 = scmp.ne.s32.totalorder %s370, %s371
      %p382 = scmp.eq.s32.totalorder %s38, 0
      %p383 = por %p381, %p382
      %p384 = scmp.ne.s32.totalorder %s370, %s371
      %p385 = scmp.eq.s32.totalorder %s39, 1
      %p386 = por %p384, %p385
      %p388 = scmp.ne.s32.totalorder %s371, %s387
      %p389 = scmp.eq.s32.totalorder %s39, 0
      %p390 = por %p388, %p389
      %s392 = sadd.s32 %s391, 1
      %p395 = scmp.eq.s32.totalorder %s33, 1
      %p396 = scmp.ne.s32.totalorder %s391, %s393
      %p397 = scmp.eq.s32.totalorder %s33, 0
      %p398 = por %p396, %p397
      %p399 = scmp.ne.s32.totalorder %s391, %s393
      %p400 = scmp.eq.s32.totalorder %s38, 1
      %p401 = por %p399, %p400
      %p402 = scmp.ne.s32.totalorder %s393, %s394
      %p403 = scmp.eq.s32.totalorder %s38, 0
      %p404 = por %p402, %p403
      %p405 = scmp.ne.s32.totalorder %s393, %s394
      %p406 = scmp.eq.s32.totalorder %s39, 1
      %p407 = por %p405, %p406
      %p409 = scmp.ne.s32.totalorder %s394, %s408
      %p410 = scmp.eq.s32.totalorder %s39, 0
      %p411 = por %p409, %p410
      %s413 = sadd.s32 %s412, 1
      %p416 = scmp.eq.s32.totalorder %s33, 1
      %p417 = scmp.ne.s32.totalorder %s412, %s414
      %p418 = scmp.eq.s32.totalorder %s33, 0
      %p419 = por %p417, %p418
      %p420 = scmp.ne.s32.totalorder %s412, %s414
      %p421 = scmp.eq.s32.totalorder %s38, 1
      %p422 = por %p420, %p421
      %p423 = scmp.ne.s32.totalorder %s414, %s415
      %p424 = scmp.eq.s32.totalorder %s38, 0
      %p425 = por %p423, %p424
      %p426 = scmp.ne.s32.totalorder %s414, %s415
      %p427 = scmp.eq.s32.totalorder %s39, 1
      %p428 = por %p426, %p427
      %p430 = scmp.ne.s32.totalorder %s415, %s429
      %p431 = scmp.eq.s32.totalorder %s39, 0
      %p432 = por %p430, %p431
      %s434 = sadd.s32 %s433, 1
      %p437 = scmp.eq.s32.totalorder %s33, 1
      %p438 = scmp.ne.s32.totalorder %s433, %s435
      %p439 = scmp.eq.s32.totalorder %s33, 0
      %p440 = por %p438, %p439
      %p441 = scmp.ne.s32.totalorder %s433, %s435
      %p442 = scmp.eq.s32.totalorder %s38, 1
      %p443 = por %p441, %p442
      %p444 = scmp.ne.s32.totalorder %s435, %s436
      %p445 = scmp.eq.s32.totalorder %s38, 0
      %p446 = por %p444, %p445
      %p447 = scmp.ne.s32.totalorder %s435, %s436
      %p448 = scmp.eq.s32.totalorder %s39, 1
      %p449 = por %p447, %p448
      %p451 = scmp.ne.s32.totalorder %s436, %s450
      %p452 = scmp.eq.s32.totalorder %s39, 0
      %p453 = por %p451, %p452
      %s455 = sadd.s32 %s454, 1
      %p458 = scmp.eq.s32.totalorder %s33, 1
      %p459 = scmp.ne.s32.totalorder %s454, %s456
      %p460 = scmp.eq.s32.totalorder %s33, 0
      %p461 = por %p459, %p460
      %p462 = scmp.ne.s32.totalorder %s454, %s456
      %p463 = scmp.eq.s32.totalorder %s38, 1
      %p464 = por %p462, %p463
      %p465 = scmp.ne.s32.totalorder %s456, %s457
      %p466 = scmp.eq.s32.totalorder %s38, 0
      %p467 = por %p465, %p466
      %p468 = scmp.ne.s32.totalorder %s456, %s457
      %p469 = scmp.eq.s32.totalorder %s39, 1
      %p470 = por %p468, %p469
      %p472 = scmp.ne.s32.totalorder %s457, %s471
      %p473 = scmp.eq.s32.totalorder %s39, 0
      %p474 = por %p472, %p473
      %s475 = ssub.s32 %s40, %s52
      %p476 = scmp.eq.s32.totalorder %s475, 0
      %s478 = sadd.s32 %s477, 1
      %s479 = scalar_select %p476, %s477, %s478
      %p482 = pneg %p476
      %p483 = scmp.eq.s32.totalorder %s33, 1
      %p484 = por %p482, %p483
      %p485 = scmp.ne.s32.totalorder %s477, %s480
      %p486 = scmp.eq.s32.totalorder %s33, 0
      %p487 = por %p485, %p486
      %p488 = scmp.ne.s32.totalorder %s477, %s480
      %p489 = scmp.eq.s32.totalorder %s38, 1
      %p490 = por %p488, %p489
      %p491 = scmp.ne.s32.totalorder %s480, %s481
      %p492 = scmp.eq.s32.totalorder %s38, 0
      %p493 = por %p491, %p492
      %p494 = scmp.ne.s32.totalorder %s480, %s481
      %p495 = scmp.eq.s32.totalorder %s39, 1
      %p496 = por %p494, %p495
      %p498 = scmp.ne.s32.totalorder %s481, %s497
      %p499 = scmp.eq.s32.totalorder %s39, 0
      %p500 = por %p498, %p499
      %p501 = scmp.le.s32.totalorder 1, %s33
      %p502 = scmp.lt.s32.totalorder %s33, 3
      %p503 = pnand %p501, %p502
      %p504 = pneg %p503
      // Predicated region
      $region9: #{clip_backbone_forward.5} parent=5 // pred_check
        _
      $region10: #{clip_backbone_forward.5} parent=5 // pred_check_branch
        %506 = sbr.rel (%p503) target = $region12
      $region11: #{clip_backbone_forward.5} parent=5 // pred_region
        %s507 = ssub.s32 %s33, 1
        // Predicated region
        $region13: #{clip_backbone_forward.5} parent=11 // pred_check
          %p508 = pneg %p71
        $region14: #{clip_backbone_forward.5} parent=11 // pred_check_branch
          %510 = sbr.rel (%p508) target = $region16
        $region15: #{clip_backbone_forward.5} parent=11 // pred_region
          %p511 = scmp.lt.s32.totalorder %s42, 0
          %s512 = scalar_select %p511, %s42, 0
          %s513 = smul.addr %s512, 2
          %s514 = smul.addr %s513, 4
          %s515 = scalar_lea.vmem %s1, %s514
        $region16: #{clip_backbone_forward.5} parent=11 // pred_fallthru
          _
        // Predicated region
        $region17: #{clip_backbone_forward.5} parent=11 // pred_check
          %p516 = pneg %p404
        $region18: #{clip_backbone_forward.5} parent=11 // pred_check_branch
          %518 = sbr.rel (%p516) target = $region20
        $region19: #{clip_backbone_forward.5} parent=11 // pred_region
          _
        $region20: #{clip_backbone_forward.5} parent=11 // pred_fallthru
          _
        // Predicated region
        $region21: #{clip_backbone_forward.5} parent=11 // pred_check
          %p519 = pneg %p425
        $region22: #{clip_backbone_forward.5} parent=11 // pred_check_branch
          %521 = sbr.rel (%p519) target = $region24
        $region23: #{clip_backbone_forward.5} parent=11 // pred_region
          _
        $region24: #{clip_backbone_forward.5} parent=11 // pred_fallthru
          _
        // Predicated region
        $region25: #{clip_backbone_forward.5} parent=11 // pred_check
          %p522 = pneg %p446
        $region26: #{clip_backbone_forward.5} parent=11 // pred_check_branch
          %524 = sbr.rel (%p522) target = $region28
        $region27: #{clip_backbone_forward.5} parent=11 // pred_region
          _
        $region28: #{clip_backbone_forward.5} parent=11 // pred_fallthru
          _
        // Predicated region
        $region29: #{clip_backbone_forward.5} parent=11 // pred_check
          %p525 = pneg %p467
        $region30: #{clip_backbone_forward.5} parent=11 // pred_check_branch
          %527 = sbr.rel (%p525) target = $region32
        $region31: #{clip_backbone_forward.5} parent=11 // pred_region
          _
        $region32: #{clip_backbone_forward.5} parent=11 // pred_fallthru
          _
      $region12: #{clip_backbone_forward.5} parent=5 // pred_fallthru
        _
      %p528 = scmp.lt.s32.totalorder %s33, 2
      // Predicated region
      $region33: #{clip_backbone_forward.5} parent=5 // pred_check
        %p529 = pneg %p528
      $region34: #{clip_backbone_forward.5} parent=5 // pred_check_branch
        %531 = sbr.rel (%p529) target = $region36
      $region35: #{clip_backbone_forward.5} parent=5 // pred_region
        // Predicated region
        $region37: #{clip_backbone_forward.5} parent=35 // pred_check
          %p532 = pneg %p91
        $region38: #{clip_backbone_forward.5} parent=35 // pred_check_branch
          %534 = sbr.rel (%p532) target = $region40
        $region39: #{clip_backbone_forward.5} parent=35 // pred_region
          %p535 = scmp.lt.s32.totalorder %s41, 1
          %s536 = scalar_select %p535, %s41, 1
          %s537 = scalar_lea.vmem %s2, %s536
        $region40: #{clip_backbone_forward.5} parent=35 // pred_fallthru
          _
        // Predicated region
        $region41: #{clip_backbone_forward.5} parent=35 // pred_check
          %p538 = pneg %p117
        $region42: #{clip_backbone_forward.5} parent=35 // pred_check_branch
          %540 = sbr.rel (%p538) target = $region44
        $region43: #{clip_backbone_forward.5} parent=35 // pred_region
          %p541 = scmp.lt.s32.totalorder %s41, 1
          %s542 = scalar_select %p541, %s41, 1
          %s543 = scalar_lea.vmem %s3, %s542
        $region44: #{clip_backbone_forward.5} parent=35 // pred_fallthru
          _
        // Predicated region
        $region45: #{clip_backbone_forward.5} parent=35 // pred_check
          %p544 = pneg %p143
        $region46: #{clip_backbone_forward.5} parent=35 // pred_check_branch
          %546 = sbr.rel (%p544) target = $region48
        $region47: #{clip_backbone_forward.5} parent=35 // pred_region
          %p547 = scmp.lt.s32.totalorder %s41, 1
          %s548 = scalar_select %p547, %s41, 1
          %s549 = smul.addr %s548, 4
          %s550 = smul.addr %s549, 4
          %s551 = scalar_lea.vmem %s4, %s550
        $region48: #{clip_backbone_forward.5} parent=35 // pred_fallthru
          _
        // Predicated region
        $region49: #{clip_backbone_forward.5} parent=35 // pred_check
          %p552 = pneg %p169
        $region50: #{clip_backbone_forward.5} parent=35 // pred_check_branch
          %554 = sbr.rel (%p552) target = $region52
        $region51: #{clip_backbone_forward.5} parent=35 // pred_region
          %p555 = scmp.lt.s32.totalorder %s41, 1
          %s556 = scalar_select %p555, %s41, 1
          %s557 = scalar_lea.vmem %s5, %s556
        $region52: #{clip_backbone_forward.5} parent=35 // pred_fallthru
          _
        // Predicated region
        $region53: #{clip_backbone_forward.5} parent=35 // pred_check
          %p558 = pneg %p195
        $region54: #{clip_backbone_forward.5} parent=35 // pred_check_branch
          %560 = sbr.rel (%p558) target = $region56
        $region55: #{clip_backbone_forward.5} parent=35 // pred_region
          %p561 = scmp.lt.s32.totalorder %s41, 1
          %s562 = scalar_select %p561, %s41, 1
          %s563 = smul.addr %s562, 4
          %s564 = smul.addr %s563, 4
          %s565 = scalar_lea.vmem %s6, %s564
        $region56: #{clip_backbone_forward.5} parent=35 // pred_fallthru
          _
        // Predicated region
        $region57: #{clip_backbone_forward.5} parent=35 // pred_check
          %p566 = pneg %p221
        $region58: #{clip_backbone_forward.5} parent=35 // pred_check_branch
          %568 = sbr.rel (%p566) target = $region60
        $region59: #{clip_backbone_forward.5} parent=35 // pred_region
          %p569 = scmp.lt.s32.totalorder %s41, 1
          %s570 = scalar_select %p569, %s41, 1
          %s571 = scalar_lea.vmem %s7, %s570
        $region60: #{clip_backbone_forward.5} parent=35 // pred_fallthru
          _
        // Predicated region
        $region61: #{clip_backbone_forward.5} parent=35 // pred_check
          %p572 = pneg %p247
        $region62: #{clip_backbone_forward.5} parent=35 // pred_check_branch
          %574 = sbr.rel (%p572) target = $region64
        $region63: #{clip_backbone_forward.5} parent=35 // pred_region
          %p575 = scmp.lt.s32.totalorder %s41, 1
          %s576 = scalar_select %p575, %s41, 1
          %s577 = scalar_lea.vmem %s8, %s576
        $region64: #{clip_backbone_forward.5} parent=35 // pred_fallthru
          _
        // Predicated region
        $region65: #{clip_backbone_forward.5} parent=35 // pred_check
          %p578 = pneg %p273
        $region66: #{clip_backbone_forward.5} parent=35 // pred_check_branch
          %580 = sbr.rel (%p578) target = $region68
        $region67: #{clip_backbone_forward.5} parent=35 // pred_region
          %p581 = scmp.lt.s32.totalorder %s41, 1
          %s582 = scalar_select %p581, %s41, 1
          %s583 = scalar_lea.vmem %s9, %s582
        $region68: #{clip_backbone_forward.5} parent=35 // pred_fallthru
          _
        // Predicated region
        $region69: #{clip_backbone_forward.5} parent=35 // pred_check
          %p584 = pneg %p299
        $region70: #{clip_backbone_forward.5} parent=35 // pred_check_branch
          %586 = sbr.rel (%p584) target = $region72
        $region71: #{clip_backbone_forward.5} parent=35 // pred_region
          %p587 = scmp.lt.s32.totalorder %s41, 1
          %s588 = scalar_select %p587, %s41, 1
          %s589 = smul.addr %s588, 4
          %s590 = smul.addr %s589, 4
          %s591 = scalar_lea.vmem %s10, %s590
        $region72: #{clip_backbone_forward.5} parent=35 // pred_fallthru
          _
        // Predicated region
        $region73: #{clip_backbone_forward.5} parent=35 // pred_check
          %p592 = pneg %p325
        $region74: #{clip_backbone_forward.5} parent=35 // pred_check_branch
          %594 = sbr.rel (%p592) target = $region76
        $region75: #{clip_backbone_forward.5} parent=35 // pred_region
          %p595 = scmp.lt.s32.totalorder %s41, 1
          %s596 = scalar_select %p595, %s41, 1
          %s597 = scalar_lea.vmem %s11, %s596
        $region76: #{clip_backbone_forward.5} parent=35 // pred_fallthru
          _
        // Predicated region
        $region77: #{clip_backbone_forward.5} parent=35 // pred_check
          %p598 = pneg %p351
        $region78: #{clip_backbone_forward.5} parent=35 // pred_check_branch
          %600 = sbr.rel (%p598) target = $region80
        $region79: #{clip_backbone_forward.5} parent=35 // pred_region
          %p601 = scmp.lt.s32.totalorder %s41, 1
          %s602 = scalar_select %p601, %s41, 1
          %s603 = smul.addr %s602, 16
          %s604 = smul.addr %s603, 4
          %s605 = scalar_lea.vmem %s12, %s604
        $region80: #{clip_backbone_forward.5} parent=35 // pred_fallthru
          _
        // Predicated region
        $region81: #{clip_backbone_forward.5} parent=35 // pred_check
          %p606 = pneg %p377
        $region82: #{clip_backbone_forward.5} parent=35 // pred_check_branch
          %608 = sbr.rel (%p606) target = $region84
        $region83: #{clip_backbone_forward.5} parent=35 // pred_region
          %p609 = scmp.lt.s32.totalorder %s41, 1
          %s610 = scalar_select %p609, %s41, 1
          %s611 = scalar_lea.vmem %s13, %s610
        $region84: #{clip_backbone_forward.5} parent=35 // pred_fallthru
          _
      $region36: #{clip_backbone_forward.5} parent=5 // pred_fallthru
        _
      %p612 = scmp.le.s32.totalorder 1, %s33
      %p613 = scmp.lt.s32.totalorder %s33, 3
      %p614 = pnand %p612, %p613
      %p615 = pneg %p614
      // Predicated region
      $region85: #{clip_backbone_forward.5} parent=5 // pred_check
        _
      $region86: #{clip_backbone_forward.5} parent=5 // pred_check_branch
        %617 = sbr.rel (%p614) target = $region88
      $region87: #{clip_backbone_forward.5} parent=5 // pred_region
        %s618 = ssub.s32 %s33, 1
        %p619 = scmp.lt.s32.totalorder %s42, 0
        %s620 = scalar_select %p619, %s42, 0
        %s621 = smul.addr %s620, 2
        %s622 = smul.addr %s621, 4
        %s623 = scalar_lea.vmem %s1, %s622
        %p624 = pneg %p71
        %p625 = pneg %p68
        %p626 = scmp.lt.s32.totalorder %s43, 1
        %s627 = scalar_select %p626, %s43, 1
        %s628 = scalar_lea.vmem %s2, %s627
        %p629 = pneg %p97
        %p630 = pneg %p94
        %p631 = scmp.lt.s32.totalorder %s43, 1
        %s632 = scalar_select %p631, %s43, 1
        %s633 = scalar_lea.vmem %s3, %s632
        %p634 = pneg %p123
        %p635 = pneg %p120
        %p636 = scmp.lt.s32.totalorder %s43, 1
        %s637 = scalar_select %p636, %s43, 1
        %s638 = smul.addr %s637, 4
        %s639 = smul.addr %s638, 4
        %s640 = scalar_lea.vmem %s4, %s639
        %p641 = pneg %p149
        %p642 = pneg %p146
        %p643 = scmp.lt.s32.totalorder %s43, 1
        %s644 = scalar_select %p643, %s43, 1
        %s645 = scalar_lea.vmem %s5, %s644
        %p646 = pneg %p175
        %p647 = pneg %p172
        %p648 = scmp.lt.s32.totalorder %s43, 1
        %s649 = scalar_select %p648, %s43, 1
        %s650 = smul.addr %s649, 4
        %s651 = smul.addr %s650, 4
        %s652 = scalar_lea.vmem %s6, %s651
        %p653 = pneg %p201
        %p654 = pneg %p198
        %p655 = scmp.lt.s32.totalorder %s43, 1
        %s656 = scalar_select %p655, %s43, 1
        %s657 = scalar_lea.vmem %s7, %s656
        %p658 = pneg %p227
        %p659 = pneg %p224
        %p660 = scmp.lt.s32.totalorder %s43, 1
        %s661 = scalar_select %p660, %s43, 1
        %s662 = scalar_lea.vmem %s8, %s661
        %p663 = pneg %p253
        %p664 = pneg %p250
        %p665 = scmp.lt.s32.totalorder %s43, 1
        %s666 = scalar_select %p665, %s43, 1
        %s667 = scalar_lea.vmem %s9, %s666
        %p668 = pneg %p279
        %p669 = pneg %p276
        %p670 = scmp.lt.s32.totalorder %s43, 1
        %s671 = scalar_select %p670, %s43, 1
        %s672 = smul.addr %s671, 4
        %s673 = smul.addr %s672, 4
        %s674 = scalar_lea.vmem %s10, %s673
        %p675 = pneg %p305
        %p676 = pneg %p302
        %p677 = scmp.lt.s32.totalorder %s43, 1
        %s678 = scalar_select %p677, %s43, 1
        %s679 = scalar_lea.vmem %s11, %s678
        %p680 = pneg %p331
        %p681 = pneg %p328
        %p682 = scmp.lt.s32.totalorder %s43, 1
        %s683 = scalar_select %p682, %s43, 1
        %s684 = smul.addr %s683, 16
        %s685 = smul.addr %s684, 4
        %s686 = scalar_lea.vmem %s12, %s685
        %p687 = pneg %p357
        %p688 = pneg %p354
        %p689 = scmp.lt.s32.totalorder %s43, 1
        %s690 = scalar_select %p689, %s43, 1
        %s691 = scalar_lea.vmem %s13, %s690
        %p692 = pneg %p383
        %p693 = pneg %p380
        %p694 = pneg %p404
        %p695 = pneg %p401
        %p696 = pneg %p425
        %p697 = pneg %p422
        %p698 = pneg %p446
        %p699 = pneg %p443
        %p700 = pneg %p467
        %p701 = pneg %p464
        %p702 = pneg %p493
        %p703 = pneg %p490
        %p704 = scmp.lt.s32.totalorder %s42, 0
        %s705 = scalar_select %p704, %s42, 0
        %s706 = smul.addr %s705, 2
        %s707 = smul.addr %s706, 4
        %s708 = scalar_lea.vmem %s1, %s707
        %p709 = scmp.lt.s32.totalorder %s43, 1
        %s710 = scalar_select %p709, %s43, 1
        %s711 = scalar_lea.vmem %s2, %s710
        %p712 = scmp.lt.s32.totalorder %s43, 1
        %s713 = scalar_select %p712, %s43, 1
        %s714 = scalar_lea.vmem %s3, %s713
        %p715 = scmp.lt.s32.totalorder %s43, 1
        %s716 = scalar_select %p715, %s43, 1
        %s717 = smul.addr %s716, 4
        %s718 = smul.addr %s717, 4
        %s719 = scalar_lea.vmem %s4, %s718
        %p720 = scmp.lt.s32.totalorder %s43, 1
        %s721 = scalar_select %p720, %s43, 1
        %s722 = scalar_lea.vmem %s5, %s721
        %p723 = scmp.lt.s32.totalorder %s43, 1
        %s724 = scalar_select %p723, %s43, 1
        %s725 = smul.addr %s724, 4
        %s726 = smul.addr %s725, 4
        %s727 = scalar_lea.vmem %s6, %s726
        %p728 = scmp.lt.s32.totalorder %s43, 1
        %s729 = scalar_select %p728, %s43, 1
        %s730 = scalar_lea.vmem %s7, %s729
        %p731 = scmp.lt.s32.totalorder %s43, 1
        %s732 = scalar_select %p731, %s43, 1
        %s733 = scalar_lea.vmem %s8, %s732
        %p734 = scmp.lt.s32.totalorder %s43, 1
        %s735 = scalar_select %p734, %s43, 1
        %s736 = scalar_lea.vmem %s9, %s735
        %p737 = scmp.lt.s32.totalorder %s43, 1
        %s738 = scalar_select %p737, %s43, 1
        %s739 = smul.addr %s738, 4
        %s740 = smul.addr %s739, 4
        %s741 = scalar_lea.vmem %s10, %s740
        %p742 = scmp.lt.s32.totalorder %s43, 1
        %s743 = scalar_select %p742, %s43, 1
        %s744 = scalar_lea.vmem %s11, %s743
        %p745 = scmp.lt.s32.totalorder %s43, 1
        %s746 = scalar_select %p745, %s43, 1
        %s747 = smul.addr %s746, 16
        %s748 = smul.addr %s747, 4
        %s749 = scalar_lea.vmem %s12, %s748
        %p750 = scmp.lt.s32.totalorder %s43, 1
        %s751 = scalar_select %p750, %s43, 1
        %s752 = scalar_lea.vmem %s13, %s751
        %p754 = scmp.eq.s32.totalorder %s43, 0
        // Predicated region
        $region89: #{clip_backbone_forward.5} parent=87 // pred_check
          %p755 = pneg %p754
        $region90: #{clip_backbone_forward.5} parent=87 // pred_check_branch
          %757 = sbr.rel (%p755) target = $region92
        $region91: #{clip_backbone_forward.5} parent=87 // pred_region
          %v758 = vld [vmem:[%s708] sm:$0xf]
          %v759 = vld [vmem:[%s708 + $0x4] sm:$0xf]
          %v760 = vunpack.c.l.bf16 %v758
          %v761 = vunpack.c.l.bf16 %v759
          %vm762 = vcmask 261120
          %763 = vst.msk [vmem:[#allocation2] sm:$0xff] %vm762, %v760
          %764 = vst.msk [vmem:[#allocation2 + $0x8] sm:$0xff] %vm762, %v761
        $region92: #{clip_backbone_forward.5} parent=87 // pred_fallthru
          _
        %v765 = vld [vmem:[#allocation2] sm:$0xff]
        %v766 = vld [vmem:[#allocation2 + $0x8] sm:$0xff]
        %v767 = vld [vmem:[%s711] sm:$0x1]
        %v768 = vld [vmem:[%s714] sm:$0x1]
        %vm769 = vcmask 261120
        %v770 = vsel %vm769, %v765, 0.0
        %771 = vadd.xlane.f32.xlu0 %v770
        %v772 = vpop.xlane.xlu0 %771
        %v773 = vsel %vm769, %v766, 0.0
        %774 = vadd.xlane.f32.xlu0 %v773
        %v775 = vpop.xlane.xlu0 %774
        %v776 = vrcp.pop 32.0
        %v777 = vmul.f32 32.0, %v776
        %v778 = vsub.f32 1.0, %v777
        %v779 = vmul.f32 %v776, %v778
        %v780 = vadd.f32 %v776, %v779
        %vm781 = vweird.f32 %v776
        %v782 = vsel %vm781, %v776, %v780
        %v783 = vmul.f32 %v772, %v782
        %v784 = vmul.f32 %v775, %v782
        %v785 = vsub.f32 %v765, %v783
        %v786 = vsub.f32 %v766, %v784
        %v787 = vmul.f32 %v785, %v785
        %v788 = vmul.f32 %v786, %v786
        %v789 = vsel %vm769, %v787, 0.0
        %790 = vadd.xlane.f32.xlu0 %v789
        %v791 = vpop.xlane.xlu0 %790
        %v792 = vsel %vm769, %v788, 0.0
        %793 = vadd.xlane.f32.xlu0 %v792
        %v794 = vpop.xlane.xlu0 %793
        %v795 = vmul.f32 %v791, %v782
        %v796 = vmul.f32 %v794, %v782
        %v797 = vadd.f32 %v795, 1e-05
        %v798 = vadd.f32 %v796, 1e-05
        %v799 = vrsqrt.pop %v797
        %v800 = vmul.f32 %v799, %v797
        %v801 = vmul.f32 %v800, %v799
        %v802 = vmul.f32 0.5, %v801
        %v803 = vsub.f32 1.5, %v802
        %v804 = vmul.f32 %v799, %v803
        %vm805 = vweird.f32 %v797
        %vm806 = vweird.f32 %v799
        %vm807 = vmor %vm805, %vm806
        %v808 = vsel %vm807, %v799, %v804
        %v809 = vrsqrt.pop %v798
        %v810 = vmul.f32 %v809, %v798
        %v811 = vmul.f32 %v810, %v809
        %v812 = vmul.f32 0.5, %v811
        %v813 = vsub.f32 1.5, %v812
        %v814 = vmul.f32 %v809, %v813
        %vm815 = vweird.f32 %v798
        %vm816 = vweird.f32 %v809
        %vm817 = vmor %vm815, %vm816
        %v818 = vsel %vm817, %v809, %v814
        %v819 = vmul.f32 %v785, %v808
        %v820 = vmul.f32 %v786, %v818
        %v822 = vperm.slane %v767, 0
        %v824 = vmul.f32 %v819, %v822
        %v825 = vmul.f32 %v820, %v822
        %v827 = vperm.slane %v768, 0
        %v829 = vadd.f32 %v824, %v827
        %v830 = vadd.f32 %v825, %v827
        %v831 = vpack.c.bf16 %v830, %v829
        %v832 = vld [vmem:[%s719] sm:$0xf]
        %v833 = vld [vmem:[%s719 + $0x4] sm:$0xf]
        %v834 = vld [vmem:[%s719 + $0x8] sm:$0xf]
        %v835 = vld [vmem:[%s719 + $0xc] sm:$0xf]
        %v836 = vld [vmem:[%s722] sm:$0x1]
        %v838 = vperm.slane %v836, 0
        %v844 = vunpack.c.l.b16 %v832
        %v845 = vunpack.c.l.b16 %v833
        %v846 = vunpack.c.l.b16 %v834
        %v847 = vunpack.c.l.b16 %v835
        %v848 = vpack.c.b16 %v845, %v844
        %v849 = vpack.c.b16 %v847, %v846
        %v853 = vsel %vm769, %v831, 0
        %855 = vmatpush.bf16.msra.mxu0 0
        %856 = vmatpush.bf16.msra.mxu0 0
        %857 = vmatpush.bf16.msra.mxu0 0
        %858 = vmatpush.bf16.msra.mxu0 0
        %859 = vmatpush.bf16.msra.mxu0 0
        %860 = vmatpush.bf16.msra.mxu0 0
        %861 = vmatpush.bf16.msra.mxu0 %v849
        %862 = vmatpush.bf16.msra.mxu0 %v848
        %863 = vmatmul.bf16.gmra.mxu0 %v853
        %v864 = vpop.f32.mrf.mxu0
        %v865 = vadd.f32 %v838, %v864
        %v866 = vpop.f32.mrf.mxu0
        %v867 = vadd.f32 %v838, %v866
        %868 = vdwg.mxu0
        %v869 = vpack.c.bf16 %v865, %v865
        %v870 = vpack.c.bf16 %v867, %v867
        %v871 = vld [vmem:[%s14] sm:$0xff]
        %v873 = vunpack.c.l.b16 %v869
        %v874 = vpack.c.b16 %v873, %v873
        %875 = vrot.lane.b32.xlu0 %v874, 96
        %v876 = vpop.permute.xlu0 %875
        %vm877 = vcmask 64512
        %v879 = vsel %vm877, %v869, 0
        %v882 = vsel %vm877, %v876, 0
        %884 = vmatpush.bf16.xpose.msra.mxu0 0
        %885 = vmatpush.bf16.xpose.msra.mxu0 0
        %886 = vmatpush.bf16.xpose.msra.mxu0 0
        %887 = vmatpush.bf16.xpose.msra.mxu0 0
        %888 = vmatpush.bf16.xpose.msra.mxu0 0
        %889 = vmatpush.bf16.xpose.msra.mxu0 0
        %890 = vmatpush.bf16.xpose.msra.mxu0 0
        %891 = vmatpush.bf16.xpose.msra.mxu0 %v882
        %892 = vmatmul.bf16.gmra.mxu0 %v879
        %v893 = vpop.f32.mrf.mxu0
        %v894 = vadd.f32 0.0, %v893
        %v895 = vpop.f32.mrf.mxu0
        %896 = vdwg.mxu0
        %v898 = vunpack.c.l.b16 %v870
        %v899 = vpack.c.b16 %v898, %v898
        %900 = vrot.lane.b32.xlu0 %v899, 96
        %v901 = vpop.permute.xlu0 %900
        %v903 = vsel %vm877, %v870, 0
        %v906 = vsel %vm877, %v901, 0
        %908 = vmatpush.bf16.xpose.msra.mxu0 0
        %909 = vmatpush.bf16.xpose.msra.mxu0 0
        %910 = vmatpush.bf16.xpose.msra.mxu0 0
        %911 = vmatpush.bf16.xpose.msra.mxu0 0
        %912 = vmatpush.bf16.xpose.msra.mxu0 0
        %913 = vmatpush.bf16.xpose.msra.mxu0 0
        %914 = vmatpush.bf16.xpose.msra.mxu0 0
        %915 = vmatpush.bf16.xpose.msra.mxu0 %v906
        %916 = vmatmul.bf16.gmra.mxu0 %v903
        %v917 = vpop.f32.mrf.mxu0
        %v918 = vadd.f32 0.0, %v917
        %v919 = vpop.f32.mrf.mxu0
        %920 = vdwg.mxu0
        %v921 = vmul.f32 %v894, 0.35355338
        %v922 = vmul.f32 %v918, 0.35355338
        %v923 = vadd.f32 %v921, %v871
        %v924 = vadd.f32 %v922, %v871
        %v925 = vsel %vm877, %v923, -inf
        %926 = vmax.xlane.f32.xlu0 %v925
        %v927 = vpop.xlane.xlu0 %926
        %v928 = vsel %vm877, %v924, -inf
        %929 = vmax.xlane.f32.xlu0 %v928
        %v930 = vpop.xlane.xlu0 %929
        %v931 = vsub.f32 %v923, %v927
        %v932 = vsub.f32 %v924, %v930
        %v933 = vmul.f32 %v931, 1.442695
        %v934 = vpow.pop %v933
        %v935 = vmul.f32 %v932, 1.442695
        %v936 = vpow.pop %v935
        %v937 = vsel %vm877, %v934, 0.0
        %938 = vadd.xlane.f32.xlu0 %v937
        %v939 = vpop.xlane.xlu0 %938
        %v940 = vsel %vm877, %v936, 0.0
        %941 = vadd.xlane.f32.xlu0 %v940
        %v942 = vpop.xlane.xlu0 %941
        %v943 = vrcp.pop %v939
        %v944 = vrcp.pop %v942
        %v945 = vmul.f32 %v934, %v943
        %v946 = vmul.f32 %v936, %v944
        %v947 = vpack.c.bf16 %v945, %v945
        %v948 = vpack.c.bf16 %v946, %v946
        %949 = vrot.lane.b32.xlu0 %v874, 64
        %v950 = vpop.permute.xlu0 %949
        %v952 = vsel %vm877, %v947, 0
        %vm954 = vcmask 1043456
        %v956 = vsel %vm954, %v950, 0
        %958 = vmatpush.bf16.msra.mxu0 0
        %959 = vmatpush.bf16.msra.mxu0 0
        %960 = vmatpush.bf16.msra.mxu0 0
        %961 = vmatpush.bf16.msra.mxu0 0
        %962 = vmatpush.bf16.msra.mxu0 0
        %963 = vmatpush.bf16.msra.mxu0 0
        %964 = vmatpush.bf16.msra.mxu0 0
        %965 = vmatpush.bf16.msra.mxu0 %v956
        %966 = vmatmul.bf16.gmra.mxu0 %v952
        %v967 = vpop.f32.mrf.mxu0
        %v968 = vadd.f32 0.0, %v967
        %v969 = vpop.f32.mrf.mxu0
        %970 = vdwg.mxu0
        %971 = vrot.lane.b32.xlu0 %v899, 64
        %v972 = vpop.permute.xlu0 %971
        %v974 = vsel %vm877, %v948, 0
        %v977 = vsel %vm954, %v972, 0
        %979 = vmatpush.bf16.msra.mxu0 0
        %980 = vmatpush.bf16.msra.mxu0 0
        %981 = vmatpush.bf16.msra.mxu0 0
        %982 = vmatpush.bf16.msra.mxu0 0
        %983 = vmatpush.bf16.msra.mxu0 0
        %984 = vmatpush.bf16.msra.mxu0 0
        %985 = vmatpush.bf16.msra.mxu0 0
        %986 = vmatpush.bf16.msra.mxu0 %v977
        %987 = vmatmul.bf16.gmra.mxu0 %v974
        %v988 = vpop.f32.mrf.mxu0
        %v989 = vadd.f32 0.0, %v988
        %v990 = vpop.f32.mrf.mxu0
        %991 = vdwg.mxu0
        %992 = vrot.lane.b32.xlu0 %v874, 120
        %v993 = vpop.permute.xlu0 %992
        %994 = vrot.lane.b32.xlu0 %v874, 88
        %v995 = vpop.permute.xlu0 %994
        %v997 = vsel %vm877, %v993, 0
        %v1000 = vsel %vm877, %v995, 0
        %1002 = vmatpush.bf16.xpose.msra.mxu0 0
        %1003 = vmatpush.bf16.xpose.msra.mxu0 0
        %1004 = vmatpush.bf16.xpose.msra.mxu0 0
        %1005 = vmatpush.bf16.xpose.msra.mxu0 0
        %1006 = vmatpush.bf16.xpose.msra.mxu0 0
        %1007 = vmatpush.bf16.xpose.msra.mxu0 0
        %1008 = vmatpush.bf16.xpose.msra.mxu0 0
        %1009 = vmatpush.bf16.xpose.msra.mxu0 %v1000
        %1010 = vmatmul.bf16.gmra.mxu0 %v997
        %v1011 = vpop.f32.mrf.mxu0
        %v1012 = vadd.f32 0.0, %v1011
        %v1013 = vpop.f32.mrf.mxu0
        %1014 = vdwg.mxu0
        %1015 = vrot.lane.b32.xlu0 %v899, 120
        %v1016 = vpop.permute.xlu0 %1015
        %1017 = vrot.lane.b32.xlu0 %v899, 88
        %v1018 = vpop.permute.xlu0 %1017
        %v1020 = vsel %vm877, %v1016, 0
        %v1023 = vsel %vm877, %v1018, 0
        %1025 = vmatpush.bf16.xpose.msra.mxu0 0
        %1026 = vmatpush.bf16.xpose.msra.mxu0 0
        %1027 = vmatpush.bf16.xpose.msra.mxu0 0
        %1028 = vmatpush.bf16.xpose.msra.mxu0 0
        %1029 = vmatpush.bf16.xpose.msra.mxu0 0
        %1030 = vmatpush.bf16.xpose.msra.mxu0 0
        %1031 = vmatpush.bf16.xpose.msra.mxu0 0
        %1032 = vmatpush.bf16.xpose.msra.mxu0 %v1023
        %1033 = vmatmul.bf16.gmra.mxu0 %v1020
        %v1034 = vpop.f32.mrf.mxu0
        %v1035 = vadd.f32 0.0, %v1034
        %v1036 = vpop.f32.mrf.mxu0
        %1037 = vdwg.mxu0
        %v1038 = vmul.f32 %v1012, 0.35355338
        %v1039 = vmul.f32 %v1035, 0.35355338
        %v1040 = vadd.f32 %v1038, %v871
        %v1041 = vadd.f32 %v1039, %v871
        %v1042 = vsel %vm877, %v1040, -inf
        %1043 = vmax.xlane.f32.xlu0 %v1042
        %v1044 = vpop.xlane.xlu0 %1043
        %v1045 = vsel %vm877, %v1041, -inf
        %1046 = vmax.xlane.f32.xlu0 %v1045
        %v1047 = vpop.xlane.xlu0 %1046
        %v1048 = vsub.f32 %v1040, %v1044
        %v1049 = vsub.f32 %v1041, %v1047
        %v1050 = vmul.f32 %v1048, 1.442695
        %v1051 = vpow.pop %v1050
        %v1052 = vmul.f32 %v1049, 1.442695
        %v1053 = vpow.pop %v1052
        %v1054 = vsel %vm877, %v1051, 0.0
        %1055 = vadd.xlane.f32.xlu0 %v1054
        %v1056 = vpop.xlane.xlu0 %1055
        %v1057 = vsel %vm877, %v1053, 0.0
        %1058 = vadd.xlane.f32.xlu0 %v1057
        %v1059 = vpop.xlane.xlu0 %1058
        %v1060 = vrcp.pop %v1056
        %v1061 = vrcp.pop %v1059
        %v1062 = vmul.f32 %v1051, %v1060
        %v1063 = vmul.f32 %v1053, %v1061
        %v1064 = vpack.c.bf16 %v1062, %v1062
        %v1065 = vpack.c.bf16 %v1063, %v1063
        %1066 = vrot.lane.b32.xlu0 %v874, 56
        %v1067 = vpop.permute.xlu0 %1066
        %v1069 = vsel %vm877, %v1064, 0
        %v1072 = vsel %vm954, %v1067, 0
        %1074 = vmatpush.bf16.msra.mxu0 0
        %1075 = vmatpush.bf16.msra.mxu0 0
        %1076 = vmatpush.bf16.msra.mxu0 0
        %1077 = vmatpush.bf16.msra.mxu0 0
        %1078 = vmatpush.bf16.msra.mxu0 0
        %1079 = vmatpush.bf16.msra.mxu0 0
        %1080 = vmatpush.bf16.msra.mxu0 0
        %1081 = vmatpush.bf16.msra.mxu0 %v1072
        %1082 = vmatmul.bf16.gmra.mxu0 %v1069
        %v1083 = vpop.f32.mrf.mxu0
        %v1084 = vadd.f32 0.0, %v1083
        %v1085 = vpop.f32.mrf.mxu0
        %1086 = vdwg.mxu0
        %1087 = vrot.lane.b32.xlu0 %v899, 56
        %v1088 = vpop.permute.xlu0 %1087
        %v1090 = vsel %vm877, %v1065, 0
        %v1093 = vsel %vm954, %v1088, 0
        %1095 = vmatpush.bf16.msra.mxu0 0
        %1096 = vmatpush.bf16.msra.mxu0 0
        %1097 = vmatpush.bf16.msra.mxu0 0
        %1098 = vmatpush.bf16.msra.mxu0 0
        %1099 = vmatpush.bf16.msra.mxu0 0
        %1100 = vmatpush.bf16.msra.mxu0 0
        %1101 = vmatpush.bf16.msra.mxu0 0
        %1102 = vmatpush.bf16.msra.mxu0 %v1093
        %1103 = vmatmul.bf16.gmra.mxu0 %v1090
        %v1104 = vpop.f32.mrf.mxu0
        %v1105 = vadd.f32 0.0, %v1104
        %v1106 = vpop.f32.mrf.mxu0
        %1107 = vdwg.mxu0
        %1108 = vrot.lane.b32.xlu0 %v874, 112
        %v1109 = vpop.permute.xlu0 %1108
        %1110 = vrot.lane.b32.xlu0 %v874, 80
        %v1111 = vpop.permute.xlu0 %1110
        %v1113 = vsel %vm877, %v1109, 0
        %v1116 = vsel %vm877, %v1111, 0
        %1118 = vmatpush.bf16.xpose.msra.mxu0 0
        %1119 = vmatpush.bf16.xpose.msra.mxu0 0
        %1120 = vmatpush.bf16.xpose.msra.mxu0 0
        %1121 = vmatpush.bf16.xpose.msra.mxu0 0
        %1122 = vmatpush.bf16.xpose.msra.mxu0 0
        %1123 = vmatpush.bf16.xpose.msra.mxu0 0
        %1124 = vmatpush.bf16.xpose.msra.mxu0 0
        %1125 = vmatpush.bf16.xpose.msra.mxu0 %v1116
        %1126 = vmatmul.bf16.gmra.mxu0 %v1113
        %v1127 = vpop.f32.mrf.mxu0
        %v1128 = vadd.f32 0.0, %v1127
        %v1129 = vpop.f32.mrf.mxu0
        %1130 = vdwg.mxu0
        %1131 = vrot.lane.b32.xlu0 %v899, 112
        %v1132 = vpop.permute.xlu0 %1131
        %1133 = vrot.lane.b32.xlu0 %v899, 80
        %v1134 = vpop.permute.xlu0 %1133
        %v1136 = vsel %vm877, %v1132, 0
        %v1139 = vsel %vm877, %v1134, 0
        %1141 = vmatpush.bf16.xpose.msra.mxu0 0
        %1142 = vmatpush.bf16.xpose.msra.mxu0 0
        %1143 = vmatpush.bf16.xpose.msra.mxu0 0
        %1144 = vmatpush.bf16.xpose.msra.mxu0 0
        %1145 = vmatpush.bf16.xpose.msra.mxu0 0
        %1146 = vmatpush.bf16.xpose.msra.mxu0 0
        %1147 = vmatpush.bf16.xpose.msra.mxu0 0
        %1148 = vmatpush.bf16.xpose.msra.mxu0 %v1139
        %1149 = vmatmul.bf16.gmra.mxu0 %v1136
        %v1150 = vpop.f32.mrf.mxu0
        %v1151 = vadd.f32 0.0, %v1150
        %v1152 = vpop.f32.mrf.mxu0
        %1153 = vdwg.mxu0
        %v1154 = vmul.f32 %v1128, 0.35355338
        %v1155 = vmul.f32 %v1151, 0.35355338
        %v1156 = vadd.f32 %v1154, %v871
        %v1157 = vadd.f32 %v1155, %v871
        %v1158 = vsel %vm877, %v1156, -inf
        %1159 = vmax.xlane.f32.xlu0 %v1158
        %v1160 = vpop.xlane.xlu0 %1159
        %v1161 = vsel %vm877, %v1157, -inf
        %1162 = vmax.xlane.f32.xlu0 %v1161
        %v1163 = vpop.xlane.xlu0 %1162
        %v1164 = vsub.f32 %v1156, %v1160
        %v1165 = vsub.f32 %v1157, %v1163
        %v1166 = vmul.f32 %v1164, 1.442695
        %v1167 = vpow.pop %v1166
        %v1168 = vmul.f32 %v1165, 1.442695
        %v1169 = vpow.pop %v1168
        %v1170 = vsel %vm877, %v1167, 0.0
        %1171 = vadd.xlane.f32.xlu0 %v1170
        %v1172 = vpop.xlane.xlu0 %1171
        %v1173 = vsel %vm877, %v1169, 0.0
        %1174 = vadd.xlane.f32.xlu0 %v1173
        %v1175 = vpop.xlane.xlu0 %1174
        %v1176 = vrcp.pop %v1172
        %v1177 = vrcp.pop %v1175
        %v1178 = vmul.f32 %v1167, %v1176
        %v1179 = vmul.f32 %v1169, %v1177
        %v1180 = vpack.c.bf16 %v1178, %v1178
        %v1181 = vpack.c.bf16 %v1179, %v1179
        %1182 = vrot.lane.b32.xlu0 %v874, 48
        %v1183 = vpop.permute.xlu0 %1182
        %v1185 = vsel %vm877, %v1180, 0
        %v1188 = vsel %vm954, %v1183, 0
        %1190 = vmatpush.bf16.msra.mxu0 0
        %1191 = vmatpush.bf16.msra.mxu0 0
        %1192 = vmatpush.bf16.msra.mxu0 0
        %1193 = vmatpush.bf16.msra.mxu0 0
        %1194 = vmatpush.bf16.msra.mxu0 0
        %1195 = vmatpush.bf16.msra.mxu0 0
        %1196 = vmatpush.bf16.msra.mxu0 0
        %1197 = vmatpush.bf16.msra.mxu0 %v1188
        %1198 = vmatmul.bf16.gmra.mxu0 %v1185
        %v1199 = vpop.f32.mrf.mxu0
        %v1200 = vadd.f32 0.0, %v1199
        %v1201 = vpop.f32.mrf.mxu0
        %1202 = vdwg.mxu0
        %1203 = vrot.lane.b32.xlu0 %v899, 48
        %v1204 = vpop.permute.xlu0 %1203
        %v1206 = vsel %vm877, %v1181, 0
        %v1209 = vsel %vm954, %v1204, 0
        %1211 = vmatpush.bf16.msra.mxu0 0
        %1212 = vmatpush.bf16.msra.mxu0 0
        %1213 = vmatpush.bf16.msra.mxu0 0
        %1214 = vmatpush.bf16.msra.mxu0 0
        %1215 = vmatpush.bf16.msra.mxu0 0
        %1216 = vmatpush.bf16.msra.mxu0 0
        %1217 = vmatpush.bf16.msra.mxu0 0
        %1218 = vmatpush.bf16.msra.mxu0 %v1209
        %1219 = vmatmul.bf16.gmra.mxu0 %v1206
        %v1220 = vpop.f32.mrf.mxu0
        %v1221 = vadd.f32 0.0, %v1220
        %v1222 = vpop.f32.mrf.mxu0
        %1223 = vdwg.mxu0
        %1224 = vrot.lane.b32.xlu0 %v874, 104
        %v1225 = vpop.permute.xlu0 %1224
        %1226 = vrot.lane.b32.xlu0 %v874, 72
        %v1227 = vpop.permute.xlu0 %1226
        %v1229 = vsel %vm877, %v1225, 0
        %v1232 = vsel %vm877, %v1227, 0
        %1234 = vmatpush.bf16.xpose.msra.mxu0 0
        %1235 = vmatpush.bf16.xpose.msra.mxu0 0
        %1236 = vmatpush.bf16.xpose.msra.mxu0 0
        %1237 = vmatpush.bf16.xpose.msra.mxu0 0
        %1238 = vmatpush.bf16.xpose.msra.mxu0 0
        %1239 = vmatpush.bf16.xpose.msra.mxu0 0
        %1240 = vmatpush.bf16.xpose.msra.mxu0 0
        %1241 = vmatpush.bf16.xpose.msra.mxu0 %v1232
        %1242 = vmatmul.bf16.gmra.mxu0 %v1229
        %v1243 = vpop.f32.mrf.mxu0
        %v1244 = vadd.f32 0.0, %v1243
        %v1245 = vpop.f32.mrf.mxu0
        %1246 = vdwg.mxu0
        %1247 = vrot.lane.b32.xlu0 %v899, 104
        %v1248 = vpop.permute.xlu0 %1247
        %1249 = vrot.lane.b32.xlu0 %v899, 72
        %v1250 = vpop.permute.xlu0 %1249
        %v1252 = vsel %vm877, %v1248, 0
        %v1255 = vsel %vm877, %v1250, 0
        %1257 = vmatpush.bf16.xpose.msra.mxu0 0
        %1258 = vmatpush.bf16.xpose.msra.mxu0 0
        %1259 = vmatpush.bf16.xpose.msra.mxu0 0
        %1260 = vmatpush.bf16.xpose.msra.mxu0 0
        %1261 = vmatpush.bf16.xpose.msra.mxu0 0
        %1262 = vmatpush.bf16.xpose.msra.mxu0 0
        %1263 = vmatpush.bf16.xpose.msra.mxu0 0
        %1264 = vmatpush.bf16.xpose.msra.mxu0 %v1255
        %1265 = vmatmul.bf16.gmra.mxu0 %v1252
        %v1266 = vpop.f32.mrf.mxu0
        %v1267 = vadd.f32 0.0, %v1266
        %v1268 = vpop.f32.mrf.mxu0
        %1269 = vdwg.mxu0
        %v1270 = vmul.f32 %v1244, 0.35355338
        %v1271 = vmul.f32 %v1267, 0.35355338
        %v1272 = vadd.f32 %v1270, %v871
        %v1273 = vadd.f32 %v1271, %v871
        %v1274 = vsel %vm877, %v1272, -inf
        %1275 = vmax.xlane.f32.xlu0 %v1274
        %v1276 = vpop.xlane.xlu0 %1275
        %v1277 = vsel %vm877, %v1273, -inf
        %1278 = vmax.xlane.f32.xlu0 %v1277
        %v1279 = vpop.xlane.xlu0 %1278
        %v1280 = vsub.f32 %v1272, %v1276
        %v1281 = vsub.f32 %v1273, %v1279
        %v1282 = vmul.f32 %v1280, 1.442695
        %v1283 = vpow.pop %v1282
        %v1284 = vmul.f32 %v1281, 1.442695
        %v1285 = vpow.pop %v1284
        %v1286 = vsel %vm877, %v1283, 0.0
        %1287 = vadd.xlane.f32.xlu0 %v1286
        %v1288 = vpop.xlane.xlu0 %1287
        %v1289 = vsel %vm877, %v1285, 0.0
        %1290 = vadd.xlane.f32.xlu0 %v1289
        %v1291 = vpop.xlane.xlu0 %1290
        %v1292 = vrcp.pop %v1288
        %v1293 = vrcp.pop %v1291
        %v1294 = vmul.f32 %v1283, %v1292
        %v1295 = vmul.f32 %v1285, %v1293
        %v1296 = vpack.c.bf16 %v1294, %v1294
        %v1297 = vpack.c.bf16 %v1295, %v1295
        %1298 = vrot.lane.b32.xlu0 %v874, 40
        %v1299 = vpop.permute.xlu0 %1298
        %v1301 = vsel %vm877, %v1296, 0
        %v1304 = vsel %vm954, %v1299, 0
        %1306 = vmatpush.bf16.msra.mxu0 0
        %1307 = vmatpush.bf16.msra.mxu0 0
        %1308 = vmatpush.bf16.msra.mxu0 0
        %1309 = vmatpush.bf16.msra.mxu0 0
        %1310 = vmatpush.bf16.msra.mxu0 0
        %1311 = vmatpush.bf16.msra.mxu0 0
        %1312 = vmatpush.bf16.msra.mxu0 0
        %1313 = vmatpush.bf16.msra.mxu0 %v1304
        %1314 = vmatmul.bf16.gmra.mxu0 %v1301
        %v1315 = vpop.f32.mrf.mxu0
        %v1316 = vadd.f32 0.0, %v1315
        %v1317 = vpop.f32.mrf.mxu0
        %1318 = vdwg.mxu0
        %1319 = vrot.lane.b32.xlu0 %v899, 40
        %v1320 = vpop.permute.xlu0 %1319
        %v1322 = vsel %vm877, %v1297, 0
        %v1325 = vsel %vm954, %v1320, 0
        %1327 = vmatpush.bf16.msra.mxu0 0
        %1328 = vmatpush.bf16.msra.mxu0 0
        %1329 = vmatpush.bf16.msra.mxu0 0
        %1330 = vmatpush.bf16.msra.mxu0 0
        %1331 = vmatpush.bf16.msra.mxu0 0
        %1332 = vmatpush.bf16.msra.mxu0 0
        %1333 = vmatpush.bf16.msra.mxu0 0
        %1334 = vmatpush.bf16.msra.mxu0 %v1325
        %1335 = vmatmul.bf16.gmra.mxu0 %v1322
        %v1336 = vpop.f32.mrf.mxu0
        %v1337 = vadd.f32 0.0, %v1336
        %v1338 = vpop.f32.mrf.mxu0
        %1339 = vdwg.mxu0
        %1342 = vrot.lane.b32.xlu0 %v1084, 8
        %v1343 = vpop.permute.xlu0 %1342
        %1344 = vrot.lane.b32.xlu0 %v1105, 8
        %v1345 = vpop.permute.xlu0 %1344
        %1350 = vrot.lane.b32.xlu0 %v1200, 16
        %v1351 = vpop.permute.xlu0 %1350
        %1352 = vrot.lane.b32.xlu0 %v1221, 16
        %v1353 = vpop.permute.xlu0 %1352
        %1358 = vrot.lane.b32.xlu0 %v1316, 24
        %v1359 = vpop.permute.xlu0 %1358
        %1360 = vrot.lane.b32.xlu0 %v1337, 24
        %v1361 = vpop.permute.xlu0 %1360
        %v1364 = vsel %vm877, %v968, %v1343
        %v1365 = vsel %vm877, %v989, %v1345
        %vm1366 = vcmask 130048
        %v1367 = vsel %vm1366, %v1364, %v1351
        %v1368 = vsel %vm1366, %v1365, %v1353
        %vm1369 = vcmask 195584
        %v1370 = vsel %vm1369, %v1367, %v1359
        %v1371 = vsel %vm1369, %v1368, %v1361
        %v1372 = vpack.c.bf16 %v1371, %v1370
        %v1373 = vld [vmem:[%s727] sm:$0xf]
        %v1374 = vld [vmem:[%s727 + $0x4] sm:$0xf]
        %v1375 = vld [vmem:[%s727 + $0x8] sm:$0xf]
        %v1376 = vld [vmem:[%s727 + $0xc] sm:$0xf]
        %v1381 = vunpack.c.l.b16 %v1373
        %v1382 = vunpack.c.l.b16 %v1374
        %v1383 = vunpack.c.l.b16 %v1375
        %v1384 = vunpack.c.l.b16 %v1376
        %v1385 = vpack.c.b16 %v1382, %v1381
        %v1386 = vpack.c.b16 %v1384, %v1383
        %v1390 = vsel %vm769, %v1372, 0
        %1392 = vmatpush.bf16.msra.mxu0 0
        %1393 = vmatpush.bf16.msra.mxu0 0
        %1394 = vmatpush.bf16.msra.mxu0 0
        %1395 = vmatpush.bf16.msra.mxu0 0
        %1396 = vmatpush.bf16.msra.mxu0 0
        %1397 = vmatpush.bf16.msra.mxu0 0
        %1398 = vmatpush.bf16.msra.mxu0 %v1386
        %1399 = vmatpush.bf16.msra.mxu0 %v1385
        %1400 = vmatmul.bf16.gmra.mxu0 %v1390
        %v1401 = vpop.f32.mrf.mxu0
        %v1402 = vadd.f32 0.0, %v1401
        %v1403 = vpop.f32.mrf.mxu0
        %v1404 = vadd.f32 0.0, %v1403
        %1405 = vdwg.mxu0
        %v1406 = vadd.f32 %v765, %v1402
        %v1407 = vadd.f32 %v766, %v1404
        %v1408 = vld [vmem:[%s730] sm:$0x1]
        %v1410 = vperm.slane %v1408, 0
        %v1412 = vadd.f32 %v1406, %v1410
        %v1413 = vadd.f32 %v1407, %v1410
        %v1414 = vld [vmem:[%s733] sm:$0x1]
        %v1415 = vld [vmem:[%s736] sm:$0x1]
        %v1416 = vsel %vm769, %v1412, 0.0
        %1417 = vadd.xlane.f32.xlu0 %v1416
        %v1418 = vpop.xlane.xlu0 %1417
        %v1419 = vsel %vm769, %v1413, 0.0
        %1420 = vadd.xlane.f32.xlu0 %v1419
        %v1421 = vpop.xlane.xlu0 %1420
        %v1422 = vmul.f32 %v1418, %v782
        %v1423 = vmul.f32 %v1421, %v782
        %v1424 = vsub.f32 %v1412, %v1422
        %v1425 = vsub.f32 %v1413, %v1423
        %v1426 = vmul.f32 %v1424, %v1424
        %v1427 = vmul.f32 %v1425, %v1425
        %v1428 = vsel %vm769, %v1426, 0.0
        %1429 = vadd.xlane.f32.xlu0 %v1428
        %v1430 = vpop.xlane.xlu0 %1429
        %v1431 = vsel %vm769, %v1427, 0.0
        %1432 = vadd.xlane.f32.xlu0 %v1431
        %v1433 = vpop.xlane.xlu0 %1432
        %v1434 = vmul.f32 %v1430, %v782
        %v1435 = vmul.f32 %v1433, %v782
        %v1436 = vadd.f32 %v1434, 1e-05
        %v1437 = vadd.f32 %v1435, 1e-05
        %v1438 = vrsqrt.pop %v1436
        %v1439 = vmul.f32 %v1438, %v1436
        %v1440 = vmul.f32 %v1439, %v1438
        %v1441 = vmul.f32 0.5, %v1440
        %v1442 = vsub.f32 1.5, %v1441
        %v1443 = vmul.f32 %v1438, %v1442
        %vm1444 = vweird.f32 %v1436
        %vm1445 = vweird.f32 %v1438
        %vm1446 = vmor %vm1444, %vm1445
        %v1447 = vsel %vm1446, %v1438, %v1443
        %v1448 = vrsqrt.pop %v1437
        %v1449 = vmul.f32 %v1448, %v1437
        %v1450 = vmul.f32 %v1449, %v1448
        %v1451 = vmul.f32 0.5, %v1450
        %v1452 = vsub.f32 1.5, %v1451
        %v1453 = vmul.f32 %v1448, %v1452
        %vm1454 = vweird.f32 %v1437
        %vm1455 = vweird.f32 %v1448
        %vm1456 = vmor %vm1454, %vm1455
        %v1457 = vsel %vm1456, %v1448, %v1453
        %v1458 = vmul.f32 %v1424, %v1447
        %v1459 = vmul.f32 %v1425, %v1457
        %v1461 = vperm.slane %v1414, 0
        %v1463 = vmul.f32 %v1458, %v1461
        %v1464 = vmul.f32 %v1459, %v1461
        %v1466 = vperm.slane %v1415, 0
        %v1468 = vadd.f32 %v1463, %v1466
        %v1469 = vadd.f32 %v1464, %v1466
        %v1470 = vpack.c.bf16 %v1469, %v1468
        %v1471 = vld [vmem:[%s741] sm:$0xf]
        %v1472 = vld [vmem:[%s741 + $0x4] sm:$0xf]
        %v1473 = vld [vmem:[%s741 + $0x8] sm:$0xf]
        %v1474 = vld [vmem:[%s741 + $0xc] sm:$0xf]
        %v1475 = vld [vmem:[%s744] sm:$0x1]
        %v1477 = vperm.slane %v1475, 0
        %v1483 = vunpack.c.l.b16 %v1471
        %v1484 = vunpack.c.l.b16 %v1472
        %v1485 = vunpack.c.l.b16 %v1473
        %v1486 = vunpack.c.l.b16 %v1474
        %v1487 = vpack.c.b16 %v1484, %v1483
        %v1488 = vpack.c.b16 %v1486, %v1485
        %v1492 = vsel %vm769, %v1470, 0
        %1494 = vmatpush.bf16.msra.mxu0 0
        %1495 = vmatpush.bf16.msra.mxu0 0
        %1496 = vmatpush.bf16.msra.mxu0 0
        %1497 = vmatpush.bf16.msra.mxu0 0
        %1498 = vmatpush.bf16.msra.mxu0 0
        %1499 = vmatpush.bf16.msra.mxu0 0
        %1500 = vmatpush.bf16.msra.mxu0 %v1488
        %1501 = vmatpush.bf16.msra.mxu0 %v1487
        %1502 = vmatmul.bf16.gmra.mxu0 %v1492
        %v1503 = vpop.f32.mrf.mxu0
        %v1504 = vadd.f32 %v1477, %v1503
        %v1505 = vpop.f32.mrf.mxu0
        %v1506 = vadd.f32 %v1477, %v1505
        %1507 = vdwg.mxu0
        %v1508 = vmul.f32 %v1504, 1.702
        %v1509 = vmul.f32 %v1506, 1.702
        %v1510 = vxor.u32 %v1508, 2147483648
        %v1511 = vxor.u32 %v1509, 2147483648
        %v1512 = vmul.f32 %v1510, 1.442695
        %v1513 = vpow.pop %v1512
        %v1514 = vmul.f32 %v1511, 1.442695
        %v1515 = vpow.pop %v1514
        %v1516 = vadd.f32 %v1513, 1.0
        %v1517 = vadd.f32 %v1515, 1.0
        %v1518 = vrcp.pop %v1516
        %v1519 = vmul.f32 %v1516, %v1518
        %v1520 = vsub.f32 1.0, %v1519
        %v1521 = vmul.f32 %v1518, %v1520
        %v1522 = vadd.f32 %v1518, %v1521
        %vm1523 = vweird.f32 %v1516
        %vm1524 = vweird.f32 %v1518
        %vm1525 = vmor %vm1523, %vm1524
        %v1526 = vsel %vm1525, %v1518, %v1522
        %v1527 = vand.u32 2147483647, %v1516
        %vm1528 = vcmp.eq.f32.partialorder %v1527, 8.507059e+37
        %v1529 = vand.u32 %v1516, 2147483648
        %v1530 = vor.u32 1.1754944e-38, %v1529
        %v1531 = vsel %vm1528, %v1530, %v1526
        %v1532 = vmul.f32 1.0, %v1531
        %v1533 = vrcp.pop %v1517
        %v1534 = vmul.f32 %v1517, %v1533
        %v1535 = vsub.f32 1.0, %v1534
        %v1536 = vmul.f32 %v1533, %v1535
        %v1537 = vadd.f32 %v1533, %v1536
        %vm1538 = vweird.f32 %v1517
        %vm1539 = vweird.f32 %v1533
        %vm1540 = vmor %vm1538, %vm1539
        %v1541 = vsel %vm1540, %v1533, %v1537
        %v1542 = vand.u32 2147483647, %v1517
        %vm1543 = vcmp.eq.f32.partialorder %v1542, 8.507059e+37
        %v1544 = vand.u32 %v1517, 2147483648
        %v1545 = vor.u32 1.1754944e-38, %v1544
        %v1546 = vsel %vm1543, %v1545, %v1541
        %v1547 = vmul.f32 1.0, %v1546
        %v1548 = vmul.f32 %v1504, %v1532
        %v1549 = vmul.f32 %v1506, %v1547
        %v1550 = vpack.c.bf16 %v1549, %v1548
        %v1551 = vld [vmem:[%s749] sm:$0xf]
        %v1552 = vld [vmem:[%s749 + $0x4] sm:$0xf]
        %v1553 = vld [vmem:[%s749 + $0x8] sm:$0xf]
        %v1554 = vld [vmem:[%s749 + $0xc] sm:$0xf]
        %v1555 = vld [vmem:[%s749 + $0x10] sm:$0xf]
        %v1556 = vld [vmem:[%s749 + $0x14] sm:$0xf]
        %v1557 = vld [vmem:[%s749 + $0x18] sm:$0xf]
        %v1558 = vld [vmem:[%s749 + $0x1c] sm:$0xf]
        %v1559 = vld [vmem:[%s749 + $0x20] sm:$0xf]
        %v1560 = vld [vmem:[%s749 + $0x24] sm:$0xf]
        %v1561 = vld [vmem:[%s749 + $0x28] sm:$0xf]
        %v1562 = vld [vmem:[%s749 + $0x2c] sm:$0xf]
        %v1563 = vld [vmem:[%s749 + $0x30] sm:$0xf]
        %v1564 = vld [vmem:[%s749 + $0x34] sm:$0xf]
        %v1565 = vld [vmem:[%s749 + $0x38] sm:$0xf]
        %v1566 = vld [vmem:[%s749 + $0x3c] sm:$0xf]
        %v1567 = vld [vmem:[%s752] sm:$0x1]
        %v1569 = vperm.slane %v1567, 0
        %v1587 = vunpack.c.l.b16 %v1551
        %v1588 = vunpack.c.l.b16 %v1552
        %v1589 = vunpack.c.l.b16 %v1553
        %v1590 = vunpack.c.l.b16 %v1554
        %v1591 = vunpack.c.l.b16 %v1555
        %v1592 = vunpack.c.l.b16 %v1556
        %v1593 = vunpack.c.l.b16 %v1557
        %v1594 = vunpack.c.l.b16 %v1558
        %v1595 = vunpack.c.l.b16 %v1559
        %v1596 = vunpack.c.l.b16 %v1560
        %v1597 = vunpack.c.l.b16 %v1561
        %v1598 = vunpack.c.l.b16 %v1562
        %v1599 = vunpack.c.l.b16 %v1563
        %v1600 = vunpack.c.l.b16 %v1564
        %v1601 = vunpack.c.l.b16 %v1565
        %v1602 = vunpack.c.l.b16 %v1566
        %v1603 = vpack.c.b16 %v1588, %v1587
        %v1604 = vpack.c.b16 %v1590, %v1589
        %v1605 = vpack.c.b16 %v1592, %v1591
        %v1606 = vpack.c.b16 %v1594, %v1593
        %v1607 = vpack.c.b16 %v1596, %v1595
        %v1608 = vpack.c.b16 %v1598, %v1597
        %v1609 = vpack.c.b16 %v1600, %v1599
        %v1610 = vpack.c.b16 %v1602, %v1601
        %1619 = vmatpush.bf16.msra.mxu0 %v1610
        %1620 = vmatpush.bf16.msra.mxu0 %v1609
        %1621 = vmatpush.bf16.msra.mxu0 %v1608
        %1622 = vmatpush.bf16.msra.mxu0 %v1607
        %1623 = vmatpush.bf16.msra.mxu0 %v1606
        %1624 = vmatpush.bf16.msra.mxu0 %v1605
        %1625 = vmatpush.bf16.msra.mxu0 %v1604
        %1626 = vmatpush.bf16.msra.mxu0 %v1603
        %1627 = vmatmul.bf16.gmra.mxu0 %v1550
        %v1628 = vpop.f32.mrf.mxu0
        %v1629 = vadd.f32 %v1569, %v1628
        %v1630 = vpop.f32.mrf.mxu0
        %v1631 = vadd.f32 %v1569, %v1630
        %1632 = vdwg.mxu0
        %v1633 = vadd.f32 %v1412, %v1629
        %v1634 = vadd.f32 %v1413, %v1631
        %1635 = vst.msk [vmem:[#allocation2] sm:$0xff] %vm769, %v1633
        %1636 = vst.msk [vmem:[#allocation2 + $0x8] sm:$0xff] %vm769, %v1634
        %p1637 = scmp.eq.s32.totalorder %s43, 1
        // Predicated region
        $region93: #{clip_backbone_forward.5} parent=87 // pred_check
          %p1638 = pneg %p1637
        $region94: #{clip_backbone_forward.5} parent=87 // pred_check_branch
          %1640 = sbr.rel (%p1638) target = $region96
        $region95: #{clip_backbone_forward.5} parent=87 // pred_region
          %s1641 = smul.u32 %s42, 2
          %s1642 = sld [smem:[#allocation4 + %s1641]]
          %s1643 = scalar_lea.vmem [#allocation2], %s1642
          %v1644 = vld [vmem:[%s1643] sm:$0x1]
          %s1645 = sadd.s32 %s1641, 1
          %s1646 = sld [smem:[#allocation4 + %s1645]]
          %s1647 = sadd.s32 %s1646, 8
          %s1648 = scalar_lea.vmem [#allocation2], %s1647
          %v1649 = vld [vmem:[%s1648] sm:$0x1]
          %v1651 = vrot.slane %v1649, 7
          %vm1653 = vcmask 1040384
          %v1654 = vsel %vm1653, %v1644, %v1651
          %v1655 = vld [vmem:[%s15] sm:$0x1]
          %v1656 = vld [vmem:[%s16] sm:$0x1]
          %vm1657 = vcmask 254976
          %v1658 = vsel %vm1657, %v1654, 0.0
          %1659 = vadd.xlane.f32.xlu0 %v1658
          %v1660 = vpop.xlane.xlu0 %1659
          %v1661 = vmul.f32 %v1660, %v782
          %v1662 = vsub.f32 %v1654, %v1661
          %v1663 = vmul.f32 %v1662, %v1662
          %v1664 = vsel %vm1657, %v1663, 0.0
          %1665 = vadd.xlane.f32.xlu0 %v1664
          %v1666 = vpop.xlane.xlu0 %1665
          %v1667 = vmul.f32 %v1666, %v782
          %v1668 = vadd.f32 %v1667, 1e-05
          %v1669 = vrsqrt.pop %v1668
          %v1670 = vmul.f32 %v1669, %v1668
          %v1671 = vmul.f32 %v1670, %v1669
          %v1672 = vmul.f32 0.5, %v1671
          %v1673 = vsub.f32 1.5, %v1672
          %v1674 = vmul.f32 %v1669, %v1673
          %vm1675 = vweird.f32 %v1668
          %vm1676 = vweird.f32 %v1669
          %vm1677 = vmor %vm1675, %vm1676
          %v1678 = vsel %vm1677, %v1669, %v1674
          %v1679 = vmul.f32 %v1662, %v1678
          %v1681 = vperm.slane %v1655, 0
          %v1683 = vmul.f32 %v1679, %v1681
          %v1685 = vperm.slane %v1656, 0
          %v1687 = vadd.f32 %v1683, %v1685
          %v1688 = vpack.c.bf16 %v1687, %v1687
          %v1689 = vld [vmem:[%s17] sm:$0xf]
          %v1690 = vld [vmem:[%s17 + $0x4] sm:$0xf]
          %v1691 = vld [vmem:[%s17 + $0x8] sm:$0xf]
          %v1692 = vld [vmem:[%s17 + $0xc] sm:$0xf]
          %v1697 = vunpack.c.l.b16 %v1689
          %v1698 = vunpack.c.l.b16 %v1690
          %v1699 = vunpack.c.l.b16 %v1691
          %v1700 = vunpack.c.l.b16 %v1692
          %v1701 = vpack.c.b16 %v1698, %v1697
          %v1702 = vpack.c.b16 %v1700, %v1699
          %v1706 = vsel %vm769, %v1688, 0
          %1708 = vmatpush.bf16.msra.mxu0 0
          %1709 = vmatpush.bf16.msra.mxu0 0
          %1710 = vmatpush.bf16.msra.mxu0 0
          %1711 = vmatpush.bf16.msra.mxu0 0
          %1712 = vmatpush.bf16.msra.mxu0 0
          %1713 = vmatpush.bf16.msra.mxu0 0
          %1714 = vmatpush.bf16.msra.mxu0 %v1702
          %1715 = vmatpush.bf16.msra.mxu0 %v1701
          %1716 = vmatmul.bf16.gmra.mxu0 %v1706
          %v1717 = vpop.f32.mrf.mxu0
          %v1718 = vadd.f32 0.0, %v1717
          %v1719 = vpop.f32.mrf.mxu0
          %1720 = vdwg.mxu0
          %vm1721 = vcmask 123904
          %1722 = vst.msk [vmem:[#allocation5] sm:$0x3] %vm1721, %v1718
        $region96: #{clip_backbone_forward.5} parent=87 // pred_fallthru
          _
        // Predicated region
        $region97: #{clip_backbone_forward.5} parent=87 // pred_check
          %p1723 = pneg %p490
        $region98: #{clip_backbone_forward.5} parent=87 // pred_check_branch
          %1725 = sbr.rel (%p1723) target = $region100
        $region99: #{clip_backbone_forward.5} parent=87 // pred_region
          %1727 = vsyncadd [#allocation6], 0
          %s1728 = smul.addr %s42, 2
          %s1729 = scalar_lea.hbm %s18, %s1728
          %s1731 = sshll.u32 [#allocation5], 4
          %s1732 = int_to_ptr.vmem [resolvable:$true] %s1731
          %s1733 = sshll.u32 %s1729, 4
          %s1734 = int_to_ptr.hbm [resolvable:$true] %s1733
          %1736 = dma.vmem_to_hbm [thread:$0]  %s1732, 32, %s1734, [#allocation6]
        $region100: #{clip_backbone_forward.5} parent=87 // pred_fallthru
          _
        // Predicated region
        $region101: #{clip_backbone_forward.5} parent=87 // pred_check
          %p1737 = pneg %p490
        $region102: #{clip_backbone_forward.5} parent=87 // pred_check_branch
          %1739 = sbr.rel (%p1737) target = $region104
        $region103: #{clip_backbone_forward.5} parent=87 // pred_region
          %1741 = dma.done [#allocation6], 32
        $region104: #{clip_backbone_forward.5} parent=87 // pred_fallthru
          _
      $region88: #{clip_backbone_forward.5} parent=5 // pred_fallthru
        _
      %p1742 = scmp.le.s32.totalorder 2, %s33
      // Predicated region
      $region105: #{clip_backbone_forward.5} parent=5 // pred_check
        %p1743 = pneg %p1742
      $region106: #{clip_backbone_forward.5} parent=5 // pred_check_branch
        %1745 = sbr.rel (%p1743) target = $region108
      $region107: #{clip_backbone_forward.5} parent=5 // pred_region
        %s1746 = ssub.s32 %s33, 2
      $region108: #{clip_backbone_forward.5} parent=5 // pred_fallthru
        _
    $region6: #{clip_backbone_forward.5} parent=1 // loop_footer
      %s37 = sadd.s32 1, %s33
    $region7: #{clip_backbone_forward.5} parent=1 // loop_footer_branch
      %32 = sbr.rel target = $region3
    $region8: #{clip_backbone_forward.5} parent=1 // loop_exit
      _
    %1747 = vsyncpa [#allocation6], 1
    %s1748 = scalar_lea.sflag [#allocation6], 1
    %1749 = vsyncpa %s1748, 1

// kernel: clip_backbone_forward.4
$region0: #{clip_backbone_forward.4}
  #allocation0 [shape = 'u32[]', space=smem, size = 0x4, offset = 0x4, fixed_abs, tag = 'smem constant byte address 0x4 - core index']
  #allocation1 [shape = 'u32[72,128]{1,0:T(1,128)}', space=vmem, size = 0x9000, scoped, tag = 'internal scratch']
  #allocation2 [shape = 'f32[64,32]{1,0:T(8,128)}', space=vmem, size = 0x8000, scoped, tag = 'scratch operand']
  #allocation3 [shape = 's32[1]{0}', space=sflag, size = 0x4, scoped, tag = 'scoped memory for clip_backbone_forward.4']
  #allocation4 [shape = 'u8[512]{0}', space=smem, size = 0x200, scoped, tag = 'prefetched SMEM operand 0']
  %s0 = inlined_call_operand.vmem [shape: s32[8], index: 0, kind: input, shape index: {}]
  %s1 = inlined_call_operand.vmem [shape: bf16[1,64,32], index: 1, kind: input, shape index: {}]
  %s2 = inlined_call_operand.vmem [shape: f32[1,32], index: 2, kind: input, shape index: {}]
  %s3 = inlined_call_operand.vmem [shape: f32[1,32], index: 3, kind: input, shape index: {}]
  %s4 = inlined_call_operand.vmem [shape: f32[2,1,32], index: 4, kind: input, shape index: {}]
  %s5 = inlined_call_operand.vmem [shape: f32[2,1,32], index: 5, kind: input, shape index: {}]
  %s6 = inlined_call_operand.vmem [shape: bf16[2,32,96], index: 6, kind: input, shape index: {}]
  %s7 = inlined_call_operand.vmem [shape: f32[2,1,96], index: 7, kind: input, shape index: {}]
  %s8 = inlined_call_operand.vmem [shape: bf16[2,32,32], index: 8, kind: input, shape index: {}]
  %s9 = inlined_call_operand.vmem [shape: f32[2,1,32], index: 9, kind: input, shape index: {}]
  %s10 = inlined_call_operand.vmem [shape: f32[2,1,32], index: 10, kind: input, shape index: {}]
  %s11 = inlined_call_operand.vmem [shape: f32[2,1,32], index: 11, kind: input, shape index: {}]
  %s12 = inlined_call_operand.vmem [shape: bf16[2,32,128], index: 12, kind: input, shape index: {}]
  %s13 = inlined_call_operand.vmem [shape: f32[2,1,128], index: 13, kind: input, shape index: {}]
  %s14 = inlined_call_operand.vmem [shape: bf16[2,128,32], index: 14, kind: input, shape index: {}]
  %s15 = inlined_call_operand.vmem [shape: f32[2,1,32], index: 15, kind: input, shape index: {}]
  %s16 = inlined_call_operand.vmem [shape: f32[8,8], index: 16, kind: input, shape index: {}]
  %s17 = inlined_call_operand.vmem [shape: f32[1,32], index: 17, kind: input, shape index: {}]
  %s18 = inlined_call_operand.vmem [shape: f32[1,32], index: 18, kind: input, shape index: {}]
  %s19 = inlined_call_operand.vmem [shape: bf16[32,16], index: 19, kind: input, shape index: {}]
  %s20 = inlined_call_operand.hbm [shape: f32[1,8,16], index: 20, kind: output, shape index: {}]
  %s21 = sld [smem:[#allocation0]]
  $region117: #{clip_backbone_forward.4} parent=0
    _
  %s23 = ssub.s32 1, %s21
  %s24 = scalar_select 0, %s23, %s21
  %s26 = sshll.u32 %s0, 4
  %s27 = int_to_ptr.vmem [resolvable:$true] %s26
  %29 = dma.vmem_to_smem %s27, 16, [#allocation4], [#allocation3]
  %31 = dma.done [#allocation3], 16
  %32 = sfence
  $region1: #{clip_backbone_forward.4} parent=0
    #allocation5 [shape = 'u8[4096]{0}', space=vmem, size = 0x1000, scoped, tag = 'output window, operand 0, single buffered']
    #allocation6 [shape = 's32[2]{0}', space=sflag, size = 0x8, scoped, tag = 'scoped memory for clip_backbone_forward.4']
    %33 = vsyncpa [#allocation6], 0
    loop: start=0, step=1, limit=4
    $region2: #{clip_backbone_forward.4} parent=1 // loop_pre_header
      _
    $region3: #{clip_backbone_forward.4} parent=1 // loop_header
      %s35 = sphi 0, %s39
      %p36 = scmp.ge.s32.totalorder %s35, 4
      %s42 = sphi 0, %s54
      %s43 = sphi 0, %s50
      %s44 = sphi 0, %s42
      %s45 = sphi 0, %s43
      %s46 = sphi 0, %s44
      %s47 = sphi 0, %s45
      %s57 = sphi 0, %s59
      %s60 = sphi 0, %s57
      %s61 = sphi 0, %s60
      %s77 = sphi 0, %s61
      %s81 = sphi 0, %s81
      %s83 = sphi 0, %s81
      %s84 = sphi 0, %s83
      %s98 = sphi 0, %s84
      %s102 = sphi 0, %s102
      %s104 = sphi 0, %s102
      %s105 = sphi 0, %s104
      %s119 = sphi 0, %s105
      %s125 = sphi 0, %s127
      %s128 = sphi 0, %s125
      %s129 = sphi 0, %s128
      %s145 = sphi 0, %s129
      %s151 = sphi 0, %s153
      %s154 = sphi 0, %s151
      %s155 = sphi 0, %s154
      %s171 = sphi 0, %s155
      %s177 = sphi 0, %s179
      %s180 = sphi 0, %s177
      %s181 = sphi 0, %s180
      %s197 = sphi 0, %s181
      %s203 = sphi 0, %s205
      %s206 = sphi 0, %s203
      %s207 = sphi 0, %s206
      %s223 = sphi 0, %s207
      %s229 = sphi 0, %s231
      %s232 = sphi 0, %s229
      %s233 = sphi 0, %s232
      %s249 = sphi 0, %s233
      %s255 = sphi 0, %s257
      %s258 = sphi 0, %s255
      %s259 = sphi 0, %s258
      %s275 = sphi 0, %s259
      %s281 = sphi 0, %s283
      %s284 = sphi 0, %s281
      %s285 = sphi 0, %s284
      %s301 = sphi 0, %s285
      %s307 = sphi 0, %s309
      %s310 = sphi 0, %s307
      %s311 = sphi 0, %s310
      %s327 = sphi 0, %s311
      %s333 = sphi 0, %s335
      %s336 = sphi 0, %s333
      %s337 = sphi 0, %s336
      %s353 = sphi 0, %s337
      %s359 = sphi 0, %s361
      %s362 = sphi 0, %s359
      %s363 = sphi 0, %s362
      %s379 = sphi 0, %s363
      %s385 = sphi 0, %s387
      %s388 = sphi 0, %s385
      %s389 = sphi 0, %s388
      %s405 = sphi 0, %s389
      %s411 = sphi 0, %s413
      %s414 = sphi 0, %s411
      %s415 = sphi 0, %s414
      %s431 = sphi 0, %s415
      %s435 = sphi 0, %s435
      %s437 = sphi 0, %s435
      %s438 = sphi 0, %s437
      %s452 = sphi 0, %s438
      %s456 = sphi 0, %s456
      %s458 = sphi 0, %s456
      %s459 = sphi 0, %s458
      %s473 = sphi 0, %s459
      %s477 = sphi 0, %s477
      %s479 = sphi 0, %s477
      %s480 = sphi 0, %s479
      %s494 = sphi 0, %s480
      %s498 = sphi 0, %s498
      %s500 = sphi 0, %s498
      %s501 = sphi 0, %s500
      %s515 = sphi 0, %s501
      %s521 = sphi 0, %s523
      %s524 = sphi 0, %s521
      %s525 = sphi 0, %s524
      %s541 = sphi 0, %s525
    $region4: #{clip_backbone_forward.4} parent=1 // loop_header_branch
      %38 = sbr.rel (%p36) target = $region8
    $region5: #{clip_backbone_forward.4} parent=1 // loop_body
      %s40 = ssub.s32 %s35, 1
      %s41 = ssub.s32 %s35, 2
      %s48 = sadd.s32 1, %s43
      %p49 = scmp.ge.s32.totalorder %s48, 2
      %s50 = scalar_select %p49, 0, %s48
      %s51 = sadd.s32 1, %s42
      %s52 = scalar_select %p49, %s51, %s42
      %p53 = scmp.ge.s32.totalorder %s52, 1
      %s54 = scalar_select %p53, 0, %s52
      %s55 = ssub.s32 %s42, %s54
      %p56 = scmp.eq.s32.totalorder %s55, 0
      %s58 = sadd.s32 %s57, 1
      %s59 = scalar_select %p56, %s57, %s58
      %p62 = pneg %p56
      %p63 = scmp.eq.s32.totalorder %s35, 1
      %p64 = por %p62, %p63
      %p65 = scmp.ne.s32.totalorder %s57, %s60
      %p66 = scmp.eq.s32.totalorder %s35, 0
      %p67 = por %p65, %p66
      %p68 = scmp.ne.s32.totalorder %s57, %s60
      %p69 = scmp.eq.s32.totalorder %s40, 1
      %p70 = por %p68, %p69
      %p71 = scmp.ne.s32.totalorder %s60, %s61
      %p72 = scmp.eq.s32.totalorder %s40, 0
      %p73 = por %p71, %p72
      %p74 = scmp.ne.s32.totalorder %s60, %s61
      %p75 = scmp.eq.s32.totalorder %s41, 1
      %p76 = por %p74, %p75
      %p78 = scmp.ne.s32.totalorder %s61, %s77
      %p79 = scmp.eq.s32.totalorder %s41, 0
      %p80 = por %p78, %p79
      %s82 = sadd.s32 %s81, 1
      %p85 = scmp.eq.s32.totalorder %s35, 1
      %p86 = scmp.ne.s32.totalorder %s81, %s83
      %p87 = scmp.eq.s32.totalorder %s35, 0
      %p88 = por %p86, %p87
      %p89 = scmp.ne.s32.totalorder %s81, %s83
      %p90 = scmp.eq.s32.totalorder %s40, 1
      %p91 = por %p89, %p90
      %p92 = scmp.ne.s32.totalorder %s83, %s84
      %p93 = scmp.eq.s32.totalorder %s40, 0
      %p94 = por %p92, %p93
      %p95 = scmp.ne.s32.totalorder %s83, %s84
      %p96 = scmp.eq.s32.totalorder %s41, 1
      %p97 = por %p95, %p96
      %p99 = scmp.ne.s32.totalorder %s84, %s98
      %p100 = scmp.eq.s32.totalorder %s41, 0
      %p101 = por %p99, %p100
      %s103 = sadd.s32 %s102, 1
      %p106 = scmp.eq.s32.totalorder %s35, 1
      %p107 = scmp.ne.s32.totalorder %s102, %s104
      %p108 = scmp.eq.s32.totalorder %s35, 0
      %p109 = por %p107, %p108
      %p110 = scmp.ne.s32.totalorder %s102, %s104
      %p111 = scmp.eq.s32.totalorder %s40, 1
      %p112 = por %p110, %p111
      %p113 = scmp.ne.s32.totalorder %s104, %s105
      %p114 = scmp.eq.s32.totalorder %s40, 0
      %p115 = por %p113, %p114
      %p116 = scmp.ne.s32.totalorder %s104, %s105
      %p117 = scmp.eq.s32.totalorder %s41, 1
      %p118 = por %p116, %p117
      %p120 = scmp.ne.s32.totalorder %s105, %s119
      %p121 = scmp.eq.s32.totalorder %s41, 0
      %p122 = por %p120, %p121
      %s123 = ssub.s32 %s43, %s50
      %p124 = scmp.eq.s32.totalorder %s123, 0
      %s126 = sadd.s32 %s125, 1
      %s127 = scalar_select %p124, %s125, %s126
      %p130 = pneg %p124
      %p131 = scmp.eq.s32.totalorder %s35, 1
      %p132 = por %p130, %p131
      %p133 = scmp.ne.s32.totalorder %s125, %s128
      %p134 = scmp.eq.s32.totalorder %s35, 0
      %p135 = por %p133, %p134
      %p136 = scmp.ne.s32.totalorder %s125, %s128
      %p137 = scmp.eq.s32.totalorder %s40, 1
      %p138 = por %p136, %p137
      %p139 = scmp.ne.s32.totalorder %s128, %s129
      %p140 = scmp.eq.s32.totalorder %s40, 0
      %p141 = por %p139, %p140
      %p142 = scmp.ne.s32.totalorder %s128, %s129
      %p143 = scmp.eq.s32.totalorder %s41, 1
      %p144 = por %p142, %p143
      %p146 = scmp.ne.s32.totalorder %s129, %s145
      %p147 = scmp.eq.s32.totalorder %s41, 0
      %p148 = por %p146, %p147
      %s149 = ssub.s32 %s43, %s50
      %p150 = scmp.eq.s32.totalorder %s149, 0
      %s152 = sadd.s32 %s151, 1
      %s153 = scalar_select %p150, %s151, %s152
      %p156 = pneg %p150
      %p157 = scmp.eq.s32.totalorder %s35, 1
      %p158 = por %p156, %p157
      %p159 = scmp.ne.s32.totalorder %s151, %s154
      %p160 = scmp.eq.s32.totalorder %s35, 0
      %p161 = por %p159, %p160
      %p162 = scmp.ne.s32.totalorder %s151, %s154
      %p163 = scmp.eq.s32.totalorder %s40, 1
      %p164 = por %p162, %p163
      %p165 = scmp.ne.s32.totalorder %s154, %s155
      %p166 = scmp.eq.s32.totalorder %s40, 0
      %p167 = por %p165, %p166
      %p168 = scmp.ne.s32.totalorder %s154, %s155
      %p169 = scmp.eq.s32.totalorder %s41, 1
      %p170 = por %p168, %p169
      %p172 = scmp.ne.s32.totalorder %s155, %s171
      %p173 = scmp.eq.s32.totalorder %s41, 0
      %p174 = por %p172, %p173
      %s175 = ssub.s32 %s43, %s50
      %p176 = scmp.eq.s32.totalorder %s175, 0
      %s178 = sadd.s32 %s177, 1
      %s179 = scalar_select %p176, %s177, %s178
      %p182 = pneg %p176
      %p183 = scmp.eq.s32.totalorder %s35, 1
      %p184 = por %p182, %p183
      %p185 = scmp.ne.s32.totalorder %s177, %s180
      %p186 = scmp.eq.s32.totalorder %s35, 0
      %p187 = por %p185, %p186
      %p188 = scmp.ne.s32.totalorder %s177, %s180
      %p189 = scmp.eq.s32.totalorder %s40, 1
      %p190 = por %p188, %p189
      %p191 = scmp.ne.s32.totalorder %s180, %s181
      %p192 = scmp.eq.s32.totalorder %s40, 0
      %p193 = por %p191, %p192
      %p194 = scmp.ne.s32.totalorder %s180, %s181
      %p195 = scmp.eq.s32.totalorder %s41, 1
      %p196 = por %p194, %p195
      %p198 = scmp.ne.s32.totalorder %s181, %s197
      %p199 = scmp.eq.s32.totalorder %s41, 0
      %p200 = por %p198, %p199
      %s201 = ssub.s32 %s43, %s50
      %p202 = scmp.eq.s32.totalorder %s201, 0
      %s204 = sadd.s32 %s203, 1
      %s205 = scalar_select %p202, %s203, %s204
      %p208 = pneg %p202
      %p209 = scmp.eq.s32.totalorder %s35, 1
      %p210 = por %p208, %p209
      %p211 = scmp.ne.s32.totalorder %s203, %s206
      %p212 = scmp.eq.s32.totalorder %s35, 0
      %p213 = por %p211, %p212
      %p214 = scmp.ne.s32.totalorder %s203, %s206
      %p215 = scmp.eq.s32.totalorder %s40, 1
      %p216 = por %p214, %p215
      %p217 = scmp.ne.s32.totalorder %s206, %s207
      %p218 = scmp.eq.s32.totalorder %s40, 0
      %p219 = por %p217, %p218
      %p220 = scmp.ne.s32.totalorder %s206, %s207
      %p221 = scmp.eq.s32.totalorder %s41, 1
      %p222 = por %p220, %p221
      %p224 = scmp.ne.s32.totalorder %s207, %s223
      %p225 = scmp.eq.s32.totalorder %s41, 0
      %p226 = por %p224, %p225
      %s227 = ssub.s32 %s43, %s50
      %p228 = scmp.eq.s32.totalorder %s227, 0
      %s230 = sadd.s32 %s229, 1
      %s231 = scalar_select %p228, %s229, %s230
      %p234 = pneg %p228
      %p235 = scmp.eq.s32.totalorder %s35, 1
      %p236 = por %p234, %p235
      %p237 = scmp.ne.s32.totalorder %s229, %s232
      %p238 = scmp.eq.s32.totalorder %s35, 0
      %p239 = por %p237, %p238
      %p240 = scmp.ne.s32.totalorder %s229, %s232
      %p241 = scmp.eq.s32.totalorder %s40, 1
      %p242 = por %p240, %p241
      %p243 = scmp.ne.s32.totalorder %s232, %s233
      %p244 = scmp.eq.s32.totalorder %s40, 0
      %p245 = por %p243, %p244
      %p246 = scmp.ne.s32.totalorder %s232, %s233
      %p247 = scmp.eq.s32.totalorder %s41, 1
      %p248 = por %p246, %p247
      %p250 = scmp.ne.s32.totalorder %s233, %s249
      %p251 = scmp.eq.s32.totalorder %s41, 0
      %p252 = por %p250, %p251
      %s253 = ssub.s32 %s43, %s50
      %p254 = scmp.eq.s32.totalorder %s253, 0
      %s256 = sadd.s32 %s255, 1
      %s257 = scalar_select %p254, %s255, %s256
      %p260 = pneg %p254
      %p261 = scmp.eq.s32.totalorder %s35, 1
      %p262 = por %p260, %p261
      %p263 = scmp.ne.s32.totalorder %s255, %s258
      %p264 = scmp.eq.s32.totalorder %s35, 0
      %p265 = por %p263, %p264
      %p266 = scmp.ne.s32.totalorder %s255, %s258
      %p267 = scmp.eq.s32.totalorder %s40, 1
      %p268 = por %p266, %p267
      %p269 = scmp.ne.s32.totalorder %s258, %s259
      %p270 = scmp.eq.s32.totalorder %s40, 0
      %p271 = por %p269, %p270
      %p272 = scmp.ne.s32.totalorder %s258, %s259
      %p273 = scmp.eq.s32.totalorder %s41, 1
      %p274 = por %p272, %p273
      %p276 = scmp.ne.s32.totalorder %s259, %s275
      %p277 = scmp.eq.s32.totalorder %s41, 0
      %p278 = por %p276, %p277
      %s279 = ssub.s32 %s43, %s50
      %p280 = scmp.eq.s32.totalorder %s279, 0
      %s282 = sadd.s32 %s281, 1
      %s283 = scalar_select %p280, %s281, %s282
      %p286 = pneg %p280
      %p287 = scmp.eq.s32.totalorder %s35, 1
      %p288 = por %p286, %p287
      %p289 = scmp.ne.s32.totalorder %s281, %s284
      %p290 = scmp.eq.s32.totalorder %s35, 0
      %p291 = por %p289, %p290
      %p292 = scmp.ne.s32.totalorder %s281, %s284
      %p293 = scmp.eq.s32.totalorder %s40, 1
      %p294 = por %p292, %p293
      %p295 = scmp.ne.s32.totalorder %s284, %s285
      %p296 = scmp.eq.s32.totalorder %s40, 0
      %p297 = por %p295, %p296
      %p298 = scmp.ne.s32.totalorder %s284, %s285
      %p299 = scmp.eq.s32.totalorder %s41, 1
      %p300 = por %p298, %p299
      %p302 = scmp.ne.s32.totalorder %s285, %s301
      %p303 = scmp.eq.s32.totalorder %s41, 0
      %p304 = por %p302, %p303
      %s305 = ssub.s32 %s43, %s50
      %p306 = scmp.eq.s32.totalorder %s305, 0
      %s308 = sadd.s32 %s307, 1
      %s309 = scalar_select %p306, %s307, %s308
      %p312 = pneg %p306
      %p313 = scmp.eq.s32.totalorder %s35, 1
      %p314 = por %p312, %p313
      %p315 = scmp.ne.s32.totalorder %s307, %s310
      %p316 = scmp.eq.s32.totalorder %s35, 0
      %p317 = por %p315, %p316
      %p318 = scmp.ne.s32.totalorder %s307, %s310
      %p319 = scmp.eq.s32.totalorder %s40, 1
      %p320 = por %p318, %p319
      %p321 = scmp.ne.s32.totalorder %s310, %s311
      %p322 = scmp.eq.s32.totalorder %s40, 0
      %p323 = por %p321, %p322
      %p324 = scmp.ne.s32.totalorder %s310, %s311
      %p325 = scmp.eq.s32.totalorder %s41, 1
      %p326 = por %p324, %p325
      %p328 = scmp.ne.s32.totalorder %s311, %s327
      %p329 = scmp.eq.s32.totalorder %s41, 0
      %p330 = por %p328, %p329
      %s331 = ssub.s32 %s43, %s50
      %p332 = scmp.eq.s32.totalorder %s331, 0
      %s334 = sadd.s32 %s333, 1
      %s335 = scalar_select %p332, %s333, %s334
      %p338 = pneg %p332
      %p339 = scmp.eq.s32.totalorder %s35, 1
      %p340 = por %p338, %p339
      %p341 = scmp.ne.s32.totalorder %s333, %s336
      %p342 = scmp.eq.s32.totalorder %s35, 0
      %p343 = por %p341, %p342
      %p344 = scmp.ne.s32.totalorder %s333, %s336
      %p345 = scmp.eq.s32.totalorder %s40, 1
      %p346 = por %p344, %p345
      %p347 = scmp.ne.s32.totalorder %s336, %s337
      %p348 = scmp.eq.s32.totalorder %s40, 0
      %p349 = por %p347, %p348
      %p350 = scmp.ne.s32.totalorder %s336, %s337
      %p351 = scmp.eq.s32.totalorder %s41, 1
      %p352 = por %p350, %p351
      %p354 = scmp.ne.s32.totalorder %s337, %s353
      %p355 = scmp.eq.s32.totalorder %s41, 0
      %p356 = por %p354, %p355
      %s357 = ssub.s32 %s43, %s50
      %p358 = scmp.eq.s32.totalorder %s357, 0
      %s360 = sadd.s32 %s359, 1
      %s361 = scalar_select %p358, %s359, %s360
      %p364 = pneg %p358
      %p365 = scmp.eq.s32.totalorder %s35, 1
      %p366 = por %p364, %p365
      %p367 = scmp.ne.s32.totalorder %s359, %s362
      %p368 = scmp.eq.s32.totalorder %s35, 0
      %p369 = por %p367, %p368
      %p370 = scmp.ne.s32.totalorder %s359, %s362
      %p371 = scmp.eq.s32.totalorder %s40, 1
      %p372 = por %p370, %p371
      %p373 = scmp.ne.s32.totalorder %s362, %s363
      %p374 = scmp.eq.s32.totalorder %s40, 0
      %p375 = por %p373, %p374
      %p376 = scmp.ne.s32.totalorder %s362, %s363
      %p377 = scmp.eq.s32.totalorder %s41, 1
      %p378 = por %p376, %p377
      %p380 = scmp.ne.s32.totalorder %s363, %s379
      %p381 = scmp.eq.s32.totalorder %s41, 0
      %p382 = por %p380, %p381
      %s383 = ssub.s32 %s43, %s50
      %p384 = scmp.eq.s32.totalorder %s383, 0
      %s386 = sadd.s32 %s385, 1
      %s387 = scalar_select %p384, %s385, %s386
      %p390 = pneg %p384
      %p391 = scmp.eq.s32.totalorder %s35, 1
      %p392 = por %p390, %p391
      %p393 = scmp.ne.s32.totalorder %s385, %s388
      %p394 = scmp.eq.s32.totalorder %s35, 0
      %p395 = por %p393, %p394
      %p396 = scmp.ne.s32.totalorder %s385, %s388
      %p397 = scmp.eq.s32.totalorder %s40, 1
      %p398 = por %p396, %p397
      %p399 = scmp.ne.s32.totalorder %s388, %s389
      %p400 = scmp.eq.s32.totalorder %s40, 0
      %p401 = por %p399, %p400
      %p402 = scmp.ne.s32.totalorder %s388, %s389
      %p403 = scmp.eq.s32.totalorder %s41, 1
      %p404 = por %p402, %p403
      %p406 = scmp.ne.s32.totalorder %s389, %s405
      %p407 = scmp.eq.s32.totalorder %s41, 0
      %p408 = por %p406, %p407
      %s409 = ssub.s32 %s43, %s50
      %p410 = scmp.eq.s32.totalorder %s409, 0
      %s412 = sadd.s32 %s411, 1
      %s413 = scalar_select %p410, %s411, %s412
      %p416 = pneg %p410
      %p417 = scmp.eq.s32.totalorder %s35, 1
      %p418 = por %p416, %p417
      %p419 = scmp.ne.s32.totalorder %s411, %s414
      %p420 = scmp.eq.s32.totalorder %s35, 0
      %p421 = por %p419, %p420
      %p422 = scmp.ne.s32.totalorder %s411, %s414
      %p423 = scmp.eq.s32.totalorder %s40, 1
      %p424 = por %p422, %p423
      %p425 = scmp.ne.s32.totalorder %s414, %s415
      %p426 = scmp.eq.s32.totalorder %s40, 0
      %p427 = por %p425, %p426
      %p428 = scmp.ne.s32.totalorder %s414, %s415
      %p429 = scmp.eq.s32.totalorder %s41, 1
      %p430 = por %p428, %p429
      %p432 = scmp.ne.s32.totalorder %s415, %s431
      %p433 = scmp.eq.s32.totalorder %s41, 0
      %p434 = por %p432, %p433
      %s436 = sadd.s32 %s435, 1
      %p439 = scmp.eq.s32.totalorder %s35, 1
      %p440 = scmp.ne.s32.totalorder %s435, %s437
      %p441 = scmp.eq.s32.totalorder %s35, 0
      %p442 = por %p440, %p441
      %p443 = scmp.ne.s32.totalorder %s435, %s437
      %p444 = scmp.eq.s32.totalorder %s40, 1
      %p445 = por %p443, %p444
      %p446 = scmp.ne.s32.totalorder %s437, %s438
      %p447 = scmp.eq.s32.totalorder %s40, 0
      %p448 = por %p446, %p447
      %p449 = scmp.ne.s32.totalorder %s437, %s438
      %p450 = scmp.eq.s32.totalorder %s41, 1
      %p451 = por %p449, %p450
      %p453 = scmp.ne.s32.totalorder %s438, %s452
      %p454 = scmp.eq.s32.totalorder %s41, 0
      %p455 = por %p453, %p454
      %s457 = sadd.s32 %s456, 1
      %p460 = scmp.eq.s32.totalorder %s35, 1
      %p461 = scmp.ne.s32.totalorder %s456, %s458
      %p462 = scmp.eq.s32.totalorder %s35, 0
      %p463 = por %p461, %p462
      %p464 = scmp.ne.s32.totalorder %s456, %s458
      %p465 = scmp.eq.s32.totalorder %s40, 1
      %p466 = por %p464, %p465
      %p467 = scmp.ne.s32.totalorder %s458, %s459
      %p468 = scmp.eq.s32.totalorder %s40, 0
      %p469 = por %p467, %p468
      %p470 = scmp.ne.s32.totalorder %s458, %s459
      %p471 = scmp.eq.s32.totalorder %s41, 1
      %p472 = por %p470, %p471
      %p474 = scmp.ne.s32.totalorder %s459, %s473
      %p475 = scmp.eq.s32.totalorder %s41, 0
      %p476 = por %p474, %p475
      %s478 = sadd.s32 %s477, 1
      %p481 = scmp.eq.s32.totalorder %s35, 1
      %p482 = scmp.ne.s32.totalorder %s477, %s479
      %p483 = scmp.eq.s32.totalorder %s35, 0
      %p484 = por %p482, %p483
      %p485 = scmp.ne.s32.totalorder %s477, %s479
      %p486 = scmp.eq.s32.totalorder %s40, 1
      %p487 = por %p485, %p486
      %p488 = scmp.ne.s32.totalorder %s479, %s480
      %p489 = scmp.eq.s32.totalorder %s40, 0
      %p490 = por %p488, %p489
      %p491 = scmp.ne.s32.totalorder %s479, %s480
      %p492 = scmp.eq.s32.totalorder %s41, 1
      %p493 = por %p491, %p492
      %p495 = scmp.ne.s32.totalorder %s480, %s494
      %p496 = scmp.eq.s32.totalorder %s41, 0
      %p497 = por %p495, %p496
      %s499 = sadd.s32 %s498, 1
      %p502 = scmp.eq.s32.totalorder %s35, 1
      %p503 = scmp.ne.s32.totalorder %s498, %s500
      %p504 = scmp.eq.s32.totalorder %s35, 0
      %p505 = por %p503, %p504
      %p506 = scmp.ne.s32.totalorder %s498, %s500
      %p507 = scmp.eq.s32.totalorder %s40, 1
      %p508 = por %p506, %p507
      %p509 = scmp.ne.s32.totalorder %s500, %s501
      %p510 = scmp.eq.s32.totalorder %s40, 0
      %p511 = por %p509, %p510
      %p512 = scmp.ne.s32.totalorder %s500, %s501
      %p513 = scmp.eq.s32.totalorder %s41, 1
      %p514 = por %p512, %p513
      %p516 = scmp.ne.s32.totalorder %s501, %s515
      %p517 = scmp.eq.s32.totalorder %s41, 0
      %p518 = por %p516, %p517
      %s519 = ssub.s32 %s42, %s54
      %p520 = scmp.eq.s32.totalorder %s519, 0
      %s522 = sadd.s32 %s521, 1
      %s523 = scalar_select %p520, %s521, %s522
      %p526 = pneg %p520
      %p527 = scmp.eq.s32.totalorder %s35, 1
      %p528 = por %p526, %p527
      %p529 = scmp.ne.s32.totalorder %s521, %s524
      %p530 = scmp.eq.s32.totalorder %s35, 0
      %p531 = por %p529, %p530
      %p532 = scmp.ne.s32.totalorder %s521, %s524
      %p533 = scmp.eq.s32.totalorder %s40, 1
      %p534 = por %p532, %p533
      %p535 = scmp.ne.s32.totalorder %s524, %s525
      %p536 = scmp.eq.s32.totalorder %s40, 0
      %p537 = por %p535, %p536
      %p538 = scmp.ne.s32.totalorder %s524, %s525
      %p539 = scmp.eq.s32.totalorder %s41, 1
      %p540 = por %p538, %p539
      %p542 = scmp.ne.s32.totalorder %s525, %s541
      %p543 = scmp.eq.s32.totalorder %s41, 0
      %p544 = por %p542, %p543
      %p545 = scmp.le.s32.totalorder 1, %s35
      %p546 = scmp.lt.s32.totalorder %s35, 3
      %p547 = pnand %p545, %p546
      %p548 = pneg %p547
      // Predicated region
      $region9: #{clip_backbone_forward.4} parent=5 // pred_check
        _
      $region10: #{clip_backbone_forward.4} parent=5 // pred_check_branch
        %550 = sbr.rel (%p547) target = $region12
      $region11: #{clip_backbone_forward.4} parent=5 // pred_region
        %s551 = ssub.s32 %s35, 1
        // Predicated region
        $region13: #{clip_backbone_forward.4} parent=11 // pred_check
          %p552 = pneg %p73
        $region14: #{clip_backbone_forward.4} parent=11 // pred_check_branch
          %554 = sbr.rel (%p552) target = $region16
        $region15: #{clip_backbone_forward.4} parent=11 // pred_region
          %p555 = scmp.lt.s32.totalorder %s44, 0
          %s556 = scalar_select %p555, %s44, 0
          %s557 = smul.addr %s556, 8
          %s558 = smul.addr %s557, 4
          %s559 = scalar_lea.vmem %s1, %s558
        $region16: #{clip_backbone_forward.4} parent=11 // pred_fallthru
          _
        // Predicated region
        $region17: #{clip_backbone_forward.4} parent=11 // pred_check
          %p560 = pneg %p94
        $region18: #{clip_backbone_forward.4} parent=11 // pred_check_branch
          %562 = sbr.rel (%p560) target = $region20
        $region19: #{clip_backbone_forward.4} parent=11 // pred_region
          _
        $region20: #{clip_backbone_forward.4} parent=11 // pred_fallthru
          _
        // Predicated region
        $region21: #{clip_backbone_forward.4} parent=11 // pred_check
          %p563 = pneg %p115
        $region22: #{clip_backbone_forward.4} parent=11 // pred_check_branch
          %565 = sbr.rel (%p563) target = $region24
        $region23: #{clip_backbone_forward.4} parent=11 // pred_region
          _
        $region24: #{clip_backbone_forward.4} parent=11 // pred_fallthru
          _
        // Predicated region
        $region25: #{clip_backbone_forward.4} parent=11 // pred_check
          %p566 = pneg %p448
        $region26: #{clip_backbone_forward.4} parent=11 // pred_check_branch
          %568 = sbr.rel (%p566) target = $region28
        $region27: #{clip_backbone_forward.4} parent=11 // pred_region
          _
        $region28: #{clip_backbone_forward.4} parent=11 // pred_fallthru
          _
        // Predicated region
        $region29: #{clip_backbone_forward.4} parent=11 // pred_check
          %p569 = pneg %p469
        $region30: #{clip_backbone_forward.4} parent=11 // pred_check_branch
          %571 = sbr.rel (%p569) target = $region32
        $region31: #{clip_backbone_forward.4} parent=11 // pred_region
          _
        $region32: #{clip_backbone_forward.4} parent=11 // pred_fallthru
          _
        // Predicated region
        $region33: #{clip_backbone_forward.4} parent=11 // pred_check
          %p572 = pneg %p490
        $region34: #{clip_backbone_forward.4} parent=11 // pred_check_branch
          %574 = sbr.rel (%p572) target = $region36
        $region35: #{clip_backbone_forward.4} parent=11 // pred_region
          _
        $region36: #{clip_backbone_forward.4} parent=11 // pred_fallthru
          _
        // Predicated region
        $region37: #{clip_backbone_forward.4} parent=11 // pred_check
          %p575 = pneg %p511
        $region38: #{clip_backbone_forward.4} parent=11 // pred_check_branch
          %577 = sbr.rel (%p575) target = $region40
        $region39: #{clip_backbone_forward.4} parent=11 // pred_region
          _
        $region40: #{clip_backbone_forward.4} parent=11 // pred_fallthru
          _
      $region12: #{clip_backbone_forward.4} parent=5 // pred_fallthru
        _
      %p578 = scmp.lt.s32.totalorder %s35, 2
      // Predicated region
      $region41: #{clip_backbone_forward.4} parent=5 // pred_check
        %p579 = pneg %p578
      $region42: #{clip_backbone_forward.4} parent=5 // pred_check_branch
        %581 = sbr.rel (%p579) target = $region44
      $region43: #{clip_backbone_forward.4} parent=5 // pred_region
        // Predicated region
        $region45: #{clip_backbone_forward.4} parent=43 // pred_check
          %p582 = pneg %p135
        $region46: #{clip_backbone_forward.4} parent=43 // pred_check_branch
          %584 = sbr.rel (%p582) target = $region48
        $region47: #{clip_backbone_forward.4} parent=43 // pred_region
          %p585 = scmp.lt.s32.totalorder %s43, 1
          %s586 = scalar_select %p585, %s43, 1
          %s587 = scalar_lea.vmem %s4, %s586
        $region48: #{clip_backbone_forward.4} parent=43 // pred_fallthru
          _
        // Predicated region
        $region49: #{clip_backbone_forward.4} parent=43 // pred_check
          %p588 = pneg %p161
        $region50: #{clip_backbone_forward.4} parent=43 // pred_check_branch
          %590 = sbr.rel (%p588) target = $region52
        $region51: #{clip_backbone_forward.4} parent=43 // pred_region
          %p591 = scmp.lt.s32.totalorder %s43, 1
          %s592 = scalar_select %p591, %s43, 1
          %s593 = scalar_lea.vmem %s5, %s592
        $region52: #{clip_backbone_forward.4} parent=43 // pred_fallthru
          _
        // Predicated region
        $region53: #{clip_backbone_forward.4} parent=43 // pred_check
          %p594 = pneg %p187
        $region54: #{clip_backbone_forward.4} parent=43 // pred_check_branch
          %596 = sbr.rel (%p594) target = $region56
        $region55: #{clip_backbone_forward.4} parent=43 // pred_region
          %p597 = scmp.lt.s32.totalorder %s43, 1
          %s598 = scalar_select %p597, %s43, 1
          %s599 = smul.addr %s598, 4
          %s600 = smul.addr %s599, 4
          %s601 = scalar_lea.vmem %s6, %s600
        $region56: #{clip_backbone_forward.4} parent=43 // pred_fallthru
          _
        // Predicated region
        $region57: #{clip_backbone_forward.4} parent=43 // pred_check
          %p602 = pneg %p213
        $region58: #{clip_backbone_forward.4} parent=43 // pred_check_branch
          %604 = sbr.rel (%p602) target = $region60
        $region59: #{clip_backbone_forward.4} parent=43 // pred_region
          %p605 = scmp.lt.s32.totalorder %s43, 1
          %s606 = scalar_select %p605, %s43, 1
          %s607 = scalar_lea.vmem %s7, %s606
        $region60: #{clip_backbone_forward.4} parent=43 // pred_fallthru
          _
        // Predicated region
        $region61: #{clip_backbone_forward.4} parent=43 // pred_check
          %p608 = pneg %p239
        $region62: #{clip_backbone_forward.4} parent=43 // pred_check_branch
          %610 = sbr.rel (%p608) target = $region64
        $region63: #{clip_backbone_forward.4} parent=43 // pred_region
          %p611 = scmp.lt.s32.totalorder %s43, 1
          %s612 = scalar_select %p611, %s43, 1
          %s613 = smul.addr %s612, 4
          %s614 = smul.addr %s613, 4
          %s615 = scalar_lea.vmem %s8, %s614
        $region64: #{clip_backbone_forward.4} parent=43 // pred_fallthru
          _
        // Predicated region
        $region65: #{clip_backbone_forward.4} parent=43 // pred_check
          %p616 = pneg %p265
        $region66: #{clip_backbone_forward.4} parent=43 // pred_check_branch
          %618 = sbr.rel (%p616) target = $region68
        $region67: #{clip_backbone_forward.4} parent=43 // pred_region
          %p619 = scmp.lt.s32.totalorder %s43, 1
          %s620 = scalar_select %p619, %s43, 1
          %s621 = scalar_lea.vmem %s9, %s620
        $region68: #{clip_backbone_forward.4} parent=43 // pred_fallthru
          _
        // Predicated region
        $region69: #{clip_backbone_forward.4} parent=43 // pred_check
          %p622 = pneg %p291
        $region70: #{clip_backbone_forward.4} parent=43 // pred_check_branch
          %624 = sbr.rel (%p622) target = $region72
        $region71: #{clip_backbone_forward.4} parent=43 // pred_region
          %p625 = scmp.lt.s32.totalorder %s43, 1
          %s626 = scalar_select %p625, %s43, 1
          %s627 = scalar_lea.vmem %s10, %s626
        $region72: #{clip_backbone_forward.4} parent=43 // pred_fallthru
          _
        // Predicated region
        $region73: #{clip_backbone_forward.4} parent=43 // pred_check
          %p628 = pneg %p317
        $region74: #{clip_backbone_forward.4} parent=43 // pred_check_branch
          %630 = sbr.rel (%p628) target = $region76
        $region75: #{clip_backbone_forward.4} parent=43 // pred_region
          %p631 = scmp.lt.s32.totalorder %s43, 1
          %s632 = scalar_select %p631, %s43, 1
          %s633 = scalar_lea.vmem %s11, %s632
        $region76: #{clip_backbone_forward.4} parent=43 // pred_fallthru
          _
        // Predicated region
        $region77: #{clip_backbone_forward.4} parent=43 // pred_check
          %p634 = pneg %p343
        $region78: #{clip_backbone_forward.4} parent=43 // pred_check_branch
          %636 = sbr.rel (%p634) target = $region80
        $region79: #{clip_backbone_forward.4} parent=43 // pred_region
          %p637 = scmp.lt.s32.totalorder %s43, 1
          %s638 = scalar_select %p637, %s43, 1
          %s639 = smul.addr %s638, 4
          %s640 = smul.addr %s639, 4
          %s641 = scalar_lea.vmem %s12, %s640
        $region80: #{clip_backbone_forward.4} parent=43 // pred_fallthru
          _
        // Predicated region
        $region81: #{clip_backbone_forward.4} parent=43 // pred_check
          %p642 = pneg %p369
        $region82: #{clip_backbone_forward.4} parent=43 // pred_check_branch
          %644 = sbr.rel (%p642) target = $region84
        $region83: #{clip_backbone_forward.4} parent=43 // pred_region
          %p645 = scmp.lt.s32.totalorder %s43, 1
          %s646 = scalar_select %p645, %s43, 1
          %s647 = scalar_lea.vmem %s13, %s646
        $region84: #{clip_backbone_forward.4} parent=43 // pred_fallthru
          _
        // Predicated region
        $region85: #{clip_backbone_forward.4} parent=43 // pred_check
          %p648 = pneg %p395
        $region86: #{clip_backbone_forward.4} parent=43 // pred_check_branch
          %650 = sbr.rel (%p648) target = $region88
        $region87: #{clip_backbone_forward.4} parent=43 // pred_region
          %p651 = scmp.lt.s32.totalorder %s43, 1
          %s652 = scalar_select %p651, %s43, 1
          %s653 = smul.addr %s652, 16
          %s654 = smul.addr %s653, 4
          %s655 = scalar_lea.vmem %s14, %s654
        $region88: #{clip_backbone_forward.4} parent=43 // pred_fallthru
          _
        // Predicated region
        $region89: #{clip_backbone_forward.4} parent=43 // pred_check
          %p656 = pneg %p421
        $region90: #{clip_backbone_forward.4} parent=43 // pred_check_branch
          %658 = sbr.rel (%p656) target = $region92
        $region91: #{clip_backbone_forward.4} parent=43 // pred_region
          %p659 = scmp.lt.s32.totalorder %s43, 1
          %s660 = scalar_select %p659, %s43, 1
          %s661 = scalar_lea.vmem %s15, %s660
        $region92: #{clip_backbone_forward.4} parent=43 // pred_fallthru
          _
      $region44: #{clip_backbone_forward.4} parent=5 // pred_fallthru
        _
      %p662 = scmp.le.s32.totalorder 1, %s35
      %p663 = scmp.lt.s32.totalorder %s35, 3
      %p664 = pnand %p662, %p663
      %p665 = pneg %p664
      // Predicated region
      $region93: #{clip_backbone_forward.4} parent=5 // pred_check
        _
      $region94: #{clip_backbone_forward.4} parent=5 // pred_check_branch
        %667 = sbr.rel (%p664) target = $region96
      $region95: #{clip_backbone_forward.4} parent=5 // pred_region
        %s668 = ssub.s32 %s35, 1
        %p669 = scmp.lt.s32.totalorder %s44, 0
        %s670 = scalar_select %p669, %s44, 0
        %s671 = smul.addr %s670, 8
        %s672 = smul.addr %s671, 4
        %s673 = scalar_lea.vmem %s1, %s672
        %p674 = pneg %p73
        %p675 = pneg %p70
        %p676 = pneg %p94
        %p677 = pneg %p91
        %p678 = pneg %p115
        %p679 = pneg %p112
        %p680 = scmp.lt.s32.totalorder %s45, 1
        %s681 = scalar_select %p680, %s45, 1
        %s682 = scalar_lea.vmem %s4, %s681
        %p683 = pneg %p141
        %p684 = pneg %p138
        %p685 = scmp.lt.s32.totalorder %s45, 1
        %s686 = scalar_select %p685, %s45, 1
        %s687 = scalar_lea.vmem %s5, %s686
        %p688 = pneg %p167
        %p689 = pneg %p164
        %p690 = scmp.lt.s32.totalorder %s45, 1
        %s691 = scalar_select %p690, %s45, 1
        %s692 = smul.addr %s691, 4
        %s693 = smul.addr %s692, 4
        %s694 = scalar_lea.vmem %s6, %s693
        %p695 = pneg %p193
        %p696 = pneg %p190
        %p697 = scmp.lt.s32.totalorder %s45, 1
        %s698 = scalar_select %p697, %s45, 1
        %s699 = scalar_lea.vmem %s7, %s698
        %p700 = pneg %p219
        %p701 = pneg %p216
        %p702 = scmp.lt.s32.totalorder %s45, 1
        %s703 = scalar_select %p702, %s45, 1
        %s704 = smul.addr %s703, 4
        %s705 = smul.addr %s704, 4
        %s706 = scalar_lea.vmem %s8, %s705
        %p707 = pneg %p245
        %p708 = pneg %p242
        %p709 = scmp.lt.s32.totalorder %s45, 1
        %s710 = scalar_select %p709, %s45, 1
        %s711 = scalar_lea.vmem %s9, %s710
        %p712 = pneg %p271
        %p713 = pneg %p268
        %p714 = scmp.lt.s32.totalorder %s45, 1
        %s715 = scalar_select %p714, %s45, 1
        %s716 = scalar_lea.vmem %s10, %s715
        %p717 = pneg %p297
        %p718 = pneg %p294
        %p719 = scmp.lt.s32.totalorder %s45, 1
        %s720 = scalar_select %p719, %s45, 1
        %s721 = scalar_lea.vmem %s11, %s720
        %p722 = pneg %p323
        %p723 = pneg %p320
        %p724 = scmp.lt.s32.totalorder %s45, 1
        %s725 = scalar_select %p724, %s45, 1
        %s726 = smul.addr %s725, 4
        %s727 = smul.addr %s726, 4
        %s728 = scalar_lea.vmem %s12, %s727
        %p729 = pneg %p349
        %p730 = pneg %p346
        %p731 = scmp.lt.s32.totalorder %s45, 1
        %s732 = scalar_select %p731, %s45, 1
        %s733 = scalar_lea.vmem %s13, %s732
        %p734 = pneg %p375
        %p735 = pneg %p372
        %p736 = scmp.lt.s32.totalorder %s45, 1
        %s737 = scalar_select %p736, %s45, 1
        %s738 = smul.addr %s737, 16
        %s739 = smul.addr %s738, 4
        %s740 = scalar_lea.vmem %s14, %s739
        %p741 = pneg %p401
        %p742 = pneg %p398
        %p743 = scmp.lt.s32.totalorder %s45, 1
        %s744 = scalar_select %p743, %s45, 1
        %s745 = scalar_lea.vmem %s15, %s744
        %p746 = pneg %p427
        %p747 = pneg %p424
        %p748 = pneg %p448
        %p749 = pneg %p445
        %p750 = pneg %p469
        %p751 = pneg %p466
        %p752 = pneg %p490
        %p753 = pneg %p487
        %p754 = pneg %p511
        %p755 = pneg %p508
        %p756 = pneg %p537
        %p757 = pneg %p534
        %p758 = scmp.lt.s32.totalorder %s44, 0
        %s759 = scalar_select %p758, %s44, 0
        %s760 = smul.addr %s759, 8
        %s761 = smul.addr %s760, 4
        %s762 = scalar_lea.vmem %s1, %s761
        %p763 = scmp.lt.s32.totalorder %s45, 1
        %s764 = scalar_select %p763, %s45, 1
        %s765 = scalar_lea.vmem %s4, %s764
        %p766 = scmp.lt.s32.totalorder %s45, 1
        %s767 = scalar_select %p766, %s45, 1
        %s768 = scalar_lea.vmem %s5, %s767
        %p769 = scmp.lt.s32.totalorder %s45, 1
        %s770 = scalar_select %p769, %s45, 1
        %s771 = smul.addr %s770, 4
        %s772 = smul.addr %s771, 4
        %s773 = scalar_lea.vmem %s6, %s772
        %p774 = scmp.lt.s32.totalorder %s45, 1
        %s775 = scalar_select %p774, %s45, 1
        %s776 = scalar_lea.vmem %s7, %s775
        %p777 = scmp.lt.s32.totalorder %s45, 1
        %s778 = scalar_select %p777, %s45, 1
        %s779 = smul.addr %s778, 4
        %s780 = smul.addr %s779, 4
        %s781 = scalar_lea.vmem %s8, %s780
        %p782 = scmp.lt.s32.totalorder %s45, 1
        %s783 = scalar_select %p782, %s45, 1
        %s784 = scalar_lea.vmem %s9, %s783
        %p785 = scmp.lt.s32.totalorder %s45, 1
        %s786 = scalar_select %p785, %s45, 1
        %s787 = scalar_lea.vmem %s10, %s786
        %p788 = scmp.lt.s32.totalorder %s45, 1
        %s789 = scalar_select %p788, %s45, 1
        %s790 = scalar_lea.vmem %s11, %s789
        %p791 = scmp.lt.s32.totalorder %s45, 1
        %s792 = scalar_select %p791, %s45, 1
        %s793 = smul.addr %s792, 4
        %s794 = smul.addr %s793, 4
        %s795 = scalar_lea.vmem %s12, %s794
        %p796 = scmp.lt.s32.totalorder %s45, 1
        %s797 = scalar_select %p796, %s45, 1
        %s798 = scalar_lea.vmem %s13, %s797
        %p799 = scmp.lt.s32.totalorder %s45, 1
        %s800 = scalar_select %p799, %s45, 1
        %s801 = smul.addr %s800, 16
        %s802 = smul.addr %s801, 4
        %s803 = scalar_lea.vmem %s14, %s802
        %p804 = scmp.lt.s32.totalorder %s45, 1
        %s805 = scalar_select %p804, %s45, 1
        %s806 = scalar_lea.vmem %s15, %s805
        %p808 = scmp.eq.s32.totalorder %s45, 0
        // Predicated region
        $region97: #{clip_backbone_forward.4} parent=95 // pred_check
          %p809 = pneg %p808
        $region98: #{clip_backbone_forward.4} parent=95 // pred_check_branch
          %811 = sbr.rel (%p809) target = $region100
        $region99: #{clip_backbone_forward.4} parent=95 // pred_region
          %v812 = vld [vmem:[%s762] sm:$0xf]
          %v813 = vld [vmem:[%s762 + $0x4] sm:$0xf]
          %v814 = vld [vmem:[%s762 + $0x8] sm:$0xf]
          %v815 = vld [vmem:[%s762 + $0xc] sm:$0xf]
          %v816 = vld [vmem:[%s762 + $0x10] sm:$0xf]
          %v817 = vld [vmem:[%s762 + $0x14] sm:$0xf]
          %v818 = vld [vmem:[%s762 + $0x18] sm:$0xf]
          %v819 = vld [vmem:[%s762 + $0x1c] sm:$0xf]
          %v820 = vunpack.c.l.bf16 %v812
          %v821 = vunpack.c.l.bf16 %v813
          %v822 = vunpack.c.l.bf16 %v814
          %v823 = vunpack.c.l.bf16 %v815
          %v824 = vunpack.c.l.bf16 %v816
          %v825 = vunpack.c.l.bf16 %v817
          %v826 = vunpack.c.l.bf16 %v818
          %v827 = vunpack.c.l.bf16 %v819
          %v828 = vld [vmem:[%s2] sm:$0x1]
          %v829 = vld [vmem:[%s3] sm:$0x1]
          %vm830 = vcmask 261120
          %v831 = vsel %vm830, %v820, 0.0
          %832 = vadd.xlane.f32.xlu0 %v831
          %v833 = vpop.xlane.xlu0 %832
          %v834 = vsel %vm830, %v821, 0.0
          %835 = vadd.xlane.f32.xlu0 %v834
          %v836 = vpop.xlane.xlu0 %835
          %v837 = vsel %vm830, %v822, 0.0
          %838 = vadd.xlane.f32.xlu0 %v837
          %v839 = vpop.xlane.xlu0 %838
          %v840 = vsel %vm830, %v823, 0.0
          %841 = vadd.xlane.f32.xlu0 %v840
          %v842 = vpop.xlane.xlu0 %841
          %v843 = vsel %vm830, %v824, 0.0
          %844 = vadd.xlane.f32.xlu0 %v843
          %v845 = vpop.xlane.xlu0 %844
          %v846 = vsel %vm830, %v825, 0.0
          %847 = vadd.xlane.f32.xlu0 %v846
          %v848 = vpop.xlane.xlu0 %847
          %v849 = vsel %vm830, %v826, 0.0
          %850 = vadd.xlane.f32.xlu0 %v849
          %v851 = vpop.xlane.xlu0 %850
          %v852 = vsel %vm830, %v827, 0.0
          %853 = vadd.xlane.f32.xlu0 %v852
          %v854 = vpop.xlane.xlu0 %853
          %v855 = vrcp.pop 32.0
          %v856 = vmul.f32 32.0, %v855
          %v857 = vsub.f32 1.0, %v856
          %v858 = vmul.f32 %v855, %v857
          %v859 = vadd.f32 %v855, %v858
          %vm860 = vweird.f32 %v855
          %v861 = vsel %vm860, %v855, %v859
          %v862 = vmul.f32 %v833, %v861
          %v863 = vmul.f32 %v836, %v861
          %v864 = vmul.f32 %v839, %v861
          %v865 = vmul.f32 %v842, %v861
          %v866 = vmul.f32 %v845, %v861
          %v867 = vmul.f32 %v848, %v861
          %v868 = vmul.f32 %v851, %v861
          %v869 = vmul.f32 %v854, %v861
          %v870 = vsub.f32 %v820, %v862
          %v871 = vsub.f32 %v821, %v863
          %v872 = vsub.f32 %v822, %v864
          %v873 = vsub.f32 %v823, %v865
          %v874 = vsub.f32 %v824, %v866
          %v875 = vsub.f32 %v825, %v867
          %v876 = vsub.f32 %v826, %v868
          %v877 = vsub.f32 %v827, %v869
          %v878 = vmul.f32 %v870, %v870
          %v879 = vmul.f32 %v871, %v871
          %v880 = vmul.f32 %v872, %v872
          %v881 = vmul.f32 %v873, %v873
          %v882 = vmul.f32 %v874, %v874
          %v883 = vmul.f32 %v875, %v875
          %v884 = vmul.f32 %v876, %v876
          %v885 = vmul.f32 %v877, %v877
          %v886 = vsel %vm830, %v878, 0.0
          %887 = vadd.xlane.f32.xlu0 %v886
          %v888 = vpop.xlane.xlu0 %887
          %v889 = vsel %vm830, %v879, 0.0
          %890 = vadd.xlane.f32.xlu0 %v889
          %v891 = vpop.xlane.xlu0 %890
          %v892 = vsel %vm830, %v880, 0.0
          %893 = vadd.xlane.f32.xlu0 %v892
          %v894 = vpop.xlane.xlu0 %893
          %v895 = vsel %vm830, %v881, 0.0
          %896 = vadd.xlane.f32.xlu0 %v895
          %v897 = vpop.xlane.xlu0 %896
          %v898 = vsel %vm830, %v882, 0.0
          %899 = vadd.xlane.f32.xlu0 %v898
          %v900 = vpop.xlane.xlu0 %899
          %v901 = vsel %vm830, %v883, 0.0
          %902 = vadd.xlane.f32.xlu0 %v901
          %v903 = vpop.xlane.xlu0 %902
          %v904 = vsel %vm830, %v884, 0.0
          %905 = vadd.xlane.f32.xlu0 %v904
          %v906 = vpop.xlane.xlu0 %905
          %v907 = vsel %vm830, %v885, 0.0
          %908 = vadd.xlane.f32.xlu0 %v907
          %v909 = vpop.xlane.xlu0 %908
          %v910 = vmul.f32 %v888, %v861
          %v911 = vmul.f32 %v891, %v861
          %v912 = vmul.f32 %v894, %v861
          %v913 = vmul.f32 %v897, %v861
          %v914 = vmul.f32 %v900, %v861
          %v915 = vmul.f32 %v903, %v861
          %v916 = vmul.f32 %v906, %v861
          %v917 = vmul.f32 %v909, %v861
          %v918 = vadd.f32 %v910, 1e-05
          %v919 = vadd.f32 %v911, 1e-05
          %v920 = vadd.f32 %v912, 1e-05
          %v921 = vadd.f32 %v913, 1e-05
          %v922 = vadd.f32 %v914, 1e-05
          %v923 = vadd.f32 %v915, 1e-05
          %v924 = vadd.f32 %v916, 1e-05
          %v925 = vadd.f32 %v917, 1e-05
          %v926 = vrsqrt.pop %v918
          %v927 = vmul.f32 %v926, %v918
          %v928 = vmul.f32 %v927, %v926
          %v929 = vmul.f32 0.5, %v928
          %v930 = vsub.f32 1.5, %v929
          %v931 = vmul.f32 %v926, %v930
          %vm932 = vweird.f32 %v918
          %vm933 = vweird.f32 %v926
          %vm934 = vmor %vm932, %vm933
          %v935 = vsel %vm934, %v926, %v931
          %v936 = vrsqrt.pop %v919
          %v937 = vmul.f32 %v936, %v919
          %v938 = vmul.f32 %v937, %v936
          %v939 = vmul.f32 0.5, %v938
          %v940 = vsub.f32 1.5, %v939
          %v941 = vmul.f32 %v936, %v940
          %vm942 = vweird.f32 %v919
          %vm943 = vweird.f32 %v936
          %vm944 = vmor %vm942, %vm943
          %v945 = vsel %vm944, %v936, %v941
          %v946 = vrsqrt.pop %v920
          %v947 = vmul.f32 %v946, %v920
          %v948 = vmul.f32 %v947, %v946
          %v949 = vmul.f32 0.5, %v948
          %v950 = vsub.f32 1.5, %v949
          %v951 = vmul.f32 %v946, %v950
          %vm952 = vweird.f32 %v920
          %vm953 = vweird.f32 %v946
          %vm954 = vmor %vm952, %vm953
          %v955 = vsel %vm954, %v946, %v951
          %v956 = vrsqrt.pop %v921
          %v957 = vmul.f32 %v956, %v921
          %v958 = vmul.f32 %v957, %v956
          %v959 = vmul.f32 0.5, %v958
          %v960 = vsub.f32 1.5, %v959
          %v961 = vmul.f32 %v956, %v960
          %vm962 = vweird.f32 %v921
          %vm963 = vweird.f32 %v956
          %vm964 = vmor %vm962, %vm963
          %v965 = vsel %vm964, %v956, %v961
          %v966 = vrsqrt.pop %v922
          %v967 = vmul.f32 %v966, %v922
          %v968 = vmul.f32 %v967, %v966
          %v969 = vmul.f32 0.5, %v968
          %v970 = vsub.f32 1.5, %v969
          %v971 = vmul.f32 %v966, %v970
          %vm972 = vweird.f32 %v922
          %vm973 = vweird.f32 %v966
          %vm974 = vmor %vm972, %vm973
          %v975 = vsel %vm974, %v966, %v971
          %v976 = vrsqrt.pop %v923
          %v977 = vmul.f32 %v976, %v923
          %v978 = vmul.f32 %v977, %v976
          %v979 = vmul.f32 0.5, %v978
          %v980 = vsub.f32 1.5, %v979
          %v981 = vmul.f32 %v976, %v980
          %vm982 = vweird.f32 %v923
          %vm983 = vweird.f32 %v976
          %vm984 = vmor %vm982, %vm983
          %v985 = vsel %vm984, %v976, %v981
          %v986 = vrsqrt.pop %v924
          %v987 = vmul.f32 %v986, %v924
          %v988 = vmul.f32 %v987, %v986
          %v989 = vmul.f32 0.5, %v988
          %v990 = vsub.f32 1.5, %v989
          %v991 = vmul.f32 %v986, %v990
          %vm992 = vweird.f32 %v924
          %vm993 = vweird.f32 %v986
          %vm994 = vmor %vm992, %vm993
          %v995 = vsel %vm994, %v986, %v991
          %v996 = vrsqrt.pop %v925
          %v997 = vmul.f32 %v996, %v925
          %v998 = vmul.f32 %v997, %v996
          %v999 = vmul.f32 0.5, %v998
          %v1000 = vsub.f32 1.5, %v999
          %v1001 = vmul.f32 %v996, %v1000
          %vm1002 = vweird.f32 %v925
          %vm1003 = vweird.f32 %v996
          %vm1004 = vmor %vm1002, %vm1003
          %v1005 = vsel %vm1004, %v996, %v1001
          %v1006 = vmul.f32 %v870, %v935
          %v1007 = vmul.f32 %v871, %v945
          %v1008 = vmul.f32 %v872, %v955
          %v1009 = vmul.f32 %v873, %v965
          %v1010 = vmul.f32 %v874, %v975
          %v1011 = vmul.f32 %v875, %v985
          %v1012 = vmul.f32 %v876, %v995
          %v1013 = vmul.f32 %v877, %v1005
          %v1015 = vperm.slane %v828, 0
          %v1017 = vmul.f32 %v1006, %v1015
          %v1018 = vmul.f32 %v1007, %v1015
          %v1019 = vmul.f32 %v1008, %v1015
          %v1020 = vmul.f32 %v1009, %v1015
          %v1021 = vmul.f32 %v1010, %v1015
          %v1022 = vmul.f32 %v1011, %v1015
          %v1023 = vmul.f32 %v1012, %v1015
          %v1024 = vmul.f32 %v1013, %v1015
          %v1026 = vperm.slane %v829, 0
          %v1028 = vadd.f32 %v1017, %v1026
          %v1029 = vadd.f32 %v1018, %v1026
          %v1030 = vadd.f32 %v1019, %v1026
          %v1031 = vadd.f32 %v1020, %v1026
          %v1032 = vadd.f32 %v1021, %v1026
          %v1033 = vadd.f32 %v1022, %v1026
          %v1034 = vadd.f32 %v1023, %v1026
          %v1035 = vadd.f32 %v1024, %v1026
          %1036 = vst.msk [vmem:[#allocation2] sm:$0xff] %vm830, %v1028
          %1037 = vst.msk [vmem:[#allocation2 + $0x8] sm:$0xff] %vm830, %v1029
          %1038 = vst.msk [vmem:[#allocation2 + $0x10] sm:$0xff] %vm830, %v1030
          %1039 = vst.msk [vmem:[#allocation2 + $0x18] sm:$0xff] %vm830, %v1031
          %1040 = vst.msk [vmem:[#allocation2 + $0x20] sm:$0xff] %vm830, %v1032
          %1041 = vst.msk [vmem:[#allocation2 + $0x28] sm:$0xff] %vm830, %v1033
          %1042 = vst.msk [vmem:[#allocation2 + $0x30] sm:$0xff] %vm830, %v1034
          %1043 = vst.msk [vmem:[#allocation2 + $0x38] sm:$0xff] %vm830, %v1035
        $region100: #{clip_backbone_forward.4} parent=95 // pred_fallthru
          _
        %v1044 = vld [vmem:[#allocation2] sm:$0xff]
        %v1045 = vld [vmem:[#allocation2 + $0x8] sm:$0xff]
        %v1046 = vld [vmem:[#allocation2 + $0x10] sm:$0xff]
        %v1047 = vld [vmem:[#allocation2 + $0x18] sm:$0xff]
        %v1048 = vld [vmem:[#allocation2 + $0x20] sm:$0xff]
        %v1049 = vld [vmem:[#allocation2 + $0x28] sm:$0xff]
        %v1050 = vld [vmem:[#allocation2 + $0x30] sm:$0xff]
        %v1051 = vld [vmem:[#allocation2 + $0x38] sm:$0xff]
        %v1052 = vld [vmem:[%s765] sm:$0x1]
        %v1053 = vld [vmem:[%s768] sm:$0x1]
        %vm1054 = vcmask 261120
        %v1055 = vsel %vm1054, %v1044, 0.0
        %1056 = vadd.xlane.f32.xlu0 %v1055
        %v1057 = vpop.xlane.xlu0 %1056
        %v1058 = vsel %vm1054, %v1045, 0.0
        %1059 = vadd.xlane.f32.xlu0 %v1058
        %v1060 = vpop.xlane.xlu0 %1059
        %v1061 = vsel %vm1054, %v1046, 0.0
        %1062 = vadd.xlane.f32.xlu0 %v1061
        %v1063 = vpop.xlane.xlu0 %1062
        %v1064 = vsel %vm1054, %v1047, 0.0
        %1065 = vadd.xlane.f32.xlu0 %v1064
        %v1066 = vpop.xlane.xlu0 %1065
        %v1067 = vsel %vm1054, %v1048, 0.0
        %1068 = vadd.xlane.f32.xlu0 %v1067
        %v1069 = vpop.xlane.xlu0 %1068
        %v1070 = vsel %vm1054, %v1049, 0.0
        %1071 = vadd.xlane.f32.xlu0 %v1070
        %v1072 = vpop.xlane.xlu0 %1071
        %v1073 = vsel %vm1054, %v1050, 0.0
        %1074 = vadd.xlane.f32.xlu0 %v1073
        %v1075 = vpop.xlane.xlu0 %1074
        %v1076 = vsel %vm1054, %v1051, 0.0
        %1077 = vadd.xlane.f32.xlu0 %v1076
        %v1078 = vpop.xlane.xlu0 %1077
        %v1079 = vrcp.pop 32.0
        %v1080 = vmul.f32 32.0, %v1079
        %v1081 = vsub.f32 1.0, %v1080
        %v1082 = vmul.f32 %v1079, %v1081
        %v1083 = vadd.f32 %v1079, %v1082
        %vm1084 = vweird.f32 %v1079
        %v1085 = vsel %vm1084, %v1079, %v1083
        %v1086 = vmul.f32 %v1057, %v1085
        %v1087 = vmul.f32 %v1060, %v1085
        %v1088 = vmul.f32 %v1063, %v1085
        %v1089 = vmul.f32 %v1066, %v1085
        %v1090 = vmul.f32 %v1069, %v1085
        %v1091 = vmul.f32 %v1072, %v1085
        %v1092 = vmul.f32 %v1075, %v1085
        %v1093 = vmul.f32 %v1078, %v1085
        %v1094 = vsub.f32 %v1044, %v1086
        %v1095 = vsub.f32 %v1045, %v1087
        %v1096 = vsub.f32 %v1046, %v1088
        %v1097 = vsub.f32 %v1047, %v1089
        %v1098 = vsub.f32 %v1048, %v1090
        %v1099 = vsub.f32 %v1049, %v1091
        %v1100 = vsub.f32 %v1050, %v1092
        %v1101 = vsub.f32 %v1051, %v1093
        %v1102 = vmul.f32 %v1094, %v1094
        %v1103 = vmul.f32 %v1095, %v1095
        %v1104 = vmul.f32 %v1096, %v1096
        %v1105 = vmul.f32 %v1097, %v1097
        %v1106 = vmul.f32 %v1098, %v1098
        %v1107 = vmul.f32 %v1099, %v1099
        %v1108 = vmul.f32 %v1100, %v1100
        %v1109 = vmul.f32 %v1101, %v1101
        %v1110 = vsel %vm1054, %v1102, 0.0
        %1111 = vadd.xlane.f32.xlu0 %v1110
        %v1112 = vpop.xlane.xlu0 %1111
        %v1113 = vsel %vm1054, %v1103, 0.0
        %1114 = vadd.xlane.f32.xlu0 %v1113
        %v1115 = vpop.xlane.xlu0 %1114
        %v1116 = vsel %vm1054, %v1104, 0.0
        %1117 = vadd.xlane.f32.xlu0 %v1116
        %v1118 = vpop.xlane.xlu0 %1117
        %v1119 = vsel %vm1054, %v1105, 0.0
        %1120 = vadd.xlane.f32.xlu0 %v1119
        %v1121 = vpop.xlane.xlu0 %1120
        %v1122 = vsel %vm1054, %v1106, 0.0
        %1123 = vadd.xlane.f32.xlu0 %v1122
        %v1124 = vpop.xlane.xlu0 %1123
        %v1125 = vsel %vm1054, %v1107, 0.0
        %1126 = vadd.xlane.f32.xlu0 %v1125
        %v1127 = vpop.xlane.xlu0 %1126
        %v1128 = vsel %vm1054, %v1108, 0.0
        %1129 = vadd.xlane.f32.xlu0 %v1128
        %v1130 = vpop.xlane.xlu0 %1129
        %v1131 = vsel %vm1054, %v1109, 0.0
        %1132 = vadd.xlane.f32.xlu0 %v1131
        %v1133 = vpop.xlane.xlu0 %1132
        %v1134 = vmul.f32 %v1112, %v1085
        %v1135 = vmul.f32 %v1115, %v1085
        %v1136 = vmul.f32 %v1118, %v1085
        %v1137 = vmul.f32 %v1121, %v1085
        %v1138 = vmul.f32 %v1124, %v1085
        %v1139 = vmul.f32 %v1127, %v1085
        %v1140 = vmul.f32 %v1130, %v1085
        %v1141 = vmul.f32 %v1133, %v1085
        %v1142 = vadd.f32 %v1134, 1e-05
        %v1143 = vadd.f32 %v1135, 1e-05
        %v1144 = vadd.f32 %v1136, 1e-05
        %v1145 = vadd.f32 %v1137, 1e-05
        %v1146 = vadd.f32 %v1138, 1e-05
        %v1147 = vadd.f32 %v1139, 1e-05
        %v1148 = vadd.f32 %v1140, 1e-05
        %v1149 = vadd.f32 %v1141, 1e-05
        %v1150 = vrsqrt.pop %v1142
        %v1151 = vmul.f32 %v1150, %v1142
        %v1152 = vmul.f32 %v1151, %v1150
        %v1153 = vmul.f32 0.5, %v1152
        %v1154 = vsub.f32 1.5, %v1153
        %v1155 = vmul.f32 %v1150, %v1154
        %vm1156 = vweird.f32 %v1142
        %vm1157 = vweird.f32 %v1150
        %vm1158 = vmor %vm1156, %vm1157
        %v1159 = vsel %vm1158, %v1150, %v1155
        %v1160 = vrsqrt.pop %v1143
        %v1161 = vmul.f32 %v1160, %v1143
        %v1162 = vmul.f32 %v1161, %v1160
        %v1163 = vmul.f32 0.5, %v1162
        %v1164 = vsub.f32 1.5, %v1163
        %v1165 = vmul.f32 %v1160, %v1164
        %vm1166 = vweird.f32 %v1143
        %vm1167 = vweird.f32 %v1160
        %vm1168 = vmor %vm1166, %vm1167
        %v1169 = vsel %vm1168, %v1160, %v1165
        %v1170 = vrsqrt.pop %v1144
        %v1171 = vmul.f32 %v1170, %v1144
        %v1172 = vmul.f32 %v1171, %v1170
        %v1173 = vmul.f32 0.5, %v1172
        %v1174 = vsub.f32 1.5, %v1173
        %v1175 = vmul.f32 %v1170, %v1174
        %vm1176 = vweird.f32 %v1144
        %vm1177 = vweird.f32 %v1170
        %vm1178 = vmor %vm1176, %vm1177
        %v1179 = vsel %vm1178, %v1170, %v1175
        %v1180 = vrsqrt.pop %v1145
        %v1181 = vmul.f32 %v1180, %v1145
        %v1182 = vmul.f32 %v1181, %v1180
        %v1183 = vmul.f32 0.5, %v1182
        %v1184 = vsub.f32 1.5, %v1183
        %v1185 = vmul.f32 %v1180, %v1184
        %vm1186 = vweird.f32 %v1145
        %vm1187 = vweird.f32 %v1180
        %vm1188 = vmor %vm1186, %vm1187
        %v1189 = vsel %vm1188, %v1180, %v1185
        %v1190 = vrsqrt.pop %v1146
        %v1191 = vmul.f32 %v1190, %v1146
        %v1192 = vmul.f32 %v1191, %v1190
        %v1193 = vmul.f32 0.5, %v1192
        %v1194 = vsub.f32 1.5, %v1193
        %v1195 = vmul.f32 %v1190, %v1194
        %vm1196 = vweird.f32 %v1146
        %vm1197 = vweird.f32 %v1190
        %vm1198 = vmor %vm1196, %vm1197
        %v1199 = vsel %vm1198, %v1190, %v1195
        %v1200 = vrsqrt.pop %v1147
        %v1201 = vmul.f32 %v1200, %v1147
        %v1202 = vmul.f32 %v1201, %v1200
        %v1203 = vmul.f32 0.5, %v1202
        %v1204 = vsub.f32 1.5, %v1203
        %v1205 = vmul.f32 %v1200, %v1204
        %vm1206 = vweird.f32 %v1147
        %vm1207 = vweird.f32 %v1200
        %vm1208 = vmor %vm1206, %vm1207
        %v1209 = vsel %vm1208, %v1200, %v1205
        %v1210 = vrsqrt.pop %v1148
        %v1211 = vmul.f32 %v1210, %v1148
        %v1212 = vmul.f32 %v1211, %v1210
        %v1213 = vmul.f32 0.5, %v1212
        %v1214 = vsub.f32 1.5, %v1213
        %v1215 = vmul.f32 %v1210, %v1214
        %vm1216 = vweird.f32 %v1148
        %vm1217 = vweird.f32 %v1210
        %vm1218 = vmor %vm1216, %vm1217
        %v1219 = vsel %vm1218, %v1210, %v1215
        %v1220 = vrsqrt.pop %v1149
        %v1221 = vmul.f32 %v1220, %v1149
        %v1222 = vmul.f32 %v1221, %v1220
        %v1223 = vmul.f32 0.5, %v1222
        %v1224 = vsub.f32 1.5, %v1223
        %v1225 = vmul.f32 %v1220, %v1224
        %vm1226 = vweird.f32 %v1149
        %vm1227 = vweird.f32 %v1220
        %vm1228 = vmor %vm1226, %vm1227
        %v1229 = vsel %vm1228, %v1220, %v1225
        %v1230 = vmul.f32 %v1094, %v1159
        %v1231 = vmul.f32 %v1095, %v1169
        %v1232 = vmul.f32 %v1096, %v1179
        %v1233 = vmul.f32 %v1097, %v1189
        %v1234 = vmul.f32 %v1098, %v1199
        %v1235 = vmul.f32 %v1099, %v1209
        %v1236 = vmul.f32 %v1100, %v1219
        %v1237 = vmul.f32 %v1101, %v1229
        %v1239 = vperm.slane %v1052, 0
        %v1241 = vmul.f32 %v1230, %v1239
        %v1242 = vmul.f32 %v1231, %v1239
        %v1243 = vmul.f32 %v1232, %v1239
        %v1244 = vmul.f32 %v1233, %v1239
        %v1245 = vmul.f32 %v1234, %v1239
        %v1246 = vmul.f32 %v1235, %v1239
        %v1247 = vmul.f32 %v1236, %v1239
        %v1248 = vmul.f32 %v1237, %v1239
        %v1250 = vperm.slane %v1053, 0
        %v1252 = vadd.f32 %v1241, %v1250
        %v1253 = vadd.f32 %v1242, %v1250
        %v1254 = vadd.f32 %v1243, %v1250
        %v1255 = vadd.f32 %v1244, %v1250
        %v1256 = vadd.f32 %v1245, %v1250
        %v1257 = vadd.f32 %v1246, %v1250
        %v1258 = vadd.f32 %v1247, %v1250
        %v1259 = vadd.f32 %v1248, %v1250
        %v1260 = vpack.c.bf16 %v1253, %v1252
        %v1261 = vpack.c.bf16 %v1255, %v1254
        %v1262 = vpack.c.bf16 %v1257, %v1256
        %v1263 = vpack.c.bf16 %v1259, %v1258
        %v1264 = vld [vmem:[%s773] sm:$0xf]
        %v1265 = vld [vmem:[%s773 + $0x4] sm:$0xf]
        %v1266 = vld [vmem:[%s773 + $0x8] sm:$0xf]
        %v1267 = vld [vmem:[%s773 + $0xc] sm:$0xf]
        %v1268 = vld [vmem:[%s776] sm:$0x1]
        %v1270 = vperm.slane %v1268, 0
        %v1276 = vunpack.c.l.b16 %v1264
        %v1277 = vunpack.c.l.b16 %v1265
        %v1278 = vunpack.c.l.b16 %v1266
        %v1279 = vunpack.c.l.b16 %v1267
        %v1280 = vpack.c.b16 %v1277, %v1276
        %v1281 = vpack.c.b16 %v1279, %v1278
        %v1285 = vsel %vm1054, %v1260, 0
        %v1288 = vsel %vm1054, %v1261, 0
        %v1291 = vsel %vm1054, %v1262, 0
        %v1294 = vsel %vm1054, %v1263, 0
        %1296 = vmatpush.bf16.msra.mxu0 0
        %1297 = vmatpush.bf16.msra.mxu0 0
        %1298 = vmatpush.bf16.msra.mxu0 0
        %1299 = vmatpush.bf16.msra.mxu0 0
        %1300 = vmatpush.bf16.msra.mxu0 0
        %1301 = vmatpush.bf16.msra.mxu0 0
        %1302 = vmatpush.bf16.msra.mxu0 %v1281
        %1303 = vmatpush.bf16.msra.mxu0 %v1280
        %1304 = vmatmul.bf16.gmra.mxu0 %v1285
        %v1305 = vpop.f32.mrf.mxu0
        %v1306 = vadd.f32 %v1270, %v1305
        %v1307 = vpop.f32.mrf.mxu0
        %v1308 = vadd.f32 %v1270, %v1307
        %1309 = vmatmul.bf16.gmra.mxu0 %v1288
        %v1310 = vpop.f32.mrf.mxu0
        %v1311 = vadd.f32 %v1270, %v1310
        %v1312 = vpop.f32.mrf.mxu0
        %v1313 = vadd.f32 %v1270, %v1312
        %1314 = vmatmul.bf16.gmra.mxu0 %v1291
        %v1315 = vpop.f32.mrf.mxu0
        %v1316 = vadd.f32 %v1270, %v1315
        %v1317 = vpop.f32.mrf.mxu0
        %v1318 = vadd.f32 %v1270, %v1317
        %1319 = vmatmul.bf16.gmra.mxu0 %v1294
        %v1320 = vpop.f32.mrf.mxu0
        %v1321 = vadd.f32 %v1270, %v1320
        %v1322 = vpop.f32.mrf.mxu0
        %v1323 = vadd.f32 %v1270, %v1322
        %1324 = vdwg.mxu0
        %v1325 = vpack.c.bf16 %v1306, %v1306
        %v1326 = vpack.c.bf16 %v1308, %v1308
        %v1327 = vpack.c.bf16 %v1311, %v1311
        %v1328 = vpack.c.bf16 %v1313, %v1313
        %v1329 = vpack.c.bf16 %v1316, %v1316
        %v1330 = vpack.c.bf16 %v1318, %v1318
        %v1331 = vpack.c.bf16 %v1321, %v1321
        %v1332 = vpack.c.bf16 %v1323, %v1323
        %v1333 = vld [vmem:[%s16] sm:$0xff]
        %v1335 = vunpack.c.l.b16 %v1325
        %v1336 = vpack.c.b16 %v1335, %v1335
        %1337 = vrot.lane.b32.xlu0 %v1336, 96
        %v1338 = vpop.permute.xlu0 %1337
        %vm1339 = vcmask 64512
        %v1341 = vsel %vm1339, %v1325, 0
        %v1344 = vsel %vm1339, %v1338, 0
        %1346 = vmatpush.bf16.xpose.msra.mxu0 0
        %1347 = vmatpush.bf16.xpose.msra.mxu0 0
        %1348 = vmatpush.bf16.xpose.msra.mxu0 0
        %1349 = vmatpush.bf16.xpose.msra.mxu0 0
        %1350 = vmatpush.bf16.xpose.msra.mxu0 0
        %1351 = vmatpush.bf16.xpose.msra.mxu0 0
        %1352 = vmatpush.bf16.xpose.msra.mxu0 0
        %1353 = vmatpush.bf16.xpose.msra.mxu0 %v1344
        %1354 = vmatmul.bf16.gmra.mxu0 %v1341
        %v1355 = vpop.f32.mrf.mxu0
        %v1356 = vadd.f32 0.0, %v1355
        %v1357 = vpop.f32.mrf.mxu0
        %1358 = vdwg.mxu0
        %v1360 = vunpack.c.l.b16 %v1326
        %v1361 = vpack.c.b16 %v1360, %v1360
        %1362 = vrot.lane.b32.xlu0 %v1361, 96
        %v1363 = vpop.permute.xlu0 %1362
        %v1365 = vsel %vm1339, %v1326, 0
        %v1368 = vsel %vm1339, %v1363, 0
        %1370 = vmatpush.bf16.xpose.msra.mxu0 0
        %1371 = vmatpush.bf16.xpose.msra.mxu0 0
        %1372 = vmatpush.bf16.xpose.msra.mxu0 0
        %1373 = vmatpush.bf16.xpose.msra.mxu0 0
        %1374 = vmatpush.bf16.xpose.msra.mxu0 0
        %1375 = vmatpush.bf16.xpose.msra.mxu0 0
        %1376 = vmatpush.bf16.xpose.msra.mxu0 0
        %1377 = vmatpush.bf16.xpose.msra.mxu0 %v1368
        %1378 = vmatmul.bf16.gmra.mxu0 %v1365
        %v1379 = vpop.f32.mrf.mxu0
        %v1380 = vadd.f32 0.0, %v1379
        %v1381 = vpop.f32.mrf.mxu0
        %1382 = vdwg.mxu0
        %v1384 = vunpack.c.l.b16 %v1327
        %v1385 = vpack.c.b16 %v1384, %v1384
        %1386 = vrot.lane.b32.xlu0 %v1385, 96
        %v1387 = vpop.permute.xlu0 %1386
        %v1389 = vsel %vm1339, %v1327, 0
        %v1392 = vsel %vm1339, %v1387, 0
        %1394 = vmatpush.bf16.xpose.msra.mxu0 0
        %1395 = vmatpush.bf16.xpose.msra.mxu0 0
        %1396 = vmatpush.bf16.xpose.msra.mxu0 0
        %1397 = vmatpush.bf16.xpose.msra.mxu0 0
        %1398 = vmatpush.bf16.xpose.msra.mxu0 0
        %1399 = vmatpush.bf16.xpose.msra.mxu0 0
        %1400 = vmatpush.bf16.xpose.msra.mxu0 0
        %1401 = vmatpush.bf16.xpose.msra.mxu0 %v1392
        %1402 = vmatmul.bf16.gmra.mxu0 %v1389
        %v1403 = vpop.f32.mrf.mxu0
        %v1404 = vadd.f32 0.0, %v1403
        %v1405 = vpop.f32.mrf.mxu0
        %1406 = vdwg.mxu0
        %v1408 = vunpack.c.l.b16 %v1328
        %v1409 = vpack.c.b16 %v1408, %v1408
        %1410 = vrot.lane.b32.xlu0 %v1409, 96
        %v1411 = vpop.permute.xlu0 %1410
        %v1413 = vsel %vm1339, %v1328, 0
        %v1416 = vsel %vm1339, %v1411, 0
        %1418 = vmatpush.bf16.xpose.msra.mxu0 0
        %1419 = vmatpush.bf16.xpose.msra.mxu0 0
        %1420 = vmatpush.bf16.xpose.msra.mxu0 0
        %1421 = vmatpush.bf16.xpose.msra.mxu0 0
        %1422 = vmatpush.bf16.xpose.msra.mxu0 0
        %1423 = vmatpush.bf16.xpose.msra.mxu0 0
        %1424 = vmatpush.bf16.xpose.msra.mxu0 0
        %1425 = vmatpush.bf16.xpose.msra.mxu0 %v1416
        %1426 = vmatmul.bf16.gmra.mxu0 %v1413
        %v1427 = vpop.f32.mrf.mxu0
        %v1428 = vadd.f32 0.0, %v1427
        %v1429 = vpop.f32.mrf.mxu0
        %1430 = vdwg.mxu0
        %v1432 = vunpack.c.l.b16 %v1329
        %v1433 = vpack.c.b16 %v1432, %v1432
        %1434 = vrot.lane.b32.xlu0 %v1433, 96
        %v1435 = vpop.permute.xlu0 %1434
        %v1437 = vsel %vm1339, %v1329, 0
        %v1440 = vsel %vm1339, %v1435, 0
        %1442 = vmatpush.bf16.xpose.msra.mxu0 0
        %1443 = vmatpush.bf16.xpose.msra.mxu0 0
        %1444 = vmatpush.bf16.xpose.msra.mxu0 0
        %1445 = vmatpush.bf16.xpose.msra.mxu0 0
        %1446 = vmatpush.bf16.xpose.msra.mxu0 0
        %1447 = vmatpush.bf16.xpose.msra.mxu0 0
        %1448 = vmatpush.bf16.xpose.msra.mxu0 0
        %1449 = vmatpush.bf16.xpose.msra.mxu0 %v1440
        %1450 = vmatmul.bf16.gmra.mxu0 %v1437
        %v1451 = vpop.f32.mrf.mxu0
        %v1452 = vadd.f32 0.0, %v1451
        %v1453 = vpop.f32.mrf.mxu0
        %1454 = vdwg.mxu0
        %v1456 = vunpack.c.l.b16 %v1330
        %v1457 = vpack.c.b16 %v1456, %v1456
        %1458 = vrot.lane.b32.xlu0 %v1457, 96
        %v1459 = vpop.permute.xlu0 %1458
        %v1461 = vsel %vm1339, %v1330, 0
        %v1464 = vsel %vm1339, %v1459, 0
        %1466 = vmatpush.bf16.xpose.msra.mxu0 0
        %1467 = vmatpush.bf16.xpose.msra.mxu0 0
        %1468 = vmatpush.bf16.xpose.msra.mxu0 0
        %1469 = vmatpush.bf16.xpose.msra.mxu0 0
        %1470 = vmatpush.bf16.xpose.msra.mxu0 0
        %1471 = vmatpush.bf16.xpose.msra.mxu0 0
        %1472 = vmatpush.bf16.xpose.msra.mxu0 0
        %1473 = vmatpush.bf16.xpose.msra.mxu0 %v1464
        %1474 = vmatmul.bf16.gmra.mxu0 %v1461
        %v1475 = vpop.f32.mrf.mxu0
        %v1476 = vadd.f32 0.0, %v1475
        %v1477 = vpop.f32.mrf.mxu0
        %1478 = vdwg.mxu0
        %v1480 = vunpack.c.l.b16 %v1331
        %v1481 = vpack.c.b16 %v1480, %v1480
        %1482 = vrot.lane.b32.xlu0 %v1481, 96
        %v1483 = vpop.permute.xlu0 %1482
        %v1485 = vsel %vm1339, %v1331, 0
        %v1488 = vsel %vm1339, %v1483, 0
        %1490 = vmatpush.bf16.xpose.msra.mxu0 0
        %1491 = vmatpush.bf16.xpose.msra.mxu0 0
        %1492 = vmatpush.bf16.xpose.msra.mxu0 0
        %1493 = vmatpush.bf16.xpose.msra.mxu0 0
        %1494 = vmatpush.bf16.xpose.msra.mxu0 0
        %1495 = vmatpush.bf16.xpose.msra.mxu0 0
        %1496 = vmatpush.bf16.xpose.msra.mxu0 0
        %1497 = vmatpush.bf16.xpose.msra.mxu0 %v1488
        %1498 = vmatmul.bf16.gmra.mxu0 %v1485
        %v1499 = vpop.f32.mrf.mxu0
        %v1500 = vadd.f32 0.0, %v1499
        %v1501 = vpop.f32.mrf.mxu0
        %1502 = vdwg.mxu0
        %v1504 = vunpack.c.l.b16 %v1332
        %v1505 = vpack.c.b16 %v1504, %v1504
        %1506 = vrot.lane.b32.xlu0 %v1505, 96
        %v1507 = vpop.permute.xlu0 %1506
        %v1509 = vsel %vm1339, %v1332, 0
        %v1512 = vsel %vm1339, %v1507, 0
        %1514 = vmatpush.bf16.xpose.msra.mxu0 0
        %1515 = vmatpush.bf16.xpose.msra.mxu0 0
        %1516 = vmatpush.bf16.xpose.msra.mxu0 0
        %1517 = vmatpush.bf16.xpose.msra.mxu0 0
        %1518 = vmatpush.bf16.xpose.msra.mxu0 0
        %1519 = vmatpush.bf16.xpose.msra.mxu0 0
        %1520 = vmatpush.bf16.xpose.msra.mxu0 0
        %1521 = vmatpush.bf16.xpose.msra.mxu0 %v1512
        %1522 = vmatmul.bf16.gmra.mxu0 %v1509
        %v1523 = vpop.f32.mrf.mxu0
        %v1524 = vadd.f32 0.0, %v1523
        %v1525 = vpop.f32.mrf.mxu0
        %1526 = vdwg.mxu0
        %v1527 = vmul.f32 %v1356, 0.35355338
        %v1528 = vmul.f32 %v1380, 0.35355338
        %v1529 = vmul.f32 %v1404, 0.35355338
        %v1530 = vmul.f32 %v1428, 0.35355338
        %v1531 = vmul.f32 %v1452, 0.35355338
        %v1532 = vmul.f32 %v1476, 0.35355338
        %v1533 = vmul.f32 %v1500, 0.35355338
        %v1534 = vmul.f32 %v1524, 0.35355338
        %v1535 = vadd.f32 %v1527, %v1333
        %v1536 = vadd.f32 %v1528, %v1333
        %v1537 = vadd.f32 %v1529, %v1333
        %v1538 = vadd.f32 %v1530, %v1333
        %v1539 = vadd.f32 %v1531, %v1333
        %v1540 = vadd.f32 %v1532, %v1333
        %v1541 = vadd.f32 %v1533, %v1333
        %v1542 = vadd.f32 %v1534, %v1333
        %v1543 = vsel %vm1339, %v1535, -inf
        %1544 = vmax.xlane.f32.xlu0 %v1543
        %v1545 = vpop.xlane.xlu0 %1544
        %v1546 = vsel %vm1339, %v1536, -inf
        %1547 = vmax.xlane.f32.xlu0 %v1546
        %v1548 = vpop.xlane.xlu0 %1547
        %v1549 = vsel %vm1339, %v1537, -inf
        %1550 = vmax.xlane.f32.xlu0 %v1549
        %v1551 = vpop.xlane.xlu0 %1550
        %v1552 = vsel %vm1339, %v1538, -inf
        %1553 = vmax.xlane.f32.xlu0 %v1552
        %v1554 = vpop.xlane.xlu0 %1553
        %v1555 = vsel %vm1339, %v1539, -inf
        %1556 = vmax.xlane.f32.xlu0 %v1555
        %v1557 = vpop.xlane.xlu0 %1556
        %v1558 = vsel %vm1339, %v1540, -inf
        %1559 = vmax.xlane.f32.xlu0 %v1558
        %v1560 = vpop.xlane.xlu0 %1559
        %v1561 = vsel %vm1339, %v1541, -inf
        %1562 = vmax.xlane.f32.xlu0 %v1561
        %v1563 = vpop.xlane.xlu0 %1562
        %v1564 = vsel %vm1339, %v1542, -inf
        %1565 = vmax.xlane.f32.xlu0 %v1564
        %v1566 = vpop.xlane.xlu0 %1565
        %v1567 = vsub.f32 %v1535, %v1545
        %v1568 = vsub.f32 %v1536, %v1548
        %v1569 = vsub.f32 %v1537, %v1551
        %v1570 = vsub.f32 %v1538, %v1554
        %v1571 = vsub.f32 %v1539, %v1557
        %v1572 = vsub.f32 %v1540, %v1560
        %v1573 = vsub.f32 %v1541, %v1563
        %v1574 = vsub.f32 %v1542, %v1566
        %v1575 = vmul.f32 %v1567, 1.442695
        %v1576 = vpow.pop %v1575
        %v1577 = vmul.f32 %v1568, 1.442695
        %v1578 = vpow.pop %v1577
        %v1579 = vmul.f32 %v1569, 1.442695
        %v1580 = vpow.pop %v1579
        %v1581 = vmul.f32 %v1570, 1.442695
        %v1582 = vpow.pop %v1581
        %v1583 = vmul.f32 %v1571, 1.442695
        %v1584 = vpow.pop %v1583
        %v1585 = vmul.f32 %v1572, 1.442695
        %v1586 = vpow.pop %v1585
        %v1587 = vmul.f32 %v1573, 1.442695
        %v1588 = vpow.pop %v1587
        %v1589 = vmul.f32 %v1574, 1.442695
        %v1590 = vpow.pop %v1589
        %v1591 = vsel %vm1339, %v1576, 0.0
        %1592 = vadd.xlane.f32.xlu0 %v1591
        %v1593 = vpop.xlane.xlu0 %1592
        %v1594 = vsel %vm1339, %v1578, 0.0
        %1595 = vadd.xlane.f32.xlu0 %v1594
        %v1596 = vpop.xlane.xlu0 %1595
        %v1597 = vsel %vm1339, %v1580, 0.0
        %1598 = vadd.xlane.f32.xlu0 %v1597
        %v1599 = vpop.xlane.xlu0 %1598
        %v1600 = vsel %vm1339, %v1582, 0.0
        %1601 = vadd.xlane.f32.xlu0 %v1600
        %v1602 = vpop.xlane.xlu0 %1601
        %v1603 = vsel %vm1339, %v1584, 0.0
        %1604 = vadd.xlane.f32.xlu0 %v1603
        %v1605 = vpop.xlane.xlu0 %1604
        %v1606 = vsel %vm1339, %v1586, 0.0
        %1607 = vadd.xlane.f32.xlu0 %v1606
        %v1608 = vpop.xlane.xlu0 %1607
        %v1609 = vsel %vm1339, %v1588, 0.0
        %1610 = vadd.xlane.f32.xlu0 %v1609
        %v1611 = vpop.xlane.xlu0 %1610
        %v1612 = vsel %vm1339, %v1590, 0.0
        %1613 = vadd.xlane.f32.xlu0 %v1612
        %v1614 = vpop.xlane.xlu0 %1613
        %v1615 = vrcp.pop %v1593
        %v1616 = vrcp.pop %v1596
        %v1617 = vrcp.pop %v1599
        %v1618 = vrcp.pop %v1602
        %v1619 = vrcp.pop %v1605
        %v1620 = vrcp.pop %v1608
        %v1621 = vrcp.pop %v1611
        %v1622 = vrcp.pop %v1614
        %v1623 = vmul.f32 %v1576, %v1615
        %v1624 = vmul.f32 %v1578, %v1616
        %v1625 = vmul.f32 %v1580, %v1617
        %v1626 = vmul.f32 %v1582, %v1618
        %v1627 = vmul.f32 %v1584, %v1619
        %v1628 = vmul.f32 %v1586, %v1620
        %v1629 = vmul.f32 %v1588, %v1621
        %v1630 = vmul.f32 %v1590, %v1622
        %v1631 = vpack.c.bf16 %v1623, %v1623
        %v1632 = vpack.c.bf16 %v1624, %v1624
        %v1633 = vpack.c.bf16 %v1625, %v1625
        %v1634 = vpack.c.bf16 %v1626, %v1626
        %v1635 = vpack.c.bf16 %v1627, %v1627
        %v1636 = vpack.c.bf16 %v1628, %v1628
        %v1637 = vpack.c.bf16 %v1629, %v1629
        %v1638 = vpack.c.bf16 %v1630, %v1630
        %1639 = vrot.lane.b32.xlu0 %v1336, 64
        %v1640 = vpop.permute.xlu0 %1639
        %v1642 = vsel %vm1339, %v1631, 0
        %vm1644 = vcmask 1043456
        %v1646 = vsel %vm1644, %v1640, 0
        %1648 = vmatpush.bf16.msra.mxu0 0
        %1649 = vmatpush.bf16.msra.mxu0 0
        %1650 = vmatpush.bf16.msra.mxu0 0
        %1651 = vmatpush.bf16.msra.mxu0 0
        %1652 = vmatpush.bf16.msra.mxu0 0
        %1653 = vmatpush.bf16.msra.mxu0 0
        %1654 = vmatpush.bf16.msra.mxu0 0
        %1655 = vmatpush.bf16.msra.mxu0 %v1646
        %1656 = vmatmul.bf16.gmra.mxu0 %v1642
        %v1657 = vpop.f32.mrf.mxu0
        %v1658 = vadd.f32 0.0, %v1657
        %v1659 = vpop.f32.mrf.mxu0
        %1660 = vdwg.mxu0
        %1661 = vrot.lane.b32.xlu0 %v1361, 64
        %v1662 = vpop.permute.xlu0 %1661
        %v1664 = vsel %vm1339, %v1632, 0
        %v1667 = vsel %vm1644, %v1662, 0
        %1669 = vmatpush.bf16.msra.mxu0 0
        %1670 = vmatpush.bf16.msra.mxu0 0
        %1671 = vmatpush.bf16.msra.mxu0 0
        %1672 = vmatpush.bf16.msra.mxu0 0
        %1673 = vmatpush.bf16.msra.mxu0 0
        %1674 = vmatpush.bf16.msra.mxu0 0
        %1675 = vmatpush.bf16.msra.mxu0 0
        %1676 = vmatpush.bf16.msra.mxu0 %v1667
        %1677 = vmatmul.bf16.gmra.mxu0 %v1664
        %v1678 = vpop.f32.mrf.mxu0
        %v1679 = vadd.f32 0.0, %v1678
        %v1680 = vpop.f32.mrf.mxu0
        %1681 = vdwg.mxu0
        %1682 = vrot.lane.b32.xlu0 %v1385, 64
        %v1683 = vpop.permute.xlu0 %1682
        %v1685 = vsel %vm1339, %v1633, 0
        %v1688 = vsel %vm1644, %v1683, 0
        %1690 = vmatpush.bf16.msra.mxu0 0
        %1691 = vmatpush.bf16.msra.mxu0 0
        %1692 = vmatpush.bf16.msra.mxu0 0
        %1693 = vmatpush.bf16.msra.mxu0 0
        %1694 = vmatpush.bf16.msra.mxu0 0
        %1695 = vmatpush.bf16.msra.mxu0 0
        %1696 = vmatpush.bf16.msra.mxu0 0
        %1697 = vmatpush.bf16.msra.mxu0 %v1688
        %1698 = vmatmul.bf16.gmra.mxu0 %v1685
        %v1699 = vpop.f32.mrf.mxu0
        %v1700 = vadd.f32 0.0, %v1699
        %v1701 = vpop.f32.mrf.mxu0
        %1702 = vdwg.mxu0
        %1703 = vrot.lane.b32.xlu0 %v1409, 64
        %v1704 = vpop.permute.xlu0 %1703
        %v1706 = vsel %vm1339, %v1634, 0
        %v1709 = vsel %vm1644, %v1704, 0
        %1711 = vmatpush.bf16.msra.mxu0 0
        %1712 = vmatpush.bf16.msra.mxu0 0
        %1713 = vmatpush.bf16.msra.mxu0 0
        %1714 = vmatpush.bf16.msra.mxu0 0
        %1715 = vmatpush.bf16.msra.mxu0 0
        %1716 = vmatpush.bf16.msra.mxu0 0
        %1717 = vmatpush.bf16.msra.mxu0 0
        %1718 = vmatpush.bf16.msra.mxu0 %v1709
        %1719 = vmatmul.bf16.gmra.mxu0 %v1706
        %v1720 = vpop.f32.mrf.mxu0
        %v1721 = vadd.f32 0.0, %v1720
        %v1722 = vpop.f32.mrf.mxu0
        %1723 = vdwg.mxu0
        %1724 = vrot.lane.b32.xlu0 %v1433, 64
        %v1725 = vpop.permute.xlu0 %1724
        %v1727 = vsel %vm1339, %v1635, 0
        %v1730 = vsel %vm1644, %v1725, 0
        %1732 = vmatpush.bf16.msra.mxu0 0
        %1733 = vmatpush.bf16.msra.mxu0 0
        %1734 = vmatpush.bf16.msra.mxu0 0
        %1735 = vmatpush.bf16.msra.mxu0 0
        %1736 = vmatpush.bf16.msra.mxu0 0
        %1737 = vmatpush.bf16.msra.mxu0 0
        %1738 = vmatpush.bf16.msra.mxu0 0
        %1739 = vmatpush.bf16.msra.mxu0 %v1730
        %1740 = vmatmul.bf16.gmra.mxu0 %v1727
        %v1741 = vpop.f32.mrf.mxu0
        %v1742 = vadd.f32 0.0, %v1741
        %v1743 = vpop.f32.mrf.mxu0
        %1744 = vdwg.mxu0
        %1745 = vrot.lane.b32.xlu0 %v1457, 64
        %v1746 = vpop.permute.xlu0 %1745
        %v1748 = vsel %vm1339, %v1636, 0
        %v1751 = vsel %vm1644, %v1746, 0
        %1753 = vmatpush.bf16.msra.mxu0 0
        %1754 = vmatpush.bf16.msra.mxu0 0
        %1755 = vmatpush.bf16.msra.mxu0 0
        %1756 = vmatpush.bf16.msra.mxu0 0
        %1757 = vmatpush.bf16.msra.mxu0 0
        %1758 = vmatpush.bf16.msra.mxu0 0
        %1759 = vmatpush.bf16.msra.mxu0 0
        %1760 = vmatpush.bf16.msra.mxu0 %v1751
        %1761 = vmatmul.bf16.gmra.mxu0 %v1748
        %v1762 = vpop.f32.mrf.mxu0
        %v1763 = vadd.f32 0.0, %v1762
        %v1764 = vpop.f32.mrf.mxu0
        %1765 = vdwg.mxu0
        %1766 = vrot.lane.b32.xlu0 %v1481, 64
        %v1767 = vpop.permute.xlu0 %1766
        %v1769 = vsel %vm1339, %v1637, 0
        %v1772 = vsel %vm1644, %v1767, 0
        %1774 = vmatpush.bf16.msra.mxu0 0
        %1775 = vmatpush.bf16.msra.mxu0 0
        %1776 = vmatpush.bf16.msra.mxu0 0
        %1777 = vmatpush.bf16.msra.mxu0 0
        %1778 = vmatpush.bf16.msra.mxu0 0
        %1779 = vmatpush.bf16.msra.mxu0 0
        %1780 = vmatpush.bf16.msra.mxu0 0
        %1781 = vmatpush.bf16.msra.mxu0 %v1772
        %1782 = vmatmul.bf16.gmra.mxu0 %v1769
        %v1783 = vpop.f32.mrf.mxu0
        %v1784 = vadd.f32 0.0, %v1783
        %v1785 = vpop.f32.mrf.mxu0
        %1786 = vdwg.mxu0
        %1787 = vrot.lane.b32.xlu0 %v1505, 64
        %v1788 = vpop.permute.xlu0 %1787
        %v1790 = vsel %vm1339, %v1638, 0
        %v1793 = vsel %vm1644, %v1788, 0
        %1795 = vmatpush.bf16.msra.mxu0 0
        %1796 = vmatpush.bf16.msra.mxu0 0
        %1797 = vmatpush.bf16.msra.mxu0 0
        %1798 = vmatpush.bf16.msra.mxu0 0
        %1799 = vmatpush.bf16.msra.mxu0 0
        %1800 = vmatpush.bf16.msra.mxu0 0
        %1801 = vmatpush.bf16.msra.mxu0 0
        %1802 = vmatpush.bf16.msra.mxu0 %v1793
        %1803 = vmatmul.bf16.gmra.mxu0 %v1790
        %v1804 = vpop.f32.mrf.mxu0
        %v1805 = vadd.f32 0.0, %v1804
        %v1806 = vpop.f32.mrf.mxu0
        %1807 = vdwg.mxu0
        %1808 = vrot.lane.b32.xlu0 %v1336, 120
        %v1809 = vpop.permute.xlu0 %1808
        %1810 = vrot.lane.b32.xlu0 %v1336, 88
        %v1811 = vpop.permute.xlu0 %1810
        %v1813 = vsel %vm1339, %v1809, 0
        %v1816 = vsel %vm1339, %v1811, 0
        %1818 = vmatpush.bf16.xpose.msra.mxu0 0
        %1819 = vmatpush.bf16.xpose.msra.mxu0 0
        %1820 = vmatpush.bf16.xpose.msra.mxu0 0
        %1821 = vmatpush.bf16.xpose.msra.mxu0 0
        %1822 = vmatpush.bf16.xpose.msra.mxu0 0
        %1823 = vmatpush.bf16.xpose.msra.mxu0 0
        %1824 = vmatpush.bf16.xpose.msra.mxu0 0
        %1825 = vmatpush.bf16.xpose.msra.mxu0 %v1816
        %1826 = vmatmul.bf16.gmra.mxu0 %v1813
        %v1827 = vpop.f32.mrf.mxu0
        %v1828 = vadd.f32 0.0, %v1827
        %v1829 = vpop.f32.mrf.mxu0
        %1830 = vdwg.mxu0
        %1831 = vrot.lane.b32.xlu0 %v1361, 120
        %v1832 = vpop.permute.xlu0 %1831
        %1833 = vrot.lane.b32.xlu0 %v1361, 88
        %v1834 = vpop.permute.xlu0 %1833
        %v1836 = vsel %vm1339, %v1832, 0
        %v1839 = vsel %vm1339, %v1834, 0
        %1841 = vmatpush.bf16.xpose.msra.mxu0 0
        %1842 = vmatpush.bf16.xpose.msra.mxu0 0
        %1843 = vmatpush.bf16.xpose.msra.mxu0 0
        %1844 = vmatpush.bf16.xpose.msra.mxu0 0
        %1845 = vmatpush.bf16.xpose.msra.mxu0 0
        %1846 = vmatpush.bf16.xpose.msra.mxu0 0
        %1847 = vmatpush.bf16.xpose.msra.mxu0 0
        %1848 = vmatpush.bf16.xpose.msra.mxu0 %v1839
        %1849 = vmatmul.bf16.gmra.mxu0 %v1836
        %v1850 = vpop.f32.mrf.mxu0
        %v1851 = vadd.f32 0.0, %v1850
        %v1852 = vpop.f32.mrf.mxu0
        %1853 = vdwg.mxu0
        %1854 = vrot.lane.b32.xlu0 %v1385, 120
        %v1855 = vpop.permute.xlu0 %1854
        %1856 = vrot.lane.b32.xlu0 %v1385, 88
        %v1857 = vpop.permute.xlu0 %1856
        %v1859 = vsel %vm1339, %v1855, 0
        %v1862 = vsel %vm1339, %v1857, 0
        %1864 = vmatpush.bf16.xpose.msra.mxu0 0
        %1865 = vmatpush.bf16.xpose.msra.mxu0 0
        %1866 = vmatpush.bf16.xpose.msra.mxu0 0
        %1867 = vmatpush.bf16.xpose.msra.mxu0 0
        %1868 = vmatpush.bf16.xpose.msra.mxu0 0
        %1869 = vmatpush.bf16.xpose.msra.mxu0 0
        %1870 = vmatpush.bf16.xpose.msra.mxu0 0
        %1871 = vmatpush.bf16.xpose.msra.mxu0 %v1862
        %1872 = vmatmul.bf16.gmra.mxu0 %v1859
        %v1873 = vpop.f32.mrf.mxu0
        %v1874 = vadd.f32 0.0, %v1873
        %v1875 = vpop.f32.mrf.mxu0
        %1876 = vdwg.mxu0
        %1877 = vrot.lane.b32.xlu0 %v1409, 120
        %v1878 = vpop.permute.xlu0 %1877
        %1879 = vrot.lane.b32.xlu0 %v1409, 88
        %v1880 = vpop.permute.xlu0 %1879
        %v1882 = vsel %vm1339, %v1878, 0
        %v1885 = vsel %vm1339, %v1880, 0
        %1887 = vmatpush.bf16.xpose.msra.mxu0 0
        %1888 = vmatpush.bf16.xpose.msra.mxu0 0
        %1889 = vmatpush.bf16.xpose.msra.mxu0 0
        %1890 = vmatpush.bf16.xpose.msra.mxu0 0
        %1891 = vmatpush.bf16.xpose.msra.mxu0 0
        %1892 = vmatpush.bf16.xpose.msra.mxu0 0
        %1893 = vmatpush.bf16.xpose.msra.mxu0 0
        %1894 = vmatpush.bf16.xpose.msra.mxu0 %v1885
        %1895 = vmatmul.bf16.gmra.mxu0 %v1882
        %v1896 = vpop.f32.mrf.mxu0
        %v1897 = vadd.f32 0.0, %v1896
        %v1898 = vpop.f32.mrf.mxu0
        %1899 = vdwg.mxu0
        %1900 = vrot.lane.b32.xlu0 %v1433, 120
        %v1901 = vpop.permute.xlu0 %1900
        %1902 = vrot.lane.b32.xlu0 %v1433, 88
        %v1903 = vpop.permute.xlu0 %1902
        %v1905 = vsel %vm1339, %v1901, 0
        %v1908 = vsel %vm1339, %v1903, 0
        %1910 = vmatpush.bf16.xpose.msra.mxu0 0
        %1911 = vmatpush.bf16.xpose.msra.mxu0 0
        %1912 = vmatpush.bf16.xpose.msra.mxu0 0
        %1913 = vmatpush.bf16.xpose.msra.mxu0 0
        %1914 = vmatpush.bf16.xpose.msra.mxu0 0
        %1915 = vmatpush.bf16.xpose.msra.mxu0 0
        %1916 = vmatpush.bf16.xpose.msra.mxu0 0
        %1917 = vmatpush.bf16.xpose.msra.mxu0 %v1908
        %1918 = vmatmul.bf16.gmra.mxu0 %v1905
        %v1919 = vpop.f32.mrf.mxu0
        %v1920 = vadd.f32 0.0, %v1919
        %v1921 = vpop.f32.mrf.mxu0
        %1922 = vdwg.mxu0
        %1923 = vrot.lane.b32.xlu0 %v1457, 120
        %v1924 = vpop.permute.xlu0 %1923
        %1925 = vrot.lane.b32.xlu0 %v1457, 88
        %v1926 = vpop.permute.xlu0 %1925
        %v1928 = vsel %vm1339, %v1924, 0
        %v1931 = vsel %vm1339, %v1926, 0
        %1933 = vmatpush.bf16.xpose.msra.mxu0 0
        %1934 = vmatpush.bf16.xpose.msra.mxu0 0
        %1935 = vmatpush.bf16.xpose.msra.mxu0 0
        %1936 = vmatpush.bf16.xpose.msra.mxu0 0
        %1937 = vmatpush.bf16.xpose.msra.mxu0 0
        %1938 = vmatpush.bf16.xpose.msra.mxu0 0
        %1939 = vmatpush.bf16.xpose.msra.mxu0 0
        %1940 = vmatpush.bf16.xpose.msra.mxu0 %v1931
        %1941 = vmatmul.bf16.gmra.mxu0 %v1928
        %v1942 = vpop.f32.mrf.mxu0
        %v1943 = vadd.f32 0.0, %v1942
        %v1944 = vpop.f32.mrf.mxu0
        %1945 = vdwg.mxu0
        %1946 = vrot.lane.b32.xlu0 %v1481, 120
        %v1947 = vpop.permute.xlu0 %1946
        %1948 = vrot.lane.b32.xlu0 %v1481, 88
        %v1949 = vpop.permute.xlu0 %1948
        %v1951 = vsel %vm1339, %v1947, 0
        %v1954 = vsel %vm1339, %v1949, 0
        %1956 = vmatpush.bf16.xpose.msra.mxu0 0
        %1957 = vmatpush.bf16.xpose.msra.mxu0 0
        %1958 = vmatpush.bf16.xpose.msra.mxu0 0
        %1959 = vmatpush.bf16.xpose.msra.mxu0 0
        %1960 = vmatpush.bf16.xpose.msra.mxu0 0
        %1961 = vmatpush.bf16.xpose.msra.mxu0 0
        %1962 = vmatpush.bf16.xpose.msra.mxu0 0
        %1963 = vmatpush.bf16.xpose.msra.mxu0 %v1954
        %1964 = vmatmul.bf16.gmra.mxu0 %v1951
        %v1965 = vpop.f32.mrf.mxu0
        %v1966 = vadd.f32 0.0, %v1965
        %v1967 = vpop.f32.mrf.mxu0
        %1968 = vdwg.mxu0
        %1969 = vrot.lane.b32.xlu0 %v1505, 120
        %v1970 = vpop.permute.xlu0 %1969
        %1971 = vrot.lane.b32.xlu0 %v1505, 88
        %v1972 = vpop.permute.xlu0 %1971
        %v1974 = vsel %vm1339, %v1970, 0
        %v1977 = vsel %vm1339, %v1972, 0
        %1979 = vmatpush.bf16.xpose.msra.mxu0 0
        %1980 = vmatpush.bf16.xpose.msra.mxu0 0
        %1981 = vmatpush.bf16.xpose.msra.mxu0 0
        %1982 = vmatpush.bf16.xpose.msra.mxu0 0
        %1983 = vmatpush.bf16.xpose.msra.mxu0 0
        %1984 = vmatpush.bf16.xpose.msra.mxu0 0
        %1985 = vmatpush.bf16.xpose.msra.mxu0 0
        %1986 = vmatpush.bf16.xpose.msra.mxu0 %v1977
        %1987 = vmatmul.bf16.gmra.mxu0 %v1974
        %v1988 = vpop.f32.mrf.mxu0
        %v1989 = vadd.f32 0.0, %v1988
        %v1990 = vpop.f32.mrf.mxu0
        %1991 = vdwg.mxu0
        %v1992 = vmul.f32 %v1828, 0.35355338
        %v1993 = vmul.f32 %v1851, 0.35355338
        %v1994 = vmul.f32 %v1874, 0.35355338
        %v1995 = vmul.f32 %v1897, 0.35355338
        %v1996 = vmul.f32 %v1920, 0.35355338
        %v1997 = vmul.f32 %v1943, 0.35355338
        %v1998 = vmul.f32 %v1966, 0.35355338
        %v1999 = vmul.f32 %v1989, 0.35355338
        %v2000 = vadd.f32 %v1992, %v1333
        %v2001 = vadd.f32 %v1993, %v1333
        %v2002 = vadd.f32 %v1994, %v1333
        %v2003 = vadd.f32 %v1995, %v1333
        %v2004 = vadd.f32 %v1996, %v1333
        %v2005 = vadd.f32 %v1997, %v1333
        %v2006 = vadd.f32 %v1998, %v1333
        %v2007 = vadd.f32 %v1999, %v1333
        %v2008 = vsel %vm1339, %v2000, -inf
        %2009 = vmax.xlane.f32.xlu0 %v2008
        %v2010 = vpop.xlane.xlu0 %2009
        %v2011 = vsel %vm1339, %v2001, -inf
        %2012 = vmax.xlane.f32.xlu0 %v2011
        %v2013 = vpop.xlane.xlu0 %2012
        %v2014 = vsel %vm1339, %v2002, -inf
        %2015 = vmax.xlane.f32.xlu0 %v2014
        %v2016 = vpop.xlane.xlu0 %2015
        %v2017 = vsel %vm1339, %v2003, -inf
        %2018 = vmax.xlane.f32.xlu0 %v2017
        %v2019 = vpop.xlane.xlu0 %2018
        %v2020 = vsel %vm1339, %v2004, -inf
        %2021 = vmax.xlane.f32.xlu0 %v2020
        %v2022 = vpop.xlane.xlu0 %2021
        %v2023 = vsel %vm1339, %v2005, -inf
        %2024 = vmax.xlane.f32.xlu0 %v2023
        %v2025 = vpop.xlane.xlu0 %2024
        %v2026 = vsel %vm1339, %v2006, -inf
        %2027 = vmax.xlane.f32.xlu0 %v2026
        %v2028 = vpop.xlane.xlu0 %2027
        %v2029 = vsel %vm1339, %v2007, -inf
        %2030 = vmax.xlane.f32.xlu0 %v2029
        %v2031 = vpop.xlane.xlu0 %2030
        %v2032 = vsub.f32 %v2000, %v2010
        %v2033 = vsub.f32 %v2001, %v2013
        %v2034 = vsub.f32 %v2002, %v2016
        %v2035 = vsub.f32 %v2003, %v2019
        %v2036 = vsub.f32 %v2004, %v2022
        %v2037 = vsub.f32 %v2005, %v2025
        %v2038 = vsub.f32 %v2006, %v2028
        %v2039 = vsub.f32 %v2007, %v2031
        %v2040 = vmul.f32 %v2032, 1.442695
        %v2041 = vpow.pop %v2040
        %v2042 = vmul.f32 %v2033, 1.442695
        %v2043 = vpow.pop %v2042
        %v2044 = vmul.f32 %v2034, 1.442695
        %v2045 = vpow.pop %v2044
        %v2046 = vmul.f32 %v2035, 1.442695
        %v2047 = vpow.pop %v2046
        %v2048 = vmul.f32 %v2036, 1.442695
        %v2049 = vpow.pop %v2048
        %v2050 = vmul.f32 %v2037, 1.442695
        %v2051 = vpow.pop %v2050
        %v2052 = vmul.f32 %v2038, 1.442695
        %v2053 = vpow.pop %v2052
        %v2054 = vmul.f32 %v2039, 1.442695
        %v2055 = vpow.pop %v2054
        %v2056 = vsel %vm1339, %v2041, 0.0
        %2057 = vadd.xlane.f32.xlu0 %v2056
        %v2058 = vpop.xlane.xlu0 %2057
        %v2059 = vsel %vm1339, %v2043, 0.0
        %2060 = vadd.xlane.f32.xlu0 %v2059
        %v2061 = vpop.xlane.xlu0 %2060
        %v2062 = vsel %vm1339, %v2045, 0.0
        %2063 = vadd.xlane.f32.xlu0 %v2062
        %v2064 = vpop.xlane.xlu0 %2063
        %v2065 = vsel %vm1339, %v2047, 0.0
        %2066 = vadd.xlane.f32.xlu0 %v2065
        %v2067 = vpop.xlane.xlu0 %2066
        %v2068 = vsel %vm1339, %v2049, 0.0
        %2069 = vadd.xlane.f32.xlu0 %v2068
        %v2070 = vpop.xlane.xlu0 %2069
        %v2071 = vsel %vm1339, %v2051, 0.0
        %2072 = vadd.xlane.f32.xlu0 %v2071
        %v2073 = vpop.xlane.xlu0 %2072
        %v2074 = vsel %vm1339, %v2053, 0.0
        %2075 = vadd.xlane.f32.xlu0 %v2074
        %v2076 = vpop.xlane.xlu0 %2075
        %v2077 = vsel %vm1339, %v2055, 0.0
        %2078 = vadd.xlane.f32.xlu0 %v2077
        %v2079 = vpop.xlane.xlu0 %2078
        %v2080 = vrcp.pop %v2058
        %v2081 = vrcp.pop %v2061
        %v2082 = vrcp.pop %v2064
        %v2083 = vrcp.pop %v2067
        %v2084 = vrcp.pop %v2070
        %v2085 = vrcp.pop %v2073
        %v2086 = vrcp.pop %v2076
        %v2087 = vrcp.pop %v2079
        %v2088 = vmul.f32 %v2041, %v2080
        %v2089 = vmul.f32 %v2043, %v2081
        %v2090 = vmul.f32 %v2045, %v2082
        %v2091 = vmul.f32 %v2047, %v2083
        %v2092 = vmul.f32 %v2049, %v2084
        %v2093 = vmul.f32 %v2051, %v2085
        %v2094 = vmul.f32 %v2053, %v2086
        %v2095 = vmul.f32 %v2055, %v2087
        %v2096 = vpack.c.bf16 %v2088, %v2088
        %v2097 = vpack.c.bf16 %v2089, %v2089
        %v2098 = vpack.c.bf16 %v2090, %v2090
        %v2099 = vpack.c.bf16 %v2091, %v2091
        %v2100 = vpack.c.bf16 %v2092, %v2092
        %v2101 = vpack.c.bf16 %v2093, %v2093
        %v2102 = vpack.c.bf16 %v2094, %v2094
        %v2103 = vpack.c.bf16 %v2095, %v2095
        %2104 = vrot.lane.b32.xlu0 %v1336, 56
        %v2105 = vpop.permute.xlu0 %2104
        %v2107 = vsel %vm1339, %v2096, 0
        %v2110 = vsel %vm1644, %v2105, 0
        %2112 = vmatpush.bf16.msra.mxu0 0
        %2113 = vmatpush.bf16.msra.mxu0 0
        %2114 = vmatpush.bf16.msra.mxu0 0
        %2115 = vmatpush.bf16.msra.mxu0 0
        %2116 = vmatpush.bf16.msra.mxu0 0
        %2117 = vmatpush.bf16.msra.mxu0 0
        %2118 = vmatpush.bf16.msra.mxu0 0
        %2119 = vmatpush.bf16.msra.mxu0 %v2110
        %2120 = vmatmul.bf16.gmra.mxu0 %v2107
        %v2121 = vpop.f32.mrf.mxu0
        %v2122 = vadd.f32 0.0, %v2121
        %v2123 = vpop.f32.mrf.mxu0
        %2124 = vdwg.mxu0
        %2125 = vrot.lane.b32.xlu0 %v1361, 56
        %v2126 = vpop.permute.xlu0 %2125
        %v2128 = vsel %vm1339, %v2097, 0
        %v2131 = vsel %vm1644, %v2126, 0
        %2133 = vmatpush.bf16.msra.mxu0 0
        %2134 = vmatpush.bf16.msra.mxu0 0
        %2135 = vmatpush.bf16.msra.mxu0 0
        %2136 = vmatpush.bf16.msra.mxu0 0
        %2137 = vmatpush.bf16.msra.mxu0 0
        %2138 = vmatpush.bf16.msra.mxu0 0
        %2139 = vmatpush.bf16.msra.mxu0 0
        %2140 = vmatpush.bf16.msra.mxu0 %v2131
        %2141 = vmatmul.bf16.gmra.mxu0 %v2128
        %v2142 = vpop.f32.mrf.mxu0
        %v2143 = vadd.f32 0.0, %v2142
        %v2144 = vpop.f32.mrf.mxu0
        %2145 = vdwg.mxu0
        %2146 = vrot.lane.b32.xlu0 %v1385, 56
        %v2147 = vpop.permute.xlu0 %2146
        %v2149 = vsel %vm1339, %v2098, 0
        %v2152 = vsel %vm1644, %v2147, 0
        %2154 = vmatpush.bf16.msra.mxu0 0
        %2155 = vmatpush.bf16.msra.mxu0 0
        %2156 = vmatpush.bf16.msra.mxu0 0
        %2157 = vmatpush.bf16.msra.mxu0 0
        %2158 = vmatpush.bf16.msra.mxu0 0
        %2159 = vmatpush.bf16.msra.mxu0 0
        %2160 = vmatpush.bf16.msra.mxu0 0
        %2161 = vmatpush.bf16.msra.mxu0 %v2152
        %2162 = vmatmul.bf16.gmra.mxu0 %v2149
        %v2163 = vpop.f32.mrf.mxu0
        %v2164 = vadd.f32 0.0, %v2163
        %v2165 = vpop.f32.mrf.mxu0
        %2166 = vdwg.mxu0
        %2167 = vrot.lane.b32.xlu0 %v1409, 56
        %v2168 = vpop.permute.xlu0 %2167
        %v2170 = vsel %vm1339, %v2099, 0
        %v2173 = vsel %vm1644, %v2168, 0
        %2175 = vmatpush.bf16.msra.mxu0 0
        %2176 = vmatpush.bf16.msra.mxu0 0
        %2177 = vmatpush.bf16.msra.mxu0 0
        %2178 = vmatpush.bf16.msra.mxu0 0
        %2179 = vmatpush.bf16.msra.mxu0 0
        %2180 = vmatpush.bf16.msra.mxu0 0
        %2181 = vmatpush.bf16.msra.mxu0 0
        %2182 = vmatpush.bf16.msra.mxu0 %v2173
        %2183 = vmatmul.bf16.gmra.mxu0 %v2170
        %v2184 = vpop.f32.mrf.mxu0
        %v2185 = vadd.f32 0.0, %v2184
        %v2186 = vpop.f32.mrf.mxu0
        %2187 = vdwg.mxu0
        %2188 = vrot.lane.b32.xlu0 %v1433, 56
        %v2189 = vpop.permute.xlu0 %2188
        %v2191 = vsel %vm1339, %v2100, 0
        %v2194 = vsel %vm1644, %v2189, 0
        %2196 = vmatpush.bf16.msra.mxu0 0
        %2197 = vmatpush.bf16.msra.mxu0 0
        %2198 = vmatpush.bf16.msra.mxu0 0
        %2199 = vmatpush.bf16.msra.mxu0 0
        %2200 = vmatpush.bf16.msra.mxu0 0
        %2201 = vmatpush.bf16.msra.mxu0 0
        %2202 = vmatpush.bf16.msra.mxu0 0
        %2203 = vmatpush.bf16.msra.mxu0 %v2194
        %2204 = vmatmul.bf16.gmra.mxu0 %v2191
        %v2205 = vpop.f32.mrf.mxu0
        %v2206 = vadd.f32 0.0, %v2205
        %v2207 = vpop.f32.mrf.mxu0
        %2208 = vdwg.mxu0
        %2209 = vrot.lane.b32.xlu0 %v1457, 56
        %v2210 = vpop.permute.xlu0 %2209
        %v2212 = vsel %vm1339, %v2101, 0
        %v2215 = vsel %vm1644, %v2210, 0
        %2217 = vmatpush.bf16.msra.mxu0 0
        %2218 = vmatpush.bf16.msra.mxu0 0
        %2219 = vmatpush.bf16.msra.mxu0 0
        %2220 = vmatpush.bf16.msra.mxu0 0
        %2221 = vmatpush.bf16.msra.mxu0 0
        %2222 = vmatpush.bf16.msra.mxu0 0
        %2223 = vmatpush.bf16.msra.mxu0 0
        %2224 = vmatpush.bf16.msra.mxu0 %v2215
        %2225 = vmatmul.bf16.gmra.mxu0 %v2212
        %v2226 = vpop.f32.mrf.mxu0
        %v2227 = vadd.f32 0.0, %v2226
        %v2228 = vpop.f32.mrf.mxu0
        %2229 = vdwg.mxu0
        %2230 = vrot.lane.b32.xlu0 %v1481, 56
        %v2231 = vpop.permute.xlu0 %2230
        %v2233 = vsel %vm1339, %v2102, 0
        %v2236 = vsel %vm1644, %v2231, 0
        %2238 = vmatpush.bf16.msra.mxu0 0
        %2239 = vmatpush.bf16.msra.mxu0 0
        %2240 = vmatpush.bf16.msra.mxu0 0
        %2241 = vmatpush.bf16.msra.mxu0 0
        %2242 = vmatpush.bf16.msra.mxu0 0
        %2243 = vmatpush.bf16.msra.mxu0 0
        %2244 = vmatpush.bf16.msra.mxu0 0
        %2245 = vmatpush.bf16.msra.mxu0 %v2236
        %2246 = vmatmul.bf16.gmra.mxu0 %v2233
        %v2247 = vpop.f32.mrf.mxu0
        %v2248 = vadd.f32 0.0, %v2247
        %v2249 = vpop.f32.mrf.mxu0
        %2250 = vdwg.mxu0
        %2251 = vrot.lane.b32.xlu0 %v1505, 56
        %v2252 = vpop.permute.xlu0 %2251
        %v2254 = vsel %vm1339, %v2103, 0
        %v2257 = vsel %vm1644, %v2252, 0
        %2259 = vmatpush.bf16.msra.mxu0 0
        %2260 = vmatpush.bf16.msra.mxu0 0
        %2261 = vmatpush.bf16.msra.mxu0 0
        %2262 = vmatpush.bf16.msra.mxu0 0
        %2263 = vmatpush.bf16.msra.mxu0 0
        %2264 = vmatpush.bf16.msra.mxu0 0
        %2265 = vmatpush.bf16.msra.mxu0 0
        %2266 = vmatpush.bf16.msra.mxu0 %v2257
        %2267 = vmatmul.bf16.gmra.mxu0 %v2254
        %v2268 = vpop.f32.mrf.mxu0
        %v2269 = vadd.f32 0.0, %v2268
        %v2270 = vpop.f32.mrf.mxu0
        %2271 = vdwg.mxu0
        %2272 = vrot.lane.b32.xlu0 %v1336, 112
        %v2273 = vpop.permute.xlu0 %2272
        %2274 = vrot.lane.b32.xlu0 %v1336, 80
        %v2275 = vpop.permute.xlu0 %2274
        %v2277 = vsel %vm1339, %v2273, 0
        %v2280 = vsel %vm1339, %v2275, 0
        %2282 = vmatpush.bf16.xpose.msra.mxu0 0
        %2283 = vmatpush.bf16.xpose.msra.mxu0 0
        %2284 = vmatpush.bf16.xpose.msra.mxu0 0
        %2285 = vmatpush.bf16.xpose.msra.mxu0 0
        %2286 = vmatpush.bf16.xpose.msra.mxu0 0
        %2287 = vmatpush.bf16.xpose.msra.mxu0 0
        %2288 = vmatpush.bf16.xpose.msra.mxu0 0
        %2289 = vmatpush.bf16.xpose.msra.mxu0 %v2280
        %2290 = vmatmul.bf16.gmra.mxu0 %v2277
        %v2291 = vpop.f32.mrf.mxu0
        %v2292 = vadd.f32 0.0, %v2291
        %v2293 = vpop.f32.mrf.mxu0
        %2294 = vdwg.mxu0
        %2295 = vrot.lane.b32.xlu0 %v1361, 112
        %v2296 = vpop.permute.xlu0 %2295
        %2297 = vrot.lane.b32.xlu0 %v1361, 80
        %v2298 = vpop.permute.xlu0 %2297
        %v2300 = vsel %vm1339, %v2296, 0
        %v2303 = vsel %vm1339, %v2298, 0
        %2305 = vmatpush.bf16.xpose.msra.mxu0 0
        %2306 = vmatpush.bf16.xpose.msra.mxu0 0
        %2307 = vmatpush.bf16.xpose.msra.mxu0 0
        %2308 = vmatpush.bf16.xpose.msra.mxu0 0
        %2309 = vmatpush.bf16.xpose.msra.mxu0 0
        %2310 = vmatpush.bf16.xpose.msra.mxu0 0
        %2311 = vmatpush.bf16.xpose.msra.mxu0 0
        %2312 = vmatpush.bf16.xpose.msra.mxu0 %v2303
        %2313 = vmatmul.bf16.gmra.mxu0 %v2300
        %v2314 = vpop.f32.mrf.mxu0
        %v2315 = vadd.f32 0.0, %v2314
        %v2316 = vpop.f32.mrf.mxu0
        %2317 = vdwg.mxu0
        %2318 = vrot.lane.b32.xlu0 %v1385, 112
        %v2319 = vpop.permute.xlu0 %2318
        %2320 = vrot.lane.b32.xlu0 %v1385, 80
        %v2321 = vpop.permute.xlu0 %2320
        %v2323 = vsel %vm1339, %v2319, 0
        %v2326 = vsel %vm1339, %v2321, 0
        %2328 = vmatpush.bf16.xpose.msra.mxu0 0
        %2329 = vmatpush.bf16.xpose.msra.mxu0 0
        %2330 = vmatpush.bf16.xpose.msra.mxu0 0
        %2331 = vmatpush.bf16.xpose.msra.mxu0 0
        %2332 = vmatpush.bf16.xpose.msra.mxu0 0
        %2333 = vmatpush.bf16.xpose.msra.mxu0 0
        %2334 = vmatpush.bf16.xpose.msra.mxu0 0
        %2335 = vmatpush.bf16.xpose.msra.mxu0 %v2326
        %2336 = vmatmul.bf16.gmra.mxu0 %v2323
        %v2337 = vpop.f32.mrf.mxu0
        %v2338 = vadd.f32 0.0, %v2337
        %v2339 = vpop.f32.mrf.mxu0
        %2340 = vdwg.mxu0
        %2341 = vrot.lane.b32.xlu0 %v1409, 112
        %v2342 = vpop.permute.xlu0 %2341
        %2343 = vrot.lane.b32.xlu0 %v1409, 80
        %v2344 = vpop.permute.xlu0 %2343
        %v2346 = vsel %vm1339, %v2342, 0
        %v2349 = vsel %vm1339, %v2344, 0
        %2351 = vmatpush.bf16.xpose.msra.mxu0 0
        %2352 = vmatpush.bf16.xpose.msra.mxu0 0
        %2353 = vmatpush.bf16.xpose.msra.mxu0 0
        %2354 = vmatpush.bf16.xpose.msra.mxu0 0
        %2355 = vmatpush.bf16.xpose.msra.mxu0 0
        %2356 = vmatpush.bf16.xpose.msra.mxu0 0
        %2357 = vmatpush.bf16.xpose.msra.mxu0 0
        %2358 = vmatpush.bf16.xpose.msra.mxu0 %v2349
        %2359 = vmatmul.bf16.gmra.mxu0 %v2346
        %v2360 = vpop.f32.mrf.mxu0
        %v2361 = vadd.f32 0.0, %v2360
        %v2362 = vpop.f32.mrf.mxu0
        %2363 = vdwg.mxu0
        %2364 = vrot.lane.b32.xlu0 %v1433, 112
        %v2365 = vpop.permute.xlu0 %2364
        %2366 = vrot.lane.b32.xlu0 %v1433, 80
        %v2367 = vpop.permute.xlu0 %2366
        %v2369 = vsel %vm1339, %v2365, 0
        %v2372 = vsel %vm1339, %v2367, 0
        %2374 = vmatpush.bf16.xpose.msra.mxu0 0
        %2375 = vmatpush.bf16.xpose.msra.mxu0 0
        %2376 = vmatpush.bf16.xpose.msra.mxu0 0
        %2377 = vmatpush.bf16.xpose.msra.mxu0 0
        %2378 = vmatpush.bf16.xpose.msra.mxu0 0
        %2379 = vmatpush.bf16.xpose.msra.mxu0 0
        %2380 = vmatpush.bf16.xpose.msra.mxu0 0
        %2381 = vmatpush.bf16.xpose.msra.mxu0 %v2372
        %2382 = vmatmul.bf16.gmra.mxu0 %v2369
        %v2383 = vpop.f32.mrf.mxu0
        %v2384 = vadd.f32 0.0, %v2383
        %v2385 = vpop.f32.mrf.mxu0
        %2386 = vdwg.mxu0
        %2387 = vrot.lane.b32.xlu0 %v1457, 112
        %v2388 = vpop.permute.xlu0 %2387
        %2389 = vrot.lane.b32.xlu0 %v1457, 80
        %v2390 = vpop.permute.xlu0 %2389
        %v2392 = vsel %vm1339, %v2388, 0
        %v2395 = vsel %vm1339, %v2390, 0
        %2397 = vmatpush.bf16.xpose.msra.mxu0 0
        %2398 = vmatpush.bf16.xpose.msra.mxu0 0
        %2399 = vmatpush.bf16.xpose.msra.mxu0 0
        %2400 = vmatpush.bf16.xpose.msra.mxu0 0
        %2401 = vmatpush.bf16.xpose.msra.mxu0 0
        %2402 = vmatpush.bf16.xpose.msra.mxu0 0
        %2403 = vmatpush.bf16.xpose.msra.mxu0 0
        %2404 = vmatpush.bf16.xpose.msra.mxu0 %v2395
        %2405 = vmatmul.bf16.gmra.mxu0 %v2392
        %v2406 = vpop.f32.mrf.mxu0
        %v2407 = vadd.f32 0.0, %v2406
        %v2408 = vpop.f32.mrf.mxu0
        %2409 = vdwg.mxu0
        %2410 = vrot.lane.b32.xlu0 %v1481, 112
        %v2411 = vpop.permute.xlu0 %2410
        %2412 = vrot.lane.b32.xlu0 %v1481, 80
        %v2413 = vpop.permute.xlu0 %2412
        %v2415 = vsel %vm1339, %v2411, 0
        %v2418 = vsel %vm1339, %v2413, 0
        %2420 = vmatpush.bf16.xpose.msra.mxu0 0
        %2421 = vmatpush.bf16.xpose.msra.mxu0 0
        %2422 = vmatpush.bf16.xpose.msra.mxu0 0
        %2423 = vmatpush.bf16.xpose.msra.mxu0 0
        %2424 = vmatpush.bf16.xpose.msra.mxu0 0
        %2425 = vmatpush.bf16.xpose.msra.mxu0 0
        %2426 = vmatpush.bf16.xpose.msra.mxu0 0
        %2427 = vmatpush.bf16.xpose.msra.mxu0 %v2418
        %2428 = vmatmul.bf16.gmra.mxu0 %v2415
        %v2429 = vpop.f32.mrf.mxu0
        %v2430 = vadd.f32 0.0, %v2429
        %v2431 = vpop.f32.mrf.mxu0
        %2432 = vdwg.mxu0
        %2433 = vrot.lane.b32.xlu0 %v1505, 112
        %v2434 = vpop.permute.xlu0 %2433
        %2435 = vrot.lane.b32.xlu0 %v1505, 80
        %v2436 = vpop.permute.xlu0 %2435
        %v2438 = vsel %vm1339, %v2434, 0
        %v2441 = vsel %vm1339, %v2436, 0
        %2443 = vmatpush.bf16.xpose.msra.mxu0 0
        %2444 = vmatpush.bf16.xpose.msra.mxu0 0
        %2445 = vmatpush.bf16.xpose.msra.mxu0 0
        %2446 = vmatpush.bf16.xpose.msra.mxu0 0
        %2447 = vmatpush.bf16.xpose.msra.mxu0 0
        %2448 = vmatpush.bf16.xpose.msra.mxu0 0
        %2449 = vmatpush.bf16.xpose.msra.mxu0 0
        %2450 = vmatpush.bf16.xpose.msra.mxu0 %v2441
        %2451 = vmatmul.bf16.gmra.mxu0 %v2438
        %v2452 = vpop.f32.mrf.mxu0
        %v2453 = vadd.f32 0.0, %v2452
        %v2454 = vpop.f32.mrf.mxu0
        %2455 = vdwg.mxu0
        %v2456 = vmul.f32 %v2292, 0.35355338
        %v2457 = vmul.f32 %v2315, 0.35355338
        %v2458 = vmul.f32 %v2338, 0.35355338
        %v2459 = vmul.f32 %v2361, 0.35355338
        %v2460 = vmul.f32 %v2384, 0.35355338
        %v2461 = vmul.f32 %v2407, 0.35355338
        %v2462 = vmul.f32 %v2430, 0.35355338
        %v2463 = vmul.f32 %v2453, 0.35355338
        %v2464 = vadd.f32 %v2456, %v1333
        %v2465 = vadd.f32 %v2457, %v1333
        %v2466 = vadd.f32 %v2458, %v1333
        %v2467 = vadd.f32 %v2459, %v1333
        %v2468 = vadd.f32 %v2460, %v1333
        %v2469 = vadd.f32 %v2461, %v1333
        %v2470 = vadd.f32 %v2462, %v1333
        %v2471 = vadd.f32 %v2463, %v1333
        %v2472 = vsel %vm1339, %v2464, -inf
        %2473 = vmax.xlane.f32.xlu0 %v2472
        %v2474 = vpop.xlane.xlu0 %2473
        %v2475 = vsel %vm1339, %v2465, -inf
        %2476 = vmax.xlane.f32.xlu0 %v2475
        %v2477 = vpop.xlane.xlu0 %2476
        %v2478 = vsel %vm1339, %v2466, -inf
        %2479 = vmax.xlane.f32.xlu0 %v2478
        %v2480 = vpop.xlane.xlu0 %2479
        %v2481 = vsel %vm1339, %v2467, -inf
        %2482 = vmax.xlane.f32.xlu0 %v2481
        %v2483 = vpop.xlane.xlu0 %2482
        %v2484 = vsel %vm1339, %v2468, -inf
        %2485 = vmax.xlane.f32.xlu0 %v2484
        %v2486 = vpop.xlane.xlu0 %2485
        %v2487 = vsel %vm1339, %v2469, -inf
        %2488 = vmax.xlane.f32.xlu0 %v2487
        %v2489 = vpop.xlane.xlu0 %2488
        %v2490 = vsel %vm1339, %v2470, -inf
        %2491 = vmax.xlane.f32.xlu0 %v2490
        %v2492 = vpop.xlane.xlu0 %2491
        %v2493 = vsel %vm1339, %v2471, -inf
        %2494 = vmax.xlane.f32.xlu0 %v2493
        %v2495 = vpop.xlane.xlu0 %2494
        %v2496 = vsub.f32 %v2464, %v2474
        %v2497 = vsub.f32 %v2465, %v2477
        %v2498 = vsub.f32 %v2466, %v2480
        %v2499 = vsub.f32 %v2467, %v2483
        %v2500 = vsub.f32 %v2468, %v2486
        %v2501 = vsub.f32 %v2469, %v2489
        %v2502 = vsub.f32 %v2470, %v2492
        %v2503 = vsub.f32 %v2471, %v2495
        %v2504 = vmul.f32 %v2496, 1.442695
        %v2505 = vpow.pop %v2504
        %v2506 = vmul.f32 %v2497, 1.442695
        %v2507 = vpow.pop %v2506
        %v2508 = vmul.f32 %v2498, 1.442695
        %v2509 = vpow.pop %v2508
        %v2510 = vmul.f32 %v2499, 1.442695
        %v2511 = vpow.pop %v2510
        %v2512 = vmul.f32 %v2500, 1.442695
        %v2513 = vpow.pop %v2512
        %v2514 = vmul.f32 %v2501, 1.442695
        %v2515 = vpow.pop %v2514
        %v2516 = vmul.f32 %v2502, 1.442695
        %v2517 = vpow.pop %v2516
        %v2518 = vmul.f32 %v2503, 1.442695
        %v2519 = vpow.pop %v2518
        %v2520 = vsel %vm1339, %v2505, 0.0
        %2521 = vadd.xlane.f32.xlu0 %v2520
        %v2522 = vpop.xlane.xlu0 %2521
        %v2523 = vsel %vm1339, %v2507, 0.0
        %2524 = vadd.xlane.f32.xlu0 %v2523
        %v2525 = vpop.xlane.xlu0 %2524
        %v2526 = vsel %vm1339, %v2509, 0.0
        %2527 = vadd.xlane.f32.xlu0 %v2526
        %v2528 = vpop.xlane.xlu0 %2527
        %v2529 = vsel %vm1339, %v2511, 0.0
        %2530 = vadd.xlane.f32.xlu0 %v2529
        %v2531 = vpop.xlane.xlu0 %2530
        %v2532 = vsel %vm1339, %v2513, 0.0
        %2533 = vadd.xlane.f32.xlu0 %v2532
        %v2534 = vpop.xlane.xlu0 %2533
        %v2535 = vsel %vm1339, %v2515, 0.0
        %2536 = vadd.xlane.f32.xlu0 %v2535
        %v2537 = vpop.xlane.xlu0 %2536
        %v2538 = vsel %vm1339, %v2517, 0.0
        %2539 = vadd.xlane.f32.xlu0 %v2538
        %v2540 = vpop.xlane.xlu0 %2539
        %v2541 = vsel %vm1339, %v2519, 0.0
        %2542 = vadd.xlane.f32.xlu0 %v2541
        %v2543 = vpop.xlane.xlu0 %2542
        %v2544 = vrcp.pop %v2522
        %v2545 = vrcp.pop %v2525
        %v2546 = vrcp.pop %v2528
        %v2547 = vrcp.pop %v2531
        %v2548 = vrcp.pop %v2534
        %v2549 = vrcp.pop %v2537
        %v2550 = vrcp.pop %v2540
        %v2551 = vrcp.pop %v2543
        %v2552 = vmul.f32 %v2505, %v2544
        %v2553 = vmul.f32 %v2507, %v2545
        %v2554 = vmul.f32 %v2509, %v2546
        %v2555 = vmul.f32 %v2511, %v2547
        %v2556 = vmul.f32 %v2513, %v2548
        %v2557 = vmul.f32 %v2515, %v2549
        %v2558 = vmul.f32 %v2517, %v2550
        %v2559 = vmul.f32 %v2519, %v2551
        %v2560 = vpack.c.bf16 %v2552, %v2552
        %v2561 = vpack.c.bf16 %v2553, %v2553
        %v2562 = vpack.c.bf16 %v2554, %v2554
        %v2563 = vpack.c.bf16 %v2555, %v2555
        %v2564 = vpack.c.bf16 %v2556, %v2556
        %v2565 = vpack.c.bf16 %v2557, %v2557
        %v2566 = vpack.c.bf16 %v2558, %v2558
        %v2567 = vpack.c.bf16 %v2559, %v2559
        %2568 = vrot.lane.b32.xlu0 %v1336, 48
        %v2569 = vpop.permute.xlu0 %2568
        %v2571 = vsel %vm1339, %v2560, 0
        %v2574 = vsel %vm1644, %v2569, 0
        %2576 = vmatpush.bf16.msra.mxu0 0
        %2577 = vmatpush.bf16.msra.mxu0 0
        %2578 = vmatpush.bf16.msra.mxu0 0
        %2579 = vmatpush.bf16.msra.mxu0 0
        %2580 = vmatpush.bf16.msra.mxu0 0
        %2581 = vmatpush.bf16.msra.mxu0 0
        %2582 = vmatpush.bf16.msra.mxu0 0
        %2583 = vmatpush.bf16.msra.mxu0 %v2574
        %2584 = vmatmul.bf16.gmra.mxu0 %v2571
        %v2585 = vpop.f32.mrf.mxu0
        %v2586 = vadd.f32 0.0, %v2585
        %v2587 = vpop.f32.mrf.mxu0
        %2588 = vdwg.mxu0
        %2589 = vrot.lane.b32.xlu0 %v1361, 48
        %v2590 = vpop.permute.xlu0 %2589
        %v2592 = vsel %vm1339, %v2561, 0
        %v2595 = vsel %vm1644, %v2590, 0
        %2597 = vmatpush.bf16.msra.mxu0 0
        %2598 = vmatpush.bf16.msra.mxu0 0
        %2599 = vmatpush.bf16.msra.mxu0 0
        %2600 = vmatpush.bf16.msra.mxu0 0
        %2601 = vmatpush.bf16.msra.mxu0 0
        %2602 = vmatpush.bf16.msra.mxu0 0
        %2603 = vmatpush.bf16.msra.mxu0 0
        %2604 = vmatpush.bf16.msra.mxu0 %v2595
        %2605 = vmatmul.bf16.gmra.mxu0 %v2592
        %v2606 = vpop.f32.mrf.mxu0
        %v2607 = vadd.f32 0.0, %v2606
        %v2608 = vpop.f32.mrf.mxu0
        %2609 = vdwg.mxu0
        %2610 = vrot.lane.b32.xlu0 %v1385, 48
        %v2611 = vpop.permute.xlu0 %2610
        %v2613 = vsel %vm1339, %v2562, 0
        %v2616 = vsel %vm1644, %v2611, 0
        %2618 = vmatpush.bf16.msra.mxu0 0
        %2619 = vmatpush.bf16.msra.mxu0 0
        %2620 = vmatpush.bf16.msra.mxu0 0
        %2621 = vmatpush.bf16.msra.mxu0 0
        %2622 = vmatpush.bf16.msra.mxu0 0
        %2623 = vmatpush.bf16.msra.mxu0 0
        %2624 = vmatpush.bf16.msra.mxu0 0
        %2625 = vmatpush.bf16.msra.mxu0 %v2616
        %2626 = vmatmul.bf16.gmra.mxu0 %v2613
        %v2627 = vpop.f32.mrf.mxu0
        %v2628 = vadd.f32 0.0, %v2627
        %v2629 = vpop.f32.mrf.mxu0
        %2630 = vdwg.mxu0
        %2631 = vrot.lane.b32.xlu0 %v1409, 48
        %v2632 = vpop.permute.xlu0 %2631
        %v2634 = vsel %vm1339, %v2563, 0
        %v2637 = vsel %vm1644, %v2632, 0
        %2639 = vmatpush.bf16.msra.mxu0 0
        %2640 = vmatpush.bf16.msra.mxu0 0
        %2641 = vmatpush.bf16.msra.mxu0 0
        %2642 = vmatpush.bf16.msra.mxu0 0
        %2643 = vmatpush.bf16.msra.mxu0 0
        %2644 = vmatpush.bf16.msra.mxu0 0
        %2645 = vmatpush.bf16.msra.mxu0 0
        %2646 = vmatpush.bf16.msra.mxu0 %v2637
        %2647 = vmatmul.bf16.gmra.mxu0 %v2634
        %v2648 = vpop.f32.mrf.mxu0
        %v2649 = vadd.f32 0.0, %v2648
        %v2650 = vpop.f32.mrf.mxu0
        %2651 = vdwg.mxu0
        %2652 = vrot.lane.b32.xlu0 %v1433, 48
        %v2653 = vpop.permute.xlu0 %2652
        %v2655 = vsel %vm1339, %v2564, 0
        %v2658 = vsel %vm1644, %v2653, 0
        %2660 = vmatpush.bf16.msra.mxu0 0
        %2661 = vmatpush.bf16.msra.mxu0 0
        %2662 = vmatpush.bf16.msra.mxu0 0
        %2663 = vmatpush.bf16.msra.mxu0 0
        %2664 = vmatpush.bf16.msra.mxu0 0
        %2665 = vmatpush.bf16.msra.mxu0 0
        %2666 = vmatpush.bf16.msra.mxu0 0
        %2667 = vmatpush.bf16.msra.mxu0 %v2658
        %2668 = vmatmul.bf16.gmra.mxu0 %v2655
        %v2669 = vpop.f32.mrf.mxu0
        %v2670 = vadd.f32 0.0, %v2669
        %v2671 = vpop.f32.mrf.mxu0
        %2672 = vdwg.mxu0
        %2673 = vrot.lane.b32.xlu0 %v1457, 48
        %v2674 = vpop.permute.xlu0 %2673
        %v2676 = vsel %vm1339, %v2565, 0
        %v2679 = vsel %vm1644, %v2674, 0
        %2681 = vmatpush.bf16.msra.mxu0 0
        %2682 = vmatpush.bf16.msra.mxu0 0
        %2683 = vmatpush.bf16.msra.mxu0 0
        %2684 = vmatpush.bf16.msra.mxu0 0
        %2685 = vmatpush.bf16.msra.mxu0 0
        %2686 = vmatpush.bf16.msra.mxu0 0
        %2687 = vmatpush.bf16.msra.mxu0 0
        %2688 = vmatpush.bf16.msra.mxu0 %v2679
        %2689 = vmatmul.bf16.gmra.mxu0 %v2676
        %v2690 = vpop.f32.mrf.mxu0
        %v2691 = vadd.f32 0.0, %v2690
        %v2692 = vpop.f32.mrf.mxu0
        %2693 = vdwg.mxu0
        %2694 = vrot.lane.b32.xlu0 %v1481, 48
        %v2695 = vpop.permute.xlu0 %2694
        %v2697 = vsel %vm1339, %v2566, 0
        %v2700 = vsel %vm1644, %v2695, 0
        %2702 = vmatpush.bf16.msra.mxu0 0
        %2703 = vmatpush.bf16.msra.mxu0 0
        %2704 = vmatpush.bf16.msra.mxu0 0
        %2705 = vmatpush.bf16.msra.mxu0 0
        %2706 = vmatpush.bf16.msra.mxu0 0
        %2707 = vmatpush.bf16.msra.mxu0 0
        %2708 = vmatpush.bf16.msra.mxu0 0
        %2709 = vmatpush.bf16.msra.mxu0 %v2700
        %2710 = vmatmul.bf16.gmra.mxu0 %v2697
        %v2711 = vpop.f32.mrf.mxu0
        %v2712 = vadd.f32 0.0, %v2711
        %v2713 = vpop.f32.mrf.mxu0
        %2714 = vdwg.mxu0
        %2715 = vrot.lane.b32.xlu0 %v1505, 48
        %v2716 = vpop.permute.xlu0 %2715
        %v2718 = vsel %vm1339, %v2567, 0
        %v2721 = vsel %vm1644, %v2716, 0
        %2723 = vmatpush.bf16.msra.mxu0 0
        %2724 = vmatpush.bf16.msra.mxu0 0
        %2725 = vmatpush.bf16.msra.mxu0 0
        %2726 = vmatpush.bf16.msra.mxu0 0
        %2727 = vmatpush.bf16.msra.mxu0 0
        %2728 = vmatpush.bf16.msra.mxu0 0
        %2729 = vmatpush.bf16.msra.mxu0 0
        %2730 = vmatpush.bf16.msra.mxu0 %v2721
        %2731 = vmatmul.bf16.gmra.mxu0 %v2718
        %v2732 = vpop.f32.mrf.mxu0
        %v2733 = vadd.f32 0.0, %v2732
        %v2734 = vpop.f32.mrf.mxu0
        %2735 = vdwg.mxu0
        %2736 = vrot.lane.b32.xlu0 %v1336, 104
        %v2737 = vpop.permute.xlu0 %2736
        %2738 = vrot.lane.b32.xlu0 %v1336, 72
        %v2739 = vpop.permute.xlu0 %2738
        %v2741 = vsel %vm1339, %v2737, 0
        %v2744 = vsel %vm1339, %v2739, 0
        %2746 = vmatpush.bf16.xpose.msra.mxu0 0
        %2747 = vmatpush.bf16.xpose.msra.mxu0 0
        %2748 = vmatpush.bf16.xpose.msra.mxu0 0
        %2749 = vmatpush.bf16.xpose.msra.mxu0 0
        %2750 = vmatpush.bf16.xpose.msra.mxu0 0
        %2751 = vmatpush.bf16.xpose.msra.mxu0 0
        %2752 = vmatpush.bf16.xpose.msra.mxu0 0
        %2753 = vmatpush.bf16.xpose.msra.mxu0 %v2744
        %2754 = vmatmul.bf16.gmra.mxu0 %v2741
        %v2755 = vpop.f32.mrf.mxu0
        %v2756 = vadd.f32 0.0, %v2755
        %v2757 = vpop.f32.mrf.mxu0
        %2758 = vdwg.mxu0
        %2759 = vrot.lane.b32.xlu0 %v1361, 104
        %v2760 = vpop.permute.xlu0 %2759
        %2761 = vrot.lane.b32.xlu0 %v1361, 72
        %v2762 = vpop.permute.xlu0 %2761
        %v2764 = vsel %vm1339, %v2760, 0
        %v2767 = vsel %vm1339, %v2762, 0
        %2769 = vmatpush.bf16.xpose.msra.mxu0 0
        %2770 = vmatpush.bf16.xpose.msra.mxu0 0
        %2771 = vmatpush.bf16.xpose.msra.mxu0 0
        %2772 = vmatpush.bf16.xpose.msra.mxu0 0
        %2773 = vmatpush.bf16.xpose.msra.mxu0 0
        %2774 = vmatpush.bf16.xpose.msra.mxu0 0
        %2775 = vmatpush.bf16.xpose.msra.mxu0 0
        %2776 = vmatpush.bf16.xpose.msra.mxu0 %v2767
        %2777 = vmatmul.bf16.gmra.mxu0 %v2764
        %v2778 = vpop.f32.mrf.mxu0
        %v2779 = vadd.f32 0.0, %v2778
        %v2780 = vpop.f32.mrf.mxu0
        %2781 = vdwg.mxu0
        %2782 = vrot.lane.b32.xlu0 %v1385, 104
        %v2783 = vpop.permute.xlu0 %2782
        %2784 = vrot.lane.b32.xlu0 %v1385, 72
        %v2785 = vpop.permute.xlu0 %2784
        %v2787 = vsel %vm1339, %v2783, 0
        %v2790 = vsel %vm1339, %v2785, 0
        %2792 = vmatpush.bf16.xpose.msra.mxu0 0
        %2793 = vmatpush.bf16.xpose.msra.mxu0 0
        %2794 = vmatpush.bf16.xpose.msra.mxu0 0
        %2795 = vmatpush.bf16.xpose.msra.mxu0 0
        %2796 = vmatpush.bf16.xpose.msra.mxu0 0
        %2797 = vmatpush.bf16.xpose.msra.mxu0 0
        %2798 = vmatpush.bf16.xpose.msra.mxu0 0
        %2799 = vmatpush.bf16.xpose.msra.mxu0 %v2790
        %2800 = vmatmul.bf16.gmra.mxu0 %v2787
        %v2801 = vpop.f32.mrf.mxu0
        %v2802 = vadd.f32 0.0, %v2801
        %v2803 = vpop.f32.mrf.mxu0
        %2804 = vdwg.mxu0
        %2805 = vrot.lane.b32.xlu0 %v1409, 104
        %v2806 = vpop.permute.xlu0 %2805
        %2807 = vrot.lane.b32.xlu0 %v1409, 72
        %v2808 = vpop.permute.xlu0 %2807
        %v2810 = vsel %vm1339, %v2806, 0
        %v2813 = vsel %vm1339, %v2808, 0
        %2815 = vmatpush.bf16.xpose.msra.mxu0 0
        %2816 = vmatpush.bf16.xpose.msra.mxu0 0
        %2817 = vmatpush.bf16.xpose.msra.mxu0 0
        %2818 = vmatpush.bf16.xpose.msra.mxu0 0
        %2819 = vmatpush.bf16.xpose.msra.mxu0 0
        %2820 = vmatpush.bf16.xpose.msra.mxu0 0
        %2821 = vmatpush.bf16.xpose.msra.mxu0 0
        %2822 = vmatpush.bf16.xpose.msra.mxu0 %v2813
        %2823 = vmatmul.bf16.gmra.mxu0 %v2810
        %v2824 = vpop.f32.mrf.mxu0
        %v2825 = vadd.f32 0.0, %v2824
        %v2826 = vpop.f32.mrf.mxu0
        %2827 = vdwg.mxu0
        %2828 = vrot.lane.b32.xlu0 %v1433, 104
        %v2829 = vpop.permute.xlu0 %2828
        %2830 = vrot.lane.b32.xlu0 %v1433, 72
        %v2831 = vpop.permute.xlu0 %2830
        %v2833 = vsel %vm1339, %v2829, 0
        %v2836 = vsel %vm1339, %v2831, 0
        %2838 = vmatpush.bf16.xpose.msra.mxu0 0
        %2839 = vmatpush.bf16.xpose.msra.mxu0 0
        %2840 = vmatpush.bf16.xpose.msra.mxu0 0
        %2841 = vmatpush.bf16.xpose.msra.mxu0 0
        %2842 = vmatpush.bf16.xpose.msra.mxu0 0
        %2843 = vmatpush.bf16.xpose.msra.mxu0 0
        %2844 = vmatpush.bf16.xpose.msra.mxu0 0
        %2845 = vmatpush.bf16.xpose.msra.mxu0 %v2836
        %2846 = vmatmul.bf16.gmra.mxu0 %v2833
        %v2847 = vpop.f32.mrf.mxu0
        %v2848 = vadd.f32 0.0, %v2847
        %v2849 = vpop.f32.mrf.mxu0
        %2850 = vdwg.mxu0
        %2851 = vrot.lane.b32.xlu0 %v1457, 104
        %v2852 = vpop.permute.xlu0 %2851
        %2853 = vrot.lane.b32.xlu0 %v1457, 72
        %v2854 = vpop.permute.xlu0 %2853
        %v2856 = vsel %vm1339, %v2852, 0
        %v2859 = vsel %vm1339, %v2854, 0
        %2861 = vmatpush.bf16.xpose.msra.mxu0 0
        %2862 = vmatpush.bf16.xpose.msra.mxu0 0
        %2863 = vmatpush.bf16.xpose.msra.mxu0 0
        %2864 = vmatpush.bf16.xpose.msra.mxu0 0
        %2865 = vmatpush.bf16.xpose.msra.mxu0 0
        %2866 = vmatpush.bf16.xpose.msra.mxu0 0
        %2867 = vmatpush.bf16.xpose.msra.mxu0 0
        %2868 = vmatpush.bf16.xpose.msra.mxu0 %v2859
        %2869 = vmatmul.bf16.gmra.mxu0 %v2856
        %v2870 = vpop.f32.mrf.mxu0
        %v2871 = vadd.f32 0.0, %v2870
        %v2872 = vpop.f32.mrf.mxu0
        %2873 = vdwg.mxu0
        %2874 = vrot.lane.b32.xlu0 %v1481, 104
        %v2875 = vpop.permute.xlu0 %2874
        %2876 = vrot.lane.b32.xlu0 %v1481, 72
        %v2877 = vpop.permute.xlu0 %2876
        %v2879 = vsel %vm1339, %v2875, 0
        %v2882 = vsel %vm1339, %v2877, 0
        %2884 = vmatpush.bf16.xpose.msra.mxu0 0
        %2885 = vmatpush.bf16.xpose.msra.mxu0 0
        %2886 = vmatpush.bf16.xpose.msra.mxu0 0
        %2887 = vmatpush.bf16.xpose.msra.mxu0 0
        %2888 = vmatpush.bf16.xpose.msra.mxu0 0
        %2889 = vmatpush.bf16.xpose.msra.mxu0 0
        %2890 = vmatpush.bf16.xpose.msra.mxu0 0
        %2891 = vmatpush.bf16.xpose.msra.mxu0 %v2882
        %2892 = vmatmul.bf16.gmra.mxu0 %v2879
        %v2893 = vpop.f32.mrf.mxu0
        %v2894 = vadd.f32 0.0, %v2893
        %v2895 = vpop.f32.mrf.mxu0
        %2896 = vdwg.mxu0
        %2897 = vrot.lane.b32.xlu0 %v1505, 104
        %v2898 = vpop.permute.xlu0 %2897
        %2899 = vrot.lane.b32.xlu0 %v1505, 72
        %v2900 = vpop.permute.xlu0 %2899
        %v2902 = vsel %vm1339, %v2898, 0
        %v2905 = vsel %vm1339, %v2900, 0
        %2907 = vmatpush.bf16.xpose.msra.mxu0 0
        %2908 = vmatpush.bf16.xpose.msra.mxu0 0
        %2909 = vmatpush.bf16.xpose.msra.mxu0 0
        %2910 = vmatpush.bf16.xpose.msra.mxu0 0
        %2911 = vmatpush.bf16.xpose.msra.mxu0 0
        %2912 = vmatpush.bf16.xpose.msra.mxu0 0
        %2913 = vmatpush.bf16.xpose.msra.mxu0 0
        %2914 = vmatpush.bf16.xpose.msra.mxu0 %v2905
        %2915 = vmatmul.bf16.gmra.mxu0 %v2902
        %v2916 = vpop.f32.mrf.mxu0
        %v2917 = vadd.f32 0.0, %v2916
        %v2918 = vpop.f32.mrf.mxu0
        %2919 = vdwg.mxu0
        %v2920 = vmul.f32 %v2756, 0.35355338
        %v2921 = vmul.f32 %v2779, 0.35355338
        %v2922 = vmul.f32 %v2802, 0.35355338
        %v2923 = vmul.f32 %v2825, 0.35355338
        %v2924 = vmul.f32 %v2848, 0.35355338
        %v2925 = vmul.f32 %v2871, 0.35355338
        %v2926 = vmul.f32 %v2894, 0.35355338
        %v2927 = vmul.f32 %v2917, 0.35355338
        %v2928 = vadd.f32 %v2920, %v1333
        %v2929 = vadd.f32 %v2921, %v1333
        %v2930 = vadd.f32 %v2922, %v1333
        %v2931 = vadd.f32 %v2923, %v1333
        %v2932 = vadd.f32 %v2924, %v1333
        %v2933 = vadd.f32 %v2925, %v1333
        %v2934 = vadd.f32 %v2926, %v1333
        %v2935 = vadd.f32 %v2927, %v1333
        %v2936 = vsel %vm1339, %v2928, -inf
        %2937 = vmax.xlane.f32.xlu0 %v2936
        %v2938 = vpop.xlane.xlu0 %2937
        %v2939 = vsel %vm1339, %v2929, -inf
        %2940 = vmax.xlane.f32.xlu0 %v2939
        %v2941 = vpop.xlane.xlu0 %2940
        %v2942 = vsel %vm1339, %v2930, -inf
        %2943 = vmax.xlane.f32.xlu0 %v2942
        %v2944 = vpop.xlane.xlu0 %2943
        %v2945 = vsel %vm1339, %v2931, -inf
        %2946 = vmax.xlane.f32.xlu0 %v2945
        %v2947 = vpop.xlane.xlu0 %2946
        %v2948 = vsel %vm1339, %v2932, -inf
        %2949 = vmax.xlane.f32.xlu0 %v2948
        %v2950 = vpop.xlane.xlu0 %2949
        %v2951 = vsel %vm1339, %v2933, -inf
        %2952 = vmax.xlane.f32.xlu0 %v2951
        %v2953 = vpop.xlane.xlu0 %2952
        %v2954 = vsel %vm1339, %v2934, -inf
        %2955 = vmax.xlane.f32.xlu0 %v2954
        %v2956 = vpop.xlane.xlu0 %2955
        %v2957 = vsel %vm1339, %v2935, -inf
        %2958 = vmax.xlane.f32.xlu0 %v2957
        %v2959 = vpop.xlane.xlu0 %2958
        %v2960 = vsub.f32 %v2928, %v2938
        %v2961 = vsub.f32 %v2929, %v2941
        %v2962 = vsub.f32 %v2930, %v2944
        %v2963 = vsub.f32 %v2931, %v2947
        %v2964 = vsub.f32 %v2932, %v2950
        %v2965 = vsub.f32 %v2933, %v2953
        %v2966 = vsub.f32 %v2934, %v2956
        %v2967 = vsub.f32 %v2935, %v2959
        %v2968 = vmul.f32 %v2960, 1.442695
        %v2969 = vpow.pop %v2968
        %v2970 = vmul.f32 %v2961, 1.442695
        %v2971 = vpow.pop %v2970
        %v2972 = vmul.f32 %v2962, 1.442695
        %v2973 = vpow.pop %v2972
        %v2974 = vmul.f32 %v2963, 1.442695
        %v2975 = vpow.pop %v2974
        %v2976 = vmul.f32 %v2964, 1.442695
        %v2977 = vpow.pop %v2976
        %v2978 = vmul.f32 %v2965, 1.442695
        %v2979 = vpow.pop %v2978
        %v2980 = vmul.f32 %v2966, 1.442695
        %v2981 = vpow.pop %v2980
        %v2982 = vmul.f32 %v2967, 1.442695
        %v2983 = vpow.pop %v2982
        %v2984 = vsel %vm1339, %v2969, 0.0
        %2985 = vadd.xlane.f32.xlu0 %v2984
        %v2986 = vpop.xlane.xlu0 %2985
        %v2987 = vsel %vm1339, %v2971, 0.0
        %2988 = vadd.xlane.f32.xlu0 %v2987
        %v2989 = vpop.xlane.xlu0 %2988
        %v2990 = vsel %vm1339, %v2973, 0.0
        %2991 = vadd.xlane.f32.xlu0 %v2990
        %v2992 = vpop.xlane.xlu0 %2991
        %v2993 = vsel %vm1339, %v2975, 0.0
        %2994 = vadd.xlane.f32.xlu0 %v2993
        %v2995 = vpop.xlane.xlu0 %2994
        %v2996 = vsel %vm1339, %v2977, 0.0
        %2997 = vadd.xlane.f32.xlu0 %v2996
        %v2998 = vpop.xlane.xlu0 %2997
        %v2999 = vsel %vm1339, %v2979, 0.0
        %3000 = vadd.xlane.f32.xlu0 %v2999
        %v3001 = vpop.xlane.xlu0 %3000
        %v3002 = vsel %vm1339, %v2981, 0.0
        %3003 = vadd.xlane.f32.xlu0 %v3002
        %v3004 = vpop.xlane.xlu0 %3003
        %v3005 = vsel %vm1339, %v2983, 0.0
        %3006 = vadd.xlane.f32.xlu0 %v3005
        %v3007 = vpop.xlane.xlu0 %3006
        %v3008 = vrcp.pop %v2986
        %v3009 = vrcp.pop %v2989
        %v3010 = vrcp.pop %v2992
        %v3011 = vrcp.pop %v2995
        %v3012 = vrcp.pop %v2998
        %v3013 = vrcp.pop %v3001
        %v3014 = vrcp.pop %v3004
        %v3015 = vrcp.pop %v3007
        %v3016 = vmul.f32 %v2969, %v3008
        %v3017 = vmul.f32 %v2971, %v3009
        %v3018 = vmul.f32 %v2973, %v3010
        %v3019 = vmul.f32 %v2975, %v3011
        %v3020 = vmul.f32 %v2977, %v3012
        %v3021 = vmul.f32 %v2979, %v3013
        %v3022 = vmul.f32 %v2981, %v3014
        %v3023 = vmul.f32 %v2983, %v3015
        %v3024 = vpack.c.bf16 %v3016, %v3016
        %v3025 = vpack.c.bf16 %v3017, %v3017
        %v3026 = vpack.c.bf16 %v3018, %v3018
        %v3027 = vpack.c.bf16 %v3019, %v3019
        %v3028 = vpack.c.bf16 %v3020, %v3020
        %v3029 = vpack.c.bf16 %v3021, %v3021
        %v3030 = vpack.c.bf16 %v3022, %v3022
        %v3031 = vpack.c.bf16 %v3023, %v3023
        %3032 = vrot.lane.b32.xlu0 %v1336, 40
        %v3033 = vpop.permute.xlu0 %3032
        %v3035 = vsel %vm1339, %v3024, 0
        %v3038 = vsel %vm1644, %v3033, 0
        %3040 = vmatpush.bf16.msra.mxu0 0
        %3041 = vmatpush.bf16.msra.mxu0 0
        %3042 = vmatpush.bf16.msra.mxu0 0
        %3043 = vmatpush.bf16.msra.mxu0 0
        %3044 = vmatpush.bf16.msra.mxu0 0
        %3045 = vmatpush.bf16.msra.mxu0 0
        %3046 = vmatpush.bf16.msra.mxu0 0
        %3047 = vmatpush.bf16.msra.mxu0 %v3038
        %3048 = vmatmul.bf16.gmra.mxu0 %v3035
        %v3049 = vpop.f32.mrf.mxu0
        %v3050 = vadd.f32 0.0, %v3049
        %v3051 = vpop.f32.mrf.mxu0
        %3052 = vdwg.mxu0
        %3053 = vrot.lane.b32.xlu0 %v1361, 40
        %v3054 = vpop.permute.xlu0 %3053
        %v3056 = vsel %vm1339, %v3025, 0
        %v3059 = vsel %vm1644, %v3054, 0
        %3061 = vmatpush.bf16.msra.mxu0 0
        %3062 = vmatpush.bf16.msra.mxu0 0
        %3063 = vmatpush.bf16.msra.mxu0 0
        %3064 = vmatpush.bf16.msra.mxu0 0
        %3065 = vmatpush.bf16.msra.mxu0 0
        %3066 = vmatpush.bf16.msra.mxu0 0
        %3067 = vmatpush.bf16.msra.mxu0 0
        %3068 = vmatpush.bf16.msra.mxu0 %v3059
        %3069 = vmatmul.bf16.gmra.mxu0 %v3056
        %v3070 = vpop.f32.mrf.mxu0
        %v3071 = vadd.f32 0.0, %v3070
        %v3072 = vpop.f32.mrf.mxu0
        %3073 = vdwg.mxu0
        %3074 = vrot.lane.b32.xlu0 %v1385, 40
        %v3075 = vpop.permute.xlu0 %3074
        %v3077 = vsel %vm1339, %v3026, 0
        %v3080 = vsel %vm1644, %v3075, 0
        %3082 = vmatpush.bf16.msra.mxu0 0
        %3083 = vmatpush.bf16.msra.mxu0 0
        %3084 = vmatpush.bf16.msra.mxu0 0
        %3085 = vmatpush.bf16.msra.mxu0 0
        %3086 = vmatpush.bf16.msra.mxu0 0
        %3087 = vmatpush.bf16.msra.mxu0 0
        %3088 = vmatpush.bf16.msra.mxu0 0
        %3089 = vmatpush.bf16.msra.mxu0 %v3080
        %3090 = vmatmul.bf16.gmra.mxu0 %v3077
        %v3091 = vpop.f32.mrf.mxu0
        %v3092 = vadd.f32 0.0, %v3091
        %v3093 = vpop.f32.mrf.mxu0
        %3094 = vdwg.mxu0
        %3095 = vrot.lane.b32.xlu0 %v1409, 40
        %v3096 = vpop.permute.xlu0 %3095
        %v3098 = vsel %vm1339, %v3027, 0
        %v3101 = vsel %vm1644, %v3096, 0
        %3103 = vmatpush.bf16.msra.mxu0 0
        %3104 = vmatpush.bf16.msra.mxu0 0
        %3105 = vmatpush.bf16.msra.mxu0 0
        %3106 = vmatpush.bf16.msra.mxu0 0
        %3107 = vmatpush.bf16.msra.mxu0 0
        %3108 = vmatpush.bf16.msra.mxu0 0
        %3109 = vmatpush.bf16.msra.mxu0 0
        %3110 = vmatpush.bf16.msra.mxu0 %v3101
        %3111 = vmatmul.bf16.gmra.mxu0 %v3098
        %v3112 = vpop.f32.mrf.mxu0
        %v3113 = vadd.f32 0.0, %v3112
        %v3114 = vpop.f32.mrf.mxu0
        %3115 = vdwg.mxu0
        %3116 = vrot.lane.b32.xlu0 %v1433, 40
        %v3117 = vpop.permute.xlu0 %3116
        %v3119 = vsel %vm1339, %v3028, 0
        %v3122 = vsel %vm1644, %v3117, 0
        %3124 = vmatpush.bf16.msra.mxu0 0
        %3125 = vmatpush.bf16.msra.mxu0 0
        %3126 = vmatpush.bf16.msra.mxu0 0
        %3127 = vmatpush.bf16.msra.mxu0 0
        %3128 = vmatpush.bf16.msra.mxu0 0
        %3129 = vmatpush.bf16.msra.mxu0 0
        %3130 = vmatpush.bf16.msra.mxu0 0
        %3131 = vmatpush.bf16.msra.mxu0 %v3122
        %3132 = vmatmul.bf16.gmra.mxu0 %v3119
        %v3133 = vpop.f32.mrf.mxu0
        %v3134 = vadd.f32 0.0, %v3133
        %v3135 = vpop.f32.mrf.mxu0
        %3136 = vdwg.mxu0
        %3137 = vrot.lane.b32.xlu0 %v1457, 40
        %v3138 = vpop.permute.xlu0 %3137
        %v3140 = vsel %vm1339, %v3029, 0
        %v3143 = vsel %vm1644, %v3138, 0
        %3145 = vmatpush.bf16.msra.mxu0 0
        %3146 = vmatpush.bf16.msra.mxu0 0
        %3147 = vmatpush.bf16.msra.mxu0 0
        %3148 = vmatpush.bf16.msra.mxu0 0
        %3149 = vmatpush.bf16.msra.mxu0 0
        %3150 = vmatpush.bf16.msra.mxu0 0
        %3151 = vmatpush.bf16.msra.mxu0 0
        %3152 = vmatpush.bf16.msra.mxu0 %v3143
        %3153 = vmatmul.bf16.gmra.mxu0 %v3140
        %v3154 = vpop.f32.mrf.mxu0
        %v3155 = vadd.f32 0.0, %v3154
        %v3156 = vpop.f32.mrf.mxu0
        %3157 = vdwg.mxu0
        %3158 = vrot.lane.b32.xlu0 %v1481, 40
        %v3159 = vpop.permute.xlu0 %3158
        %v3161 = vsel %vm1339, %v3030, 0
        %v3164 = vsel %vm1644, %v3159, 0
        %3166 = vmatpush.bf16.msra.mxu0 0
        %3167 = vmatpush.bf16.msra.mxu0 0
        %3168 = vmatpush.bf16.msra.mxu0 0
        %3169 = vmatpush.bf16.msra.mxu0 0
        %3170 = vmatpush.bf16.msra.mxu0 0
        %3171 = vmatpush.bf16.msra.mxu0 0
        %3172 = vmatpush.bf16.msra.mxu0 0
        %3173 = vmatpush.bf16.msra.mxu0 %v3164
        %3174 = vmatmul.bf16.gmra.mxu0 %v3161
        %v3175 = vpop.f32.mrf.mxu0
        %v3176 = vadd.f32 0.0, %v3175
        %v3177 = vpop.f32.mrf.mxu0
        %3178 = vdwg.mxu0
        %3179 = vrot.lane.b32.xlu0 %v1505, 40
        %v3180 = vpop.permute.xlu0 %3179
        %v3182 = vsel %vm1339, %v3031, 0
        %v3185 = vsel %vm1644, %v3180, 0
        %3187 = vmatpush.bf16.msra.mxu0 0
        %3188 = vmatpush.bf16.msra.mxu0 0
        %3189 = vmatpush.bf16.msra.mxu0 0
        %3190 = vmatpush.bf16.msra.mxu0 0
        %3191 = vmatpush.bf16.msra.mxu0 0
        %3192 = vmatpush.bf16.msra.mxu0 0
        %3193 = vmatpush.bf16.msra.mxu0 0
        %3194 = vmatpush.bf16.msra.mxu0 %v3185
        %3195 = vmatmul.bf16.gmra.mxu0 %v3182
        %v3196 = vpop.f32.mrf.mxu0
        %v3197 = vadd.f32 0.0, %v3196
        %v3198 = vpop.f32.mrf.mxu0
        %3199 = vdwg.mxu0
        %3208 = vrot.lane.b32.xlu0 %v2122, 8
        %v3209 = vpop.permute.xlu0 %3208
        %3210 = vrot.lane.b32.xlu0 %v2143, 8
        %v3211 = vpop.permute.xlu0 %3210
        %3212 = vrot.lane.b32.xlu0 %v2164, 8
        %v3213 = vpop.permute.xlu0 %3212
        %3214 = vrot.lane.b32.xlu0 %v2185, 8
        %v3215 = vpop.permute.xlu0 %3214
        %3216 = vrot.lane.b32.xlu0 %v2206, 8
        %v3217 = vpop.permute.xlu0 %3216
        %3218 = vrot.lane.b32.xlu0 %v2227, 8
        %v3219 = vpop.permute.xlu0 %3218
        %3220 = vrot.lane.b32.xlu0 %v2248, 8
        %v3221 = vpop.permute.xlu0 %3220
        %3222 = vrot.lane.b32.xlu0 %v2269, 8
        %v3223 = vpop.permute.xlu0 %3222
        %3240 = vrot.lane.b32.xlu0 %v2586, 16
        %v3241 = vpop.permute.xlu0 %3240
        %3242 = vrot.lane.b32.xlu0 %v2607, 16
        %v3243 = vpop.permute.xlu0 %3242
        %3244 = vrot.lane.b32.xlu0 %v2628, 16
        %v3245 = vpop.permute.xlu0 %3244
        %3246 = vrot.lane.b32.xlu0 %v2649, 16
        %v3247 = vpop.permute.xlu0 %3246
        %3248 = vrot.lane.b32.xlu0 %v2670, 16
        %v3249 = vpop.permute.xlu0 %3248
        %3250 = vrot.lane.b32.xlu0 %v2691, 16
        %v3251 = vpop.permute.xlu0 %3250
        %3252 = vrot.lane.b32.xlu0 %v2712, 16
        %v3253 = vpop.permute.xlu0 %3252
        %3254 = vrot.lane.b32.xlu0 %v2733, 16
        %v3255 = vpop.permute.xlu0 %3254
        %3272 = vrot.lane.b32.xlu0 %v3050, 24
        %v3273 = vpop.permute.xlu0 %3272
        %3274 = vrot.lane.b32.xlu0 %v3071, 24
        %v3275 = vpop.permute.xlu0 %3274
        %3276 = vrot.lane.b32.xlu0 %v3092, 24
        %v3277 = vpop.permute.xlu0 %3276
        %3278 = vrot.lane.b32.xlu0 %v3113, 24
        %v3279 = vpop.permute.xlu0 %3278
        %3280 = vrot.lane.b32.xlu0 %v3134, 24
        %v3281 = vpop.permute.xlu0 %3280
        %3282 = vrot.lane.b32.xlu0 %v3155, 24
        %v3283 = vpop.permute.xlu0 %3282
        %3284 = vrot.lane.b32.xlu0 %v3176, 24
        %v3285 = vpop.permute.xlu0 %3284
        %3286 = vrot.lane.b32.xlu0 %v3197, 24
        %v3287 = vpop.permute.xlu0 %3286
        %v3296 = vsel %vm1339, %v1658, %v3209
        %v3297 = vsel %vm1339, %v1679, %v3211
        %v3298 = vsel %vm1339, %v1700, %v3213
        %v3299 = vsel %vm1339, %v1721, %v3215
        %v3300 = vsel %vm1339, %v1742, %v3217
        %v3301 = vsel %vm1339, %v1763, %v3219
        %v3302 = vsel %vm1339, %v1784, %v3221
        %v3303 = vsel %vm1339, %v1805, %v3223
        %vm3304 = vcmask 130048
        %v3305 = vsel %vm3304, %v3296, %v3241
        %v3306 = vsel %vm3304, %v3297, %v3243
        %v3307 = vsel %vm3304, %v3298, %v3245
        %v3308 = vsel %vm3304, %v3299, %v3247
        %v3309 = vsel %vm3304, %v3300, %v3249
        %v3310 = vsel %vm3304, %v3301, %v3251
        %v3311 = vsel %vm3304, %v3302, %v3253
        %v3312 = vsel %vm3304, %v3303, %v3255
        %vm3313 = vcmask 195584
        %v3314 = vsel %vm3313, %v3305, %v3273
        %v3315 = vsel %vm3313, %v3306, %v3275
        %v3316 = vsel %vm3313, %v3307, %v3277
        %v3317 = vsel %vm3313, %v3308, %v3279
        %v3318 = vsel %vm3313, %v3309, %v3281
        %v3319 = vsel %vm3313, %v3310, %v3283
        %v3320 = vsel %vm3313, %v3311, %v3285
        %v3321 = vsel %vm3313, %v3312, %v3287
        %v3322 = vpack.c.bf16 %v3315, %v3314
        %v3323 = vpack.c.bf16 %v3317, %v3316
        %v3324 = vpack.c.bf16 %v3319, %v3318
        %v3325 = vpack.c.bf16 %v3321, %v3320
        %v3326 = vld [vmem:[%s781] sm:$0xf]
        %v3327 = vld [vmem:[%s781 + $0x4] sm:$0xf]
        %v3328 = vld [vmem:[%s781 + $0x8] sm:$0xf]
        %v3329 = vld [vmem:[%s781 + $0xc] sm:$0xf]
        %v3334 = vunpack.c.l.b16 %v3326
        %v3335 = vunpack.c.l.b16 %v3327
        %v3336 = vunpack.c.l.b16 %v3328
        %v3337 = vunpack.c.l.b16 %v3329
        %v3338 = vpack.c.b16 %v3335, %v3334
        %v3339 = vpack.c.b16 %v3337, %v3336
        %v3343 = vsel %vm1054, %v3322, 0
        %v3346 = vsel %vm1054, %v3323, 0
        %v3349 = vsel %vm1054, %v3324, 0
        %v3352 = vsel %vm1054, %v3325, 0
        %3354 = vmatpush.bf16.msra.mxu0 0
        %3355 = vmatpush.bf16.msra.mxu0 0
        %3356 = vmatpush.bf16.msra.mxu0 0
        %3357 = vmatpush.bf16.msra.mxu0 0
        %3358 = vmatpush.bf16.msra.mxu0 0
        %3359 = vmatpush.bf16.msra.mxu0 0
        %3360 = vmatpush.bf16.msra.mxu0 %v3339
        %3361 = vmatpush.bf16.msra.mxu0 %v3338
        %3362 = vmatmul.bf16.gmra.mxu0 %v3343
        %v3363 = vpop.f32.mrf.mxu0
        %v3364 = vadd.f32 0.0, %v3363
        %v3365 = vpop.f32.mrf.mxu0
        %v3366 = vadd.f32 0.0, %v3365
        %3367 = vmatmul.bf16.gmra.mxu0 %v3346
        %v3368 = vpop.f32.mrf.mxu0
        %v3369 = vadd.f32 0.0, %v3368
        %v3370 = vpop.f32.mrf.mxu0
        %v3371 = vadd.f32 0.0, %v3370
        %3372 = vmatmul.bf16.gmra.mxu0 %v3349
        %v3373 = vpop.f32.mrf.mxu0
        %v3374 = vadd.f32 0.0, %v3373
        %v3375 = vpop.f32.mrf.mxu0
        %v3376 = vadd.f32 0.0, %v3375
        %3377 = vmatmul.bf16.gmra.mxu0 %v3352
        %v3378 = vpop.f32.mrf.mxu0
        %v3379 = vadd.f32 0.0, %v3378
        %v3380 = vpop.f32.mrf.mxu0
        %v3381 = vadd.f32 0.0, %v3380
        %3382 = vdwg.mxu0
        %v3383 = vadd.f32 %v1044, %v3364
        %v3384 = vadd.f32 %v1045, %v3366
        %v3385 = vadd.f32 %v1046, %v3369
        %v3386 = vadd.f32 %v1047, %v3371
        %v3387 = vadd.f32 %v1048, %v3374
        %v3388 = vadd.f32 %v1049, %v3376
        %v3389 = vadd.f32 %v1050, %v3379
        %v3390 = vadd.f32 %v1051, %v3381
        %v3391 = vld [vmem:[%s784] sm:$0x1]
        %v3393 = vperm.slane %v3391, 0
        %v3395 = vadd.f32 %v3383, %v3393
        %v3396 = vadd.f32 %v3384, %v3393
        %v3397 = vadd.f32 %v3385, %v3393
        %v3398 = vadd.f32 %v3386, %v3393
        %v3399 = vadd.f32 %v3387, %v3393
        %v3400 = vadd.f32 %v3388, %v3393
        %v3401 = vadd.f32 %v3389, %v3393
        %v3402 = vadd.f32 %v3390, %v3393
        %v3403 = vld [vmem:[%s787] sm:$0x1]
        %v3404 = vld [vmem:[%s790] sm:$0x1]
        %v3405 = vsel %vm1054, %v3395, 0.0
        %3406 = vadd.xlane.f32.xlu0 %v3405
        %v3407 = vpop.xlane.xlu0 %3406
        %v3408 = vsel %vm1054, %v3396, 0.0
        %3409 = vadd.xlane.f32.xlu0 %v3408
        %v3410 = vpop.xlane.xlu0 %3409
        %v3411 = vsel %vm1054, %v3397, 0.0
        %3412 = vadd.xlane.f32.xlu0 %v3411
        %v3413 = vpop.xlane.xlu0 %3412
        %v3414 = vsel %vm1054, %v3398, 0.0
        %3415 = vadd.xlane.f32.xlu0 %v3414
        %v3416 = vpop.xlane.xlu0 %3415
        %v3417 = vsel %vm1054, %v3399, 0.0
        %3418 = vadd.xlane.f32.xlu0 %v3417
        %v3419 = vpop.xlane.xlu0 %3418
        %v3420 = vsel %vm1054, %v3400, 0.0
        %3421 = vadd.xlane.f32.xlu0 %v3420
        %v3422 = vpop.xlane.xlu0 %3421
        %v3423 = vsel %vm1054, %v3401, 0.0
        %3424 = vadd.xlane.f32.xlu0 %v3423
        %v3425 = vpop.xlane.xlu0 %3424
        %v3426 = vsel %vm1054, %v3402, 0.0
        %3427 = vadd.xlane.f32.xlu0 %v3426
        %v3428 = vpop.xlane.xlu0 %3427
        %v3429 = vmul.f32 %v3407, %v1085
        %v3430 = vmul.f32 %v3410, %v1085
        %v3431 = vmul.f32 %v3413, %v1085
        %v3432 = vmul.f32 %v3416, %v1085
        %v3433 = vmul.f32 %v3419, %v1085
        %v3434 = vmul.f32 %v3422, %v1085
        %v3435 = vmul.f32 %v3425, %v1085
        %v3436 = vmul.f32 %v3428, %v1085
        %v3437 = vsub.f32 %v3395, %v3429
        %v3438 = vsub.f32 %v3396, %v3430
        %v3439 = vsub.f32 %v3397, %v3431
        %v3440 = vsub.f32 %v3398, %v3432
        %v3441 = vsub.f32 %v3399, %v3433
        %v3442 = vsub.f32 %v3400, %v3434
        %v3443 = vsub.f32 %v3401, %v3435
        %v3444 = vsub.f32 %v3402, %v3436
        %v3445 = vmul.f32 %v3437, %v3437
        %v3446 = vmul.f32 %v3438, %v3438
        %v3447 = vmul.f32 %v3439, %v3439
        %v3448 = vmul.f32 %v3440, %v3440
        %v3449 = vmul.f32 %v3441, %v3441
        %v3450 = vmul.f32 %v3442, %v3442
        %v3451 = vmul.f32 %v3443, %v3443
        %v3452 = vmul.f32 %v3444, %v3444
        %v3453 = vsel %vm1054, %v3445, 0.0
        %3454 = vadd.xlane.f32.xlu0 %v3453
        %v3455 = vpop.xlane.xlu0 %3454
        %v3456 = vsel %vm1054, %v3446, 0.0
        %3457 = vadd.xlane.f32.xlu0 %v3456
        %v3458 = vpop.xlane.xlu0 %3457
        %v3459 = vsel %vm1054, %v3447, 0.0
        %3460 = vadd.xlane.f32.xlu0 %v3459
        %v3461 = vpop.xlane.xlu0 %3460
        %v3462 = vsel %vm1054, %v3448, 0.0
        %3463 = vadd.xlane.f32.xlu0 %v3462
        %v3464 = vpop.xlane.xlu0 %3463
        %v3465 = vsel %vm1054, %v3449, 0.0
        %3466 = vadd.xlane.f32.xlu0 %v3465
        %v3467 = vpop.xlane.xlu0 %3466
        %v3468 = vsel %vm1054, %v3450, 0.0
        %3469 = vadd.xlane.f32.xlu0 %v3468
        %v3470 = vpop.xlane.xlu0 %3469
        %v3471 = vsel %vm1054, %v3451, 0.0
        %3472 = vadd.xlane.f32.xlu0 %v3471
        %v3473 = vpop.xlane.xlu0 %3472
        %v3474 = vsel %vm1054, %v3452, 0.0
        %3475 = vadd.xlane.f32.xlu0 %v3474
        %v3476 = vpop.xlane.xlu0 %3475
        %v3477 = vmul.f32 %v3455, %v1085
        %v3478 = vmul.f32 %v3458, %v1085
        %v3479 = vmul.f32 %v3461, %v1085
        %v3480 = vmul.f32 %v3464, %v1085
        %v3481 = vmul.f32 %v3467, %v1085
        %v3482 = vmul.f32 %v3470, %v1085
        %v3483 = vmul.f32 %v3473, %v1085
        %v3484 = vmul.f32 %v3476, %v1085
        %v3485 = vadd.f32 %v3477, 1e-05
        %v3486 = vadd.f32 %v3478, 1e-05
        %v3487 = vadd.f32 %v3479, 1e-05
        %v3488 = vadd.f32 %v3480, 1e-05
        %v3489 = vadd.f32 %v3481, 1e-05
        %v3490 = vadd.f32 %v3482, 1e-05
        %v3491 = vadd.f32 %v3483, 1e-05
        %v3492 = vadd.f32 %v3484, 1e-05
        %v3493 = vrsqrt.pop %v3485
        %v3494 = vmul.f32 %v3493, %v3485
        %v3495 = vmul.f32 %v3494, %v3493
        %v3496 = vmul.f32 0.5, %v3495
        %v3497 = vsub.f32 1.5, %v3496
        %v3498 = vmul.f32 %v3493, %v3497
        %vm3499 = vweird.f32 %v3485
        %vm3500 = vweird.f32 %v3493
        %vm3501 = vmor %vm3499, %vm3500
        %v3502 = vsel %vm3501, %v3493, %v3498
        %v3503 = vrsqrt.pop %v3486
        %v3504 = vmul.f32 %v3503, %v3486
        %v3505 = vmul.f32 %v3504, %v3503
        %v3506 = vmul.f32 0.5, %v3505
        %v3507 = vsub.f32 1.5, %v3506
        %v3508 = vmul.f32 %v3503, %v3507
        %vm3509 = vweird.f32 %v3486
        %vm3510 = vweird.f32 %v3503
        %vm3511 = vmor %vm3509, %vm3510
        %v3512 = vsel %vm3511, %v3503, %v3508
        %v3513 = vrsqrt.pop %v3487
        %v3514 = vmul.f32 %v3513, %v3487
        %v3515 = vmul.f32 %v3514, %v3513
        %v3516 = vmul.f32 0.5, %v3515
        %v3517 = vsub.f32 1.5, %v3516
        %v3518 = vmul.f32 %v3513, %v3517
        %vm3519 = vweird.f32 %v3487
        %vm3520 = vweird.f32 %v3513
        %vm3521 = vmor %vm3519, %vm3520
        %v3522 = vsel %vm3521, %v3513, %v3518
        %v3523 = vrsqrt.pop %v3488
        %v3524 = vmul.f32 %v3523, %v3488
        %v3525 = vmul.f32 %v3524, %v3523
        %v3526 = vmul.f32 0.5, %v3525
        %v3527 = vsub.f32 1.5, %v3526
        %v3528 = vmul.f32 %v3523, %v3527
        %vm3529 = vweird.f32 %v3488
        %vm3530 = vweird.f32 %v3523
        %vm3531 = vmor %vm3529, %vm3530
        %v3532 = vsel %vm3531, %v3523, %v3528
        %v3533 = vrsqrt.pop %v3489
        %v3534 = vmul.f32 %v3533, %v3489
        %v3535 = vmul.f32 %v3534, %v3533
        %v3536 = vmul.f32 0.5, %v3535
        %v3537 = vsub.f32 1.5, %v3536
        %v3538 = vmul.f32 %v3533, %v3537
        %vm3539 = vweird.f32 %v3489
        %vm3540 = vweird.f32 %v3533
        %vm3541 = vmor %vm3539, %vm3540
        %v3542 = vsel %vm3541, %v3533, %v3538
        %v3543 = vrsqrt.pop %v3490
        %v3544 = vmul.f32 %v3543, %v3490
        %v3545 = vmul.f32 %v3544, %v3543
        %v3546 = vmul.f32 0.5, %v3545
        %v3547 = vsub.f32 1.5, %v3546
        %v3548 = vmul.f32 %v3543, %v3547
        %vm3549 = vweird.f32 %v3490
        %vm3550 = vweird.f32 %v3543
        %vm3551 = vmor %vm3549, %vm3550
        %v3552 = vsel %vm3551, %v3543, %v3548
        %v3553 = vrsqrt.pop %v3491
        %v3554 = vmul.f32 %v3553, %v3491
        %v3555 = vmul.f32 %v3554, %v3553
        %v3556 = vmul.f32 0.5, %v3555
        %v3557 = vsub.f32 1.5, %v3556
        %v3558 = vmul.f32 %v3553, %v3557
        %vm3559 = vweird.f32 %v3491
        %vm3560 = vweird.f32 %v3553
        %vm3561 = vmor %vm3559, %vm3560
        %v3562 = vsel %vm3561, %v3553, %v3558
        %v3563 = vrsqrt.pop %v3492
        %v3564 = vmul.f32 %v3563, %v3492
        %v3565 = vmul.f32 %v3564, %v3563
        %v3566 = vmul.f32 0.5, %v3565
        %v3567 = vsub.f32 1.5, %v3566
        %v3568 = vmul.f32 %v3563, %v3567
        %vm3569 = vweird.f32 %v3492
        %vm3570 = vweird.f32 %v3563
        %vm3571 = vmor %vm3569, %vm3570
        %v3572 = vsel %vm3571, %v3563, %v3568
        %v3573 = vmul.f32 %v3437, %v3502
        %v3574 = vmul.f32 %v3438, %v3512
        %v3575 = vmul.f32 %v3439, %v3522
        %v3576 = vmul.f32 %v3440, %v3532
        %v3577 = vmul.f32 %v3441, %v3542
        %v3578 = vmul.f32 %v3442, %v3552
        %v3579 = vmul.f32 %v3443, %v3562
        %v3580 = vmul.f32 %v3444, %v3572
        %v3582 = vperm.slane %v3403, 0
        %v3584 = vmul.f32 %v3573, %v3582
        %v3585 = vmul.f32 %v3574, %v3582
        %v3586 = vmul.f32 %v3575, %v3582
        %v3587 = vmul.f32 %v3576, %v3582
        %v3588 = vmul.f32 %v3577, %v3582
        %v3589 = vmul.f32 %v3578, %v3582
        %v3590 = vmul.f32 %v3579, %v3582
        %v3591 = vmul.f32 %v3580, %v3582
        %v3593 = vperm.slane %v3404, 0
        %v3595 = vadd.f32 %v3584, %v3593
        %v3596 = vadd.f32 %v3585, %v3593
        %v3597 = vadd.f32 %v3586, %v3593
        %v3598 = vadd.f32 %v3587, %v3593
        %v3599 = vadd.f32 %v3588, %v3593
        %v3600 = vadd.f32 %v3589, %v3593
        %v3601 = vadd.f32 %v3590, %v3593
        %v3602 = vadd.f32 %v3591, %v3593
        %v3603 = vpack.c.bf16 %v3596, %v3595
        %v3604 = vpack.c.bf16 %v3598, %v3597
        %v3605 = vpack.c.bf16 %v3600, %v3599
        %v3606 = vpack.c.bf16 %v3602, %v3601
        %v3607 = vld [vmem:[%s795] sm:$0xf]
        %v3608 = vld [vmem:[%s795 + $0x4] sm:$0xf]
        %v3609 = vld [vmem:[%s795 + $0x8] sm:$0xf]
        %v3610 = vld [vmem:[%s795 + $0xc] sm:$0xf]
        %v3611 = vld [vmem:[%s798] sm:$0x1]
        %v3613 = vperm.slane %v3611, 0
        %v3619 = vunpack.c.l.b16 %v3607
        %v3620 = vunpack.c.l.b16 %v3608
        %v3621 = vunpack.c.l.b16 %v3609
        %v3622 = vunpack.c.l.b16 %v3610
        %v3623 = vpack.c.b16 %v3620, %v3619
        %v3624 = vpack.c.b16 %v3622, %v3621
        %v3628 = vsel %vm1054, %v3603, 0
        %v3631 = vsel %vm1054, %v3604, 0
        %v3634 = vsel %vm1054, %v3605, 0
        %v3637 = vsel %vm1054, %v3606, 0
        %3639 = vmatpush.bf16.msra.mxu0 0
        %3640 = vmatpush.bf16.msra.mxu0 0
        %3641 = vmatpush.bf16.msra.mxu0 0
        %3642 = vmatpush.bf16.msra.mxu0 0
        %3643 = vmatpush.bf16.msra.mxu0 0
        %3644 = vmatpush.bf16.msra.mxu0 0
        %3645 = vmatpush.bf16.msra.mxu0 %v3624
        %3646 = vmatpush.bf16.msra.mxu0 %v3623
        %3647 = vmatmul.bf16.gmra.mxu0 %v3628
        %v3648 = vpop.f32.mrf.mxu0
        %v3649 = vadd.f32 %v3613, %v3648
        %v3650 = vpop.f32.mrf.mxu0
        %v3651 = vadd.f32 %v3613, %v3650
        %3652 = vmatmul.bf16.gmra.mxu0 %v3631
        %v3653 = vpop.f32.mrf.mxu0
        %v3654 = vadd.f32 %v3613, %v3653
        %v3655 = vpop.f32.mrf.mxu0
        %v3656 = vadd.f32 %v3613, %v3655
        %3657 = vmatmul.bf16.gmra.mxu0 %v3634
        %v3658 = vpop.f32.mrf.mxu0
        %v3659 = vadd.f32 %v3613, %v3658
        %v3660 = vpop.f32.mrf.mxu0
        %v3661 = vadd.f32 %v3613, %v3660
        %3662 = vmatmul.bf16.gmra.mxu0 %v3637
        %v3663 = vpop.f32.mrf.mxu0
        %v3664 = vadd.f32 %v3613, %v3663
        %v3665 = vpop.f32.mrf.mxu0
        %v3666 = vadd.f32 %v3613, %v3665
        %3667 = vdwg.mxu0
        %v3668 = vmul.f32 %v3649, 1.702
        %v3669 = vmul.f32 %v3651, 1.702
        %v3670 = vmul.f32 %v3654, 1.702
        %v3671 = vmul.f32 %v3656, 1.702
        %v3672 = vmul.f32 %v3659, 1.702
        %v3673 = vmul.f32 %v3661, 1.702
        %v3674 = vmul.f32 %v3664, 1.702
        %v3675 = vmul.f32 %v3666, 1.702
        %v3676 = vxor.u32 %v3668, 2147483648
        %v3677 = vxor.u32 %v3669, 2147483648
        %v3678 = vxor.u32 %v3670, 2147483648
        %v3679 = vxor.u32 %v3671, 2147483648
        %v3680 = vxor.u32 %v3672, 2147483648
        %v3681 = vxor.u32 %v3673, 2147483648
        %v3682 = vxor.u32 %v3674, 2147483648
        %v3683 = vxor.u32 %v3675, 2147483648
        %v3684 = vmul.f32 %v3676, 1.442695
        %v3685 = vpow.pop %v3684
        %v3686 = vmul.f32 %v3677, 1.442695
        %v3687 = vpow.pop %v3686
        %v3688 = vmul.f32 %v3678, 1.442695
        %v3689 = vpow.pop %v3688
        %v3690 = vmul.f32 %v3679, 1.442695
        %v3691 = vpow.pop %v3690
        %v3692 = vmul.f32 %v3680, 1.442695
        %v3693 = vpow.pop %v3692
        %v3694 = vmul.f32 %v3681, 1.442695
        %v3695 = vpow.pop %v3694
        %v3696 = vmul.f32 %v3682, 1.442695
        %v3697 = vpow.pop %v3696
        %v3698 = vmul.f32 %v3683, 1.442695
        %v3699 = vpow.pop %v3698
        %v3700 = vadd.f32 %v3685, 1.0
        %v3701 = vadd.f32 %v3687, 1.0
        %v3702 = vadd.f32 %v3689, 1.0
        %v3703 = vadd.f32 %v3691, 1.0
        %v3704 = vadd.f32 %v3693, 1.0
        %v3705 = vadd.f32 %v3695, 1.0
        %v3706 = vadd.f32 %v3697, 1.0
        %v3707 = vadd.f32 %v3699, 1.0
        %v3708 = vrcp.pop %v3700
        %v3709 = vmul.f32 %v3700, %v3708
        %v3710 = vsub.f32 1.0, %v3709
        %v3711 = vmul.f32 %v3708, %v3710
        %v3712 = vadd.f32 %v3708, %v3711
        %vm3713 = vweird.f32 %v3700
        %vm3714 = vweird.f32 %v3708
        %vm3715 = vmor %vm3713, %vm3714
        %v3716 = vsel %vm3715, %v3708, %v3712
        %v3717 = vand.u32 2147483647, %v3700
        %vm3718 = vcmp.eq.f32.partialorder %v3717, 8.507059e+37
        %v3719 = vand.u32 %v3700, 2147483648
        %v3720 = vor.u32 1.1754944e-38, %v3719
        %v3721 = vsel %vm3718, %v3720, %v3716
        %v3722 = vmul.f32 1.0, %v3721
        %v3723 = vrcp.pop %v3701
        %v3724 = vmul.f32 %v3701, %v3723
        %v3725 = vsub.f32 1.0, %v3724
        %v3726 = vmul.f32 %v3723, %v3725
        %v3727 = vadd.f32 %v3723, %v3726
        %vm3728 = vweird.f32 %v3701
        %vm3729 = vweird.f32 %v3723
        %vm3730 = vmor %vm3728, %vm3729
        %v3731 = vsel %vm3730, %v3723, %v3727
        %v3732 = vand.u32 2147483647, %v3701
        %vm3733 = vcmp.eq.f32.partialorder %v3732, 8.507059e+37
        %v3734 = vand.u32 %v3701, 2147483648
        %v3735 = vor.u32 1.1754944e-38, %v3734
        %v3736 = vsel %vm3733, %v3735, %v3731
        %v3737 = vmul.f32 1.0, %v3736
        %v3738 = vrcp.pop %v3702
        %v3739 = vmul.f32 %v3702, %v3738
        %v3740 = vsub.f32 1.0, %v3739
        %v3741 = vmul.f32 %v3738, %v3740
        %v3742 = vadd.f32 %v3738, %v3741
        %vm3743 = vweird.f32 %v3702
        %vm3744 = vweird.f32 %v3738
        %vm3745 = vmor %vm3743, %vm3744
        %v3746 = vsel %vm3745, %v3738, %v3742
        %v3747 = vand.u32 2147483647, %v3702
        %vm3748 = vcmp.eq.f32.partialorder %v3747, 8.507059e+37
        %v3749 = vand.u32 %v3702, 2147483648
        %v3750 = vor.u32 1.1754944e-38, %v3749
        %v3751 = vsel %vm3748, %v3750, %v3746
        %v3752 = vmul.f32 1.0, %v3751
        %v3753 = vrcp.pop %v3703
        %v3754 = vmul.f32 %v3703, %v3753
        %v3755 = vsub.f32 1.0, %v3754
        %v3756 = vmul.f32 %v3753, %v3755
        %v3757 = vadd.f32 %v3753, %v3756
        %vm3758 = vweird.f32 %v3703
        %vm3759 = vweird.f32 %v3753
        %vm3760 = vmor %vm3758, %vm3759
        %v3761 = vsel %vm3760, %v3753, %v3757
        %v3762 = vand.u32 2147483647, %v3703
        %vm3763 = vcmp.eq.f32.partialorder %v3762, 8.507059e+37
        %v3764 = vand.u32 %v3703, 2147483648
        %v3765 = vor.u32 1.1754944e-38, %v3764
        %v3766 = vsel %vm3763, %v3765, %v3761
        %v3767 = vmul.f32 1.0, %v3766
        %v3768 = vrcp.pop %v3704
        %v3769 = vmul.f32 %v3704, %v3768
        %v3770 = vsub.f32 1.0, %v3769
        %v3771 = vmul.f32 %v3768, %v3770
        %v3772 = vadd.f32 %v3768, %v3771
        %vm3773 = vweird.f32 %v3704
        %vm3774 = vweird.f32 %v3768
        %vm3775 = vmor %vm3773, %vm3774
        %v3776 = vsel %vm3775, %v3768, %v3772
        %v3777 = vand.u32 2147483647, %v3704
        %vm3778 = vcmp.eq.f32.partialorder %v3777, 8.507059e+37
        %v3779 = vand.u32 %v3704, 2147483648
        %v3780 = vor.u32 1.1754944e-38, %v3779
        %v3781 = vsel %vm3778, %v3780, %v3776
        %v3782 = vmul.f32 1.0, %v3781
        %v3783 = vrcp.pop %v3705
        %v3784 = vmul.f32 %v3705, %v3783
        %v3785 = vsub.f32 1.0, %v3784
        %v3786 = vmul.f32 %v3783, %v3785
        %v3787 = vadd.f32 %v3783, %v3786
        %vm3788 = vweird.f32 %v3705
        %vm3789 = vweird.f32 %v3783
        %vm3790 = vmor %vm3788, %vm3789
        %v3791 = vsel %vm3790, %v3783, %v3787
        %v3792 = vand.u32 2147483647, %v3705
        %vm3793 = vcmp.eq.f32.partialorder %v3792, 8.507059e+37
        %v3794 = vand.u32 %v3705, 2147483648
        %v3795 = vor.u32 1.1754944e-38, %v3794
        %v3796 = vsel %vm3793, %v3795, %v3791
        %v3797 = vmul.f32 1.0, %v3796
        %v3798 = vrcp.pop %v3706
        %v3799 = vmul.f32 %v3706, %v3798
        %v3800 = vsub.f32 1.0, %v3799
        %v3801 = vmul.f32 %v3798, %v3800
        %v3802 = vadd.f32 %v3798, %v3801
        %vm3803 = vweird.f32 %v3706
        %vm3804 = vweird.f32 %v3798
        %vm3805 = vmor %vm3803, %vm3804
        %v3806 = vsel %vm3805, %v3798, %v3802
        %v3807 = vand.u32 2147483647, %v3706
        %vm3808 = vcmp.eq.f32.partialorder %v3807, 8.507059e+37
        %v3809 = vand.u32 %v3706, 2147483648
        %v3810 = vor.u32 1.1754944e-38, %v3809
        %v3811 = vsel %vm3808, %v3810, %v3806
        %v3812 = vmul.f32 1.0, %v3811
        %v3813 = vrcp.pop %v3707
        %v3814 = vmul.f32 %v3707, %v3813
        %v3815 = vsub.f32 1.0, %v3814
        %v3816 = vmul.f32 %v3813, %v3815
        %v3817 = vadd.f32 %v3813, %v3816
        %vm3818 = vweird.f32 %v3707
        %vm3819 = vweird.f32 %v3813
        %vm3820 = vmor %vm3818, %vm3819
        %v3821 = vsel %vm3820, %v3813, %v3817
        %v3822 = vand.u32 2147483647, %v3707
        %vm3823 = vcmp.eq.f32.partialorder %v3822, 8.507059e+37
        %v3824 = vand.u32 %v3707, 2147483648
        %v3825 = vor.u32 1.1754944e-38, %v3824
        %v3826 = vsel %vm3823, %v3825, %v3821
        %v3827 = vmul.f32 1.0, %v3826
        %v3828 = vmul.f32 %v3649, %v3722
        %v3829 = vmul.f32 %v3651, %v3737
        %v3830 = vmul.f32 %v3654, %v3752
        %v3831 = vmul.f32 %v3656, %v3767
        %v3832 = vmul.f32 %v3659, %v3782
        %v3833 = vmul.f32 %v3661, %v3797
        %v3834 = vmul.f32 %v3664, %v3812
        %v3835 = vmul.f32 %v3666, %v3827
        %v3836 = vpack.c.bf16 %v3829, %v3828
        %v3837 = vpack.c.bf16 %v3831, %v3830
        %v3838 = vpack.c.bf16 %v3833, %v3832
        %v3839 = vpack.c.bf16 %v3835, %v3834
        %v3840 = vld [vmem:[%s803] sm:$0xf]
        %v3841 = vld [vmem:[%s803 + $0x4] sm:$0xf]
        %v3842 = vld [vmem:[%s803 + $0x8] sm:$0xf]
        %v3843 = vld [vmem:[%s803 + $0xc] sm:$0xf]
        %v3844 = vld [vmem:[%s803 + $0x10] sm:$0xf]
        %v3845 = vld [vmem:[%s803 + $0x14] sm:$0xf]
        %v3846 = vld [vmem:[%s803 + $0x18] sm:$0xf]
        %v3847 = vld [vmem:[%s803 + $0x1c] sm:$0xf]
        %v3848 = vld [vmem:[%s803 + $0x20] sm:$0xf]
        %v3849 = vld [vmem:[%s803 + $0x24] sm:$0xf]
        %v3850 = vld [vmem:[%s803 + $0x28] sm:$0xf]
        %v3851 = vld [vmem:[%s803 + $0x2c] sm:$0xf]
        %v3852 = vld [vmem:[%s803 + $0x30] sm:$0xf]
        %v3853 = vld [vmem:[%s803 + $0x34] sm:$0xf]
        %v3854 = vld [vmem:[%s803 + $0x38] sm:$0xf]
        %v3855 = vld [vmem:[%s803 + $0x3c] sm:$0xf]
        %v3856 = vld [vmem:[%s806] sm:$0x1]
        %v3858 = vperm.slane %v3856, 0
        %v3876 = vunpack.c.l.b16 %v3840
        %v3877 = vunpack.c.l.b16 %v3841
        %v3878 = vunpack.c.l.b16 %v3842
        %v3879 = vunpack.c.l.b16 %v3843
        %v3880 = vunpack.c.l.b16 %v3844
        %v3881 = vunpack.c.l.b16 %v3845
        %v3882 = vunpack.c.l.b16 %v3846
        %v3883 = vunpack.c.l.b16 %v3847
        %v3884 = vunpack.c.l.b16 %v3848
        %v3885 = vunpack.c.l.b16 %v3849
        %v3886 = vunpack.c.l.b16 %v3850
        %v3887 = vunpack.c.l.b16 %v3851
        %v3888 = vunpack.c.l.b16 %v3852
        %v3889 = vunpack.c.l.b16 %v3853
        %v3890 = vunpack.c.l.b16 %v3854
        %v3891 = vunpack.c.l.b16 %v3855
        %v3892 = vpack.c.b16 %v3877, %v3876
        %v3893 = vpack.c.b16 %v3879, %v3878
        %v3894 = vpack.c.b16 %v3881, %v3880
        %v3895 = vpack.c.b16 %v3883, %v3882
        %v3896 = vpack.c.b16 %v3885, %v3884
        %v3897 = vpack.c.b16 %v3887, %v3886
        %v3898 = vpack.c.b16 %v3889, %v3888
        %v3899 = vpack.c.b16 %v3891, %v3890
        %3908 = vmatpush.bf16.msra.mxu0 %v3899
        %3909 = vmatpush.bf16.msra.mxu0 %v3898
        %3910 = vmatpush.bf16.msra.mxu0 %v3897
        %3911 = vmatpush.bf16.msra.mxu0 %v3896
        %3912 = vmatpush.bf16.msra.mxu0 %v3895
        %3913 = vmatpush.bf16.msra.mxu0 %v3894
        %3914 = vmatpush.bf16.msra.mxu0 %v3893
        %3915 = vmatpush.bf16.msra.mxu0 %v3892
        %3916 = vmatmul.bf16.gmra.mxu0 %v3836
        %v3917 = vpop.f32.mrf.mxu0
        %v3918 = vadd.f32 %v3858, %v3917
        %v3919 = vpop.f32.mrf.mxu0
        %v3920 = vadd.f32 %v3858, %v3919
        %3921 = vmatmul.bf16.gmra.mxu0 %v3837
        %v3922 = vpop.f32.mrf.mxu0
        %v3923 = vadd.f32 %v3858, %v3922
        %v3924 = vpop.f32.mrf.mxu0
        %v3925 = vadd.f32 %v3858, %v3924
        %3926 = vmatmul.bf16.gmra.mxu0 %v3838
        %v3927 = vpop.f32.mrf.mxu0
        %v3928 = vadd.f32 %v3858, %v3927
        %v3929 = vpop.f32.mrf.mxu0
        %v3930 = vadd.f32 %v3858, %v3929
        %3931 = vmatmul.bf16.gmra.mxu0 %v3839
        %v3932 = vpop.f32.mrf.mxu0
        %v3933 = vadd.f32 %v3858, %v3932
        %v3934 = vpop.f32.mrf.mxu0
        %v3935 = vadd.f32 %v3858, %v3934
        %3936 = vdwg.mxu0
        %v3937 = vadd.f32 %v3395, %v3918
        %v3938 = vadd.f32 %v3396, %v3920
        %v3939 = vadd.f32 %v3397, %v3923
        %v3940 = vadd.f32 %v3398, %v3925
        %v3941 = vadd.f32 %v3399, %v3928
        %v3942 = vadd.f32 %v3400, %v3930
        %v3943 = vadd.f32 %v3401, %v3933
        %v3944 = vadd.f32 %v3402, %v3935
        %3945 = vst.msk [vmem:[#allocation2] sm:$0xff] %vm1054, %v3937
        %3946 = vst.msk [vmem:[#allocation2 + $0x8] sm:$0xff] %vm1054, %v3938
        %3947 = vst.msk [vmem:[#allocation2 + $0x10] sm:$0xff] %vm1054, %v3939
        %3948 = vst.msk [vmem:[#allocation2 + $0x18] sm:$0xff] %vm1054, %v3940
        %3949 = vst.msk [vmem:[#allocation2 + $0x20] sm:$0xff] %vm1054, %v3941
        %3950 = vst.msk [vmem:[#allocation2 + $0x28] sm:$0xff] %vm1054, %v3942
        %3951 = vst.msk [vmem:[#allocation2 + $0x30] sm:$0xff] %vm1054, %v3943
        %3952 = vst.msk [vmem:[#allocation2 + $0x38] sm:$0xff] %vm1054, %v3944
        %p3953 = scmp.eq.s32.totalorder %s45, 1
        // Predicated region
        $region101: #{clip_backbone_forward.4} parent=95 // pred_check
          %p3954 = pneg %p3953
        $region102: #{clip_backbone_forward.4} parent=95 // pred_check_branch
          %3956 = sbr.rel (%p3954) target = $region104
        $region103: #{clip_backbone_forward.4} parent=95 // pred_region
          %s3957 = smul.u32 %s44, 8
          %s3958 = sld [smem:[#allocation4 + %s3957]]
          %s3959 = scalar_lea.vmem [#allocation2], %s3958
          %v3960 = vld [vmem:[%s3959] sm:$0x1]
          %s3961 = sadd.s32 %s3957, 1
          %s3962 = sld [smem:[#allocation4 + %s3961]]
          %s3963 = sadd.s32 %s3962, 8
          %s3964 = scalar_lea.vmem [#allocation2], %s3963
          %v3965 = vld [vmem:[%s3964] sm:$0x1]
          %s3966 = sadd.s32 %s3957, 2
          %s3967 = sld [smem:[#allocation4 + %s3966]]
          %s3968 = sadd.s32 %s3967, 16
          %s3969 = scalar_lea.vmem [#allocation2], %s3968
          %v3970 = vld [vmem:[%s3969] sm:$0x1]
          %s3971 = sadd.s32 %s3957, 3
          %s3972 = sld [smem:[#allocation4 + %s3971]]
          %s3973 = sadd.s32 %s3972, 24
          %s3974 = scalar_lea.vmem [#allocation2], %s3973
          %v3975 = vld [vmem:[%s3974] sm:$0x1]
          %s3976 = sadd.s32 %s3957, 4
          %s3977 = sld [smem:[#allocation4 + %s3976]]
          %s3978 = sadd.s32 %s3977, 32
          %s3979 = scalar_lea.vmem [#allocation2], %s3978
          %v3980 = vld [vmem:[%s3979] sm:$0x1]
          %s3981 = sadd.s32 %s3957, 5
          %s3982 = sld [smem:[#allocation4 + %s3981]]
          %s3983 = sadd.s32 %s3982, 40
          %s3984 = scalar_lea.vmem [#allocation2], %s3983
          %v3985 = vld [vmem:[%s3984] sm:$0x1]
          %s3986 = sadd.s32 %s3957, 6
          %s3987 = sld [smem:[#allocation4 + %s3986]]
          %s3988 = sadd.s32 %s3987, 48
          %s3989 = scalar_lea.vmem [#allocation2], %s3988
          %v3990 = vld [vmem:[%s3989] sm:$0x1]
          %s3991 = sadd.s32 %s3957, 7
          %s3992 = sld [smem:[#allocation4 + %s3991]]
          %s3993 = sadd.s32 %s3992, 56
          %s3994 = scalar_lea.vmem [#allocation2], %s3993
          %v3995 = vld [vmem:[%s3994] sm:$0x1]
          %v3997 = vrot.slane %v3965, 7
          %v4000 = vrot.slane %v3970, 6
          %v4003 = vrot.slane %v3975, 5
          %v4006 = vrot.slane %v3980, 4
          %v4009 = vrot.slane %v3985, 3
          %v4012 = vrot.slane %v3990, 2
          %v4015 = vrot.slane %v3995, 1
          %vm4017 = vcmask 1040384
          %v4018 = vsel %vm4017, %v3960, %v3997
          %vm4019 = vcmask 1041408
          %v4020 = vsel %vm4019, %v4018, %v4000
          %vm4021 = vcmask 1042432
          %v4022 = vsel %vm4021, %v4020, %v4003
          %v4023 = vsel %vm1644, %v4022, %v4006
          %vm4024 = vcmask 1044480
          %v4025 = vsel %vm4024, %v4023, %v4009
          %vm4026 = vcmask 1045504
          %v4027 = vsel %vm4026, %v4025, %v4012
          %vm4028 = vcmask 1046528
          %v4029 = vsel %vm4028, %v4027, %v4015
          %v4030 = vld [vmem:[%s17] sm:$0x1]
          %v4031 = vld [vmem:[%s18] sm:$0x1]
          %v4032 = vsel %vm1054, %v4029, 0.0
          %4033 = vadd.xlane.f32.xlu0 %v4032
          %v4034 = vpop.xlane.xlu0 %4033
          %v4035 = vmul.f32 %v4034, %v1085
          %v4036 = vsub.f32 %v4029, %v4035
          %v4037 = vmul.f32 %v4036, %v4036
          %v4038 = vsel %vm1054, %v4037, 0.0
          %4039 = vadd.xlane.f32.xlu0 %v4038
          %v4040 = vpop.xlane.xlu0 %4039
          %v4041 = vmul.f32 %v4040, %v1085
          %v4042 = vadd.f32 %v4041, 1e-05
          %v4043 = vrsqrt.pop %v4042
          %v4044 = vmul.f32 %v4043, %v4042
          %v4045 = vmul.f32 %v4044, %v4043
          %v4046 = vmul.f32 0.5, %v4045
          %v4047 = vsub.f32 1.5, %v4046
          %v4048 = vmul.f32 %v4043, %v4047
          %vm4049 = vweird.f32 %v4042
          %vm4050 = vweird.f32 %v4043
          %vm4051 = vmor %vm4049, %vm4050
          %v4052 = vsel %vm4051, %v4043, %v4048
          %v4053 = vmul.f32 %v4036, %v4052
          %v4055 = vperm.slane %v4030, 0
          %v4057 = vmul.f32 %v4053, %v4055
          %v4059 = vperm.slane %v4031, 0
          %v4061 = vadd.f32 %v4057, %v4059
          %v4062 = vpack.c.bf16 %v4061, %v4061
          %v4063 = vld [vmem:[%s19] sm:$0xf]
          %v4064 = vld [vmem:[%s19 + $0x4] sm:$0xf]
          %v4065 = vld [vmem:[%s19 + $0x8] sm:$0xf]
          %v4066 = vld [vmem:[%s19 + $0xc] sm:$0xf]
          %v4071 = vunpack.c.l.b16 %v4063
          %v4072 = vunpack.c.l.b16 %v4064
          %v4073 = vunpack.c.l.b16 %v4065
          %v4074 = vunpack.c.l.b16 %v4066
          %v4075 = vpack.c.b16 %v4072, %v4071
          %v4076 = vpack.c.b16 %v4074, %v4073
          %v4080 = vsel %vm1054, %v4062, 0
          %4082 = vmatpush.bf16.msra.mxu0 0
          %4083 = vmatpush.bf16.msra.mxu0 0
          %4084 = vmatpush.bf16.msra.mxu0 0
          %4085 = vmatpush.bf16.msra.mxu0 0
          %4086 = vmatpush.bf16.msra.mxu0 0
          %4087 = vmatpush.bf16.msra.mxu0 0
          %4088 = vmatpush.bf16.msra.mxu0 %v4076
          %4089 = vmatpush.bf16.msra.mxu0 %v4075
          %4090 = vmatmul.bf16.gmra.mxu0 %v4080
          %v4091 = vpop.f32.mrf.mxu0
          %v4092 = vadd.f32 0.0, %v4091
          %v4093 = vpop.f32.mrf.mxu0
          %4094 = vdwg.mxu0
          %4095 = vst.msk [vmem:[#allocation5] sm:$0xff] %vm3304, %v4092
        $region104: #{clip_backbone_forward.4} parent=95 // pred_fallthru
          _
        // Predicated region
        $region105: #{clip_backbone_forward.4} parent=95 // pred_check
          %p4096 = pneg %p534
        $region106: #{clip_backbone_forward.4} parent=95 // pred_check_branch
          %4098 = sbr.rel (%p4096) target = $region108
        $region107: #{clip_backbone_forward.4} parent=95 // pred_region
          %4100 = vsyncadd [#allocation6], 0
          %s4101 = smul.addr %s44, 8
          %s4102 = scalar_lea.hbm %s20, %s4101
          %s4104 = sshll.u32 [#allocation5], 4
          %s4105 = int_to_ptr.vmem [resolvable:$true] %s4104
          %s4106 = sshll.u32 %s4102, 4
          %s4107 = int_to_ptr.hbm [resolvable:$true] %s4106
          %4109 = dma.vmem_to_hbm [thread:$0]  %s4105, 128, %s4107, [#allocation6]
        $region108: #{clip_backbone_forward.4} parent=95 // pred_fallthru
          _
        // Predicated region
        $region109: #{clip_backbone_forward.4} parent=95 // pred_check
          %p4110 = pneg %p534
        $region110: #{clip_backbone_forward.4} parent=95 // pred_check_branch
          %4112 = sbr.rel (%p4110) target = $region112
        $region111: #{clip_backbone_forward.4} parent=95 // pred_region
          %4114 = dma.done [#allocation6], 128
        $region112: #{clip_backbone_forward.4} parent=95 // pred_fallthru
          _
      $region96: #{clip_backbone_forward.4} parent=5 // pred_fallthru
        _
      %p4115 = scmp.le.s32.totalorder 2, %s35
      // Predicated region
      $region113: #{clip_backbone_forward.4} parent=5 // pred_check
        %p4116 = pneg %p4115
      $region114: #{clip_backbone_forward.4} parent=5 // pred_check_branch
        %4118 = sbr.rel (%p4116) target = $region116
      $region115: #{clip_backbone_forward.4} parent=5 // pred_region
        %s4119 = ssub.s32 %s35, 2
      $region116: #{clip_backbone_forward.4} parent=5 // pred_fallthru
        _
    $region6: #{clip_backbone_forward.4} parent=1 // loop_footer
      %s39 = sadd.s32 1, %s35
    $region7: #{clip_backbone_forward.4} parent=1 // loop_footer_branch
      %34 = sbr.rel target = $region3
    $region8: #{clip_backbone_forward.4} parent=1 // loop_exit
      _
    %4120 = vsyncpa [#allocation6], 1
    %s4121 = scalar_lea.sflag [#allocation6], 1
    %4122 = vsyncpa %s4121, 1

</llo_original>
